<compile_context>
chip_gen: v6e
topology: v6e:2x2x1
jax: 0.10.0
libtpu: 0.0.40
codegen_flags: <defaults>
</compile_context>

<pallas_src>
import math

import jax
import jax.numpy as jnp
from jax.experimental import pallas as pl
from jax.experimental.pallas import tpu as pltpu

# ----------------------- config (small, synthetic) -----------------------
N_VOCAB = 50
EMBED = 32
GRU_LEN = 16                     # hidden size per direction
INPUT_DIM_CAPSULE = 2 * GRU_LEN
NUM_CAPSULE = 4
DIM_CAPSULE = 8
ROUTINGS = 3
T_EPSILON = 1e-7
NUM_CLASSES = 2
BATCH = 2
SEQ_LEN = 8

HI = jax.lax.Precision.HIGHEST   # f32-accurate MXU passes (kernel + reference)


# ============================ fused Pallas kernel ============================
def fused_kernel(tok_ref, emb_ref,
                 wih_f_ref, whh_f_ref, b_f_ref,
                 wih_b_ref, whh_b_ref, b_b_ref,
                 wcaps_ref, wfc_ref, bfc_ref,
                 out_ref):
    H = GRU_LEN
    T = BATCH        # batch_first=False: dim 0 of the [B, L, E] input is GRU "time"
    N = SEQ_LEN      # ... and dim 1 is the GRU "batch"

    # ---- 1) in-kernel embedding gather: one-hot(ids) @ table (exact at HIGHEST) ----
    ids = tok_ref[...]                                                  # [T*N, 1] int32
    vocab = jax.lax.broadcasted_iota(jnp.int32, (T * N, N_VOCAB), 1)
    onehot = (vocab == ids).astype(jnp.float32)                         # [T*N, V]
    x_all = jnp.dot(onehot, emb_ref[...], precision=HI,
                    preferred_element_type=jnp.float32)                 # [T*N, E]
    x_steps = [x_all[t * N:(t + 1) * N, :] for t in range(T)]           # T x [N, E]

    # ---- 2) bidirectional GRU, fully unrolled, fused r|z|n gate matmuls ----
    def gru_cell(x_t, h, wih_ref, whh_ref, b_ref):
        gi = jnp.dot(x_t, wih_ref[...], precision=HI,
                     preferred_element_type=jnp.float32) + b_ref[0:1, :]
        gh = jnp.dot(h, whh_ref[...], precision=HI,
                     preferred_element_type=jnp.float32) + b_ref[1:2, :]
        r = jax.nn.sigmoid(gi[:, 0:H] + gh[:, 0:H])
        z = jax.nn.sigmoid(gi[:, H:2 * H] + gh[:, H:2 * H])
        n = jnp.tanh(gi[:, 2 * H:3 * H] + r * gh[:, 2 * H:3 * H])
        return (1.0 - z) * n + z * h

    h = jnp.zeros((N, H), jnp.float32)
    hf = [None] * T
    for t in range(T):                                # forward in time
        h = gru_cell(x_steps[t], h, wih_f_ref, whh_f_ref, b_f_ref)
        hf[t] = h

    h = jnp.zeros((N, H), jnp.float32)
    hb = [None] * T
    for t in range(T - 1, -1, -1):                    # reverse in time (no flips)
        h = gru_cell(x_steps[t], h, wih_b_ref, whh_b_ref, b_b_ref)
        hb[t] = h

    # capsule input [T*N, 2H] = (fwd || bwd), assembled in-register
    x2d = jnp.concatenate([jnp.concatenate(hf, axis=0),
                           jnp.concatenate(hb, axis=0)], axis=1)

    # ---- 3) u_hat: one small MXU dot per capsule ([NC, Din, DC] weight layout) ----
    u = [[None] * NUM_CAPSULE for _ in range(T)]      # u[b][j] : [L, DC]
    for j in range(NUM_CAPSULE):
        uj = jnp.dot(x2d, wcaps_ref[j], precision=HI,
                     preferred_element_type=jnp.float32)                # [T*N, DC]
        for b in range(T):
            u[b][j] = uj[b * N:(b + 1) * N, :]

    # ---- 4) dynamic routing entirely on VPU/XLU (no 1-row matmuls) ----
    v = [[None] * NUM_CAPSULE for _ in range(T)]
    for b in range(T):
        b_log = [jnp.zeros((N, 1), jnp.float32) for _ in range(NUM_CAPSULE)]
        for it in range(ROUTINGS):
            # softmax over the capsule axis (held as a Python list)
            bmax = b_log[0]
            for j in range(1, NUM_CAPSULE):
                bmax = jnp.maximum(bmax, b_log[j])
            e = [jnp.exp(b_log[j] - bmax) for j in range(NUM_CAPSULE)]
            esum = e[0]
            for j in range(1, NUM_CAPSULE):
                esum = esum + e[j]
            for j in range(NUM_CAPSULE):
                cj = e[j] / esum                                         # [L, 1]
                sj = jnp.sum(cj * u[b][j], axis=0, keepdims=True)        # [1, DC]
                ssq = jnp.sum(sj * sj, axis=1, keepdims=True)            # [1, 1]
                v[b][j] = sj * jax.lax.rsqrt(ssq + T_EPSILON)            # squash
            if it < ROUTINGS - 1:
                for j in range(NUM_CAPSULE):
                    b_log[j] = jnp.sum(v[b][j] * u[b][j], axis=1,
                                       keepdims=True)                    # [L, 1]

    # ---- 5) dense head: one [B, NC*DC] @ [NC*DC, C] dot (dropout p=0 is a no-op) ----
    v_flat = jnp.concatenate(
        [jnp.concatenate(v[b], axis=1) for b in range(T)], axis=0)       # [B, NC*DC]
    out_ref[...] = jnp.dot(v_flat, wfc_ref[...], precision=HI,
                           preferred_element_type=jnp.float32) + bfc_ref[...]


@jax.jit
def model_forward(token_ids, params):
    tok2d = token_ids.reshape(BATCH * SEQ_LEN, 1).astype(jnp.int32)
    wih_f, whh_f, b_f = params["k_gru_f"]
    wih_b, whh_b, b_b = params["k_gru_b"]

    full = lambda *shape: shape  # readability helper for block shapes
    return pl.pallas_call(
        fused_kernel,
        out_shape=jax.ShapeDtypeStruct((BATCH, NUM_CLASSES), jnp.float32),
        grid_spec=pltpu.PrefetchScalarGridSpec(
            num_scalar_prefetch=0,
            grid=(1,),
            in_specs=[
                pl.BlockSpec(full(BATCH * SEQ_LEN, 1), lambda i: (0, 0)),
                pl.BlockSpec(full(N_VOCAB, EMBED), lambda i: (0, 0)),
                pl.BlockSpec(full(EMBED, 3 * GRU_LEN), lambda i: (0, 0)),
                pl.BlockSpec(full(GRU_LEN, 3 * GRU_LEN), lambda i: (0, 0)),
                pl.BlockSpec(full(2, 3 * GRU_LEN), lambda i: (0, 0)),
                pl.BlockSpec(full(EMBED, 3 * GRU_LEN), lambda i: (0, 0)),
                pl.BlockSpec(full(GRU_LEN, 3 * GRU_LEN), lambda i: (0, 0)),
                pl.BlockSpec(full(2, 3 * GRU_LEN), lambda i: (0, 0)),
                pl.BlockSpec(full(NUM_CAPSULE, INPUT_DIM_CAPSULE, DIM_CAPSULE),
                             lambda i: (0, 0, 0)),
                pl.BlockSpec(full(NUM_CAPSULE * DIM_CAPSULE, NUM_CLASSES),
                             lambda i: (0, 0)),
                pl.BlockSpec(full(1, NUM_CLASSES), lambda i: (0, 0)),
            ],
            out_specs=pl.BlockSpec(full(BATCH, NUM_CLASSES), lambda i: (0, 0)),
        ),
        compiler_params=pltpu.CompilerParams(dimension_semantics=("arbitrary",)),
    )(tok2d, params["emb"], wih_f, whh_f, b_f, wih_b, whh_b, b_b,
      params["k_w_caps"], params["k_w_fc"], params["k_b_fc"])


# ============================== pure-JAX reference ==============================
def _mm(a, b):
    return jnp.dot(a, b, precision=HI, preferred_element_type=jnp.float32)


def gru_direction_ref(x, w_ih, w_hh, b_ih, b_hh, reverse=False):
    T, N, _ = x.shape
    H = GRU_LEN
    h = jnp.zeros((N, H), jnp.float32)
    outs = [None] * T
    order = range(T - 1, -1, -1) if reverse else range(T)
    for t in order:
        gi = _mm(x[t], w_ih.T) + b_ih
        gh = _mm(h, w_hh.T) + b_hh
        r = jax.nn.sigmoid(gi[:, :H] + gh[:, :H])
        z = jax.nn.sigmoid(gi[:, H:2 * H] + gh[:, H:2 * H])
        n = jnp.tanh(gi[:, 2 * H:] + r * gh[:, 2 * H:])
        h = (1.0 - z) * n + z * h
        outs[t] = h
    return jnp.stack(outs, axis=0)


def model_forward_ref(token_ids, params):
    emb = params["emb"][token_ids]                                       # [B, L, E]
    hf = gru_direction_ref(emb, *params["gru_f"])
    hb = gru_direction_ref(emb, *params["gru_b"], reverse=True)
    x = jnp.concatenate([hf, hb], axis=-1)                               # [B, L, 2H]

    B, L, _ = x.shape
    u = _mm(x.reshape(B * L, -1), params["w_caps"])
    u = u.reshape(B, L, NUM_CAPSULE, DIM_CAPSULE).transpose(0, 2, 1, 3)  # [B, NC, L, DC]
    b = jnp.zeros((B, NUM_CAPSULE, L), jnp.float32)
    for r in range(ROUTINGS):
        c = jax.nn.softmax(b, axis=1)
        v = jnp.einsum("bji,bjik->bjk", c, u, precision=HI)
        s = jnp.sum(v * v, axis=-1, keepdims=True)
        v = v / jnp.sqrt(s + T_EPSILON)
        if r < ROUTINGS - 1:
            b = jnp.einsum("bjk,bjik->bji", v, u, precision=HI)
    logits = _mm(v.reshape(B, -1), params["w_fc"].T) + params["b_fc"]
    return logits


# ================================ param init ================================
def xavier_uniform(key, shape):
    fan_out, fan_in = shape[0], shape[1]
    bound = math.sqrt(6.0 / (fan_in + fan_out))
    return jax.random.uniform(key, shape, jnp.float32, -bound, bound)


def make_params(key):
    keys = jax.random.split(key, 8)

    emb = jax.random.normal(keys[0], (N_VOCAB, EMBED), jnp.float32)
    emb = emb.at[N_VOCAB - 1].set(0.0)                                   # padding_idx

    def gru_dir(k1, k2):
        w_ih = xavier_uniform(k1, (3 * GRU_LEN, EMBED))                  # [3H, E] (r|z|n)
        w_hh = xavier_uniform(k2, (3 * GRU_LEN, GRU_LEN))                # [3H, H]
        b_ih = jnp.zeros((3 * GRU_LEN,), jnp.float32)                    # init_weights zeros
        b_hh = jnp.zeros((3 * GRU_LEN,), jnp.float32)
        return (w_ih, w_hh, b_ih, b_hh)

    gru_f = gru_dir(keys[1], keys[2])
    gru_b = gru_dir(keys[3], keys[4])

    din = INPUT_DIM_CAPSULE
    std = math.sqrt(2.0 / (din + NUM_CAPSULE * DIM_CAPSULE))             # xavier_normal
    w_caps = std * jax.random.normal(keys[5], (din, NUM_CAPSULE * DIM_CAPSULE),
                                     jnp.float32)

    fan_in = NUM_CAPSULE * DIM_CAPSULE
    bound = 1.0 / math.sqrt(fan_in)
    w_fc = jax.random.uniform(keys[6], (NUM_CLASSES, fan_in), jnp.float32, -bound, bound)
    b_fc = jax.random.uniform(keys[7], (NUM_CLASSES,), jnp.float32, -bound, bound)

    # ---- kernel-friendly layouts (derived once, host/XLA-side) ----
    def pack_dir(w_ih, w_hh, b_ih, b_hh):
        # fused-gate layout: [E, 3H], [H, 3H], biases stacked [2, 3H] (row0=ih, row1=hh)
        return (w_ih.T, w_hh.T, jnp.stack([b_ih, b_hh], axis=0))

    return {
        # reference layouts
        "emb": emb, "gru_f": gru_f, "gru_b": gru_b,
        "w_caps": w_caps, "w_fc": w_fc, "b_fc": b_fc,
        # kernel layouts
        "k_gru_f": pack_dir(*gru_f),
        "k_gru_b": pack_dir(*gru_b),
        "k_w_caps": jnp.transpose(
            w_caps.reshape(din, NUM_CAPSULE, DIM_CAPSULE), (1, 0, 2)),   # [NC, Din, DC]
        "k_w_fc": w_fc.T,                                                # [NC*DC, C]
        "k_b_fc": b_fc.reshape(1, NUM_CLASSES),
    }


# ================================== main ==================================
if __name__ == "__main__":
    key = jax.random.PRNGKey(0)
    pkey, ikey = jax.random.split(key)
    params = make_params(pkey)

    token_ids = jax.random.randint(ikey, (BATCH, SEQ_LEN), 0, N_VOCAB, dtype=jnp.int32)

    logits = model_forward(token_ids, params)
    logits = jax.block_until_ready(logits)

    ref = model_forward_ref(token_ids, params)
    assert logits.shape == (BATCH, NUM_CLASSES), logits.shape
    assert bool(jnp.all(jnp.isfinite(logits)))
    assert jnp.allclose(logits, ref, atol=1e-3, rtol=1e-3), (logits, ref)

    print("KERNEL_OK")
</pallas_src>

<mosaic_0001>
module attributes {stable_mosaic.version = 11 : i64} {
  func.func @fused_kernel(%arg0: i32, %arg1: memref<16x1xi32, #tpu.memory_space<vmem>>, %arg2: memref<50x32xf32, #tpu.memory_space<vmem>>, %arg3: memref<32x48xf32, #tpu.memory_space<vmem>>, %arg4: memref<16x48xf32, #tpu.memory_space<vmem>>, %arg5: memref<2x48xf32, #tpu.memory_space<vmem>>, %arg6: memref<32x48xf32, #tpu.memory_space<vmem>>, %arg7: memref<16x48xf32, #tpu.memory_space<vmem>>, %arg8: memref<2x48xf32, #tpu.memory_space<vmem>>, %arg9: memref<4x32x8xf32, #tpu.memory_space<vmem>>, %arg10: memref<32x2xf32, #tpu.memory_space<vmem>>, %arg11: memref<1x2xf32, #tpu.memory_space<vmem>>, %arg12: memref<2x2xf32, #tpu.memory_space<vmem>>) attributes {dimension_semantics = [#tpu.dimension_semantics<arbitrary>], iteration_bounds = array<i64: 1>, scalar_prefetch = 0 : i64, scratch_operands = 0 : i64, tpu.core_type = #tpu.core_type<tc>, window_params = [{pipeline_mode = #tpu.pipeline_mode<synchronous>, transform_indices = @transform_0, window_bounds = array<i64: 16, 1>}, {pipeline_mode = #tpu.pipeline_mode<synchronous>, transform_indices = @transform_1, window_bounds = array<i64: 50, 32>}, {pipeline_mode = #tpu.pipeline_mode<synchronous>, transform_indices = @transform_2, window_bounds = array<i64: 32, 48>}, {pipeline_mode = #tpu.pipeline_mode<synchronous>, transform_indices = @transform_3, window_bounds = array<i64: 16, 48>}, {pipeline_mode = #tpu.pipeline_mode<synchronous>, transform_indices = @transform_4, window_bounds = array<i64: 2, 48>}, {pipeline_mode = #tpu.pipeline_mode<synchronous>, transform_indices = @transform_5, window_bounds = array<i64: 32, 48>}, {pipeline_mode = #tpu.pipeline_mode<synchronous>, transform_indices = @transform_6, window_bounds = array<i64: 16, 48>}, {pipeline_mode = #tpu.pipeline_mode<synchronous>, transform_indices = @transform_7, window_bounds = array<i64: 2, 48>}, {pipeline_mode = #tpu.pipeline_mode<synchronous>, transform_indices = @transform_8, window_bounds = array<i64: 4, 32, 8>}, {pipeline_mode = #tpu.pipeline_mode<synchronous>, transform_indices = @transform_9, window_bounds = array<i64: 32, 2>}, {pipeline_mode = #tpu.pipeline_mode<synchronous>, transform_indices = @transform_10, window_bounds = array<i64: 1, 2>}, {pipeline_mode = #tpu.pipeline_mode<synchronous>, transform_indices = @transform_11, window_bounds = array<i64: 2, 2>}]} {
    %c0 = arith.constant 0 : index
    %c0_0 = arith.constant 0 : index
    %0 = vector.load %arg1[%c0, %c0_0] : memref<16x1xi32, #tpu.memory_space<vmem>>, vector<16x1xi32>
    %1 = tpu.iota {dimensions = array<i32: 1>} : vector<16x50xi32>
    %2 = vector.broadcast %0 : vector<16x1xi32> to vector<16x50xi32>
    %3 = arith.cmpi eq, %1, %2 : vector<16x50xi32>
    %4 = arith.extui %3 : vector<16x50xi1> to vector<16x50xi32>
    %5 = arith.sitofp %4 : vector<16x50xi32> to vector<16x50xf32>
    %c0_1 = arith.constant 0 : index
    %c0_2 = arith.constant 0 : index
    %6 = vector.load %arg2[%c0_1, %c0_2] : memref<50x32xf32, #tpu.memory_space<vmem>>, vector<50x32xf32>
    %cst = arith.constant dense<0.000000e+00> : vector<16x32xf32>
    %7 = tpu.matmul %5, %6, %cst {dimension_numbers = #tpu.dot_dimension_numbers<[1], [0], [0], [1], [0, 0, 1, 1], [], []>, precision = #tpu.contract_precision<fp32>} : vector<16x50xf32>, vector<50x32xf32>, vector<16x32xf32> -> vector<16x32xf32>
    %8 = vector.extract_strided_slice %7 {offsets = [0, 0], sizes = [8, 32], strides = [1, 1]} : vector<16x32xf32> to vector<8x32xf32>
    %9 = vector.extract_strided_slice %7 {offsets = [8, 0], sizes = [8, 32], strides = [1, 1]} : vector<16x32xf32> to vector<8x32xf32>
    %cst_3 = arith.constant 0.000000e+00 : f32
    %10 = vector.broadcast %cst_3 : f32 to vector<8x16xf32>
    %c0_4 = arith.constant 0 : index
    %c0_5 = arith.constant 0 : index
    %11 = vector.load %arg3[%c0_4, %c0_5] : memref<32x48xf32, #tpu.memory_space<vmem>>, vector<32x48xf32>
    %cst_6 = arith.constant dense<0.000000e+00> : vector<8x48xf32>
    %12 = tpu.matmul %8, %11, %cst_6 {dimension_numbers = #tpu.dot_dimension_numbers<[1], [0], [0], [1], [0, 0, 1, 1], [], []>, precision = #tpu.contract_precision<fp32>} : vector<8x32xf32>, vector<32x48xf32>, vector<8x48xf32> -> vector<8x48xf32>
    %c0_7 = arith.constant 0 : index
    %c0_8 = arith.constant 0 : index
    %13 = vector.load %arg5[%c0_7, %c0_8] : memref<2x48xf32, #tpu.memory_space<vmem>>, vector<1x48xf32>
    %14 = vector.broadcast %13 : vector<1x48xf32> to vector<8x48xf32>
    %15 = arith.addf %12, %14 : vector<8x48xf32>
    %c0_9 = arith.constant 0 : index
    %c0_10 = arith.constant 0 : index
    %16 = vector.load %arg4[%c0_9, %c0_10] : memref<16x48xf32, #tpu.memory_space<vmem>>, vector<16x48xf32>
    %cst_11 = arith.constant dense<0.000000e+00> : vector<8x48xf32>
    %17 = tpu.matmul %10, %16, %cst_11 {dimension_numbers = #tpu.dot_dimension_numbers<[1], [0], [0], [1], [0, 0, 1, 1], [], []>, precision = #tpu.contract_precision<fp32>} : vector<8x16xf32>, vector<16x48xf32>, vector<8x48xf32> -> vector<8x48xf32>
    %c1 = arith.constant 1 : index
    %c0_12 = arith.constant 0 : index
    %18 = vector.load %arg5[%c1, %c0_12] : memref<2x48xf32, #tpu.memory_space<vmem>>, vector<1x48xf32>
    %19 = vector.broadcast %18 : vector<1x48xf32> to vector<8x48xf32>
    %20 = arith.addf %17, %19 : vector<8x48xf32>
    %21 = vector.extract_strided_slice %15 {offsets = [0, 0], sizes = [8, 16], strides = [1, 1]} : vector<8x48xf32> to vector<8x16xf32>
    %22 = vector.extract_strided_slice %20 {offsets = [0, 0], sizes = [8, 16], strides = [1, 1]} : vector<8x48xf32> to vector<8x16xf32>
    %23 = arith.addf %21, %22 : vector<8x16xf32>
    %24 = arith.negf %23 : vector<8x16xf32>
    %25 = math.exp %24 : vector<8x16xf32>
    %cst_13 = arith.constant 1.000000e+00 : f32
    %26 = vector.broadcast %cst_13 : f32 to vector<8x16xf32>
    %27 = arith.addf %26, %25 : vector<8x16xf32>
    %28 = arith.divf %26, %27 : vector<8x16xf32>
    %29 = vector.extract_strided_slice %15 {offsets = [0, 16], sizes = [8, 16], strides = [1, 1]} : vector<8x48xf32> to vector<8x16xf32>
    %30 = vector.extract_strided_slice %20 {offsets = [0, 16], sizes = [8, 16], strides = [1, 1]} : vector<8x48xf32> to vector<8x16xf32>
    %31 = arith.addf %29, %30 : vector<8x16xf32>
    %32 = arith.negf %31 : vector<8x16xf32>
    %33 = math.exp %32 : vector<8x16xf32>
    %cst_14 = arith.constant 1.000000e+00 : f32
    %34 = vector.broadcast %cst_14 : f32 to vector<8x16xf32>
    %35 = arith.addf %34, %33 : vector<8x16xf32>
    %36 = arith.divf %34, %35 : vector<8x16xf32>
    %37 = vector.extract_strided_slice %15 {offsets = [0, 32], sizes = [8, 16], strides = [1, 1]} : vector<8x48xf32> to vector<8x16xf32>
    %38 = vector.extract_strided_slice %20 {offsets = [0, 32], sizes = [8, 16], strides = [1, 1]} : vector<8x48xf32> to vector<8x16xf32>
    %39 = arith.mulf %28, %38 : vector<8x16xf32>
    %40 = arith.addf %37, %39 : vector<8x16xf32>
    %41 = math.tanh %40 : vector<8x16xf32>
    %cst_15 = arith.constant 1.000000e+00 : f32
    %42 = vector.broadcast %cst_15 : f32 to vector<8x16xf32>
    %43 = arith.subf %42, %36 : vector<8x16xf32>
    %44 = arith.mulf %43, %41 : vector<8x16xf32>
    %45 = arith.mulf %36, %10 : vector<8x16xf32>
    %46 = arith.addf %44, %45 : vector<8x16xf32>
    %c0_16 = arith.constant 0 : index
    %c0_17 = arith.constant 0 : index
    %47 = vector.load %arg3[%c0_16, %c0_17] : memref<32x48xf32, #tpu.memory_space<vmem>>, vector<32x48xf32>
    %cst_18 = arith.constant dense<0.000000e+00> : vector<8x48xf32>
    %48 = tpu.matmul %9, %47, %cst_18 {dimension_numbers = #tpu.dot_dimension_numbers<[1], [0], [0], [1], [0, 0, 1, 1], [], []>, precision = #tpu.contract_precision<fp32>} : vector<8x32xf32>, vector<32x48xf32>, vector<8x48xf32> -> vector<8x48xf32>
    %c0_19 = arith.constant 0 : index
    %c0_20 = arith.constant 0 : index
    %49 = vector.load %arg5[%c0_19, %c0_20] : memref<2x48xf32, #tpu.memory_space<vmem>>, vector<1x48xf32>
    %50 = vector.broadcast %49 : vector<1x48xf32> to vector<8x48xf32>
    %51 = arith.addf %48, %50 : vector<8x48xf32>
    %c0_21 = arith.constant 0 : index
    %c0_22 = arith.constant 0 : index
    %52 = vector.load %arg4[%c0_21, %c0_22] : memref<16x48xf32, #tpu.memory_space<vmem>>, vector<16x48xf32>
    %cst_23 = arith.constant dense<0.000000e+00> : vector<8x48xf32>
    %53 = tpu.matmul %46, %52, %cst_23 {dimension_numbers = #tpu.dot_dimension_numbers<[1], [0], [0], [1], [0, 0, 1, 1], [], []>, precision = #tpu.contract_precision<fp32>} : vector<8x16xf32>, vector<16x48xf32>, vector<8x48xf32> -> vector<8x48xf32>
    %c1_24 = arith.constant 1 : index
    %c0_25 = arith.constant 0 : index
    %54 = vector.load %arg5[%c1_24, %c0_25] : memref<2x48xf32, #tpu.memory_space<vmem>>, vector<1x48xf32>
    %55 = vector.broadcast %54 : vector<1x48xf32> to vector<8x48xf32>
    %56 = arith.addf %53, %55 : vector<8x48xf32>
    %57 = vector.extract_strided_slice %51 {offsets = [0, 0], sizes = [8, 16], strides = [1, 1]} : vector<8x48xf32> to vector<8x16xf32>
    %58 = vector.extract_strided_slice %56 {offsets = [0, 0], sizes = [8, 16], strides = [1, 1]} : vector<8x48xf32> to vector<8x16xf32>
    %59 = arith.addf %57, %58 : vector<8x16xf32>
    %60 = arith.negf %59 : vector<8x16xf32>
    %61 = math.exp %60 : vector<8x16xf32>
    %cst_26 = arith.constant 1.000000e+00 : f32
    %62 = vector.broadcast %cst_26 : f32 to vector<8x16xf32>
    %63 = arith.addf %62, %61 : vector<8x16xf32>
    %64 = arith.divf %62, %63 : vector<8x16xf32>
    %65 = vector.extract_strided_slice %51 {offsets = [0, 16], sizes = [8, 16], strides = [1, 1]} : vector<8x48xf32> to vector<8x16xf32>
    %66 = vector.extract_strided_slice %56 {offsets = [0, 16], sizes = [8, 16], strides = [1, 1]} : vector<8x48xf32> to vector<8x16xf32>
    %67 = arith.addf %65, %66 : vector<8x16xf32>
    %68 = arith.negf %67 : vector<8x16xf32>
    %69 = math.exp %68 : vector<8x16xf32>
    %cst_27 = arith.constant 1.000000e+00 : f32
    %70 = vector.broadcast %cst_27 : f32 to vector<8x16xf32>
    %71 = arith.addf %70, %69 : vector<8x16xf32>
    %72 = arith.divf %70, %71 : vector<8x16xf32>
    %73 = vector.extract_strided_slice %51 {offsets = [0, 32], sizes = [8, 16], strides = [1, 1]} : vector<8x48xf32> to vector<8x16xf32>
    %74 = vector.extract_strided_slice %56 {offsets = [0, 32], sizes = [8, 16], strides = [1, 1]} : vector<8x48xf32> to vector<8x16xf32>
    %75 = arith.mulf %64, %74 : vector<8x16xf32>
    %76 = arith.addf %73, %75 : vector<8x16xf32>
    %77 = math.tanh %76 : vector<8x16xf32>
    %cst_28 = arith.constant 1.000000e+00 : f32
    %78 = vector.broadcast %cst_28 : f32 to vector<8x16xf32>
    %79 = arith.subf %78, %72 : vector<8x16xf32>
    %80 = arith.mulf %79, %77 : vector<8x16xf32>
    %81 = arith.mulf %72, %46 : vector<8x16xf32>
    %82 = arith.addf %80, %81 : vector<8x16xf32>
    %cst_29 = arith.constant 0.000000e+00 : f32
    %83 = vector.broadcast %cst_29 : f32 to vector<8x16xf32>
    %c0_30 = arith.constant 0 : index
    %c0_31 = arith.constant 0 : index
    %84 = vector.load %arg6[%c0_30, %c0_31] : memref<32x48xf32, #tpu.memory_space<vmem>>, vector<32x48xf32>
    %cst_32 = arith.constant dense<0.000000e+00> : vector<8x48xf32>
    %85 = tpu.matmul %9, %84, %cst_32 {dimension_numbers = #tpu.dot_dimension_numbers<[1], [0], [0], [1], [0, 0, 1, 1], [], []>, precision = #tpu.contract_precision<fp32>} : vector<8x32xf32>, vector<32x48xf32>, vector<8x48xf32> -> vector<8x48xf32>
    %c0_33 = arith.constant 0 : index
    %c0_34 = arith.constant 0 : index
    %86 = vector.load %arg8[%c0_33, %c0_34] : memref<2x48xf32, #tpu.memory_space<vmem>>, vector<1x48xf32>
    %87 = vector.broadcast %86 : vector<1x48xf32> to vector<8x48xf32>
    %88 = arith.addf %85, %87 : vector<8x48xf32>
    %c0_35 = arith.constant 0 : index
    %c0_36 = arith.constant 0 : index
    %89 = vector.load %arg7[%c0_35, %c0_36] : memref<16x48xf32, #tpu.memory_space<vmem>>, vector<16x48xf32>
    %cst_37 = arith.constant dense<0.000000e+00> : vector<8x48xf32>
    %90 = tpu.matmul %83, %89, %cst_37 {dimension_numbers = #tpu.dot_dimension_numbers<[1], [0], [0], [1], [0, 0, 1, 1], [], []>, precision = #tpu.contract_precision<fp32>} : vector<8x16xf32>, vector<16x48xf32>, vector<8x48xf32> -> vector<8x48xf32>
    %c1_38 = arith.constant 1 : index
    %c0_39 = arith.constant 0 : index
    %91 = vector.load %arg8[%c1_38, %c0_39] : memref<2x48xf32, #tpu.memory_space<vmem>>, vector<1x48xf32>
    %92 = vector.broadcast %91 : vector<1x48xf32> to vector<8x48xf32>
    %93 = arith.addf %90, %92 : vector<8x48xf32>
    %94 = vector.extract_strided_slice %88 {offsets = [0, 0], sizes = [8, 16], strides = [1, 1]} : vector<8x48xf32> to vector<8x16xf32>
    %95 = vector.extract_strided_slice %93 {offsets = [0, 0], sizes = [8, 16], strides = [1, 1]} : vector<8x48xf32> to vector<8x16xf32>
    %96 = arith.addf %94, %95 : vector<8x16xf32>
    %97 = arith.negf %96 : vector<8x16xf32>
    %98 = math.exp %97 : vector<8x16xf32>
    %cst_40 = arith.constant 1.000000e+00 : f32
    %99 = vector.broadcast %cst_40 : f32 to vector<8x16xf32>
    %100 = arith.addf %99, %98 : vector<8x16xf32>
    %101 = arith.divf %99, %100 : vector<8x16xf32>
    %102 = vector.extract_strided_slice %88 {offsets = [0, 16], sizes = [8, 16], strides = [1, 1]} : vector<8x48xf32> to vector<8x16xf32>
    %103 = vector.extract_strided_slice %93 {offsets = [0, 16], sizes = [8, 16], strides = [1, 1]} : vector<8x48xf32> to vector<8x16xf32>
    %104 = arith.addf %102, %103 : vector<8x16xf32>
    %105 = arith.negf %104 : vector<8x16xf32>
    %106 = math.exp %105 : vector<8x16xf32>
    %cst_41 = arith.constant 1.000000e+00 : f32
    %107 = vector.broadcast %cst_41 : f32 to vector<8x16xf32>
    %108 = arith.addf %107, %106 : vector<8x16xf32>
    %109 = arith.divf %107, %108 : vector<8x16xf32>
    %110 = vector.extract_strided_slice %88 {offsets = [0, 32], sizes = [8, 16], strides = [1, 1]} : vector<8x48xf32> to vector<8x16xf32>
    %111 = vector.extract_strided_slice %93 {offsets = [0, 32], sizes = [8, 16], strides = [1, 1]} : vector<8x48xf32> to vector<8x16xf32>
    %112 = arith.mulf %101, %111 : vector<8x16xf32>
    %113 = arith.addf %110, %112 : vector<8x16xf32>
    %114 = math.tanh %113 : vector<8x16xf32>
    %cst_42 = arith.constant 1.000000e+00 : f32
    %115 = vector.broadcast %cst_42 : f32 to vector<8x16xf32>
    %116 = arith.subf %115, %109 : vector<8x16xf32>
    %117 = arith.mulf %116, %114 : vector<8x16xf32>
    %118 = arith.mulf %109, %83 : vector<8x16xf32>
    %119 = arith.addf %117, %118 : vector<8x16xf32>
    %c0_43 = arith.constant 0 : index
    %c0_44 = arith.constant 0 : index
    %120 = vector.load %arg6[%c0_43, %c0_44] : memref<32x48xf32, #tpu.memory_space<vmem>>, vector<32x48xf32>
    %cst_45 = arith.constant dense<0.000000e+00> : vector<8x48xf32>
    %121 = tpu.matmul %8, %120, %cst_45 {dimension_numbers = #tpu.dot_dimension_numbers<[1], [0], [0], [1], [0, 0, 1, 1], [], []>, precision = #tpu.contract_precision<fp32>} : vector<8x32xf32>, vector<32x48xf32>, vector<8x48xf32> -> vector<8x48xf32>
    %c0_46 = arith.constant 0 : index
    %c0_47 = arith.constant 0 : index
    %122 = vector.load %arg8[%c0_46, %c0_47] : memref<2x48xf32, #tpu.memory_space<vmem>>, vector<1x48xf32>
    %123 = vector.broadcast %122 : vector<1x48xf32> to vector<8x48xf32>
    %124 = arith.addf %121, %123 : vector<8x48xf32>
    %c0_48 = arith.constant 0 : index
    %c0_49 = arith.constant 0 : index
    %125 = vector.load %arg7[%c0_48, %c0_49] : memref<16x48xf32, #tpu.memory_space<vmem>>, vector<16x48xf32>
    %cst_50 = arith.constant dense<0.000000e+00> : vector<8x48xf32>
    %126 = tpu.matmul %119, %125, %cst_50 {dimension_numbers = #tpu.dot_dimension_numbers<[1], [0], [0], [1], [0, 0, 1, 1], [], []>, precision = #tpu.contract_precision<fp32>} : vector<8x16xf32>, vector<16x48xf32>, vector<8x48xf32> -> vector<8x48xf32>
    %c1_51 = arith.constant 1 : index
    %c0_52 = arith.constant 0 : index
    %127 = vector.load %arg8[%c1_51, %c0_52] : memref<2x48xf32, #tpu.memory_space<vmem>>, vector<1x48xf32>
    %128 = vector.broadcast %127 : vector<1x48xf32> to vector<8x48xf32>
    %129 = arith.addf %126, %128 : vector<8x48xf32>
    %130 = vector.extract_strided_slice %124 {offsets = [0, 0], sizes = [8, 16], strides = [1, 1]} : vector<8x48xf32> to vector<8x16xf32>
    %131 = vector.extract_strided_slice %129 {offsets = [0, 0], sizes = [8, 16], strides = [1, 1]} : vector<8x48xf32> to vector<8x16xf32>
    %132 = arith.addf %130, %131 : vector<8x16xf32>
    %133 = arith.negf %132 : vector<8x16xf32>
    %134 = math.exp %133 : vector<8x16xf32>
    %cst_53 = arith.constant 1.000000e+00 : f32
    %135 = vector.broadcast %cst_53 : f32 to vector<8x16xf32>
    %136 = arith.addf %135, %134 : vector<8x16xf32>
    %137 = arith.divf %135, %136 : vector<8x16xf32>
    %138 = vector.extract_strided_slice %124 {offsets = [0, 16], sizes = [8, 16], strides = [1, 1]} : vector<8x48xf32> to vector<8x16xf32>
    %139 = vector.extract_strided_slice %129 {offsets = [0, 16], sizes = [8, 16], strides = [1, 1]} : vector<8x48xf32> to vector<8x16xf32>
    %140 = arith.addf %138, %139 : vector<8x16xf32>
    %141 = arith.negf %140 : vector<8x16xf32>
    %142 = math.exp %141 : vector<8x16xf32>
    %cst_54 = arith.constant 1.000000e+00 : f32
    %143 = vector.broadcast %cst_54 : f32 to vector<8x16xf32>
    %144 = arith.addf %143, %142 : vector<8x16xf32>
    %145 = arith.divf %143, %144 : vector<8x16xf32>
    %146 = vector.extract_strided_slice %124 {offsets = [0, 32], sizes = [8, 16], strides = [1, 1]} : vector<8x48xf32> to vector<8x16xf32>
    %147 = vector.extract_strided_slice %129 {offsets = [0, 32], sizes = [8, 16], strides = [1, 1]} : vector<8x48xf32> to vector<8x16xf32>
    %148 = arith.mulf %137, %147 : vector<8x16xf32>
    %149 = arith.addf %146, %148 : vector<8x16xf32>
    %150 = math.tanh %149 : vector<8x16xf32>
    %cst_55 = arith.constant 1.000000e+00 : f32
    %151 = vector.broadcast %cst_55 : f32 to vector<8x16xf32>
    %152 = arith.subf %151, %145 : vector<8x16xf32>
    %153 = arith.mulf %152, %150 : vector<8x16xf32>
    %154 = arith.mulf %145, %119 : vector<8x16xf32>
    %155 = arith.addf %153, %154 : vector<8x16xf32>
    %156 = tpu.concatenate %46, %82 in 0 : vector<8x16xf32>, vector<8x16xf32> -> vector<16x16xf32>
    %157 = tpu.concatenate %155, %119 in 0 : vector<8x16xf32>, vector<8x16xf32> -> vector<16x16xf32>
    %158 = tpu.concatenate %156, %157 in 1 : vector<16x16xf32>, vector<16x16xf32> -> vector<16x32xf32>
    %c0_56 = arith.constant 0 : index
    %c0_57 = arith.constant 0 : index
    %c0_58 = arith.constant 0 : index
    %159 = vector.load %arg9[%c0_56, %c0_57, %c0_58] : memref<4x32x8xf32, #tpu.memory_space<vmem>>, vector<1x32x8xf32>
    %160 = vector.shape_cast %159 : vector<1x32x8xf32> to vector<32x8xf32>
    %cst_59 = arith.constant dense<0.000000e+00> : vector<16x8xf32>
    %161 = tpu.matmul %158, %160, %cst_59 {dimension_numbers = #tpu.dot_dimension_numbers<[1], [0], [0], [1], [0, 0, 1, 1], [], []>, precision = #tpu.contract_precision<fp32>} : vector<16x32xf32>, vector<32x8xf32>, vector<16x8xf32> -> vector<16x8xf32>
    %162 = vector.extract_strided_slice %161 {offsets = [0, 0], sizes = [8, 8], strides = [1, 1]} : vector<16x8xf32> to vector<8x8xf32>
    %163 = vector.extract_strided_slice %161 {offsets = [8, 0], sizes = [8, 8], strides = [1, 1]} : vector<16x8xf32> to vector<8x8xf32>
    %c1_60 = arith.constant 1 : index
    %c0_61 = arith.constant 0 : index
    %c0_62 = arith.constant 0 : index
    %164 = vector.load %arg9[%c1_60, %c0_61, %c0_62] : memref<4x32x8xf32, #tpu.memory_space<vmem>>, vector<1x32x8xf32>
    %165 = vector.shape_cast %164 : vector<1x32x8xf32> to vector<32x8xf32>
    %cst_63 = arith.constant dense<0.000000e+00> : vector<16x8xf32>
    %166 = tpu.matmul %158, %165, %cst_63 {dimension_numbers = #tpu.dot_dimension_numbers<[1], [0], [0], [1], [0, 0, 1, 1], [], []>, precision = #tpu.contract_precision<fp32>} : vector<16x32xf32>, vector<32x8xf32>, vector<16x8xf32> -> vector<16x8xf32>
    %167 = vector.extract_strided_slice %166 {offsets = [0, 0], sizes = [8, 8], strides = [1, 1]} : vector<16x8xf32> to vector<8x8xf32>
    %168 = vector.extract_strided_slice %166 {offsets = [8, 0], sizes = [8, 8], strides = [1, 1]} : vector<16x8xf32> to vector<8x8xf32>
    %c2 = arith.constant 2 : index
    %c0_64 = arith.constant 0 : index
    %c0_65 = arith.constant 0 : index
    %169 = vector.load %arg9[%c2, %c0_64, %c0_65] : memref<4x32x8xf32, #tpu.memory_space<vmem>>, vector<1x32x8xf32>
    %170 = vector.shape_cast %169 : vector<1x32x8xf32> to vector<32x8xf32>
    %cst_66 = arith.constant dense<0.000000e+00> : vector<16x8xf32>
    %171 = tpu.matmul %158, %170, %cst_66 {dimension_numbers = #tpu.dot_dimension_numbers<[1], [0], [0], [1], [0, 0, 1, 1], [], []>, precision = #tpu.contract_precision<fp32>} : vector<16x32xf32>, vector<32x8xf32>, vector<16x8xf32> -> vector<16x8xf32>
    %172 = vector.extract_strided_slice %171 {offsets = [0, 0], sizes = [8, 8], strides = [1, 1]} : vector<16x8xf32> to vector<8x8xf32>
    %173 = vector.extract_strided_slice %171 {offsets = [8, 0], sizes = [8, 8], strides = [1, 1]} : vector<16x8xf32> to vector<8x8xf32>
    %c3 = arith.constant 3 : index
    %c0_67 = arith.constant 0 : index
    %c0_68 = arith.constant 0 : index
    %174 = vector.load %arg9[%c3, %c0_67, %c0_68] : memref<4x32x8xf32, #tpu.memory_space<vmem>>, vector<1x32x8xf32>
    %175 = vector.shape_cast %174 : vector<1x32x8xf32> to vector<32x8xf32>
    %cst_69 = arith.constant dense<0.000000e+00> : vector<16x8xf32>
    %176 = tpu.matmul %158, %175, %cst_69 {dimension_numbers = #tpu.dot_dimension_numbers<[1], [0], [0], [1], [0, 0, 1, 1], [], []>, precision = #tpu.contract_precision<fp32>} : vector<16x32xf32>, vector<32x8xf32>, vector<16x8xf32> -> vector<16x8xf32>
    %177 = vector.extract_strided_slice %176 {offsets = [0, 0], sizes = [8, 8], strides = [1, 1]} : vector<16x8xf32> to vector<8x8xf32>
    %178 = vector.extract_strided_slice %176 {offsets = [8, 0], sizes = [8, 8], strides = [1, 1]} : vector<16x8xf32> to vector<8x8xf32>
    %cst_70 = arith.constant 0.000000e+00 : f32
    %179 = vector.broadcast %cst_70 : f32 to vector<8x1xf32>
    %cst_71 = arith.constant 0.000000e+00 : f32
    %180 = vector.broadcast %cst_71 : f32 to vector<8x1xf32>
    %cst_72 = arith.constant 0.000000e+00 : f32
    %181 = vector.broadcast %cst_72 : f32 to vector<8x1xf32>
    %cst_73 = arith.constant 0.000000e+00 : f32
    %182 = vector.broadcast %cst_73 : f32 to vector<8x1xf32>
    %183 = arith.maximumf %179, %180 : vector<8x1xf32>
    %184 = arith.maximumf %183, %181 : vector<8x1xf32>
    %185 = arith.maximumf %184, %182 : vector<8x1xf32>
    %186 = arith.subf %179, %185 : vector<8x1xf32>
    %187 = math.exp %186 : vector<8x1xf32>
    %188 = arith.subf %180, %185 : vector<8x1xf32>
    %189 = math.exp %188 : vector<8x1xf32>
    %190 = arith.subf %181, %185 : vector<8x1xf32>
    %191 = math.exp %190 : vector<8x1xf32>
    %192 = arith.subf %182, %185 : vector<8x1xf32>
    %193 = math.exp %192 : vector<8x1xf32>
    %194 = arith.addf %187, %189 : vector<8x1xf32>
    %195 = arith.addf %194, %191 : vector<8x1xf32>
    %196 = arith.addf %195, %193 : vector<8x1xf32>
    %197 = arith.divf %187, %196 : vector<8x1xf32>
    %198 = vector.broadcast %197 : vector<8x1xf32> to vector<8x8xf32>
    %199 = arith.mulf %198, %162 : vector<8x8xf32>
    %cst_74 = arith.constant dense<0.000000e+00> : vector<8xf32>
    %200 = vector.multi_reduction <add>, %199, %cst_74 [0] : vector<8x8xf32> to vector<8xf32>
    %201 = vector.shape_cast %200 : vector<8xf32> to vector<1x8xf32>
    %202 = arith.mulf %201, %201 : vector<1x8xf32>
    %cst_75 = arith.constant dense<0.000000e+00> : vector<1xf32>
    %203 = vector.multi_reduction <add>, %202, %cst_75 [1] : vector<1x8xf32> to vector<1xf32>
    %204 = vector.shape_cast %203 : vector<1xf32> to vector<1x1xf32>
    %cst_76 = arith.constant 1.000000e-07 : f32
    %205 = vector.broadcast %cst_76 : f32 to vector<1x1xf32>
    %206 = arith.addf %204, %205 : vector<1x1xf32>
    %207 = math.rsqrt %206 : vector<1x1xf32>
    %208 = vector.broadcast %207 : vector<1x1xf32> to vector<1x8xf32>
    %209 = arith.mulf %201, %208 : vector<1x8xf32>
    %210 = arith.divf %189, %196 : vector<8x1xf32>
    %211 = vector.broadcast %210 : vector<8x1xf32> to vector<8x8xf32>
    %212 = arith.mulf %211, %167 : vector<8x8xf32>
    %cst_77 = arith.constant dense<0.000000e+00> : vector<8xf32>
    %213 = vector.multi_reduction <add>, %212, %cst_77 [0] : vector<8x8xf32> to vector<8xf32>
    %214 = vector.shape_cast %213 : vector<8xf32> to vector<1x8xf32>
    %215 = arith.mulf %214, %214 : vector<1x8xf32>
    %cst_78 = arith.constant dense<0.000000e+00> : vector<1xf32>
    %216 = vector.multi_reduction <add>, %215, %cst_78 [1] : vector<1x8xf32> to vector<1xf32>
    %217 = vector.shape_cast %216 : vector<1xf32> to vector<1x1xf32>
    %cst_79 = arith.constant 1.000000e-07 : f32
    %218 = vector.broadcast %cst_79 : f32 to vector<1x1xf32>
    %219 = arith.addf %217, %218 : vector<1x1xf32>
    %220 = math.rsqrt %219 : vector<1x1xf32>
    %221 = vector.broadcast %220 : vector<1x1xf32> to vector<1x8xf32>
    %222 = arith.mulf %214, %221 : vector<1x8xf32>
    %223 = arith.divf %191, %196 : vector<8x1xf32>
    %224 = vector.broadcast %223 : vector<8x1xf32> to vector<8x8xf32>
    %225 = arith.mulf %224, %172 : vector<8x8xf32>
    %cst_80 = arith.constant dense<0.000000e+00> : vector<8xf32>
    %226 = vector.multi_reduction <add>, %225, %cst_80 [0] : vector<8x8xf32> to vector<8xf32>
    %227 = vector.shape_cast %226 : vector<8xf32> to vector<1x8xf32>
    %228 = arith.mulf %227, %227 : vector<1x8xf32>
    %cst_81 = arith.constant dense<0.000000e+00> : vector<1xf32>
    %229 = vector.multi_reduction <add>, %228, %cst_81 [1] : vector<1x8xf32> to vector<1xf32>
    %230 = vector.shape_cast %229 : vector<1xf32> to vector<1x1xf32>
    %cst_82 = arith.constant 1.000000e-07 : f32
    %231 = vector.broadcast %cst_82 : f32 to vector<1x1xf32>
    %232 = arith.addf %230, %231 : vector<1x1xf32>
    %233 = math.rsqrt %232 : vector<1x1xf32>
    %234 = vector.broadcast %233 : vector<1x1xf32> to vector<1x8xf32>
    %235 = arith.mulf %227, %234 : vector<1x8xf32>
    %236 = arith.divf %193, %196 : vector<8x1xf32>
    %237 = vector.broadcast %236 : vector<8x1xf32> to vector<8x8xf32>
    %238 = arith.mulf %237, %177 : vector<8x8xf32>
    %cst_83 = arith.constant dense<0.000000e+00> : vector<8xf32>
    %239 = vector.multi_reduction <add>, %238, %cst_83 [0] : vector<8x8xf32> to vector<8xf32>
    %240 = vector.shape_cast %239 : vector<8xf32> to vector<1x8xf32>
    %241 = arith.mulf %240, %240 : vector<1x8xf32>
    %cst_84 = arith.constant dense<0.000000e+00> : vector<1xf32>
    %242 = vector.multi_reduction <add>, %241, %cst_84 [1] : vector<1x8xf32> to vector<1xf32>
    %243 = vector.shape_cast %242 : vector<1xf32> to vector<1x1xf32>
    %cst_85 = arith.constant 1.000000e-07 : f32
    %244 = vector.broadcast %cst_85 : f32 to vector<1x1xf32>
    %245 = arith.addf %243, %244 : vector<1x1xf32>
    %246 = math.rsqrt %245 : vector<1x1xf32>
    %247 = vector.broadcast %246 : vector<1x1xf32> to vector<1x8xf32>
    %248 = arith.mulf %240, %247 : vector<1x8xf32>
    %249 = vector.broadcast %209 : vector<1x8xf32> to vector<8x8xf32>
    %250 = arith.mulf %249, %162 : vector<8x8xf32>
    %cst_86 = arith.constant dense<0.000000e+00> : vector<8xf32>
    %251 = vector.multi_reduction <add>, %250, %cst_86 [1] : vector<8x8xf32> to vector<8xf32>
    %252 = vector.shape_cast %251 : vector<8xf32> to vector<8x1xf32>
    %253 = vector.broadcast %222 : vector<1x8xf32> to vector<8x8xf32>
    %254 = arith.mulf %253, %167 : vector<8x8xf32>
    %cst_87 = arith.constant dense<0.000000e+00> : vector<8xf32>
    %255 = vector.multi_reduction <add>, %254, %cst_87 [1] : vector<8x8xf32> to vector<8xf32>
    %256 = vector.shape_cast %255 : vector<8xf32> to vector<8x1xf32>
    %257 = vector.broadcast %235 : vector<1x8xf32> to vector<8x8xf32>
    %258 = arith.mulf %257, %172 : vector<8x8xf32>
    %cst_88 = arith.constant dense<0.000000e+00> : vector<8xf32>
    %259 = vector.multi_reduction <add>, %258, %cst_88 [1] : vector<8x8xf32> to vector<8xf32>
    %260 = vector.shape_cast %259 : vector<8xf32> to vector<8x1xf32>
    %261 = vector.broadcast %248 : vector<1x8xf32> to vector<8x8xf32>
    %262 = arith.mulf %261, %177 : vector<8x8xf32>
    %cst_89 = arith.constant dense<0.000000e+00> : vector<8xf32>
    %263 = vector.multi_reduction <add>, %262, %cst_89 [1] : vector<8x8xf32> to vector<8xf32>
    %264 = vector.shape_cast %263 : vector<8xf32> to vector<8x1xf32>
    %265 = arith.maximumf %252, %256 : vector<8x1xf32>
    %266 = arith.maximumf %265, %260 : vector<8x1xf32>
    %267 = arith.maximumf %266, %264 : vector<8x1xf32>
    %268 = arith.subf %252, %267 : vector<8x1xf32>
    %269 = math.exp %268 : vector<8x1xf32>
    %270 = arith.subf %256, %267 : vector<8x1xf32>
    %271 = math.exp %270 : vector<8x1xf32>
    %272 = arith.subf %260, %267 : vector<8x1xf32>
    %273 = math.exp %272 : vector<8x1xf32>
    %274 = arith.subf %264, %267 : vector<8x1xf32>
    %275 = math.exp %274 : vector<8x1xf32>
    %276 = arith.addf %269, %271 : vector<8x1xf32>
    %277 = arith.addf %276, %273 : vector<8x1xf32>
    %278 = arith.addf %277, %275 : vector<8x1xf32>
    %279 = arith.divf %269, %278 : vector<8x1xf32>
    %280 = vector.broadcast %279 : vector<8x1xf32> to vector<8x8xf32>
    %281 = arith.mulf %280, %162 : vector<8x8xf32>
    %cst_90 = arith.constant dense<0.000000e+00> : vector<8xf32>
    %282 = vector.multi_reduction <add>, %281, %cst_90 [0] : vector<8x8xf32> to vector<8xf32>
    %283 = vector.shape_cast %282 : vector<8xf32> to vector<1x8xf32>
    %284 = arith.mulf %283, %283 : vector<1x8xf32>
    %cst_91 = arith.constant dense<0.000000e+00> : vector<1xf32>
    %285 = vector.multi_reduction <add>, %284, %cst_91 [1] : vector<1x8xf32> to vector<1xf32>
    %286 = vector.shape_cast %285 : vector<1xf32> to vector<1x1xf32>
    %cst_92 = arith.constant 1.000000e-07 : f32
    %287 = vector.broadcast %cst_92 : f32 to vector<1x1xf32>
    %288 = arith.addf %286, %287 : vector<1x1xf32>
    %289 = math.rsqrt %288 : vector<1x1xf32>
    %290 = vector.broadcast %289 : vector<1x1xf32> to vector<1x8xf32>
    %291 = arith.mulf %283, %290 : vector<1x8xf32>
    %292 = arith.divf %271, %278 : vector<8x1xf32>
    %293 = vector.broadcast %292 : vector<8x1xf32> to vector<8x8xf32>
    %294 = arith.mulf %293, %167 : vector<8x8xf32>
    %cst_93 = arith.constant dense<0.000000e+00> : vector<8xf32>
    %295 = vector.multi_reduction <add>, %294, %cst_93 [0] : vector<8x8xf32> to vector<8xf32>
    %296 = vector.shape_cast %295 : vector<8xf32> to vector<1x8xf32>
    %297 = arith.mulf %296, %296 : vector<1x8xf32>
    %cst_94 = arith.constant dense<0.000000e+00> : vector<1xf32>
    %298 = vector.multi_reduction <add>, %297, %cst_94 [1] : vector<1x8xf32> to vector<1xf32>
    %299 = vector.shape_cast %298 : vector<1xf32> to vector<1x1xf32>
    %cst_95 = arith.constant 1.000000e-07 : f32
    %300 = vector.broadcast %cst_95 : f32 to vector<1x1xf32>
    %301 = arith.addf %299, %300 : vector<1x1xf32>
    %302 = math.rsqrt %301 : vector<1x1xf32>
    %303 = vector.broadcast %302 : vector<1x1xf32> to vector<1x8xf32>
    %304 = arith.mulf %296, %303 : vector<1x8xf32>
    %305 = arith.divf %273, %278 : vector<8x1xf32>
    %306 = vector.broadcast %305 : vector<8x1xf32> to vector<8x8xf32>
    %307 = arith.mulf %306, %172 : vector<8x8xf32>
    %cst_96 = arith.constant dense<0.000000e+00> : vector<8xf32>
    %308 = vector.multi_reduction <add>, %307, %cst_96 [0] : vector<8x8xf32> to vector<8xf32>
    %309 = vector.shape_cast %308 : vector<8xf32> to vector<1x8xf32>
    %310 = arith.mulf %309, %309 : vector<1x8xf32>
    %cst_97 = arith.constant dense<0.000000e+00> : vector<1xf32>
    %311 = vector.multi_reduction <add>, %310, %cst_97 [1] : vector<1x8xf32> to vector<1xf32>
    %312 = vector.shape_cast %311 : vector<1xf32> to vector<1x1xf32>
    %cst_98 = arith.constant 1.000000e-07 : f32
    %313 = vector.broadcast %cst_98 : f32 to vector<1x1xf32>
    %314 = arith.addf %312, %313 : vector<1x1xf32>
    %315 = math.rsqrt %314 : vector<1x1xf32>
    %316 = vector.broadcast %315 : vector<1x1xf32> to vector<1x8xf32>
    %317 = arith.mulf %309, %316 : vector<1x8xf32>
    %318 = arith.divf %275, %278 : vector<8x1xf32>
    %319 = vector.broadcast %318 : vector<8x1xf32> to vector<8x8xf32>
    %320 = arith.mulf %319, %177 : vector<8x8xf32>
    %cst_99 = arith.constant dense<0.000000e+00> : vector<8xf32>
    %321 = vector.multi_reduction <add>, %320, %cst_99 [0] : vector<8x8xf32> to vector<8xf32>
    %322 = vector.shape_cast %321 : vector<8xf32> to vector<1x8xf32>
    %323 = arith.mulf %322, %322 : vector<1x8xf32>
    %cst_100 = arith.constant dense<0.000000e+00> : vector<1xf32>
    %324 = vector.multi_reduction <add>, %323, %cst_100 [1] : vector<1x8xf32> to vector<1xf32>
    %325 = vector.shape_cast %324 : vector<1xf32> to vector<1x1xf32>
    %cst_101 = arith.constant 1.000000e-07 : f32
    %326 = vector.broadcast %cst_101 : f32 to vector<1x1xf32>
    %327 = arith.addf %325, %326 : vector<1x1xf32>
    %328 = math.rsqrt %327 : vector<1x1xf32>
    %329 = vector.broadcast %328 : vector<1x1xf32> to vector<1x8xf32>
    %330 = arith.mulf %322, %329 : vector<1x8xf32>
    %331 = vector.broadcast %291 : vector<1x8xf32> to vector<8x8xf32>
    %332 = arith.mulf %331, %162 : vector<8x8xf32>
    %cst_102 = arith.constant dense<0.000000e+00> : vector<8xf32>
    %333 = vector.multi_reduction <add>, %332, %cst_102 [1] : vector<8x8xf32> to vector<8xf32>
    %334 = vector.shape_cast %333 : vector<8xf32> to vector<8x1xf32>
    %335 = vector.broadcast %304 : vector<1x8xf32> to vector<8x8xf32>
    %336 = arith.mulf %335, %167 : vector<8x8xf32>
    %cst_103 = arith.constant dense<0.000000e+00> : vector<8xf32>
    %337 = vector.multi_reduction <add>, %336, %cst_103 [1] : vector<8x8xf32> to vector<8xf32>
    %338 = vector.shape_cast %337 : vector<8xf32> to vector<8x1xf32>
    %339 = vector.broadcast %317 : vector<1x8xf32> to vector<8x8xf32>
    %340 = arith.mulf %339, %172 : vector<8x8xf32>
    %cst_104 = arith.constant dense<0.000000e+00> : vector<8xf32>
    %341 = vector.multi_reduction <add>, %340, %cst_104 [1] : vector<8x8xf32> to vector<8xf32>
    %342 = vector.shape_cast %341 : vector<8xf32> to vector<8x1xf32>
    %343 = vector.broadcast %330 : vector<1x8xf32> to vector<8x8xf32>
    %344 = arith.mulf %343, %177 : vector<8x8xf32>
    %cst_105 = arith.constant dense<0.000000e+00> : vector<8xf32>
    %345 = vector.multi_reduction <add>, %344, %cst_105 [1] : vector<8x8xf32> to vector<8xf32>
    %346 = vector.shape_cast %345 : vector<8xf32> to vector<8x1xf32>
    %347 = arith.maximumf %334, %338 : vector<8x1xf32>
    %348 = arith.maximumf %347, %342 : vector<8x1xf32>
    %349 = arith.maximumf %348, %346 : vector<8x1xf32>
    %350 = arith.subf %334, %349 : vector<8x1xf32>
    %351 = math.exp %350 : vector<8x1xf32>
    %352 = arith.subf %338, %349 : vector<8x1xf32>
    %353 = math.exp %352 : vector<8x1xf32>
    %354 = arith.subf %342, %349 : vector<8x1xf32>
    %355 = math.exp %354 : vector<8x1xf32>
    %356 = arith.subf %346, %349 : vector<8x1xf32>
    %357 = math.exp %356 : vector<8x1xf32>
    %358 = arith.addf %351, %353 : vector<8x1xf32>
    %359 = arith.addf %358, %355 : vector<8x1xf32>
    %360 = arith.addf %359, %357 : vector<8x1xf32>
    %361 = arith.divf %351, %360 : vector<8x1xf32>
    %362 = vector.broadcast %361 : vector<8x1xf32> to vector<8x8xf32>
    %363 = arith.mulf %362, %162 : vector<8x8xf32>
    %cst_106 = arith.constant dense<0.000000e+00> : vector<8xf32>
    %364 = vector.multi_reduction <add>, %363, %cst_106 [0] : vector<8x8xf32> to vector<8xf32>
    %365 = vector.shape_cast %364 : vector<8xf32> to vector<1x8xf32>
    %366 = arith.mulf %365, %365 : vector<1x8xf32>
    %cst_107 = arith.constant dense<0.000000e+00> : vector<1xf32>
    %367 = vector.multi_reduction <add>, %366, %cst_107 [1] : vector<1x8xf32> to vector<1xf32>
    %368 = vector.shape_cast %367 : vector<1xf32> to vector<1x1xf32>
    %cst_108 = arith.constant 1.000000e-07 : f32
    %369 = vector.broadcast %cst_108 : f32 to vector<1x1xf32>
    %370 = arith.addf %368, %369 : vector<1x1xf32>
    %371 = math.rsqrt %370 : vector<1x1xf32>
    %372 = vector.broadcast %371 : vector<1x1xf32> to vector<1x8xf32>
    %373 = arith.mulf %365, %372 : vector<1x8xf32>
    %374 = arith.divf %353, %360 : vector<8x1xf32>
    %375 = vector.broadcast %374 : vector<8x1xf32> to vector<8x8xf32>
    %376 = arith.mulf %375, %167 : vector<8x8xf32>
    %cst_109 = arith.constant dense<0.000000e+00> : vector<8xf32>
    %377 = vector.multi_reduction <add>, %376, %cst_109 [0] : vector<8x8xf32> to vector<8xf32>
    %378 = vector.shape_cast %377 : vector<8xf32> to vector<1x8xf32>
    %379 = arith.mulf %378, %378 : vector<1x8xf32>
    %cst_110 = arith.constant dense<0.000000e+00> : vector<1xf32>
    %380 = vector.multi_reduction <add>, %379, %cst_110 [1] : vector<1x8xf32> to vector<1xf32>
    %381 = vector.shape_cast %380 : vector<1xf32> to vector<1x1xf32>
    %cst_111 = arith.constant 1.000000e-07 : f32
    %382 = vector.broadcast %cst_111 : f32 to vector<1x1xf32>
    %383 = arith.addf %381, %382 : vector<1x1xf32>
    %384 = math.rsqrt %383 : vector<1x1xf32>
    %385 = vector.broadcast %384 : vector<1x1xf32> to vector<1x8xf32>
    %386 = arith.mulf %378, %385 : vector<1x8xf32>
    %387 = arith.divf %355, %360 : vector<8x1xf32>
    %388 = vector.broadcast %387 : vector<8x1xf32> to vector<8x8xf32>
    %389 = arith.mulf %388, %172 : vector<8x8xf32>
    %cst_112 = arith.constant dense<0.000000e+00> : vector<8xf32>
    %390 = vector.multi_reduction <add>, %389, %cst_112 [0] : vector<8x8xf32> to vector<8xf32>
    %391 = vector.shape_cast %390 : vector<8xf32> to vector<1x8xf32>
    %392 = arith.mulf %391, %391 : vector<1x8xf32>
    %cst_113 = arith.constant dense<0.000000e+00> : vector<1xf32>
    %393 = vector.multi_reduction <add>, %392, %cst_113 [1] : vector<1x8xf32> to vector<1xf32>
    %394 = vector.shape_cast %393 : vector<1xf32> to vector<1x1xf32>
    %cst_114 = arith.constant 1.000000e-07 : f32
    %395 = vector.broadcast %cst_114 : f32 to vector<1x1xf32>
    %396 = arith.addf %394, %395 : vector<1x1xf32>
    %397 = math.rsqrt %396 : vector<1x1xf32>
    %398 = vector.broadcast %397 : vector<1x1xf32> to vector<1x8xf32>
    %399 = arith.mulf %391, %398 : vector<1x8xf32>
    %400 = arith.divf %357, %360 : vector<8x1xf32>
    %401 = vector.broadcast %400 : vector<8x1xf32> to vector<8x8xf32>
    %402 = arith.mulf %401, %177 : vector<8x8xf32>
    %cst_115 = arith.constant dense<0.000000e+00> : vector<8xf32>
    %403 = vector.multi_reduction <add>, %402, %cst_115 [0] : vector<8x8xf32> to vector<8xf32>
    %404 = vector.shape_cast %403 : vector<8xf32> to vector<1x8xf32>
    %405 = arith.mulf %404, %404 : vector<1x8xf32>
    %cst_116 = arith.constant dense<0.000000e+00> : vector<1xf32>
    %406 = vector.multi_reduction <add>, %405, %cst_116 [1] : vector<1x8xf32> to vector<1xf32>
    %407 = vector.shape_cast %406 : vector<1xf32> to vector<1x1xf32>
    %cst_117 = arith.constant 1.000000e-07 : f32
    %408 = vector.broadcast %cst_117 : f32 to vector<1x1xf32>
    %409 = arith.addf %407, %408 : vector<1x1xf32>
    %410 = math.rsqrt %409 : vector<1x1xf32>
    %411 = vector.broadcast %410 : vector<1x1xf32> to vector<1x8xf32>
    %412 = arith.mulf %404, %411 : vector<1x8xf32>
    %cst_118 = arith.constant 0.000000e+00 : f32
    %413 = vector.broadcast %cst_118 : f32 to vector<8x1xf32>
    %cst_119 = arith.constant 0.000000e+00 : f32
    %414 = vector.broadcast %cst_119 : f32 to vector<8x1xf32>
    %cst_120 = arith.constant 0.000000e+00 : f32
    %415 = vector.broadcast %cst_120 : f32 to vector<8x1xf32>
    %cst_121 = arith.constant 0.000000e+00 : f32
    %416 = vector.broadcast %cst_121 : f32 to vector<8x1xf32>
    %417 = arith.maximumf %413, %414 : vector<8x1xf32>
    %418 = arith.maximumf %417, %415 : vector<8x1xf32>
    %419 = arith.maximumf %418, %416 : vector<8x1xf32>
    %420 = arith.subf %413, %419 : vector<8x1xf32>
    %421 = math.exp %420 : vector<8x1xf32>
    %422 = arith.subf %414, %419 : vector<8x1xf32>
    %423 = math.exp %422 : vector<8x1xf32>
    %424 = arith.subf %415, %419 : vector<8x1xf32>
    %425 = math.exp %424 : vector<8x1xf32>
    %426 = arith.subf %416, %419 : vector<8x1xf32>
    %427 = math.exp %426 : vector<8x1xf32>
    %428 = arith.addf %421, %423 : vector<8x1xf32>
    %429 = arith.addf %428, %425 : vector<8x1xf32>
    %430 = arith.addf %429, %427 : vector<8x1xf32>
    %431 = arith.divf %421, %430 : vector<8x1xf32>
    %432 = vector.broadcast %431 : vector<8x1xf32> to vector<8x8xf32>
    %433 = arith.mulf %432, %163 : vector<8x8xf32>
    %cst_122 = arith.constant dense<0.000000e+00> : vector<8xf32>
    %434 = vector.multi_reduction <add>, %433, %cst_122 [0] : vector<8x8xf32> to vector<8xf32>
    %435 = vector.shape_cast %434 : vector<8xf32> to vector<1x8xf32>
    %436 = arith.mulf %435, %435 : vector<1x8xf32>
    %cst_123 = arith.constant dense<0.000000e+00> : vector<1xf32>
    %437 = vector.multi_reduction <add>, %436, %cst_123 [1] : vector<1x8xf32> to vector<1xf32>
    %438 = vector.shape_cast %437 : vector<1xf32> to vector<1x1xf32>
    %cst_124 = arith.constant 1.000000e-07 : f32
    %439 = vector.broadcast %cst_124 : f32 to vector<1x1xf32>
    %440 = arith.addf %438, %439 : vector<1x1xf32>
    %441 = math.rsqrt %440 : vector<1x1xf32>
    %442 = vector.broadcast %441 : vector<1x1xf32> to vector<1x8xf32>
    %443 = arith.mulf %435, %442 : vector<1x8xf32>
    %444 = arith.divf %423, %430 : vector<8x1xf32>
    %445 = vector.broadcast %444 : vector<8x1xf32> to vector<8x8xf32>
    %446 = arith.mulf %445, %168 : vector<8x8xf32>
    %cst_125 = arith.constant dense<0.000000e+00> : vector<8xf32>
    %447 = vector.multi_reduction <add>, %446, %cst_125 [0] : vector<8x8xf32> to vector<8xf32>
    %448 = vector.shape_cast %447 : vector<8xf32> to vector<1x8xf32>
    %449 = arith.mulf %448, %448 : vector<1x8xf32>
    %cst_126 = arith.constant dense<0.000000e+00> : vector<1xf32>
    %450 = vector.multi_reduction <add>, %449, %cst_126 [1] : vector<1x8xf32> to vector<1xf32>
    %451 = vector.shape_cast %450 : vector<1xf32> to vector<1x1xf32>
    %cst_127 = arith.constant 1.000000e-07 : f32
    %452 = vector.broadcast %cst_127 : f32 to vector<1x1xf32>
    %453 = arith.addf %451, %452 : vector<1x1xf32>
    %454 = math.rsqrt %453 : vector<1x1xf32>
    %455 = vector.broadcast %454 : vector<1x1xf32> to vector<1x8xf32>
    %456 = arith.mulf %448, %455 : vector<1x8xf32>
    %457 = arith.divf %425, %430 : vector<8x1xf32>
    %458 = vector.broadcast %457 : vector<8x1xf32> to vector<8x8xf32>
    %459 = arith.mulf %458, %173 : vector<8x8xf32>
    %cst_128 = arith.constant dense<0.000000e+00> : vector<8xf32>
    %460 = vector.multi_reduction <add>, %459, %cst_128 [0] : vector<8x8xf32> to vector<8xf32>
    %461 = vector.shape_cast %460 : vector<8xf32> to vector<1x8xf32>
    %462 = arith.mulf %461, %461 : vector<1x8xf32>
    %cst_129 = arith.constant dense<0.000000e+00> : vector<1xf32>
    %463 = vector.multi_reduction <add>, %462, %cst_129 [1] : vector<1x8xf32> to vector<1xf32>
    %464 = vector.shape_cast %463 : vector<1xf32> to vector<1x1xf32>
    %cst_130 = arith.constant 1.000000e-07 : f32
    %465 = vector.broadcast %cst_130 : f32 to vector<1x1xf32>
    %466 = arith.addf %464, %465 : vector<1x1xf32>
    %467 = math.rsqrt %466 : vector<1x1xf32>
    %468 = vector.broadcast %467 : vector<1x1xf32> to vector<1x8xf32>
    %469 = arith.mulf %461, %468 : vector<1x8xf32>
    %470 = arith.divf %427, %430 : vector<8x1xf32>
    %471 = vector.broadcast %470 : vector<8x1xf32> to vector<8x8xf32>
    %472 = arith.mulf %471, %178 : vector<8x8xf32>
    %cst_131 = arith.constant dense<0.000000e+00> : vector<8xf32>
    %473 = vector.multi_reduction <add>, %472, %cst_131 [0] : vector<8x8xf32> to vector<8xf32>
    %474 = vector.shape_cast %473 : vector<8xf32> to vector<1x8xf32>
    %475 = arith.mulf %474, %474 : vector<1x8xf32>
    %cst_132 = arith.constant dense<0.000000e+00> : vector<1xf32>
    %476 = vector.multi_reduction <add>, %475, %cst_132 [1] : vector<1x8xf32> to vector<1xf32>
    %477 = vector.shape_cast %476 : vector<1xf32> to vector<1x1xf32>
    %cst_133 = arith.constant 1.000000e-07 : f32
    %478 = vector.broadcast %cst_133 : f32 to vector<1x1xf32>
    %479 = arith.addf %477, %478 : vector<1x1xf32>
    %480 = math.rsqrt %479 : vector<1x1xf32>
    %481 = vector.broadcast %480 : vector<1x1xf32> to vector<1x8xf32>
    %482 = arith.mulf %474, %481 : vector<1x8xf32>
    %483 = vector.broadcast %443 : vector<1x8xf32> to vector<8x8xf32>
    %484 = arith.mulf %483, %163 : vector<8x8xf32>
    %cst_134 = arith.constant dense<0.000000e+00> : vector<8xf32>
    %485 = vector.multi_reduction <add>, %484, %cst_134 [1] : vector<8x8xf32> to vector<8xf32>
    %486 = vector.shape_cast %485 : vector<8xf32> to vector<8x1xf32>
    %487 = vector.broadcast %456 : vector<1x8xf32> to vector<8x8xf32>
    %488 = arith.mulf %487, %168 : vector<8x8xf32>
    %cst_135 = arith.constant dense<0.000000e+00> : vector<8xf32>
    %489 = vector.multi_reduction <add>, %488, %cst_135 [1] : vector<8x8xf32> to vector<8xf32>
    %490 = vector.shape_cast %489 : vector<8xf32> to vector<8x1xf32>
    %491 = vector.broadcast %469 : vector<1x8xf32> to vector<8x8xf32>
    %492 = arith.mulf %491, %173 : vector<8x8xf32>
    %cst_136 = arith.constant dense<0.000000e+00> : vector<8xf32>
    %493 = vector.multi_reduction <add>, %492, %cst_136 [1] : vector<8x8xf32> to vector<8xf32>
    %494 = vector.shape_cast %493 : vector<8xf32> to vector<8x1xf32>
    %495 = vector.broadcast %482 : vector<1x8xf32> to vector<8x8xf32>
    %496 = arith.mulf %495, %178 : vector<8x8xf32>
    %cst_137 = arith.constant dense<0.000000e+00> : vector<8xf32>
    %497 = vector.multi_reduction <add>, %496, %cst_137 [1] : vector<8x8xf32> to vector<8xf32>
    %498 = vector.shape_cast %497 : vector<8xf32> to vector<8x1xf32>
    %499 = arith.maximumf %486, %490 : vector<8x1xf32>
    %500 = arith.maximumf %499, %494 : vector<8x1xf32>
    %501 = arith.maximumf %500, %498 : vector<8x1xf32>
    %502 = arith.subf %486, %501 : vector<8x1xf32>
    %503 = math.exp %502 : vector<8x1xf32>
    %504 = arith.subf %490, %501 : vector<8x1xf32>
    %505 = math.exp %504 : vector<8x1xf32>
    %506 = arith.subf %494, %501 : vector<8x1xf32>
    %507 = math.exp %506 : vector<8x1xf32>
    %508 = arith.subf %498, %501 : vector<8x1xf32>
    %509 = math.exp %508 : vector<8x1xf32>
    %510 = arith.addf %503, %505 : vector<8x1xf32>
    %511 = arith.addf %510, %507 : vector<8x1xf32>
    %512 = arith.addf %511, %509 : vector<8x1xf32>
    %513 = arith.divf %503, %512 : vector<8x1xf32>
    %514 = vector.broadcast %513 : vector<8x1xf32> to vector<8x8xf32>
    %515 = arith.mulf %514, %163 : vector<8x8xf32>
    %cst_138 = arith.constant dense<0.000000e+00> : vector<8xf32>
    %516 = vector.multi_reduction <add>, %515, %cst_138 [0] : vector<8x8xf32> to vector<8xf32>
    %517 = vector.shape_cast %516 : vector<8xf32> to vector<1x8xf32>
    %518 = arith.mulf %517, %517 : vector<1x8xf32>
    %cst_139 = arith.constant dense<0.000000e+00> : vector<1xf32>
    %519 = vector.multi_reduction <add>, %518, %cst_139 [1] : vector<1x8xf32> to vector<1xf32>
    %520 = vector.shape_cast %519 : vector<1xf32> to vector<1x1xf32>
    %cst_140 = arith.constant 1.000000e-07 : f32
    %521 = vector.broadcast %cst_140 : f32 to vector<1x1xf32>
    %522 = arith.addf %520, %521 : vector<1x1xf32>
    %523 = math.rsqrt %522 : vector<1x1xf32>
    %524 = vector.broadcast %523 : vector<1x1xf32> to vector<1x8xf32>
    %525 = arith.mulf %517, %524 : vector<1x8xf32>
    %526 = arith.divf %505, %512 : vector<8x1xf32>
    %527 = vector.broadcast %526 : vector<8x1xf32> to vector<8x8xf32>
    %528 = arith.mulf %527, %168 : vector<8x8xf32>
    %cst_141 = arith.constant dense<0.000000e+00> : vector<8xf32>
    %529 = vector.multi_reduction <add>, %528, %cst_141 [0] : vector<8x8xf32> to vector<8xf32>
    %530 = vector.shape_cast %529 : vector<8xf32> to vector<1x8xf32>
    %531 = arith.mulf %530, %530 : vector<1x8xf32>
    %cst_142 = arith.constant dense<0.000000e+00> : vector<1xf32>
    %532 = vector.multi_reduction <add>, %531, %cst_142 [1] : vector<1x8xf32> to vector<1xf32>
    %533 = vector.shape_cast %532 : vector<1xf32> to vector<1x1xf32>
    %cst_143 = arith.constant 1.000000e-07 : f32
    %534 = vector.broadcast %cst_143 : f32 to vector<1x1xf32>
    %535 = arith.addf %533, %534 : vector<1x1xf32>
    %536 = math.rsqrt %535 : vector<1x1xf32>
    %537 = vector.broadcast %536 : vector<1x1xf32> to vector<1x8xf32>
    %538 = arith.mulf %530, %537 : vector<1x8xf32>
    %539 = arith.divf %507, %512 : vector<8x1xf32>
    %540 = vector.broadcast %539 : vector<8x1xf32> to vector<8x8xf32>
    %541 = arith.mulf %540, %173 : vector<8x8xf32>
    %cst_144 = arith.constant dense<0.000000e+00> : vector<8xf32>
    %542 = vector.multi_reduction <add>, %541, %cst_144 [0] : vector<8x8xf32> to vector<8xf32>
    %543 = vector.shape_cast %542 : vector<8xf32> to vector<1x8xf32>
    %544 = arith.mulf %543, %543 : vector<1x8xf32>
    %cst_145 = arith.constant dense<0.000000e+00> : vector<1xf32>
    %545 = vector.multi_reduction <add>, %544, %cst_145 [1] : vector<1x8xf32> to vector<1xf32>
    %546 = vector.shape_cast %545 : vector<1xf32> to vector<1x1xf32>
    %cst_146 = arith.constant 1.000000e-07 : f32
    %547 = vector.broadcast %cst_146 : f32 to vector<1x1xf32>
    %548 = arith.addf %546, %547 : vector<1x1xf32>
    %549 = math.rsqrt %548 : vector<1x1xf32>
    %550 = vector.broadcast %549 : vector<1x1xf32> to vector<1x8xf32>
    %551 = arith.mulf %543, %550 : vector<1x8xf32>
    %552 = arith.divf %509, %512 : vector<8x1xf32>
    %553 = vector.broadcast %552 : vector<8x1xf32> to vector<8x8xf32>
    %554 = arith.mulf %553, %178 : vector<8x8xf32>
    %cst_147 = arith.constant dense<0.000000e+00> : vector<8xf32>
    %555 = vector.multi_reduction <add>, %554, %cst_147 [0] : vector<8x8xf32> to vector<8xf32>
    %556 = vector.shape_cast %555 : vector<8xf32> to vector<1x8xf32>
    %557 = arith.mulf %556, %556 : vector<1x8xf32>
    %cst_148 = arith.constant dense<0.000000e+00> : vector<1xf32>
    %558 = vector.multi_reduction <add>, %557, %cst_148 [1] : vector<1x8xf32> to vector<1xf32>
    %559 = vector.shape_cast %558 : vector<1xf32> to vector<1x1xf32>
    %cst_149 = arith.constant 1.000000e-07 : f32
    %560 = vector.broadcast %cst_149 : f32 to vector<1x1xf32>
    %561 = arith.addf %559, %560 : vector<1x1xf32>
    %562 = math.rsqrt %561 : vector<1x1xf32>
    %563 = vector.broadcast %562 : vector<1x1xf32> to vector<1x8xf32>
    %564 = arith.mulf %556, %563 : vector<1x8xf32>
    %565 = vector.broadcast %525 : vector<1x8xf32> to vector<8x8xf32>
    %566 = arith.mulf %565, %163 : vector<8x8xf32>
    %cst_150 = arith.constant dense<0.000000e+00> : vector<8xf32>
    %567 = vector.multi_reduction <add>, %566, %cst_150 [1] : vector<8x8xf32> to vector<8xf32>
    %568 = vector.shape_cast %567 : vector<8xf32> to vector<8x1xf32>
    %569 = vector.broadcast %538 : vector<1x8xf32> to vector<8x8xf32>
    %570 = arith.mulf %569, %168 : vector<8x8xf32>
    %cst_151 = arith.constant dense<0.000000e+00> : vector<8xf32>
    %571 = vector.multi_reduction <add>, %570, %cst_151 [1] : vector<8x8xf32> to vector<8xf32>
    %572 = vector.shape_cast %571 : vector<8xf32> to vector<8x1xf32>
    %573 = vector.broadcast %551 : vector<1x8xf32> to vector<8x8xf32>
    %574 = arith.mulf %573, %173 : vector<8x8xf32>
    %cst_152 = arith.constant dense<0.000000e+00> : vector<8xf32>
    %575 = vector.multi_reduction <add>, %574, %cst_152 [1] : vector<8x8xf32> to vector<8xf32>
    %576 = vector.shape_cast %575 : vector<8xf32> to vector<8x1xf32>
    %577 = vector.broadcast %564 : vector<1x8xf32> to vector<8x8xf32>
    %578 = arith.mulf %577, %178 : vector<8x8xf32>
    %cst_153 = arith.constant dense<0.000000e+00> : vector<8xf32>
    %579 = vector.multi_reduction <add>, %578, %cst_153 [1] : vector<8x8xf32> to vector<8xf32>
    %580 = vector.shape_cast %579 : vector<8xf32> to vector<8x1xf32>
    %581 = arith.maximumf %568, %572 : vector<8x1xf32>
    %582 = arith.maximumf %581, %576 : vector<8x1xf32>
    %583 = arith.maximumf %582, %580 : vector<8x1xf32>
    %584 = arith.subf %568, %583 : vector<8x1xf32>
    %585 = math.exp %584 : vector<8x1xf32>
    %586 = arith.subf %572, %583 : vector<8x1xf32>
    %587 = math.exp %586 : vector<8x1xf32>
    %588 = arith.subf %576, %583 : vector<8x1xf32>
    %589 = math.exp %588 : vector<8x1xf32>
    %590 = arith.subf %580, %583 : vector<8x1xf32>
    %591 = math.exp %590 : vector<8x1xf32>
    %592 = arith.addf %585, %587 : vector<8x1xf32>
    %593 = arith.addf %592, %589 : vector<8x1xf32>
    %594 = arith.addf %593, %591 : vector<8x1xf32>
    %595 = arith.divf %585, %594 : vector<8x1xf32>
    %596 = vector.broadcast %595 : vector<8x1xf32> to vector<8x8xf32>
    %597 = arith.mulf %596, %163 : vector<8x8xf32>
    %cst_154 = arith.constant dense<0.000000e+00> : vector<8xf32>
    %598 = vector.multi_reduction <add>, %597, %cst_154 [0] : vector<8x8xf32> to vector<8xf32>
    %599 = vector.shape_cast %598 : vector<8xf32> to vector<1x8xf32>
    %600 = arith.mulf %599, %599 : vector<1x8xf32>
    %cst_155 = arith.constant dense<0.000000e+00> : vector<1xf32>
    %601 = vector.multi_reduction <add>, %600, %cst_155 [1] : vector<1x8xf32> to vector<1xf32>
    %602 = vector.shape_cast %601 : vector<1xf32> to vector<1x1xf32>
    %cst_156 = arith.constant 1.000000e-07 : f32
    %603 = vector.broadcast %cst_156 : f32 to vector<1x1xf32>
    %604 = arith.addf %602, %603 : vector<1x1xf32>
    %605 = math.rsqrt %604 : vector<1x1xf32>
    %606 = vector.broadcast %605 : vector<1x1xf32> to vector<1x8xf32>
    %607 = arith.mulf %599, %606 : vector<1x8xf32>
    %608 = arith.divf %587, %594 : vector<8x1xf32>
    %609 = vector.broadcast %608 : vector<8x1xf32> to vector<8x8xf32>
    %610 = arith.mulf %609, %168 : vector<8x8xf32>
    %cst_157 = arith.constant dense<0.000000e+00> : vector<8xf32>
    %611 = vector.multi_reduction <add>, %610, %cst_157 [0] : vector<8x8xf32> to vector<8xf32>
    %612 = vector.shape_cast %611 : vector<8xf32> to vector<1x8xf32>
    %613 = arith.mulf %612, %612 : vector<1x8xf32>
    %cst_158 = arith.constant dense<0.000000e+00> : vector<1xf32>
    %614 = vector.multi_reduction <add>, %613, %cst_158 [1] : vector<1x8xf32> to vector<1xf32>
    %615 = vector.shape_cast %614 : vector<1xf32> to vector<1x1xf32>
    %cst_159 = arith.constant 1.000000e-07 : f32
    %616 = vector.broadcast %cst_159 : f32 to vector<1x1xf32>
    %617 = arith.addf %615, %616 : vector<1x1xf32>
    %618 = math.rsqrt %617 : vector<1x1xf32>
    %619 = vector.broadcast %618 : vector<1x1xf32> to vector<1x8xf32>
    %620 = arith.mulf %612, %619 : vector<1x8xf32>
    %621 = arith.divf %589, %594 : vector<8x1xf32>
    %622 = vector.broadcast %621 : vector<8x1xf32> to vector<8x8xf32>
    %623 = arith.mulf %622, %173 : vector<8x8xf32>
    %cst_160 = arith.constant dense<0.000000e+00> : vector<8xf32>
    %624 = vector.multi_reduction <add>, %623, %cst_160 [0] : vector<8x8xf32> to vector<8xf32>
    %625 = vector.shape_cast %624 : vector<8xf32> to vector<1x8xf32>
    %626 = arith.mulf %625, %625 : vector<1x8xf32>
    %cst_161 = arith.constant dense<0.000000e+00> : vector<1xf32>
    %627 = vector.multi_reduction <add>, %626, %cst_161 [1] : vector<1x8xf32> to vector<1xf32>
    %628 = vector.shape_cast %627 : vector<1xf32> to vector<1x1xf32>
    %cst_162 = arith.constant 1.000000e-07 : f32
    %629 = vector.broadcast %cst_162 : f32 to vector<1x1xf32>
    %630 = arith.addf %628, %629 : vector<1x1xf32>
    %631 = math.rsqrt %630 : vector<1x1xf32>
    %632 = vector.broadcast %631 : vector<1x1xf32> to vector<1x8xf32>
    %633 = arith.mulf %625, %632 : vector<1x8xf32>
    %634 = arith.divf %591, %594 : vector<8x1xf32>
    %635 = vector.broadcast %634 : vector<8x1xf32> to vector<8x8xf32>
    %636 = arith.mulf %635, %178 : vector<8x8xf32>
    %cst_163 = arith.constant dense<0.000000e+00> : vector<8xf32>
    %637 = vector.multi_reduction <add>, %636, %cst_163 [0] : vector<8x8xf32> to vector<8xf32>
    %638 = vector.shape_cast %637 : vector<8xf32> to vector<1x8xf32>
    %639 = arith.mulf %638, %638 : vector<1x8xf32>
    %cst_164 = arith.constant dense<0.000000e+00> : vector<1xf32>
    %640 = vector.multi_reduction <add>, %639, %cst_164 [1] : vector<1x8xf32> to vector<1xf32>
    %641 = vector.shape_cast %640 : vector<1xf32> to vector<1x1xf32>
    %cst_165 = arith.constant 1.000000e-07 : f32
    %642 = vector.broadcast %cst_165 : f32 to vector<1x1xf32>
    %643 = arith.addf %641, %642 : vector<1x1xf32>
    %644 = math.rsqrt %643 : vector<1x1xf32>
    %645 = vector.broadcast %644 : vector<1x1xf32> to vector<1x8xf32>
    %646 = arith.mulf %638, %645 : vector<1x8xf32>
    %647 = tpu.concatenate %373, %386, %399, %412 in 1 : vector<1x8xf32>, vector<1x8xf32>, vector<1x8xf32>, vector<1x8xf32> -> vector<1x32xf32>
    %648 = tpu.concatenate %607, %620, %633, %646 in 1 : vector<1x8xf32>, vector<1x8xf32>, vector<1x8xf32>, vector<1x8xf32> -> vector<1x32xf32>
    %649 = tpu.concatenate %647, %648 in 0 : vector<1x32xf32>, vector<1x32xf32> -> vector<2x32xf32>
    %c0_166 = arith.constant 0 : index
    %c0_167 = arith.constant 0 : index
    %650 = vector.load %arg10[%c0_166, %c0_167] : memref<32x2xf32, #tpu.memory_space<vmem>>, vector<32x2xf32>
    %cst_168 = arith.constant dense<0.000000e+00> : vector<2x2xf32>
    %651 = tpu.matmul %649, %650, %cst_168 {dimension_numbers = #tpu.dot_dimension_numbers<[1], [0], [0], [1], [0, 0, 1, 1], [], []>, precision = #tpu.contract_precision<fp32>} : vector<2x32xf32>, vector<32x2xf32>, vector<2x2xf32> -> vector<2x2xf32>
    %c0_169 = arith.constant 0 : index
    %c0_170 = arith.constant 0 : index
    %652 = vector.load %arg11[%c0_169, %c0_170] : memref<1x2xf32, #tpu.memory_space<vmem>>, vector<1x2xf32>
    %653 = vector.broadcast %652 : vector<1x2xf32> to vector<2x2xf32>
    %654 = arith.addf %651, %653 : vector<2x2xf32>
    %c0_171 = arith.constant 0 : index
    %c0_172 = arith.constant 0 : index
    %655 = vector.load %arg12[%c0_171, %c0_172] : memref<2x2xf32, #tpu.memory_space<vmem>>, vector<2x2xf32>
    tpu.vector_store %arg12[%c0_171, %c0_172], %654 {strides = array<i32>} : memref<2x2xf32, #tpu.memory_space<vmem>>, vector<2x2xf32>,
    return
  }
  func.func @transform_0(%arg0: i32) -> (i32, i32) {
    %c0_i32 = arith.constant 0 : i32
    %c0_i32_0 = arith.constant 0 : i32
    %c0_i32_1 = arith.constant 0 : i32
    return %c0_i32, %c0_i32_0 : i32, i32
  }
  func.func @transform_1(%arg0: i32) -> (i32, i32) {
    %c0_i32 = arith.constant 0 : i32
    %c0_i32_0 = arith.constant 0 : i32
    %c0_i32_1 = arith.constant 0 : i32
    return %c0_i32, %c0_i32_0 : i32, i32
  }
  func.func @transform_2(%arg0: i32) -> (i32, i32) {
    %c0_i32 = arith.constant 0 : i32
    %c0_i32_0 = arith.constant 0 : i32
    %c0_i32_1 = arith.constant 0 : i32
    return %c0_i32, %c0_i32_0 : i32, i32
  }
  func.func @transform_3(%arg0: i32) -> (i32, i32) {
    %c0_i32 = arith.constant 0 : i32
    %c0_i32_0 = arith.constant 0 : i32
    %c0_i32_1 = arith.constant 0 : i32
    return %c0_i32, %c0_i32_0 : i32, i32
  }
  func.func @transform_4(%arg0: i32) -> (i32, i32) {
    %c0_i32 = arith.constant 0 : i32
    %c0_i32_0 = arith.constant 0 : i32
    %c0_i32_1 = arith.constant 0 : i32
    return %c0_i32, %c0_i32_0 : i32, i32
  }
  func.func @transform_5(%arg0: i32) -> (i32, i32) {
    %c0_i32 = arith.constant 0 : i32
    %c0_i32_0 = arith.constant 0 : i32
    %c0_i32_1 = arith.constant 0 : i32
    return %c0_i32, %c0_i32_0 : i32, i32
  }
  func.func @transform_6(%arg0: i32) -> (i32, i32) {
    %c0_i32 = arith.constant 0 : i32
    %c0_i32_0 = arith.constant 0 : i32
    %c0_i32_1 = arith.constant 0 : i32
    return %c0_i32, %c0_i32_0 : i32, i32
  }
  func.func @transform_7(%arg0: i32) -> (i32, i32) {
    %c0_i32 = arith.constant 0 : i32
    %c0_i32_0 = arith.constant 0 : i32
    %c0_i32_1 = arith.constant 0 : i32
    return %c0_i32, %c0_i32_0 : i32, i32
  }
  func.func @transform_8(%arg0: i32) -> (i32, i32, i32) {
    %c0_i32 = arith.constant 0 : i32
    %c0_i32_0 = arith.constant 0 : i32
    %c0_i32_1 = arith.constant 0 : i32
    %c0_i32_2 = arith.constant 0 : i32
    return %c0_i32, %c0_i32_0, %c0_i32_1 : i32, i32, i32
  }
  func.func @transform_9(%arg0: i32) -> (i32, i32) {
    %c0_i32 = arith.constant 0 : i32
    %c0_i32_0 = arith.constant 0 : i32
    %c0_i32_1 = arith.constant 0 : i32
    return %c0_i32, %c0_i32_0 : i32, i32
  }
  func.func @transform_10(%arg0: i32) -> (i32, i32) {
    %c0_i32 = arith.constant 0 : i32
    %c0_i32_0 = arith.constant 0 : i32
    %c0_i32_1 = arith.constant 0 : i32
    return %c0_i32, %c0_i32_0 : i32, i32
  }
  func.func @transform_11(%arg0: i32) -> (i32, i32) {
    %c0_i32 = arith.constant 0 : i32
    %c0_i32_0 = arith.constant 0 : i32
    %c0_i32_1 = arith.constant 0 : i32
    return %c0_i32, %c0_i32_0 : i32, i32
  }
}

</mosaic_0001>

<llo_original>
// kernel: model_forward.1
$region0: #{model_forward.1}
  #allocation0 [shape = 'u32[]', space=smem, size = 0x4, offset = 0x4, fixed_abs, tag = 'smem constant byte address 0x4 - core index']
  #allocation1 [shape = 'u32[144,128]{1,0:T(1,128)}', space=vmem, size = 0x12000, scoped, tag = 'internal scratch']
  %s0 = inlined_call_operand.vmem [shape: s32[16,1], index: 0, kind: input, shape index: {}]
  %s1 = inlined_call_operand.vmem [shape: f32[50,32], index: 1, kind: input, shape index: {}]
  %s2 = inlined_call_operand.vmem [shape: f32[32,48], index: 2, kind: input, shape index: {}]
  %s3 = inlined_call_operand.vmem [shape: f32[16,48], index: 3, kind: input, shape index: {}]
  %s4 = inlined_call_operand.vmem [shape: f32[2,48], index: 4, kind: input, shape index: {}]
  %s5 = inlined_call_operand.vmem [shape: f32[32,48], index: 5, kind: input, shape index: {}]
  %s6 = inlined_call_operand.vmem [shape: f32[16,48], index: 6, kind: input, shape index: {}]
  %s7 = inlined_call_operand.vmem [shape: f32[2,48], index: 7, kind: input, shape index: {}]
  %s8 = inlined_call_operand.vmem [shape: f32[4,32,8], index: 8, kind: input, shape index: {}]
  %s9 = inlined_call_operand.vmem [shape: f32[32,2], index: 9, kind: input, shape index: {}]
  %s10 = inlined_call_operand.vmem [shape: f32[1,2], index: 10, kind: input, shape index: {}]
  %s11 = inlined_call_operand.hbm [shape: f32[2,2], index: 11, kind: output, shape index: {}]
  %s12 = sld [smem:[#allocation0]]
  $region54: #{model_forward.1} parent=0
    _
  %s14 = ssub.s32 1, %s12
  %s15 = scalar_select 0, %s14, %s12
  $region1: #{model_forward.1} parent=0
    #allocation2 [shape = 'u8[1024]{0}', space=vmem, size = 0x400, scoped, tag = 'output window, operand 0, single buffered']
    #allocation3 [shape = 's32[1]{0}', space=sflag, size = 0x4, scoped, tag = 'scoped memory for model_forward.1']
    %16 = vsyncpa [#allocation3], 0
    // Predicated region
    $region2: #{model_forward.1} parent=1 // pred_check
      _
    $region3: #{model_forward.1} parent=1 // pred_check_branch
      %18 = sbr.rel (0) target = $region5
    $region4: #{model_forward.1} parent=1 // pred_region
      _
    $region5: #{model_forward.1} parent=1 // pred_fallthru
      _
    // Predicated region
    $region6: #{model_forward.1} parent=1 // pred_check
      _
    $region7: #{model_forward.1} parent=1 // pred_check_branch
      %20 = sbr.rel (0) target = $region9
    $region8: #{model_forward.1} parent=1 // pred_region
      _
    $region9: #{model_forward.1} parent=1 // pred_fallthru
      _
    // Predicated region
    $region10: #{model_forward.1} parent=1 // pred_check
      _
    $region11: #{model_forward.1} parent=1 // pred_check_branch
      %22 = sbr.rel (0) target = $region13
    $region12: #{model_forward.1} parent=1 // pred_region
      _
    $region13: #{model_forward.1} parent=1 // pred_fallthru
      _
    // Predicated region
    $region14: #{model_forward.1} parent=1 // pred_check
      _
    $region15: #{model_forward.1} parent=1 // pred_check_branch
      %24 = sbr.rel (0) target = $region17
    $region16: #{model_forward.1} parent=1 // pred_region
      _
    $region17: #{model_forward.1} parent=1 // pred_fallthru
      _
    // Predicated region
    $region18: #{model_forward.1} parent=1 // pred_check
      _
    $region19: #{model_forward.1} parent=1 // pred_check_branch
      %26 = sbr.rel (0) target = $region21
    $region20: #{model_forward.1} parent=1 // pred_region
      _
    $region21: #{model_forward.1} parent=1 // pred_fallthru
      _
    // Predicated region
    $region22: #{model_forward.1} parent=1 // pred_check
      _
    $region23: #{model_forward.1} parent=1 // pred_check_branch
      %28 = sbr.rel (0) target = $region25
    $region24: #{model_forward.1} parent=1 // pred_region
      _
    $region25: #{model_forward.1} parent=1 // pred_fallthru
      _
    // Predicated region
    $region26: #{model_forward.1} parent=1 // pred_check
      _
    $region27: #{model_forward.1} parent=1 // pred_check_branch
      %30 = sbr.rel (0) target = $region29
    $region28: #{model_forward.1} parent=1 // pred_region
      _
    $region29: #{model_forward.1} parent=1 // pred_fallthru
      _
    // Predicated region
    $region30: #{model_forward.1} parent=1 // pred_check
      _
    $region31: #{model_forward.1} parent=1 // pred_check_branch
      %32 = sbr.rel (0) target = $region33
    $region32: #{model_forward.1} parent=1 // pred_region
      _
    $region33: #{model_forward.1} parent=1 // pred_fallthru
      _
    // Predicated region
    $region34: #{model_forward.1} parent=1 // pred_check
      _
    $region35: #{model_forward.1} parent=1 // pred_check_branch
      %34 = sbr.rel (0) target = $region37
    $region36: #{model_forward.1} parent=1 // pred_region
      _
    $region37: #{model_forward.1} parent=1 // pred_fallthru
      _
    // Predicated region
    $region38: #{model_forward.1} parent=1 // pred_check
      _
    $region39: #{model_forward.1} parent=1 // pred_check_branch
      %36 = sbr.rel (0) target = $region41
    $region40: #{model_forward.1} parent=1 // pred_region
      _
    $region41: #{model_forward.1} parent=1 // pred_fallthru
      _
    // Predicated region
    $region42: #{model_forward.1} parent=1 // pred_check
      _
    $region43: #{model_forward.1} parent=1 // pred_check_branch
      %38 = sbr.rel (0) target = $region45
    $region44: #{model_forward.1} parent=1 // pred_region
      _
    $region45: #{model_forward.1} parent=1 // pred_fallthru
      _
    %v39 = vld [vmem:[%s0] sm:$0xff]
    %v40 = vld [vmem:[%s0 + $0x8] sm:$0xff]
    %v41 = vlaneseq
    %v42 = vand.u32 %v41, 127
    %43 = vset.pattern.permute.xlu0 0
    %44 = vperm.xlu0 %43, %v39
    %v45 = vpop.permute.xlu0 %44
    %46 = vset.pattern.permute.xlu0 0
    %47 = vperm.xlu0 %46, %v40
    %v48 = vpop.permute.xlu0 %47
    %vm49 = vcmp.eq.s32.totalorder %v42, %v45
    %vm50 = vcmp.eq.s32.totalorder %v42, %v48
    %v51 = vsel %vm49, 1, 0
    %v52 = vsel %vm50, 1, 0
    %v53 = vcvt.s32.f32 %v51
    %v54 = vcvt.s32.f32 %v52
    %v55 = vld [vmem:[%s1] sm:$0xff]
    %v56 = vld [vmem:[%s1 + $0x8] sm:$0xff]
    %v57 = vld [vmem:[%s1 + $0x10] sm:$0xff]
    %v58 = vld [vmem:[%s1 + $0x18] sm:$0xff]
    %v59 = vld [vmem:[%s1 + $0x20] sm:$0xff]
    %v60 = vld [vmem:[%s1 + $0x28] sm:$0xff]
    %v61 = vld [vmem:[%s1 + $0x30] sm:$0x3]
    %vm62 = vcmask 408576
    %v64 = vsel %vm62, %v53, 0
    %v67 = vsel %vm62, %v54, 0
    %vm69 = vcmask 1041408
    %v71 = vsel %vm69, %v61, 0
    %73 = vmatprep.subr.mxu0 0.0
    %74 = vmatpush1.msra.mxu0 0.0
    %75 = vmatprep.subr.mxu0 0.0
    %76 = vmatpush1.msra.mxu0 0.0
    %77 = vmatprep.subr.mxu0 0.0
    %78 = vmatpush1.msra.mxu0 0.0
    %79 = vmatprep.subr.mxu0 0.0
    %80 = vmatpush1.msra.mxu0 0.0
    %81 = vmatprep.subr.mxu0 0.0
    %82 = vmatpush1.msra.mxu0 0.0
    %83 = vmatprep.subr.mxu0 0.0
    %84 = vmatpush1.msra.mxu0 0.0
    %85 = vmatprep.subr.mxu0 0.0
    %86 = vmatpush1.msra.mxu0 0.0
    %87 = vmatprep.subr.mxu0 0.0
    %88 = vmatpush1.msra.mxu0 0.0
    %89 = vmatprep.subr.mxu0 0.0
    %90 = vmatpush1.msra.mxu0 0.0
    %91 = vmatprep.subr.mxu0 0.0
    %v92 = vand.u32 %v71, 4294901760
    %93 = vmatpush1.msra.mxu0 %v92
    %94 = vmatprep.subr.mxu0 0.0
    %v95 = vand.u32 %v60, 4294901760
    %96 = vmatpush1.msra.mxu0 %v95
    %97 = vmatprep.subr.mxu0 0.0
    %v98 = vand.u32 %v59, 4294901760
    %99 = vmatpush1.msra.mxu0 %v98
    %100 = vmatprep.subr.mxu0 0.0
    %v101 = vand.u32 %v58, 4294901760
    %102 = vmatpush1.msra.mxu0 %v101
    %103 = vmatprep.subr.mxu0 0.0
    %v104 = vand.u32 %v57, 4294901760
    %105 = vmatpush1.msra.mxu0 %v104
    %106 = vmatprep.subr.mxu0 0.0
    %v107 = vand.u32 %v56, 4294901760
    %108 = vmatpush1.msra.mxu0 %v107
    %109 = vmatprep.subr.mxu0 0.0
    %v110 = vand.u32 %v55, 4294901760
    %111 = vmatpush1.msra.mxu0 %v110
    %112 = vmatprep.subr.mxu0 0.0
    %113 = vmatpush2.msra.mxu0 0.0
    %114 = vmatprep.subr.mxu0 0.0
    %115 = vmatpush2.msra.mxu0 0.0
    %116 = vmatprep.subr.mxu0 0.0
    %117 = vmatpush2.msra.mxu0 0.0
    %118 = vmatprep.subr.mxu0 0.0
    %119 = vmatpush2.msra.mxu0 0.0
    %120 = vmatprep.subr.mxu0 0.0
    %121 = vmatpush2.msra.mxu0 0.0
    %122 = vmatprep.subr.mxu0 0.0
    %123 = vmatpush2.msra.mxu0 0.0
    %124 = vmatprep.subr.mxu0 0.0
    %125 = vmatpush2.msra.mxu0 0.0
    %126 = vmatprep.subr.mxu0 0.0
    %127 = vmatpush2.msra.mxu0 0.0
    %128 = vmatprep.subr.mxu0 0.0
    %129 = vmatpush2.msra.mxu0 0.0
    %130 = vmatprep.subr.mxu0 0.0
    %131 = vmatpush2.msra.mxu0 0.0
    %132 = vmatprep.subr.mxu0 0.0
    %133 = vmatpush2.msra.mxu0 0.0
    %134 = vmatprep.subr.mxu0 0.0
    %135 = vmatpush2.msra.mxu0 0.0
    %136 = vmatprep.subr.mxu0 0.0
    %137 = vmatpush2.msra.mxu0 0.0
    %138 = vmatprep.subr.mxu0 0.0
    %139 = vmatpush2.msra.mxu0 0.0
    %140 = vmatprep.subr.mxu0 0.0
    %141 = vmatpush2.msra.mxu0 0.0
    %142 = vmatprep.subr.mxu0 0.0
    %143 = vmatpush2.msra.mxu0 0.0
    %144 = vmatprep.mubr.f32.mxu0 0.0
    %v145 = vand.u32 %v64, 4294901760
    %v146 = vsub.f32 %v64, %v145
    %v147 = vand.u32 %v146, 4294901760
    %v148 = vsub.f32 %v146, %v147
    %v149 = vand.u32 %v148, 4294901760
    %150 = vmatmul.mubr.f32.gmra.mxu0 %v149
    %v151 = vpop.f32.mrf.mxu0
    %v152 = vadd.f32 0.0, %v151
    %v153 = vpop.f32.mrf.mxu0
    %154 = vmatprep.mubr.f32.mxu0 0.0
    %v155 = vand.u32 %v67, 4294901760
    %v156 = vsub.f32 %v67, %v155
    %v157 = vand.u32 %v156, 4294901760
    %v158 = vsub.f32 %v156, %v157
    %v159 = vand.u32 %v158, 4294901760
    %160 = vmatmul.mubr.f32.gmra.mxu0 %v159
    %v161 = vpop.f32.mrf.mxu0
    %v162 = vadd.f32 0.0, %v161
    %v163 = vpop.f32.mrf.mxu0
    %164 = vdwg.mxu0
    %165 = vmatprep.subr.mxu0 0.0
    %166 = vmatpush1.msra.mxu0 0.0
    %167 = vmatprep.subr.mxu0 0.0
    %168 = vmatpush1.msra.mxu0 0.0
    %169 = vmatprep.subr.mxu0 0.0
    %170 = vmatpush1.msra.mxu0 0.0
    %171 = vmatprep.subr.mxu0 0.0
    %172 = vmatpush1.msra.mxu0 0.0
    %173 = vmatprep.subr.mxu0 0.0
    %174 = vmatpush1.msra.mxu0 0.0
    %175 = vmatprep.subr.mxu0 0.0
    %176 = vmatpush1.msra.mxu0 0.0
    %177 = vmatprep.subr.mxu0 0.0
    %178 = vmatpush1.msra.mxu0 0.0
    %179 = vmatprep.subr.mxu0 0.0
    %180 = vmatpush1.msra.mxu0 0.0
    %181 = vmatprep.subr.mxu0 0.0
    %182 = vmatpush1.msra.mxu0 0.0
    %183 = vmatprep.subr.mxu0 0.0
    %v184 = vand.u32 %v71, 4294901760
    %v185 = vsub.f32 %v71, %v184
    %v186 = vand.u32 %v185, 4294901760
    %v187 = vsub.f32 %v185, %v186
    %v188 = vand.u32 %v187, 4294901760
    %189 = vmatpush1.msra.mxu0 %v188
    %190 = vmatprep.subr.mxu0 0.0
    %v191 = vand.u32 %v60, 4294901760
    %v192 = vsub.f32 %v60, %v191
    %v193 = vand.u32 %v192, 4294901760
    %v194 = vsub.f32 %v192, %v193
    %v195 = vand.u32 %v194, 4294901760
    %196 = vmatpush1.msra.mxu0 %v195
    %197 = vmatprep.subr.mxu0 0.0
    %v198 = vand.u32 %v59, 4294901760
    %v199 = vsub.f32 %v59, %v198
    %v200 = vand.u32 %v199, 4294901760
    %v201 = vsub.f32 %v199, %v200
    %v202 = vand.u32 %v201, 4294901760
    %203 = vmatpush1.msra.mxu0 %v202
    %204 = vmatprep.subr.mxu0 0.0
    %v205 = vand.u32 %v58, 4294901760
    %v206 = vsub.f32 %v58, %v205
    %v207 = vand.u32 %v206, 4294901760
    %v208 = vsub.f32 %v206, %v207
    %v209 = vand.u32 %v208, 4294901760
    %210 = vmatpush1.msra.mxu0 %v209
    %211 = vmatprep.subr.mxu0 0.0
    %v212 = vand.u32 %v57, 4294901760
    %v213 = vsub.f32 %v57, %v212
    %v214 = vand.u32 %v213, 4294901760
    %v215 = vsub.f32 %v213, %v214
    %v216 = vand.u32 %v215, 4294901760
    %217 = vmatpush1.msra.mxu0 %v216
    %218 = vmatprep.subr.mxu0 0.0
    %v219 = vand.u32 %v56, 4294901760
    %v220 = vsub.f32 %v56, %v219
    %v221 = vand.u32 %v220, 4294901760
    %v222 = vsub.f32 %v220, %v221
    %v223 = vand.u32 %v222, 4294901760
    %224 = vmatpush1.msra.mxu0 %v223
    %225 = vmatprep.subr.mxu0 0.0
    %v226 = vand.u32 %v55, 4294901760
    %v227 = vsub.f32 %v55, %v226
    %v228 = vand.u32 %v227, 4294901760
    %v229 = vsub.f32 %v227, %v228
    %v230 = vand.u32 %v229, 4294901760
    %231 = vmatpush1.msra.mxu0 %v230
    %232 = vmatprep.subr.mxu0 0.0
    %233 = vmatpush2.msra.mxu0 0.0
    %234 = vmatprep.subr.mxu0 0.0
    %235 = vmatpush2.msra.mxu0 0.0
    %236 = vmatprep.subr.mxu0 0.0
    %237 = vmatpush2.msra.mxu0 0.0
    %238 = vmatprep.subr.mxu0 0.0
    %239 = vmatpush2.msra.mxu0 0.0
    %240 = vmatprep.subr.mxu0 0.0
    %241 = vmatpush2.msra.mxu0 0.0
    %242 = vmatprep.subr.mxu0 0.0
    %243 = vmatpush2.msra.mxu0 0.0
    %244 = vmatprep.subr.mxu0 0.0
    %245 = vmatpush2.msra.mxu0 0.0
    %246 = vmatprep.subr.mxu0 0.0
    %247 = vmatpush2.msra.mxu0 0.0
    %248 = vmatprep.subr.mxu0 0.0
    %249 = vmatpush2.msra.mxu0 0.0
    %250 = vmatprep.subr.mxu0 0.0
    %251 = vmatpush2.msra.mxu0 0.0
    %252 = vmatprep.subr.mxu0 0.0
    %253 = vmatpush2.msra.mxu0 0.0
    %254 = vmatprep.subr.mxu0 0.0
    %255 = vmatpush2.msra.mxu0 0.0
    %256 = vmatprep.subr.mxu0 0.0
    %257 = vmatpush2.msra.mxu0 0.0
    %258 = vmatprep.subr.mxu0 0.0
    %259 = vmatpush2.msra.mxu0 0.0
    %260 = vmatprep.subr.mxu0 0.0
    %261 = vmatpush2.msra.mxu0 0.0
    %262 = vmatprep.subr.mxu0 0.0
    %263 = vmatpush2.msra.mxu0 0.0
    %264 = vmatprep.mubr.f32.mxu0 0.0
    %v265 = vand.u32 %v64, 4294901760
    %266 = vmatmul.mubr.f32.gmra.mxu0 %v265
    %v267 = vpop.f32.mrf.mxu0
    %v268 = vadd.f32 %v152, %v267
    %v269 = vpop.f32.mrf.mxu0
    %270 = vmatprep.mubr.f32.mxu0 0.0
    %v271 = vand.u32 %v67, 4294901760
    %272 = vmatmul.mubr.f32.gmra.mxu0 %v271
    %v273 = vpop.f32.mrf.mxu0
    %v274 = vadd.f32 %v162, %v273
    %v275 = vpop.f32.mrf.mxu0
    %276 = vdwg.mxu0
    %277 = vmatprep.subr.mxu0 0.0
    %278 = vmatpush1.msra.mxu0 0.0
    %279 = vmatprep.subr.mxu0 0.0
    %280 = vmatpush1.msra.mxu0 0.0
    %281 = vmatprep.subr.mxu0 0.0
    %282 = vmatpush1.msra.mxu0 0.0
    %283 = vmatprep.subr.mxu0 0.0
    %284 = vmatpush1.msra.mxu0 0.0
    %285 = vmatprep.subr.mxu0 0.0
    %286 = vmatpush1.msra.mxu0 0.0
    %287 = vmatprep.subr.mxu0 0.0
    %288 = vmatpush1.msra.mxu0 0.0
    %289 = vmatprep.subr.mxu0 0.0
    %290 = vmatpush1.msra.mxu0 0.0
    %291 = vmatprep.subr.mxu0 0.0
    %292 = vmatpush1.msra.mxu0 0.0
    %293 = vmatprep.subr.mxu0 0.0
    %294 = vmatpush1.msra.mxu0 0.0
    %295 = vmatprep.subr.mxu0 0.0
    %v296 = vand.u32 %v71, 4294901760
    %v297 = vsub.f32 %v71, %v296
    %298 = vmatpush1.msra.mxu0 %v297
    %299 = vmatprep.subr.mxu0 0.0
    %v300 = vand.u32 %v60, 4294901760
    %v301 = vsub.f32 %v60, %v300
    %302 = vmatpush1.msra.mxu0 %v301
    %303 = vmatprep.subr.mxu0 0.0
    %v304 = vand.u32 %v59, 4294901760
    %v305 = vsub.f32 %v59, %v304
    %306 = vmatpush1.msra.mxu0 %v305
    %307 = vmatprep.subr.mxu0 0.0
    %v308 = vand.u32 %v58, 4294901760
    %v309 = vsub.f32 %v58, %v308
    %310 = vmatpush1.msra.mxu0 %v309
    %311 = vmatprep.subr.mxu0 0.0
    %v312 = vand.u32 %v57, 4294901760
    %v313 = vsub.f32 %v57, %v312
    %314 = vmatpush1.msra.mxu0 %v313
    %315 = vmatprep.subr.mxu0 0.0
    %v316 = vand.u32 %v56, 4294901760
    %v317 = vsub.f32 %v56, %v316
    %318 = vmatpush1.msra.mxu0 %v317
    %319 = vmatprep.subr.mxu0 0.0
    %v320 = vand.u32 %v55, 4294901760
    %v321 = vsub.f32 %v55, %v320
    %322 = vmatpush1.msra.mxu0 %v321
    %323 = vmatprep.subr.mxu0 0.0
    %324 = vmatpush2.msra.mxu0 0.0
    %325 = vmatprep.subr.mxu0 0.0
    %326 = vmatpush2.msra.mxu0 0.0
    %327 = vmatprep.subr.mxu0 0.0
    %328 = vmatpush2.msra.mxu0 0.0
    %329 = vmatprep.subr.mxu0 0.0
    %330 = vmatpush2.msra.mxu0 0.0
    %331 = vmatprep.subr.mxu0 0.0
    %332 = vmatpush2.msra.mxu0 0.0
    %333 = vmatprep.subr.mxu0 0.0
    %334 = vmatpush2.msra.mxu0 0.0
    %335 = vmatprep.subr.mxu0 0.0
    %336 = vmatpush2.msra.mxu0 0.0
    %337 = vmatprep.subr.mxu0 0.0
    %338 = vmatpush2.msra.mxu0 0.0
    %339 = vmatprep.subr.mxu0 0.0
    %340 = vmatpush2.msra.mxu0 0.0
    %341 = vmatprep.subr.mxu0 0.0
    %342 = vmatpush2.msra.mxu0 0.0
    %343 = vmatprep.subr.mxu0 0.0
    %344 = vmatpush2.msra.mxu0 0.0
    %345 = vmatprep.subr.mxu0 0.0
    %346 = vmatpush2.msra.mxu0 0.0
    %347 = vmatprep.subr.mxu0 0.0
    %348 = vmatpush2.msra.mxu0 0.0
    %349 = vmatprep.subr.mxu0 0.0
    %350 = vmatpush2.msra.mxu0 0.0
    %351 = vmatprep.subr.mxu0 0.0
    %352 = vmatpush2.msra.mxu0 0.0
    %353 = vmatprep.subr.mxu0 0.0
    %354 = vmatpush2.msra.mxu0 0.0
    %355 = vmatprep.mubr.f32.mxu0 0.0
    %v356 = vand.u32 %v64, 4294901760
    %v357 = vsub.f32 %v64, %v356
    %358 = vmatmul.mubr.f32.gmra.mxu0 %v357
    %v359 = vpop.f32.mrf.mxu0
    %v360 = vadd.f32 %v268, %v359
    %v361 = vpop.f32.mrf.mxu0
    %362 = vmatprep.mubr.f32.mxu0 0.0
    %v363 = vand.u32 %v67, 4294901760
    %v364 = vsub.f32 %v67, %v363
    %365 = vmatmul.mubr.f32.gmra.mxu0 %v364
    %v366 = vpop.f32.mrf.mxu0
    %v367 = vadd.f32 %v274, %v366
    %v368 = vpop.f32.mrf.mxu0
    %369 = vdwg.mxu0
    %370 = vmatprep.subr.mxu0 0.0
    %371 = vmatpush1.msra.mxu0 0.0
    %372 = vmatprep.subr.mxu0 0.0
    %373 = vmatpush1.msra.mxu0 0.0
    %374 = vmatprep.subr.mxu0 0.0
    %375 = vmatpush1.msra.mxu0 0.0
    %376 = vmatprep.subr.mxu0 0.0
    %377 = vmatpush1.msra.mxu0 0.0
    %378 = vmatprep.subr.mxu0 0.0
    %379 = vmatpush1.msra.mxu0 0.0
    %380 = vmatprep.subr.mxu0 0.0
    %381 = vmatpush1.msra.mxu0 0.0
    %382 = vmatprep.subr.mxu0 0.0
    %383 = vmatpush1.msra.mxu0 0.0
    %384 = vmatprep.subr.mxu0 0.0
    %385 = vmatpush1.msra.mxu0 0.0
    %386 = vmatprep.subr.mxu0 0.0
    %387 = vmatpush1.msra.mxu0 0.0
    %388 = vmatprep.subr.mxu0 0.0
    %v389 = vand.u32 %v71, 4294901760
    %390 = vmatpush1.msra.mxu0 %v389
    %391 = vmatprep.subr.mxu0 0.0
    %v392 = vand.u32 %v60, 4294901760
    %393 = vmatpush1.msra.mxu0 %v392
    %394 = vmatprep.subr.mxu0 0.0
    %v395 = vand.u32 %v59, 4294901760
    %396 = vmatpush1.msra.mxu0 %v395
    %397 = vmatprep.subr.mxu0 0.0
    %v398 = vand.u32 %v58, 4294901760
    %399 = vmatpush1.msra.mxu0 %v398
    %400 = vmatprep.subr.mxu0 0.0
    %v401 = vand.u32 %v57, 4294901760
    %402 = vmatpush1.msra.mxu0 %v401
    %403 = vmatprep.subr.mxu0 0.0
    %v404 = vand.u32 %v56, 4294901760
    %405 = vmatpush1.msra.mxu0 %v404
    %406 = vmatprep.subr.mxu0 0.0
    %v407 = vand.u32 %v55, 4294901760
    %408 = vmatpush1.msra.mxu0 %v407
    %409 = vmatprep.subr.mxu0 0.0
    %410 = vmatpush2.msra.mxu0 0.0
    %411 = vmatprep.subr.mxu0 0.0
    %412 = vmatpush2.msra.mxu0 0.0
    %413 = vmatprep.subr.mxu0 0.0
    %414 = vmatpush2.msra.mxu0 0.0
    %415 = vmatprep.subr.mxu0 0.0
    %416 = vmatpush2.msra.mxu0 0.0
    %417 = vmatprep.subr.mxu0 0.0
    %418 = vmatpush2.msra.mxu0 0.0
    %419 = vmatprep.subr.mxu0 0.0
    %420 = vmatpush2.msra.mxu0 0.0
    %421 = vmatprep.subr.mxu0 0.0
    %422 = vmatpush2.msra.mxu0 0.0
    %423 = vmatprep.subr.mxu0 0.0
    %424 = vmatpush2.msra.mxu0 0.0
    %425 = vmatprep.subr.mxu0 0.0
    %426 = vmatpush2.msra.mxu0 0.0
    %427 = vmatprep.subr.mxu0 0.0
    %428 = vmatpush2.msra.mxu0 0.0
    %429 = vmatprep.subr.mxu0 0.0
    %430 = vmatpush2.msra.mxu0 0.0
    %431 = vmatprep.subr.mxu0 0.0
    %432 = vmatpush2.msra.mxu0 0.0
    %433 = vmatprep.subr.mxu0 0.0
    %434 = vmatpush2.msra.mxu0 0.0
    %435 = vmatprep.subr.mxu0 0.0
    %436 = vmatpush2.msra.mxu0 0.0
    %437 = vmatprep.subr.mxu0 0.0
    %438 = vmatpush2.msra.mxu0 0.0
    %439 = vmatprep.subr.mxu0 0.0
    %440 = vmatpush2.msra.mxu0 0.0
    %441 = vmatprep.mubr.f32.mxu0 0.0
    %v442 = vand.u32 %v64, 4294901760
    %v443 = vsub.f32 %v64, %v442
    %v444 = vand.u32 %v443, 4294901760
    %445 = vmatmul.mubr.f32.gmra.mxu0 %v444
    %v446 = vpop.f32.mrf.mxu0
    %v447 = vadd.f32 %v360, %v446
    %v448 = vpop.f32.mrf.mxu0
    %449 = vmatprep.mubr.f32.mxu0 0.0
    %v450 = vand.u32 %v67, 4294901760
    %v451 = vsub.f32 %v67, %v450
    %v452 = vand.u32 %v451, 4294901760
    %453 = vmatmul.mubr.f32.gmra.mxu0 %v452
    %v454 = vpop.f32.mrf.mxu0
    %v455 = vadd.f32 %v367, %v454
    %v456 = vpop.f32.mrf.mxu0
    %457 = vdwg.mxu0
    %458 = vmatprep.subr.mxu0 0.0
    %459 = vmatpush1.msra.mxu0 0.0
    %460 = vmatprep.subr.mxu0 0.0
    %461 = vmatpush1.msra.mxu0 0.0
    %462 = vmatprep.subr.mxu0 0.0
    %463 = vmatpush1.msra.mxu0 0.0
    %464 = vmatprep.subr.mxu0 0.0
    %465 = vmatpush1.msra.mxu0 0.0
    %466 = vmatprep.subr.mxu0 0.0
    %467 = vmatpush1.msra.mxu0 0.0
    %468 = vmatprep.subr.mxu0 0.0
    %469 = vmatpush1.msra.mxu0 0.0
    %470 = vmatprep.subr.mxu0 0.0
    %471 = vmatpush1.msra.mxu0 0.0
    %472 = vmatprep.subr.mxu0 0.0
    %473 = vmatpush1.msra.mxu0 0.0
    %474 = vmatprep.subr.mxu0 0.0
    %475 = vmatpush1.msra.mxu0 0.0
    %476 = vmatprep.subr.mxu0 0.0
    %v477 = vand.u32 %v71, 4294901760
    %v478 = vsub.f32 %v71, %v477
    %v479 = vand.u32 %v478, 4294901760
    %480 = vmatpush1.msra.mxu0 %v479
    %481 = vmatprep.subr.mxu0 0.0
    %v482 = vand.u32 %v60, 4294901760
    %v483 = vsub.f32 %v60, %v482
    %v484 = vand.u32 %v483, 4294901760
    %485 = vmatpush1.msra.mxu0 %v484
    %486 = vmatprep.subr.mxu0 0.0
    %v487 = vand.u32 %v59, 4294901760
    %v488 = vsub.f32 %v59, %v487
    %v489 = vand.u32 %v488, 4294901760
    %490 = vmatpush1.msra.mxu0 %v489
    %491 = vmatprep.subr.mxu0 0.0
    %v492 = vand.u32 %v58, 4294901760
    %v493 = vsub.f32 %v58, %v492
    %v494 = vand.u32 %v493, 4294901760
    %495 = vmatpush1.msra.mxu0 %v494
    %496 = vmatprep.subr.mxu0 0.0
    %v497 = vand.u32 %v57, 4294901760
    %v498 = vsub.f32 %v57, %v497
    %v499 = vand.u32 %v498, 4294901760
    %500 = vmatpush1.msra.mxu0 %v499
    %501 = vmatprep.subr.mxu0 0.0
    %v502 = vand.u32 %v56, 4294901760
    %v503 = vsub.f32 %v56, %v502
    %v504 = vand.u32 %v503, 4294901760
    %505 = vmatpush1.msra.mxu0 %v504
    %506 = vmatprep.subr.mxu0 0.0
    %v507 = vand.u32 %v55, 4294901760
    %v508 = vsub.f32 %v55, %v507
    %v509 = vand.u32 %v508, 4294901760
    %510 = vmatpush1.msra.mxu0 %v509
    %511 = vmatprep.subr.mxu0 0.0
    %512 = vmatpush2.msra.mxu0 0.0
    %513 = vmatprep.subr.mxu0 0.0
    %514 = vmatpush2.msra.mxu0 0.0
    %515 = vmatprep.subr.mxu0 0.0
    %516 = vmatpush2.msra.mxu0 0.0
    %517 = vmatprep.subr.mxu0 0.0
    %518 = vmatpush2.msra.mxu0 0.0
    %519 = vmatprep.subr.mxu0 0.0
    %520 = vmatpush2.msra.mxu0 0.0
    %521 = vmatprep.subr.mxu0 0.0
    %522 = vmatpush2.msra.mxu0 0.0
    %523 = vmatprep.subr.mxu0 0.0
    %524 = vmatpush2.msra.mxu0 0.0
    %525 = vmatprep.subr.mxu0 0.0
    %526 = vmatpush2.msra.mxu0 0.0
    %527 = vmatprep.subr.mxu0 0.0
    %528 = vmatpush2.msra.mxu0 0.0
    %529 = vmatprep.subr.mxu0 0.0
    %530 = vmatpush2.msra.mxu0 0.0
    %531 = vmatprep.subr.mxu0 0.0
    %532 = vmatpush2.msra.mxu0 0.0
    %533 = vmatprep.subr.mxu0 0.0
    %534 = vmatpush2.msra.mxu0 0.0
    %535 = vmatprep.subr.mxu0 0.0
    %536 = vmatpush2.msra.mxu0 0.0
    %537 = vmatprep.subr.mxu0 0.0
    %538 = vmatpush2.msra.mxu0 0.0
    %539 = vmatprep.subr.mxu0 0.0
    %540 = vmatpush2.msra.mxu0 0.0
    %541 = vmatprep.subr.mxu0 0.0
    %542 = vmatpush2.msra.mxu0 0.0
    %543 = vmatprep.mubr.f32.mxu0 0.0
    %v544 = vand.u32 %v64, 4294901760
    %545 = vmatmul.mubr.f32.gmra.mxu0 %v544
    %v546 = vpop.f32.mrf.mxu0
    %v547 = vadd.f32 %v447, %v546
    %v548 = vpop.f32.mrf.mxu0
    %549 = vmatprep.mubr.f32.mxu0 0.0
    %v550 = vand.u32 %v67, 4294901760
    %551 = vmatmul.mubr.f32.gmra.mxu0 %v550
    %v552 = vpop.f32.mrf.mxu0
    %v553 = vadd.f32 %v455, %v552
    %v554 = vpop.f32.mrf.mxu0
    %555 = vdwg.mxu0
    %556 = vmatprep.subr.mxu0 0.0
    %557 = vmatpush1.msra.mxu0 0.0
    %558 = vmatprep.subr.mxu0 0.0
    %559 = vmatpush1.msra.mxu0 0.0
    %560 = vmatprep.subr.mxu0 0.0
    %561 = vmatpush1.msra.mxu0 0.0
    %562 = vmatprep.subr.mxu0 0.0
    %563 = vmatpush1.msra.mxu0 0.0
    %564 = vmatprep.subr.mxu0 0.0
    %565 = vmatpush1.msra.mxu0 0.0
    %566 = vmatprep.subr.mxu0 0.0
    %567 = vmatpush1.msra.mxu0 0.0
    %568 = vmatprep.subr.mxu0 0.0
    %569 = vmatpush1.msra.mxu0 0.0
    %570 = vmatprep.subr.mxu0 0.0
    %571 = vmatpush1.msra.mxu0 0.0
    %572 = vmatprep.subr.mxu0 0.0
    %573 = vmatpush1.msra.mxu0 0.0
    %574 = vmatprep.subr.mxu0 0.0
    %v575 = vand.u32 %v71, 4294901760
    %576 = vmatpush1.msra.mxu0 %v575
    %577 = vmatprep.subr.mxu0 0.0
    %v578 = vand.u32 %v60, 4294901760
    %579 = vmatpush1.msra.mxu0 %v578
    %580 = vmatprep.subr.mxu0 0.0
    %v581 = vand.u32 %v59, 4294901760
    %582 = vmatpush1.msra.mxu0 %v581
    %583 = vmatprep.subr.mxu0 0.0
    %v584 = vand.u32 %v58, 4294901760
    %585 = vmatpush1.msra.mxu0 %v584
    %586 = vmatprep.subr.mxu0 0.0
    %v587 = vand.u32 %v57, 4294901760
    %588 = vmatpush1.msra.mxu0 %v587
    %589 = vmatprep.subr.mxu0 0.0
    %v590 = vand.u32 %v56, 4294901760
    %591 = vmatpush1.msra.mxu0 %v590
    %592 = vmatprep.subr.mxu0 0.0
    %v593 = vand.u32 %v55, 4294901760
    %594 = vmatpush1.msra.mxu0 %v593
    %595 = vmatprep.subr.mxu0 0.0
    %596 = vmatpush2.msra.mxu0 0.0
    %597 = vmatprep.subr.mxu0 0.0
    %598 = vmatpush2.msra.mxu0 0.0
    %599 = vmatprep.subr.mxu0 0.0
    %600 = vmatpush2.msra.mxu0 0.0
    %601 = vmatprep.subr.mxu0 0.0
    %602 = vmatpush2.msra.mxu0 0.0
    %603 = vmatprep.subr.mxu0 0.0
    %604 = vmatpush2.msra.mxu0 0.0
    %605 = vmatprep.subr.mxu0 0.0
    %606 = vmatpush2.msra.mxu0 0.0
    %607 = vmatprep.subr.mxu0 0.0
    %608 = vmatpush2.msra.mxu0 0.0
    %609 = vmatprep.subr.mxu0 0.0
    %610 = vmatpush2.msra.mxu0 0.0
    %611 = vmatprep.subr.mxu0 0.0
    %612 = vmatpush2.msra.mxu0 0.0
    %613 = vmatprep.subr.mxu0 0.0
    %614 = vmatpush2.msra.mxu0 0.0
    %615 = vmatprep.subr.mxu0 0.0
    %616 = vmatpush2.msra.mxu0 0.0
    %617 = vmatprep.subr.mxu0 0.0
    %618 = vmatpush2.msra.mxu0 0.0
    %619 = vmatprep.subr.mxu0 0.0
    %620 = vmatpush2.msra.mxu0 0.0
    %621 = vmatprep.subr.mxu0 0.0
    %622 = vmatpush2.msra.mxu0 0.0
    %623 = vmatprep.subr.mxu0 0.0
    %624 = vmatpush2.msra.mxu0 0.0
    %625 = vmatprep.subr.mxu0 0.0
    %626 = vmatpush2.msra.mxu0 0.0
    %627 = vmatprep.mubr.f32.mxu0 0.0
    %v628 = vand.u32 %v64, 4294901760
    %629 = vmatmul.mubr.f32.gmra.mxu0 %v628
    %v630 = vpop.f32.mrf.mxu0
    %v631 = vadd.f32 %v547, %v630
    %v632 = vpop.f32.mrf.mxu0
    %633 = vmatprep.mubr.f32.mxu0 0.0
    %v634 = vand.u32 %v67, 4294901760
    %635 = vmatmul.mubr.f32.gmra.mxu0 %v634
    %v636 = vpop.f32.mrf.mxu0
    %v637 = vadd.f32 %v553, %v636
    %v638 = vpop.f32.mrf.mxu0
    %639 = vdwg.mxu0
    %v640 = vld [vmem:[%s2] sm:$0xff]
    %v641 = vld [vmem:[%s2 + $0x8] sm:$0xff]
    %v642 = vld [vmem:[%s2 + $0x10] sm:$0xff]
    %v643 = vld [vmem:[%s2 + $0x18] sm:$0xff]
    %v644 = vld [vmem:[%s4] sm:$0x1]
    %v645 = vlaneseq
    %v646 = vshrl.u32 %v645, 7
    %v647 = vsub.s32 0, %v646
    %v648 = vrot.slane %v644, %v647
    %vm649 = vcmask 261120
    %v651 = vsel %vm649, %v631, 0
    %653 = vmatprep.subr.mxu0 0.0
    %654 = vmatpush1.msra.mxu0 0.0
    %655 = vmatprep.subr.mxu0 0.0
    %656 = vmatpush1.msra.mxu0 0.0
    %657 = vmatprep.subr.mxu0 0.0
    %658 = vmatpush1.msra.mxu0 0.0
    %659 = vmatprep.subr.mxu0 0.0
    %660 = vmatpush1.msra.mxu0 0.0
    %661 = vmatprep.subr.mxu0 0.0
    %662 = vmatpush1.msra.mxu0 0.0
    %663 = vmatprep.subr.mxu0 0.0
    %664 = vmatpush1.msra.mxu0 0.0
    %665 = vmatprep.subr.mxu0 0.0
    %666 = vmatpush1.msra.mxu0 0.0
    %667 = vmatprep.subr.mxu0 0.0
    %668 = vmatpush1.msra.mxu0 0.0
    %669 = vmatprep.subr.mxu0 0.0
    %670 = vmatpush1.msra.mxu0 0.0
    %671 = vmatprep.subr.mxu0 0.0
    %672 = vmatpush1.msra.mxu0 0.0
    %673 = vmatprep.subr.mxu0 0.0
    %674 = vmatpush1.msra.mxu0 0.0
    %675 = vmatprep.subr.mxu0 0.0
    %676 = vmatpush1.msra.mxu0 0.0
    %677 = vmatprep.subr.mxu0 0.0
    %v678 = vand.u32 %v643, 4294901760
    %679 = vmatpush1.msra.mxu0 %v678
    %680 = vmatprep.subr.mxu0 0.0
    %v681 = vand.u32 %v642, 4294901760
    %682 = vmatpush1.msra.mxu0 %v681
    %683 = vmatprep.subr.mxu0 0.0
    %v684 = vand.u32 %v641, 4294901760
    %685 = vmatpush1.msra.mxu0 %v684
    %686 = vmatprep.subr.mxu0 0.0
    %v687 = vand.u32 %v640, 4294901760
    %688 = vmatpush1.msra.mxu0 %v687
    %689 = vmatprep.subr.mxu0 0.0
    %690 = vmatpush2.msra.mxu0 0.0
    %691 = vmatprep.subr.mxu0 0.0
    %692 = vmatpush2.msra.mxu0 0.0
    %693 = vmatprep.subr.mxu0 0.0
    %694 = vmatpush2.msra.mxu0 0.0
    %695 = vmatprep.subr.mxu0 0.0
    %696 = vmatpush2.msra.mxu0 0.0
    %697 = vmatprep.subr.mxu0 0.0
    %698 = vmatpush2.msra.mxu0 0.0
    %699 = vmatprep.subr.mxu0 0.0
    %700 = vmatpush2.msra.mxu0 0.0
    %701 = vmatprep.subr.mxu0 0.0
    %702 = vmatpush2.msra.mxu0 0.0
    %703 = vmatprep.subr.mxu0 0.0
    %704 = vmatpush2.msra.mxu0 0.0
    %705 = vmatprep.subr.mxu0 0.0
    %706 = vmatpush2.msra.mxu0 0.0
    %707 = vmatprep.subr.mxu0 0.0
    %708 = vmatpush2.msra.mxu0 0.0
    %709 = vmatprep.subr.mxu0 0.0
    %710 = vmatpush2.msra.mxu0 0.0
    %711 = vmatprep.subr.mxu0 0.0
    %712 = vmatpush2.msra.mxu0 0.0
    %713 = vmatprep.subr.mxu0 0.0
    %714 = vmatpush2.msra.mxu0 0.0
    %715 = vmatprep.subr.mxu0 0.0
    %716 = vmatpush2.msra.mxu0 0.0
    %717 = vmatprep.subr.mxu0 0.0
    %718 = vmatpush2.msra.mxu0 0.0
    %719 = vmatprep.subr.mxu0 0.0
    %720 = vmatpush2.msra.mxu0 0.0
    %721 = vmatprep.mubr.f32.mxu0 0.0
    %v722 = vand.u32 %v651, 4294901760
    %v723 = vsub.f32 %v651, %v722
    %v724 = vand.u32 %v723, 4294901760
    %v725 = vsub.f32 %v723, %v724
    %v726 = vand.u32 %v725, 4294901760
    %727 = vmatmul.mubr.f32.gmra.mxu0 %v726
    %v728 = vpop.f32.mrf.mxu0
    %v729 = vadd.f32 %v648, %v728
    %v730 = vpop.f32.mrf.mxu0
    %731 = vdwg.mxu0
    %732 = vmatprep.subr.mxu0 0.0
    %733 = vmatpush1.msra.mxu0 0.0
    %734 = vmatprep.subr.mxu0 0.0
    %735 = vmatpush1.msra.mxu0 0.0
    %736 = vmatprep.subr.mxu0 0.0
    %737 = vmatpush1.msra.mxu0 0.0
    %738 = vmatprep.subr.mxu0 0.0
    %739 = vmatpush1.msra.mxu0 0.0
    %740 = vmatprep.subr.mxu0 0.0
    %741 = vmatpush1.msra.mxu0 0.0
    %742 = vmatprep.subr.mxu0 0.0
    %743 = vmatpush1.msra.mxu0 0.0
    %744 = vmatprep.subr.mxu0 0.0
    %745 = vmatpush1.msra.mxu0 0.0
    %746 = vmatprep.subr.mxu0 0.0
    %747 = vmatpush1.msra.mxu0 0.0
    %748 = vmatprep.subr.mxu0 0.0
    %749 = vmatpush1.msra.mxu0 0.0
    %750 = vmatprep.subr.mxu0 0.0
    %751 = vmatpush1.msra.mxu0 0.0
    %752 = vmatprep.subr.mxu0 0.0
    %753 = vmatpush1.msra.mxu0 0.0
    %754 = vmatprep.subr.mxu0 0.0
    %755 = vmatpush1.msra.mxu0 0.0
    %756 = vmatprep.subr.mxu0 0.0
    %v757 = vand.u32 %v643, 4294901760
    %v758 = vsub.f32 %v643, %v757
    %v759 = vand.u32 %v758, 4294901760
    %v760 = vsub.f32 %v758, %v759
    %v761 = vand.u32 %v760, 4294901760
    %762 = vmatpush1.msra.mxu0 %v761
    %763 = vmatprep.subr.mxu0 0.0
    %v764 = vand.u32 %v642, 4294901760
    %v765 = vsub.f32 %v642, %v764
    %v766 = vand.u32 %v765, 4294901760
    %v767 = vsub.f32 %v765, %v766
    %v768 = vand.u32 %v767, 4294901760
    %769 = vmatpush1.msra.mxu0 %v768
    %770 = vmatprep.subr.mxu0 0.0
    %v771 = vand.u32 %v641, 4294901760
    %v772 = vsub.f32 %v641, %v771
    %v773 = vand.u32 %v772, 4294901760
    %v774 = vsub.f32 %v772, %v773
    %v775 = vand.u32 %v774, 4294901760
    %776 = vmatpush1.msra.mxu0 %v775
    %777 = vmatprep.subr.mxu0 0.0
    %v778 = vand.u32 %v640, 4294901760
    %v779 = vsub.f32 %v640, %v778
    %v780 = vand.u32 %v779, 4294901760
    %v781 = vsub.f32 %v779, %v780
    %v782 = vand.u32 %v781, 4294901760
    %783 = vmatpush1.msra.mxu0 %v782
    %784 = vmatprep.subr.mxu0 0.0
    %785 = vmatpush2.msra.mxu0 0.0
    %786 = vmatprep.subr.mxu0 0.0
    %787 = vmatpush2.msra.mxu0 0.0
    %788 = vmatprep.subr.mxu0 0.0
    %789 = vmatpush2.msra.mxu0 0.0
    %790 = vmatprep.subr.mxu0 0.0
    %791 = vmatpush2.msra.mxu0 0.0
    %792 = vmatprep.subr.mxu0 0.0
    %793 = vmatpush2.msra.mxu0 0.0
    %794 = vmatprep.subr.mxu0 0.0
    %795 = vmatpush2.msra.mxu0 0.0
    %796 = vmatprep.subr.mxu0 0.0
    %797 = vmatpush2.msra.mxu0 0.0
    %798 = vmatprep.subr.mxu0 0.0
    %799 = vmatpush2.msra.mxu0 0.0
    %800 = vmatprep.subr.mxu0 0.0
    %801 = vmatpush2.msra.mxu0 0.0
    %802 = vmatprep.subr.mxu0 0.0
    %803 = vmatpush2.msra.mxu0 0.0
    %804 = vmatprep.subr.mxu0 0.0
    %805 = vmatpush2.msra.mxu0 0.0
    %806 = vmatprep.subr.mxu0 0.0
    %807 = vmatpush2.msra.mxu0 0.0
    %808 = vmatprep.subr.mxu0 0.0
    %809 = vmatpush2.msra.mxu0 0.0
    %810 = vmatprep.subr.mxu0 0.0
    %811 = vmatpush2.msra.mxu0 0.0
    %812 = vmatprep.subr.mxu0 0.0
    %813 = vmatpush2.msra.mxu0 0.0
    %814 = vmatprep.subr.mxu0 0.0
    %815 = vmatpush2.msra.mxu0 0.0
    %816 = vmatprep.mubr.f32.mxu0 0.0
    %v817 = vand.u32 %v651, 4294901760
    %818 = vmatmul.mubr.f32.gmra.mxu0 %v817
    %v819 = vpop.f32.mrf.mxu0
    %v820 = vadd.f32 %v729, %v819
    %v821 = vpop.f32.mrf.mxu0
    %822 = vdwg.mxu0
    %823 = vmatprep.subr.mxu0 0.0
    %824 = vmatpush1.msra.mxu0 0.0
    %825 = vmatprep.subr.mxu0 0.0
    %826 = vmatpush1.msra.mxu0 0.0
    %827 = vmatprep.subr.mxu0 0.0
    %828 = vmatpush1.msra.mxu0 0.0
    %829 = vmatprep.subr.mxu0 0.0
    %830 = vmatpush1.msra.mxu0 0.0
    %831 = vmatprep.subr.mxu0 0.0
    %832 = vmatpush1.msra.mxu0 0.0
    %833 = vmatprep.subr.mxu0 0.0
    %834 = vmatpush1.msra.mxu0 0.0
    %835 = vmatprep.subr.mxu0 0.0
    %836 = vmatpush1.msra.mxu0 0.0
    %837 = vmatprep.subr.mxu0 0.0
    %838 = vmatpush1.msra.mxu0 0.0
    %839 = vmatprep.subr.mxu0 0.0
    %840 = vmatpush1.msra.mxu0 0.0
    %841 = vmatprep.subr.mxu0 0.0
    %842 = vmatpush1.msra.mxu0 0.0
    %843 = vmatprep.subr.mxu0 0.0
    %844 = vmatpush1.msra.mxu0 0.0
    %845 = vmatprep.subr.mxu0 0.0
    %846 = vmatpush1.msra.mxu0 0.0
    %847 = vmatprep.subr.mxu0 0.0
    %v848 = vand.u32 %v643, 4294901760
    %v849 = vsub.f32 %v643, %v848
    %850 = vmatpush1.msra.mxu0 %v849
    %851 = vmatprep.subr.mxu0 0.0
    %v852 = vand.u32 %v642, 4294901760
    %v853 = vsub.f32 %v642, %v852
    %854 = vmatpush1.msra.mxu0 %v853
    %855 = vmatprep.subr.mxu0 0.0
    %v856 = vand.u32 %v641, 4294901760
    %v857 = vsub.f32 %v641, %v856
    %858 = vmatpush1.msra.mxu0 %v857
    %859 = vmatprep.subr.mxu0 0.0
    %v860 = vand.u32 %v640, 4294901760
    %v861 = vsub.f32 %v640, %v860
    %862 = vmatpush1.msra.mxu0 %v861
    %863 = vmatprep.subr.mxu0 0.0
    %864 = vmatpush2.msra.mxu0 0.0
    %865 = vmatprep.subr.mxu0 0.0
    %866 = vmatpush2.msra.mxu0 0.0
    %867 = vmatprep.subr.mxu0 0.0
    %868 = vmatpush2.msra.mxu0 0.0
    %869 = vmatprep.subr.mxu0 0.0
    %870 = vmatpush2.msra.mxu0 0.0
    %871 = vmatprep.subr.mxu0 0.0
    %872 = vmatpush2.msra.mxu0 0.0
    %873 = vmatprep.subr.mxu0 0.0
    %874 = vmatpush2.msra.mxu0 0.0
    %875 = vmatprep.subr.mxu0 0.0
    %876 = vmatpush2.msra.mxu0 0.0
    %877 = vmatprep.subr.mxu0 0.0
    %878 = vmatpush2.msra.mxu0 0.0
    %879 = vmatprep.subr.mxu0 0.0
    %880 = vmatpush2.msra.mxu0 0.0
    %881 = vmatprep.subr.mxu0 0.0
    %882 = vmatpush2.msra.mxu0 0.0
    %883 = vmatprep.subr.mxu0 0.0
    %884 = vmatpush2.msra.mxu0 0.0
    %885 = vmatprep.subr.mxu0 0.0
    %886 = vmatpush2.msra.mxu0 0.0
    %887 = vmatprep.subr.mxu0 0.0
    %888 = vmatpush2.msra.mxu0 0.0
    %889 = vmatprep.subr.mxu0 0.0
    %890 = vmatpush2.msra.mxu0 0.0
    %891 = vmatprep.subr.mxu0 0.0
    %892 = vmatpush2.msra.mxu0 0.0
    %893 = vmatprep.subr.mxu0 0.0
    %894 = vmatpush2.msra.mxu0 0.0
    %895 = vmatprep.mubr.f32.mxu0 0.0
    %v896 = vand.u32 %v651, 4294901760
    %v897 = vsub.f32 %v651, %v896
    %898 = vmatmul.mubr.f32.gmra.mxu0 %v897
    %v899 = vpop.f32.mrf.mxu0
    %v900 = vadd.f32 %v820, %v899
    %v901 = vpop.f32.mrf.mxu0
    %902 = vdwg.mxu0
    %903 = vmatprep.subr.mxu0 0.0
    %904 = vmatpush1.msra.mxu0 0.0
    %905 = vmatprep.subr.mxu0 0.0
    %906 = vmatpush1.msra.mxu0 0.0
    %907 = vmatprep.subr.mxu0 0.0
    %908 = vmatpush1.msra.mxu0 0.0
    %909 = vmatprep.subr.mxu0 0.0
    %910 = vmatpush1.msra.mxu0 0.0
    %911 = vmatprep.subr.mxu0 0.0
    %912 = vmatpush1.msra.mxu0 0.0
    %913 = vmatprep.subr.mxu0 0.0
    %914 = vmatpush1.msra.mxu0 0.0
    %915 = vmatprep.subr.mxu0 0.0
    %916 = vmatpush1.msra.mxu0 0.0
    %917 = vmatprep.subr.mxu0 0.0
    %918 = vmatpush1.msra.mxu0 0.0
    %919 = vmatprep.subr.mxu0 0.0
    %920 = vmatpush1.msra.mxu0 0.0
    %921 = vmatprep.subr.mxu0 0.0
    %922 = vmatpush1.msra.mxu0 0.0
    %923 = vmatprep.subr.mxu0 0.0
    %924 = vmatpush1.msra.mxu0 0.0
    %925 = vmatprep.subr.mxu0 0.0
    %926 = vmatpush1.msra.mxu0 0.0
    %927 = vmatprep.subr.mxu0 0.0
    %v928 = vand.u32 %v643, 4294901760
    %929 = vmatpush1.msra.mxu0 %v928
    %930 = vmatprep.subr.mxu0 0.0
    %v931 = vand.u32 %v642, 4294901760
    %932 = vmatpush1.msra.mxu0 %v931
    %933 = vmatprep.subr.mxu0 0.0
    %v934 = vand.u32 %v641, 4294901760
    %935 = vmatpush1.msra.mxu0 %v934
    %936 = vmatprep.subr.mxu0 0.0
    %v937 = vand.u32 %v640, 4294901760
    %938 = vmatpush1.msra.mxu0 %v937
    %939 = vmatprep.subr.mxu0 0.0
    %940 = vmatpush2.msra.mxu0 0.0
    %941 = vmatprep.subr.mxu0 0.0
    %942 = vmatpush2.msra.mxu0 0.0
    %943 = vmatprep.subr.mxu0 0.0
    %944 = vmatpush2.msra.mxu0 0.0
    %945 = vmatprep.subr.mxu0 0.0
    %946 = vmatpush2.msra.mxu0 0.0
    %947 = vmatprep.subr.mxu0 0.0
    %948 = vmatpush2.msra.mxu0 0.0
    %949 = vmatprep.subr.mxu0 0.0
    %950 = vmatpush2.msra.mxu0 0.0
    %951 = vmatprep.subr.mxu0 0.0
    %952 = vmatpush2.msra.mxu0 0.0
    %953 = vmatprep.subr.mxu0 0.0
    %954 = vmatpush2.msra.mxu0 0.0
    %955 = vmatprep.subr.mxu0 0.0
    %956 = vmatpush2.msra.mxu0 0.0
    %957 = vmatprep.subr.mxu0 0.0
    %958 = vmatpush2.msra.mxu0 0.0
    %959 = vmatprep.subr.mxu0 0.0
    %960 = vmatpush2.msra.mxu0 0.0
    %961 = vmatprep.subr.mxu0 0.0
    %962 = vmatpush2.msra.mxu0 0.0
    %963 = vmatprep.subr.mxu0 0.0
    %964 = vmatpush2.msra.mxu0 0.0
    %965 = vmatprep.subr.mxu0 0.0
    %966 = vmatpush2.msra.mxu0 0.0
    %967 = vmatprep.subr.mxu0 0.0
    %968 = vmatpush2.msra.mxu0 0.0
    %969 = vmatprep.subr.mxu0 0.0
    %970 = vmatpush2.msra.mxu0 0.0
    %971 = vmatprep.mubr.f32.mxu0 0.0
    %v972 = vand.u32 %v651, 4294901760
    %v973 = vsub.f32 %v651, %v972
    %v974 = vand.u32 %v973, 4294901760
    %975 = vmatmul.mubr.f32.gmra.mxu0 %v974
    %v976 = vpop.f32.mrf.mxu0
    %v977 = vadd.f32 %v900, %v976
    %v978 = vpop.f32.mrf.mxu0
    %979 = vdwg.mxu0
    %980 = vmatprep.subr.mxu0 0.0
    %981 = vmatpush1.msra.mxu0 0.0
    %982 = vmatprep.subr.mxu0 0.0
    %983 = vmatpush1.msra.mxu0 0.0
    %984 = vmatprep.subr.mxu0 0.0
    %985 = vmatpush1.msra.mxu0 0.0
    %986 = vmatprep.subr.mxu0 0.0
    %987 = vmatpush1.msra.mxu0 0.0
    %988 = vmatprep.subr.mxu0 0.0
    %989 = vmatpush1.msra.mxu0 0.0
    %990 = vmatprep.subr.mxu0 0.0
    %991 = vmatpush1.msra.mxu0 0.0
    %992 = vmatprep.subr.mxu0 0.0
    %993 = vmatpush1.msra.mxu0 0.0
    %994 = vmatprep.subr.mxu0 0.0
    %995 = vmatpush1.msra.mxu0 0.0
    %996 = vmatprep.subr.mxu0 0.0
    %997 = vmatpush1.msra.mxu0 0.0
    %998 = vmatprep.subr.mxu0 0.0
    %999 = vmatpush1.msra.mxu0 0.0
    %1000 = vmatprep.subr.mxu0 0.0
    %1001 = vmatpush1.msra.mxu0 0.0
    %1002 = vmatprep.subr.mxu0 0.0
    %1003 = vmatpush1.msra.mxu0 0.0
    %1004 = vmatprep.subr.mxu0 0.0
    %v1005 = vand.u32 %v643, 4294901760
    %v1006 = vsub.f32 %v643, %v1005
    %v1007 = vand.u32 %v1006, 4294901760
    %1008 = vmatpush1.msra.mxu0 %v1007
    %1009 = vmatprep.subr.mxu0 0.0
    %v1010 = vand.u32 %v642, 4294901760
    %v1011 = vsub.f32 %v642, %v1010
    %v1012 = vand.u32 %v1011, 4294901760
    %1013 = vmatpush1.msra.mxu0 %v1012
    %1014 = vmatprep.subr.mxu0 0.0
    %v1015 = vand.u32 %v641, 4294901760
    %v1016 = vsub.f32 %v641, %v1015
    %v1017 = vand.u32 %v1016, 4294901760
    %1018 = vmatpush1.msra.mxu0 %v1017
    %1019 = vmatprep.subr.mxu0 0.0
    %v1020 = vand.u32 %v640, 4294901760
    %v1021 = vsub.f32 %v640, %v1020
    %v1022 = vand.u32 %v1021, 4294901760
    %1023 = vmatpush1.msra.mxu0 %v1022
    %1024 = vmatprep.subr.mxu0 0.0
    %1025 = vmatpush2.msra.mxu0 0.0
    %1026 = vmatprep.subr.mxu0 0.0
    %1027 = vmatpush2.msra.mxu0 0.0
    %1028 = vmatprep.subr.mxu0 0.0
    %1029 = vmatpush2.msra.mxu0 0.0
    %1030 = vmatprep.subr.mxu0 0.0
    %1031 = vmatpush2.msra.mxu0 0.0
    %1032 = vmatprep.subr.mxu0 0.0
    %1033 = vmatpush2.msra.mxu0 0.0
    %1034 = vmatprep.subr.mxu0 0.0
    %1035 = vmatpush2.msra.mxu0 0.0
    %1036 = vmatprep.subr.mxu0 0.0
    %1037 = vmatpush2.msra.mxu0 0.0
    %1038 = vmatprep.subr.mxu0 0.0
    %1039 = vmatpush2.msra.mxu0 0.0
    %1040 = vmatprep.subr.mxu0 0.0
    %1041 = vmatpush2.msra.mxu0 0.0
    %1042 = vmatprep.subr.mxu0 0.0
    %1043 = vmatpush2.msra.mxu0 0.0
    %1044 = vmatprep.subr.mxu0 0.0
    %1045 = vmatpush2.msra.mxu0 0.0
    %1046 = vmatprep.subr.mxu0 0.0
    %1047 = vmatpush2.msra.mxu0 0.0
    %1048 = vmatprep.subr.mxu0 0.0
    %1049 = vmatpush2.msra.mxu0 0.0
    %1050 = vmatprep.subr.mxu0 0.0
    %1051 = vmatpush2.msra.mxu0 0.0
    %1052 = vmatprep.subr.mxu0 0.0
    %1053 = vmatpush2.msra.mxu0 0.0
    %1054 = vmatprep.subr.mxu0 0.0
    %1055 = vmatpush2.msra.mxu0 0.0
    %1056 = vmatprep.mubr.f32.mxu0 0.0
    %v1057 = vand.u32 %v651, 4294901760
    %1058 = vmatmul.mubr.f32.gmra.mxu0 %v1057
    %v1059 = vpop.f32.mrf.mxu0
    %v1060 = vadd.f32 %v977, %v1059
    %v1061 = vpop.f32.mrf.mxu0
    %1062 = vdwg.mxu0
    %1063 = vmatprep.subr.mxu0 0.0
    %1064 = vmatpush1.msra.mxu0 0.0
    %1065 = vmatprep.subr.mxu0 0.0
    %1066 = vmatpush1.msra.mxu0 0.0
    %1067 = vmatprep.subr.mxu0 0.0
    %1068 = vmatpush1.msra.mxu0 0.0
    %1069 = vmatprep.subr.mxu0 0.0
    %1070 = vmatpush1.msra.mxu0 0.0
    %1071 = vmatprep.subr.mxu0 0.0
    %1072 = vmatpush1.msra.mxu0 0.0
    %1073 = vmatprep.subr.mxu0 0.0
    %1074 = vmatpush1.msra.mxu0 0.0
    %1075 = vmatprep.subr.mxu0 0.0
    %1076 = vmatpush1.msra.mxu0 0.0
    %1077 = vmatprep.subr.mxu0 0.0
    %1078 = vmatpush1.msra.mxu0 0.0
    %1079 = vmatprep.subr.mxu0 0.0
    %1080 = vmatpush1.msra.mxu0 0.0
    %1081 = vmatprep.subr.mxu0 0.0
    %1082 = vmatpush1.msra.mxu0 0.0
    %1083 = vmatprep.subr.mxu0 0.0
    %1084 = vmatpush1.msra.mxu0 0.0
    %1085 = vmatprep.subr.mxu0 0.0
    %1086 = vmatpush1.msra.mxu0 0.0
    %1087 = vmatprep.subr.mxu0 0.0
    %v1088 = vand.u32 %v643, 4294901760
    %1089 = vmatpush1.msra.mxu0 %v1088
    %1090 = vmatprep.subr.mxu0 0.0
    %v1091 = vand.u32 %v642, 4294901760
    %1092 = vmatpush1.msra.mxu0 %v1091
    %1093 = vmatprep.subr.mxu0 0.0
    %v1094 = vand.u32 %v641, 4294901760
    %1095 = vmatpush1.msra.mxu0 %v1094
    %1096 = vmatprep.subr.mxu0 0.0
    %v1097 = vand.u32 %v640, 4294901760
    %1098 = vmatpush1.msra.mxu0 %v1097
    %1099 = vmatprep.subr.mxu0 0.0
    %1100 = vmatpush2.msra.mxu0 0.0
    %1101 = vmatprep.subr.mxu0 0.0
    %1102 = vmatpush2.msra.mxu0 0.0
    %1103 = vmatprep.subr.mxu0 0.0
    %1104 = vmatpush2.msra.mxu0 0.0
    %1105 = vmatprep.subr.mxu0 0.0
    %1106 = vmatpush2.msra.mxu0 0.0
    %1107 = vmatprep.subr.mxu0 0.0
    %1108 = vmatpush2.msra.mxu0 0.0
    %1109 = vmatprep.subr.mxu0 0.0
    %1110 = vmatpush2.msra.mxu0 0.0
    %1111 = vmatprep.subr.mxu0 0.0
    %1112 = vmatpush2.msra.mxu0 0.0
    %1113 = vmatprep.subr.mxu0 0.0
    %1114 = vmatpush2.msra.mxu0 0.0
    %1115 = vmatprep.subr.mxu0 0.0
    %1116 = vmatpush2.msra.mxu0 0.0
    %1117 = vmatprep.subr.mxu0 0.0
    %1118 = vmatpush2.msra.mxu0 0.0
    %1119 = vmatprep.subr.mxu0 0.0
    %1120 = vmatpush2.msra.mxu0 0.0
    %1121 = vmatprep.subr.mxu0 0.0
    %1122 = vmatpush2.msra.mxu0 0.0
    %1123 = vmatprep.subr.mxu0 0.0
    %1124 = vmatpush2.msra.mxu0 0.0
    %1125 = vmatprep.subr.mxu0 0.0
    %1126 = vmatpush2.msra.mxu0 0.0
    %1127 = vmatprep.subr.mxu0 0.0
    %1128 = vmatpush2.msra.mxu0 0.0
    %1129 = vmatprep.subr.mxu0 0.0
    %1130 = vmatpush2.msra.mxu0 0.0
    %1131 = vmatprep.mubr.f32.mxu0 0.0
    %v1132 = vand.u32 %v651, 4294901760
    %1133 = vmatmul.mubr.f32.gmra.mxu0 %v1132
    %v1134 = vpop.f32.mrf.mxu0
    %v1135 = vadd.f32 %v1060, %v1134
    %v1136 = vpop.f32.mrf.mxu0
    %1137 = vdwg.mxu0
    %v1138 = vld [vmem:[%s3] sm:$0xff]
    %v1139 = vld [vmem:[%s3 + $0x8] sm:$0xff]
    %v1140 = vld [vmem:[%s4 + $0x1] sm:$0x1]
    %v1141 = vlaneseq
    %v1142 = vshrl.u32 %v1141, 7
    %v1143 = vsub.s32 0, %v1142
    %v1144 = vrot.slane %v1140, %v1143
    %vm1145 = vcmask 130048
    %v1147 = vsel %vm1145, 0.0, 0
    %1149 = vmatprep.subr.mxu0 0.0
    %1150 = vmatpush1.msra.mxu0 0.0
    %1151 = vmatprep.subr.mxu0 0.0
    %1152 = vmatpush1.msra.mxu0 0.0
    %1153 = vmatprep.subr.mxu0 0.0
    %1154 = vmatpush1.msra.mxu0 0.0
    %1155 = vmatprep.subr.mxu0 0.0
    %1156 = vmatpush1.msra.mxu0 0.0
    %1157 = vmatprep.subr.mxu0 0.0
    %1158 = vmatpush1.msra.mxu0 0.0
    %1159 = vmatprep.subr.mxu0 0.0
    %1160 = vmatpush1.msra.mxu0 0.0
    %1161 = vmatprep.subr.mxu0 0.0
    %1162 = vmatpush1.msra.mxu0 0.0
    %1163 = vmatprep.subr.mxu0 0.0
    %1164 = vmatpush1.msra.mxu0 0.0
    %1165 = vmatprep.subr.mxu0 0.0
    %1166 = vmatpush1.msra.mxu0 0.0
    %1167 = vmatprep.subr.mxu0 0.0
    %1168 = vmatpush1.msra.mxu0 0.0
    %1169 = vmatprep.subr.mxu0 0.0
    %1170 = vmatpush1.msra.mxu0 0.0
    %1171 = vmatprep.subr.mxu0 0.0
    %1172 = vmatpush1.msra.mxu0 0.0
    %1173 = vmatprep.subr.mxu0 0.0
    %1174 = vmatpush1.msra.mxu0 0.0
    %1175 = vmatprep.subr.mxu0 0.0
    %1176 = vmatpush1.msra.mxu0 0.0
    %1177 = vmatprep.subr.mxu0 0.0
    %v1178 = vand.u32 %v1139, 4294901760
    %1179 = vmatpush1.msra.mxu0 %v1178
    %1180 = vmatprep.subr.mxu0 0.0
    %v1181 = vand.u32 %v1138, 4294901760
    %1182 = vmatpush1.msra.mxu0 %v1181
    %1183 = vmatprep.subr.mxu0 0.0
    %1184 = vmatpush2.msra.mxu0 0.0
    %1185 = vmatprep.subr.mxu0 0.0
    %1186 = vmatpush2.msra.mxu0 0.0
    %1187 = vmatprep.subr.mxu0 0.0
    %1188 = vmatpush2.msra.mxu0 0.0
    %1189 = vmatprep.subr.mxu0 0.0
    %1190 = vmatpush2.msra.mxu0 0.0
    %1191 = vmatprep.subr.mxu0 0.0
    %1192 = vmatpush2.msra.mxu0 0.0
    %1193 = vmatprep.subr.mxu0 0.0
    %1194 = vmatpush2.msra.mxu0 0.0
    %1195 = vmatprep.subr.mxu0 0.0
    %1196 = vmatpush2.msra.mxu0 0.0
    %1197 = vmatprep.subr.mxu0 0.0
    %1198 = vmatpush2.msra.mxu0 0.0
    %1199 = vmatprep.subr.mxu0 0.0
    %1200 = vmatpush2.msra.mxu0 0.0
    %1201 = vmatprep.subr.mxu0 0.0
    %1202 = vmatpush2.msra.mxu0 0.0
    %1203 = vmatprep.subr.mxu0 0.0
    %1204 = vmatpush2.msra.mxu0 0.0
    %1205 = vmatprep.subr.mxu0 0.0
    %1206 = vmatpush2.msra.mxu0 0.0
    %1207 = vmatprep.subr.mxu0 0.0
    %1208 = vmatpush2.msra.mxu0 0.0
    %1209 = vmatprep.subr.mxu0 0.0
    %1210 = vmatpush2.msra.mxu0 0.0
    %1211 = vmatprep.subr.mxu0 0.0
    %1212 = vmatpush2.msra.mxu0 0.0
    %1213 = vmatprep.subr.mxu0 0.0
    %1214 = vmatpush2.msra.mxu0 0.0
    %1215 = vmatprep.mubr.f32.mxu0 0.0
    %v1216 = vand.u32 %v1147, 4294901760
    %v1217 = vsub.f32 %v1147, %v1216
    %v1218 = vand.u32 %v1217, 4294901760
    %v1219 = vsub.f32 %v1217, %v1218
    %v1220 = vand.u32 %v1219, 4294901760
    %1221 = vmatmul.mubr.f32.gmra.mxu0 %v1220
    %v1222 = vpop.f32.mrf.mxu0
    %v1223 = vadd.f32 %v1144, %v1222
    %v1224 = vpop.f32.mrf.mxu0
    %1225 = vdwg.mxu0
    %1226 = vmatprep.subr.mxu0 0.0
    %1227 = vmatpush1.msra.mxu0 0.0
    %1228 = vmatprep.subr.mxu0 0.0
    %1229 = vmatpush1.msra.mxu0 0.0
    %1230 = vmatprep.subr.mxu0 0.0
    %1231 = vmatpush1.msra.mxu0 0.0
    %1232 = vmatprep.subr.mxu0 0.0
    %1233 = vmatpush1.msra.mxu0 0.0
    %1234 = vmatprep.subr.mxu0 0.0
    %1235 = vmatpush1.msra.mxu0 0.0
    %1236 = vmatprep.subr.mxu0 0.0
    %1237 = vmatpush1.msra.mxu0 0.0
    %1238 = vmatprep.subr.mxu0 0.0
    %1239 = vmatpush1.msra.mxu0 0.0
    %1240 = vmatprep.subr.mxu0 0.0
    %1241 = vmatpush1.msra.mxu0 0.0
    %1242 = vmatprep.subr.mxu0 0.0
    %1243 = vmatpush1.msra.mxu0 0.0
    %1244 = vmatprep.subr.mxu0 0.0
    %1245 = vmatpush1.msra.mxu0 0.0
    %1246 = vmatprep.subr.mxu0 0.0
    %1247 = vmatpush1.msra.mxu0 0.0
    %1248 = vmatprep.subr.mxu0 0.0
    %1249 = vmatpush1.msra.mxu0 0.0
    %1250 = vmatprep.subr.mxu0 0.0
    %1251 = vmatpush1.msra.mxu0 0.0
    %1252 = vmatprep.subr.mxu0 0.0
    %1253 = vmatpush1.msra.mxu0 0.0
    %1254 = vmatprep.subr.mxu0 0.0
    %v1255 = vand.u32 %v1139, 4294901760
    %v1256 = vsub.f32 %v1139, %v1255
    %v1257 = vand.u32 %v1256, 4294901760
    %v1258 = vsub.f32 %v1256, %v1257
    %v1259 = vand.u32 %v1258, 4294901760
    %1260 = vmatpush1.msra.mxu0 %v1259
    %1261 = vmatprep.subr.mxu0 0.0
    %v1262 = vand.u32 %v1138, 4294901760
    %v1263 = vsub.f32 %v1138, %v1262
    %v1264 = vand.u32 %v1263, 4294901760
    %v1265 = vsub.f32 %v1263, %v1264
    %v1266 = vand.u32 %v1265, 4294901760
    %1267 = vmatpush1.msra.mxu0 %v1266
    %1268 = vmatprep.subr.mxu0 0.0
    %1269 = vmatpush2.msra.mxu0 0.0
    %1270 = vmatprep.subr.mxu0 0.0
    %1271 = vmatpush2.msra.mxu0 0.0
    %1272 = vmatprep.subr.mxu0 0.0
    %1273 = vmatpush2.msra.mxu0 0.0
    %1274 = vmatprep.subr.mxu0 0.0
    %1275 = vmatpush2.msra.mxu0 0.0
    %1276 = vmatprep.subr.mxu0 0.0
    %1277 = vmatpush2.msra.mxu0 0.0
    %1278 = vmatprep.subr.mxu0 0.0
    %1279 = vmatpush2.msra.mxu0 0.0
    %1280 = vmatprep.subr.mxu0 0.0
    %1281 = vmatpush2.msra.mxu0 0.0
    %1282 = vmatprep.subr.mxu0 0.0
    %1283 = vmatpush2.msra.mxu0 0.0
    %1284 = vmatprep.subr.mxu0 0.0
    %1285 = vmatpush2.msra.mxu0 0.0
    %1286 = vmatprep.subr.mxu0 0.0
    %1287 = vmatpush2.msra.mxu0 0.0
    %1288 = vmatprep.subr.mxu0 0.0
    %1289 = vmatpush2.msra.mxu0 0.0
    %1290 = vmatprep.subr.mxu0 0.0
    %1291 = vmatpush2.msra.mxu0 0.0
    %1292 = vmatprep.subr.mxu0 0.0
    %1293 = vmatpush2.msra.mxu0 0.0
    %1294 = vmatprep.subr.mxu0 0.0
    %1295 = vmatpush2.msra.mxu0 0.0
    %1296 = vmatprep.subr.mxu0 0.0
    %1297 = vmatpush2.msra.mxu0 0.0
    %1298 = vmatprep.subr.mxu0 0.0
    %1299 = vmatpush2.msra.mxu0 0.0
    %1300 = vmatprep.mubr.f32.mxu0 0.0
    %v1301 = vand.u32 %v1147, 4294901760
    %1302 = vmatmul.mubr.f32.gmra.mxu0 %v1301
    %v1303 = vpop.f32.mrf.mxu0
    %v1304 = vadd.f32 %v1223, %v1303
    %v1305 = vpop.f32.mrf.mxu0
    %1306 = vdwg.mxu0
    %1307 = vmatprep.subr.mxu0 0.0
    %1308 = vmatpush1.msra.mxu0 0.0
    %1309 = vmatprep.subr.mxu0 0.0
    %1310 = vmatpush1.msra.mxu0 0.0
    %1311 = vmatprep.subr.mxu0 0.0
    %1312 = vmatpush1.msra.mxu0 0.0
    %1313 = vmatprep.subr.mxu0 0.0
    %1314 = vmatpush1.msra.mxu0 0.0
    %1315 = vmatprep.subr.mxu0 0.0
    %1316 = vmatpush1.msra.mxu0 0.0
    %1317 = vmatprep.subr.mxu0 0.0
    %1318 = vmatpush1.msra.mxu0 0.0
    %1319 = vmatprep.subr.mxu0 0.0
    %1320 = vmatpush1.msra.mxu0 0.0
    %1321 = vmatprep.subr.mxu0 0.0
    %1322 = vmatpush1.msra.mxu0 0.0
    %1323 = vmatprep.subr.mxu0 0.0
    %1324 = vmatpush1.msra.mxu0 0.0
    %1325 = vmatprep.subr.mxu0 0.0
    %1326 = vmatpush1.msra.mxu0 0.0
    %1327 = vmatprep.subr.mxu0 0.0
    %1328 = vmatpush1.msra.mxu0 0.0
    %1329 = vmatprep.subr.mxu0 0.0
    %1330 = vmatpush1.msra.mxu0 0.0
    %1331 = vmatprep.subr.mxu0 0.0
    %1332 = vmatpush1.msra.mxu0 0.0
    %1333 = vmatprep.subr.mxu0 0.0
    %1334 = vmatpush1.msra.mxu0 0.0
    %1335 = vmatprep.subr.mxu0 0.0
    %v1336 = vand.u32 %v1139, 4294901760
    %v1337 = vsub.f32 %v1139, %v1336
    %1338 = vmatpush1.msra.mxu0 %v1337
    %1339 = vmatprep.subr.mxu0 0.0
    %v1340 = vand.u32 %v1138, 4294901760
    %v1341 = vsub.f32 %v1138, %v1340
    %1342 = vmatpush1.msra.mxu0 %v1341
    %1343 = vmatprep.subr.mxu0 0.0
    %1344 = vmatpush2.msra.mxu0 0.0
    %1345 = vmatprep.subr.mxu0 0.0
    %1346 = vmatpush2.msra.mxu0 0.0
    %1347 = vmatprep.subr.mxu0 0.0
    %1348 = vmatpush2.msra.mxu0 0.0
    %1349 = vmatprep.subr.mxu0 0.0
    %1350 = vmatpush2.msra.mxu0 0.0
    %1351 = vmatprep.subr.mxu0 0.0
    %1352 = vmatpush2.msra.mxu0 0.0
    %1353 = vmatprep.subr.mxu0 0.0
    %1354 = vmatpush2.msra.mxu0 0.0
    %1355 = vmatprep.subr.mxu0 0.0
    %1356 = vmatpush2.msra.mxu0 0.0
    %1357 = vmatprep.subr.mxu0 0.0
    %1358 = vmatpush2.msra.mxu0 0.0
    %1359 = vmatprep.subr.mxu0 0.0
    %1360 = vmatpush2.msra.mxu0 0.0
    %1361 = vmatprep.subr.mxu0 0.0
    %1362 = vmatpush2.msra.mxu0 0.0
    %1363 = vmatprep.subr.mxu0 0.0
    %1364 = vmatpush2.msra.mxu0 0.0
    %1365 = vmatprep.subr.mxu0 0.0
    %1366 = vmatpush2.msra.mxu0 0.0
    %1367 = vmatprep.subr.mxu0 0.0
    %1368 = vmatpush2.msra.mxu0 0.0
    %1369 = vmatprep.subr.mxu0 0.0
    %1370 = vmatpush2.msra.mxu0 0.0
    %1371 = vmatprep.subr.mxu0 0.0
    %1372 = vmatpush2.msra.mxu0 0.0
    %1373 = vmatprep.subr.mxu0 0.0
    %1374 = vmatpush2.msra.mxu0 0.0
    %1375 = vmatprep.mubr.f32.mxu0 0.0
    %v1376 = vand.u32 %v1147, 4294901760
    %v1377 = vsub.f32 %v1147, %v1376
    %1378 = vmatmul.mubr.f32.gmra.mxu0 %v1377
    %v1379 = vpop.f32.mrf.mxu0
    %v1380 = vadd.f32 %v1304, %v1379
    %v1381 = vpop.f32.mrf.mxu0
    %1382 = vdwg.mxu0
    %1383 = vmatprep.subr.mxu0 0.0
    %1384 = vmatpush1.msra.mxu0 0.0
    %1385 = vmatprep.subr.mxu0 0.0
    %1386 = vmatpush1.msra.mxu0 0.0
    %1387 = vmatprep.subr.mxu0 0.0
    %1388 = vmatpush1.msra.mxu0 0.0
    %1389 = vmatprep.subr.mxu0 0.0
    %1390 = vmatpush1.msra.mxu0 0.0
    %1391 = vmatprep.subr.mxu0 0.0
    %1392 = vmatpush1.msra.mxu0 0.0
    %1393 = vmatprep.subr.mxu0 0.0
    %1394 = vmatpush1.msra.mxu0 0.0
    %1395 = vmatprep.subr.mxu0 0.0
    %1396 = vmatpush1.msra.mxu0 0.0
    %1397 = vmatprep.subr.mxu0 0.0
    %1398 = vmatpush1.msra.mxu0 0.0
    %1399 = vmatprep.subr.mxu0 0.0
    %1400 = vmatpush1.msra.mxu0 0.0
    %1401 = vmatprep.subr.mxu0 0.0
    %1402 = vmatpush1.msra.mxu0 0.0
    %1403 = vmatprep.subr.mxu0 0.0
    %1404 = vmatpush1.msra.mxu0 0.0
    %1405 = vmatprep.subr.mxu0 0.0
    %1406 = vmatpush1.msra.mxu0 0.0
    %1407 = vmatprep.subr.mxu0 0.0
    %1408 = vmatpush1.msra.mxu0 0.0
    %1409 = vmatprep.subr.mxu0 0.0
    %1410 = vmatpush1.msra.mxu0 0.0
    %1411 = vmatprep.subr.mxu0 0.0
    %v1412 = vand.u32 %v1139, 4294901760
    %1413 = vmatpush1.msra.mxu0 %v1412
    %1414 = vmatprep.subr.mxu0 0.0
    %v1415 = vand.u32 %v1138, 4294901760
    %1416 = vmatpush1.msra.mxu0 %v1415
    %1417 = vmatprep.subr.mxu0 0.0
    %1418 = vmatpush2.msra.mxu0 0.0
    %1419 = vmatprep.subr.mxu0 0.0
    %1420 = vmatpush2.msra.mxu0 0.0
    %1421 = vmatprep.subr.mxu0 0.0
    %1422 = vmatpush2.msra.mxu0 0.0
    %1423 = vmatprep.subr.mxu0 0.0
    %1424 = vmatpush2.msra.mxu0 0.0
    %1425 = vmatprep.subr.mxu0 0.0
    %1426 = vmatpush2.msra.mxu0 0.0
    %1427 = vmatprep.subr.mxu0 0.0
    %1428 = vmatpush2.msra.mxu0 0.0
    %1429 = vmatprep.subr.mxu0 0.0
    %1430 = vmatpush2.msra.mxu0 0.0
    %1431 = vmatprep.subr.mxu0 0.0
    %1432 = vmatpush2.msra.mxu0 0.0
    %1433 = vmatprep.subr.mxu0 0.0
    %1434 = vmatpush2.msra.mxu0 0.0
    %1435 = vmatprep.subr.mxu0 0.0
    %1436 = vmatpush2.msra.mxu0 0.0
    %1437 = vmatprep.subr.mxu0 0.0
    %1438 = vmatpush2.msra.mxu0 0.0
    %1439 = vmatprep.subr.mxu0 0.0
    %1440 = vmatpush2.msra.mxu0 0.0
    %1441 = vmatprep.subr.mxu0 0.0
    %1442 = vmatpush2.msra.mxu0 0.0
    %1443 = vmatprep.subr.mxu0 0.0
    %1444 = vmatpush2.msra.mxu0 0.0
    %1445 = vmatprep.subr.mxu0 0.0
    %1446 = vmatpush2.msra.mxu0 0.0
    %1447 = vmatprep.subr.mxu0 0.0
    %1448 = vmatpush2.msra.mxu0 0.0
    %1449 = vmatprep.mubr.f32.mxu0 0.0
    %v1450 = vand.u32 %v1147, 4294901760
    %v1451 = vsub.f32 %v1147, %v1450
    %v1452 = vand.u32 %v1451, 4294901760
    %1453 = vmatmul.mubr.f32.gmra.mxu0 %v1452
    %v1454 = vpop.f32.mrf.mxu0
    %v1455 = vadd.f32 %v1380, %v1454
    %v1456 = vpop.f32.mrf.mxu0
    %1457 = vdwg.mxu0
    %1458 = vmatprep.subr.mxu0 0.0
    %1459 = vmatpush1.msra.mxu0 0.0
    %1460 = vmatprep.subr.mxu0 0.0
    %1461 = vmatpush1.msra.mxu0 0.0
    %1462 = vmatprep.subr.mxu0 0.0
    %1463 = vmatpush1.msra.mxu0 0.0
    %1464 = vmatprep.subr.mxu0 0.0
    %1465 = vmatpush1.msra.mxu0 0.0
    %1466 = vmatprep.subr.mxu0 0.0
    %1467 = vmatpush1.msra.mxu0 0.0
    %1468 = vmatprep.subr.mxu0 0.0
    %1469 = vmatpush1.msra.mxu0 0.0
    %1470 = vmatprep.subr.mxu0 0.0
    %1471 = vmatpush1.msra.mxu0 0.0
    %1472 = vmatprep.subr.mxu0 0.0
    %1473 = vmatpush1.msra.mxu0 0.0
    %1474 = vmatprep.subr.mxu0 0.0
    %1475 = vmatpush1.msra.mxu0 0.0
    %1476 = vmatprep.subr.mxu0 0.0
    %1477 = vmatpush1.msra.mxu0 0.0
    %1478 = vmatprep.subr.mxu0 0.0
    %1479 = vmatpush1.msra.mxu0 0.0
    %1480 = vmatprep.subr.mxu0 0.0
    %1481 = vmatpush1.msra.mxu0 0.0
    %1482 = vmatprep.subr.mxu0 0.0
    %1483 = vmatpush1.msra.mxu0 0.0
    %1484 = vmatprep.subr.mxu0 0.0
    %1485 = vmatpush1.msra.mxu0 0.0
    %1486 = vmatprep.subr.mxu0 0.0
    %v1487 = vand.u32 %v1139, 4294901760
    %v1488 = vsub.f32 %v1139, %v1487
    %v1489 = vand.u32 %v1488, 4294901760
    %1490 = vmatpush1.msra.mxu0 %v1489
    %1491 = vmatprep.subr.mxu0 0.0
    %v1492 = vand.u32 %v1138, 4294901760
    %v1493 = vsub.f32 %v1138, %v1492
    %v1494 = vand.u32 %v1493, 4294901760
    %1495 = vmatpush1.msra.mxu0 %v1494
    %1496 = vmatprep.subr.mxu0 0.0
    %1497 = vmatpush2.msra.mxu0 0.0
    %1498 = vmatprep.subr.mxu0 0.0
    %1499 = vmatpush2.msra.mxu0 0.0
    %1500 = vmatprep.subr.mxu0 0.0
    %1501 = vmatpush2.msra.mxu0 0.0
    %1502 = vmatprep.subr.mxu0 0.0
    %1503 = vmatpush2.msra.mxu0 0.0
    %1504 = vmatprep.subr.mxu0 0.0
    %1505 = vmatpush2.msra.mxu0 0.0
    %1506 = vmatprep.subr.mxu0 0.0
    %1507 = vmatpush2.msra.mxu0 0.0
    %1508 = vmatprep.subr.mxu0 0.0
    %1509 = vmatpush2.msra.mxu0 0.0
    %1510 = vmatprep.subr.mxu0 0.0
    %1511 = vmatpush2.msra.mxu0 0.0
    %1512 = vmatprep.subr.mxu0 0.0
    %1513 = vmatpush2.msra.mxu0 0.0
    %1514 = vmatprep.subr.mxu0 0.0
    %1515 = vmatpush2.msra.mxu0 0.0
    %1516 = vmatprep.subr.mxu0 0.0
    %1517 = vmatpush2.msra.mxu0 0.0
    %1518 = vmatprep.subr.mxu0 0.0
    %1519 = vmatpush2.msra.mxu0 0.0
    %1520 = vmatprep.subr.mxu0 0.0
    %1521 = vmatpush2.msra.mxu0 0.0
    %1522 = vmatprep.subr.mxu0 0.0
    %1523 = vmatpush2.msra.mxu0 0.0
    %1524 = vmatprep.subr.mxu0 0.0
    %1525 = vmatpush2.msra.mxu0 0.0
    %1526 = vmatprep.subr.mxu0 0.0
    %1527 = vmatpush2.msra.mxu0 0.0
    %1528 = vmatprep.mubr.f32.mxu0 0.0
    %v1529 = vand.u32 %v1147, 4294901760
    %1530 = vmatmul.mubr.f32.gmra.mxu0 %v1529
    %v1531 = vpop.f32.mrf.mxu0
    %v1532 = vadd.f32 %v1455, %v1531
    %v1533 = vpop.f32.mrf.mxu0
    %1534 = vdwg.mxu0
    %1535 = vmatprep.subr.mxu0 0.0
    %1536 = vmatpush1.msra.mxu0 0.0
    %1537 = vmatprep.subr.mxu0 0.0
    %1538 = vmatpush1.msra.mxu0 0.0
    %1539 = vmatprep.subr.mxu0 0.0
    %1540 = vmatpush1.msra.mxu0 0.0
    %1541 = vmatprep.subr.mxu0 0.0
    %1542 = vmatpush1.msra.mxu0 0.0
    %1543 = vmatprep.subr.mxu0 0.0
    %1544 = vmatpush1.msra.mxu0 0.0
    %1545 = vmatprep.subr.mxu0 0.0
    %1546 = vmatpush1.msra.mxu0 0.0
    %1547 = vmatprep.subr.mxu0 0.0
    %1548 = vmatpush1.msra.mxu0 0.0
    %1549 = vmatprep.subr.mxu0 0.0
    %1550 = vmatpush1.msra.mxu0 0.0
    %1551 = vmatprep.subr.mxu0 0.0
    %1552 = vmatpush1.msra.mxu0 0.0
    %1553 = vmatprep.subr.mxu0 0.0
    %1554 = vmatpush1.msra.mxu0 0.0
    %1555 = vmatprep.subr.mxu0 0.0
    %1556 = vmatpush1.msra.mxu0 0.0
    %1557 = vmatprep.subr.mxu0 0.0
    %1558 = vmatpush1.msra.mxu0 0.0
    %1559 = vmatprep.subr.mxu0 0.0
    %1560 = vmatpush1.msra.mxu0 0.0
    %1561 = vmatprep.subr.mxu0 0.0
    %1562 = vmatpush1.msra.mxu0 0.0
    %1563 = vmatprep.subr.mxu0 0.0
    %v1564 = vand.u32 %v1139, 4294901760
    %1565 = vmatpush1.msra.mxu0 %v1564
    %1566 = vmatprep.subr.mxu0 0.0
    %v1567 = vand.u32 %v1138, 4294901760
    %1568 = vmatpush1.msra.mxu0 %v1567
    %1569 = vmatprep.subr.mxu0 0.0
    %1570 = vmatpush2.msra.mxu0 0.0
    %1571 = vmatprep.subr.mxu0 0.0
    %1572 = vmatpush2.msra.mxu0 0.0
    %1573 = vmatprep.subr.mxu0 0.0
    %1574 = vmatpush2.msra.mxu0 0.0
    %1575 = vmatprep.subr.mxu0 0.0
    %1576 = vmatpush2.msra.mxu0 0.0
    %1577 = vmatprep.subr.mxu0 0.0
    %1578 = vmatpush2.msra.mxu0 0.0
    %1579 = vmatprep.subr.mxu0 0.0
    %1580 = vmatpush2.msra.mxu0 0.0
    %1581 = vmatprep.subr.mxu0 0.0
    %1582 = vmatpush2.msra.mxu0 0.0
    %1583 = vmatprep.subr.mxu0 0.0
    %1584 = vmatpush2.msra.mxu0 0.0
    %1585 = vmatprep.subr.mxu0 0.0
    %1586 = vmatpush2.msra.mxu0 0.0
    %1587 = vmatprep.subr.mxu0 0.0
    %1588 = vmatpush2.msra.mxu0 0.0
    %1589 = vmatprep.subr.mxu0 0.0
    %1590 = vmatpush2.msra.mxu0 0.0
    %1591 = vmatprep.subr.mxu0 0.0
    %1592 = vmatpush2.msra.mxu0 0.0
    %1593 = vmatprep.subr.mxu0 0.0
    %1594 = vmatpush2.msra.mxu0 0.0
    %1595 = vmatprep.subr.mxu0 0.0
    %1596 = vmatpush2.msra.mxu0 0.0
    %1597 = vmatprep.subr.mxu0 0.0
    %1598 = vmatpush2.msra.mxu0 0.0
    %1599 = vmatprep.subr.mxu0 0.0
    %1600 = vmatpush2.msra.mxu0 0.0
    %1601 = vmatprep.mubr.f32.mxu0 0.0
    %v1602 = vand.u32 %v1147, 4294901760
    %1603 = vmatmul.mubr.f32.gmra.mxu0 %v1602
    %v1604 = vpop.f32.mrf.mxu0
    %v1605 = vadd.f32 %v1532, %v1604
    %v1606 = vpop.f32.mrf.mxu0
    %1607 = vdwg.mxu0
    %v1608 = vadd.f32 %v1135, %v1605
    %v1609 = vxor.u32 %v1608, 2147483648
    %v1610 = vmul.f32 %v1609, 1.442695
    %v1611 = vpow.pop %v1610
    %v1612 = vadd.f32 %v1611, 1.0
    %v1613 = vrcp.pop %v1612
    %v1614 = vmul.f32 1.0, %v1613
    %1616 = vrot.lane.b32.xlu0 %v1605, 96
    %v1617 = vpop.permute.xlu0 %1616
    %v1619 = vmul.f32 %v1614, %v1617
    %1621 = vrot.lane.b32.xlu0 %v1619, 32
    %v1622 = vpop.permute.xlu0 %1621
    %v1624 = vadd.f32 %v1135, %v1622
    %v1625 = vtanh.pop %v1624
    %v1626 = vsub.f32 1.0, %v1614
    %1628 = vrot.lane.b32.xlu0 %v1625, 112
    %v1629 = vpop.permute.xlu0 %1628
    %v1631 = vmul.f32 %v1626, %v1629
    %v1632 = vmul.f32 %v1614, 0.0
    %v1633 = vadd.f32 %v1631, %v1632
    %v1635 = vsel %vm649, %v637, 0
    %1637 = vmatprep.subr.mxu0 0.0
    %1638 = vmatpush1.msra.mxu0 0.0
    %1639 = vmatprep.subr.mxu0 0.0
    %1640 = vmatpush1.msra.mxu0 0.0
    %1641 = vmatprep.subr.mxu0 0.0
    %1642 = vmatpush1.msra.mxu0 0.0
    %1643 = vmatprep.subr.mxu0 0.0
    %1644 = vmatpush1.msra.mxu0 0.0
    %1645 = vmatprep.subr.mxu0 0.0
    %1646 = vmatpush1.msra.mxu0 0.0
    %1647 = vmatprep.subr.mxu0 0.0
    %1648 = vmatpush1.msra.mxu0 0.0
    %1649 = vmatprep.subr.mxu0 0.0
    %1650 = vmatpush1.msra.mxu0 0.0
    %1651 = vmatprep.subr.mxu0 0.0
    %1652 = vmatpush1.msra.mxu0 0.0
    %1653 = vmatprep.subr.mxu0 0.0
    %1654 = vmatpush1.msra.mxu0 0.0
    %1655 = vmatprep.subr.mxu0 0.0
    %1656 = vmatpush1.msra.mxu0 0.0
    %1657 = vmatprep.subr.mxu0 0.0
    %1658 = vmatpush1.msra.mxu0 0.0
    %1659 = vmatprep.subr.mxu0 0.0
    %1660 = vmatpush1.msra.mxu0 0.0
    %1661 = vmatprep.subr.mxu0 0.0
    %v1662 = vand.u32 %v643, 4294901760
    %1663 = vmatpush1.msra.mxu0 %v1662
    %1664 = vmatprep.subr.mxu0 0.0
    %v1665 = vand.u32 %v642, 4294901760
    %1666 = vmatpush1.msra.mxu0 %v1665
    %1667 = vmatprep.subr.mxu0 0.0
    %v1668 = vand.u32 %v641, 4294901760
    %1669 = vmatpush1.msra.mxu0 %v1668
    %1670 = vmatprep.subr.mxu0 0.0
    %v1671 = vand.u32 %v640, 4294901760
    %1672 = vmatpush1.msra.mxu0 %v1671
    %1673 = vmatprep.subr.mxu0 0.0
    %1674 = vmatpush2.msra.mxu0 0.0
    %1675 = vmatprep.subr.mxu0 0.0
    %1676 = vmatpush2.msra.mxu0 0.0
    %1677 = vmatprep.subr.mxu0 0.0
    %1678 = vmatpush2.msra.mxu0 0.0
    %1679 = vmatprep.subr.mxu0 0.0
    %1680 = vmatpush2.msra.mxu0 0.0
    %1681 = vmatprep.subr.mxu0 0.0
    %1682 = vmatpush2.msra.mxu0 0.0
    %1683 = vmatprep.subr.mxu0 0.0
    %1684 = vmatpush2.msra.mxu0 0.0
    %1685 = vmatprep.subr.mxu0 0.0
    %1686 = vmatpush2.msra.mxu0 0.0
    %1687 = vmatprep.subr.mxu0 0.0
    %1688 = vmatpush2.msra.mxu0 0.0
    %1689 = vmatprep.subr.mxu0 0.0
    %1690 = vmatpush2.msra.mxu0 0.0
    %1691 = vmatprep.subr.mxu0 0.0
    %1692 = vmatpush2.msra.mxu0 0.0
    %1693 = vmatprep.subr.mxu0 0.0
    %1694 = vmatpush2.msra.mxu0 0.0
    %1695 = vmatprep.subr.mxu0 0.0
    %1696 = vmatpush2.msra.mxu0 0.0
    %1697 = vmatprep.subr.mxu0 0.0
    %1698 = vmatpush2.msra.mxu0 0.0
    %1699 = vmatprep.subr.mxu0 0.0
    %1700 = vmatpush2.msra.mxu0 0.0
    %1701 = vmatprep.subr.mxu0 0.0
    %1702 = vmatpush2.msra.mxu0 0.0
    %1703 = vmatprep.subr.mxu0 0.0
    %1704 = vmatpush2.msra.mxu0 0.0
    %1705 = vmatprep.mubr.f32.mxu0 0.0
    %v1706 = vand.u32 %v1635, 4294901760
    %v1707 = vsub.f32 %v1635, %v1706
    %v1708 = vand.u32 %v1707, 4294901760
    %v1709 = vsub.f32 %v1707, %v1708
    %v1710 = vand.u32 %v1709, 4294901760
    %1711 = vmatmul.mubr.f32.gmra.mxu0 %v1710
    %v1712 = vpop.f32.mrf.mxu0
    %v1713 = vadd.f32 %v648, %v1712
    %v1714 = vpop.f32.mrf.mxu0
    %1715 = vdwg.mxu0
    %1716 = vmatprep.subr.mxu0 0.0
    %1717 = vmatpush1.msra.mxu0 0.0
    %1718 = vmatprep.subr.mxu0 0.0
    %1719 = vmatpush1.msra.mxu0 0.0
    %1720 = vmatprep.subr.mxu0 0.0
    %1721 = vmatpush1.msra.mxu0 0.0
    %1722 = vmatprep.subr.mxu0 0.0
    %1723 = vmatpush1.msra.mxu0 0.0
    %1724 = vmatprep.subr.mxu0 0.0
    %1725 = vmatpush1.msra.mxu0 0.0
    %1726 = vmatprep.subr.mxu0 0.0
    %1727 = vmatpush1.msra.mxu0 0.0
    %1728 = vmatprep.subr.mxu0 0.0
    %1729 = vmatpush1.msra.mxu0 0.0
    %1730 = vmatprep.subr.mxu0 0.0
    %1731 = vmatpush1.msra.mxu0 0.0
    %1732 = vmatprep.subr.mxu0 0.0
    %1733 = vmatpush1.msra.mxu0 0.0
    %1734 = vmatprep.subr.mxu0 0.0
    %1735 = vmatpush1.msra.mxu0 0.0
    %1736 = vmatprep.subr.mxu0 0.0
    %1737 = vmatpush1.msra.mxu0 0.0
    %1738 = vmatprep.subr.mxu0 0.0
    %1739 = vmatpush1.msra.mxu0 0.0
    %1740 = vmatprep.subr.mxu0 0.0
    %v1741 = vand.u32 %v643, 4294901760
    %v1742 = vsub.f32 %v643, %v1741
    %v1743 = vand.u32 %v1742, 4294901760
    %v1744 = vsub.f32 %v1742, %v1743
    %v1745 = vand.u32 %v1744, 4294901760
    %1746 = vmatpush1.msra.mxu0 %v1745
    %1747 = vmatprep.subr.mxu0 0.0
    %v1748 = vand.u32 %v642, 4294901760
    %v1749 = vsub.f32 %v642, %v1748
    %v1750 = vand.u32 %v1749, 4294901760
    %v1751 = vsub.f32 %v1749, %v1750
    %v1752 = vand.u32 %v1751, 4294901760
    %1753 = vmatpush1.msra.mxu0 %v1752
    %1754 = vmatprep.subr.mxu0 0.0
    %v1755 = vand.u32 %v641, 4294901760
    %v1756 = vsub.f32 %v641, %v1755
    %v1757 = vand.u32 %v1756, 4294901760
    %v1758 = vsub.f32 %v1756, %v1757
    %v1759 = vand.u32 %v1758, 4294901760
    %1760 = vmatpush1.msra.mxu0 %v1759
    %1761 = vmatprep.subr.mxu0 0.0
    %v1762 = vand.u32 %v640, 4294901760
    %v1763 = vsub.f32 %v640, %v1762
    %v1764 = vand.u32 %v1763, 4294901760
    %v1765 = vsub.f32 %v1763, %v1764
    %v1766 = vand.u32 %v1765, 4294901760
    %1767 = vmatpush1.msra.mxu0 %v1766
    %1768 = vmatprep.subr.mxu0 0.0
    %1769 = vmatpush2.msra.mxu0 0.0
    %1770 = vmatprep.subr.mxu0 0.0
    %1771 = vmatpush2.msra.mxu0 0.0
    %1772 = vmatprep.subr.mxu0 0.0
    %1773 = vmatpush2.msra.mxu0 0.0
    %1774 = vmatprep.subr.mxu0 0.0
    %1775 = vmatpush2.msra.mxu0 0.0
    %1776 = vmatprep.subr.mxu0 0.0
    %1777 = vmatpush2.msra.mxu0 0.0
    %1778 = vmatprep.subr.mxu0 0.0
    %1779 = vmatpush2.msra.mxu0 0.0
    %1780 = vmatprep.subr.mxu0 0.0
    %1781 = vmatpush2.msra.mxu0 0.0
    %1782 = vmatprep.subr.mxu0 0.0
    %1783 = vmatpush2.msra.mxu0 0.0
    %1784 = vmatprep.subr.mxu0 0.0
    %1785 = vmatpush2.msra.mxu0 0.0
    %1786 = vmatprep.subr.mxu0 0.0
    %1787 = vmatpush2.msra.mxu0 0.0
    %1788 = vmatprep.subr.mxu0 0.0
    %1789 = vmatpush2.msra.mxu0 0.0
    %1790 = vmatprep.subr.mxu0 0.0
    %1791 = vmatpush2.msra.mxu0 0.0
    %1792 = vmatprep.subr.mxu0 0.0
    %1793 = vmatpush2.msra.mxu0 0.0
    %1794 = vmatprep.subr.mxu0 0.0
    %1795 = vmatpush2.msra.mxu0 0.0
    %1796 = vmatprep.subr.mxu0 0.0
    %1797 = vmatpush2.msra.mxu0 0.0
    %1798 = vmatprep.subr.mxu0 0.0
    %1799 = vmatpush2.msra.mxu0 0.0
    %1800 = vmatprep.mubr.f32.mxu0 0.0
    %v1801 = vand.u32 %v1635, 4294901760
    %1802 = vmatmul.mubr.f32.gmra.mxu0 %v1801
    %v1803 = vpop.f32.mrf.mxu0
    %v1804 = vadd.f32 %v1713, %v1803
    %v1805 = vpop.f32.mrf.mxu0
    %1806 = vdwg.mxu0
    %1807 = vmatprep.subr.mxu0 0.0
    %1808 = vmatpush1.msra.mxu0 0.0
    %1809 = vmatprep.subr.mxu0 0.0
    %1810 = vmatpush1.msra.mxu0 0.0
    %1811 = vmatprep.subr.mxu0 0.0
    %1812 = vmatpush1.msra.mxu0 0.0
    %1813 = vmatprep.subr.mxu0 0.0
    %1814 = vmatpush1.msra.mxu0 0.0
    %1815 = vmatprep.subr.mxu0 0.0
    %1816 = vmatpush1.msra.mxu0 0.0
    %1817 = vmatprep.subr.mxu0 0.0
    %1818 = vmatpush1.msra.mxu0 0.0
    %1819 = vmatprep.subr.mxu0 0.0
    %1820 = vmatpush1.msra.mxu0 0.0
    %1821 = vmatprep.subr.mxu0 0.0
    %1822 = vmatpush1.msra.mxu0 0.0
    %1823 = vmatprep.subr.mxu0 0.0
    %1824 = vmatpush1.msra.mxu0 0.0
    %1825 = vmatprep.subr.mxu0 0.0
    %1826 = vmatpush1.msra.mxu0 0.0
    %1827 = vmatprep.subr.mxu0 0.0
    %1828 = vmatpush1.msra.mxu0 0.0
    %1829 = vmatprep.subr.mxu0 0.0
    %1830 = vmatpush1.msra.mxu0 0.0
    %1831 = vmatprep.subr.mxu0 0.0
    %v1832 = vand.u32 %v643, 4294901760
    %v1833 = vsub.f32 %v643, %v1832
    %1834 = vmatpush1.msra.mxu0 %v1833
    %1835 = vmatprep.subr.mxu0 0.0
    %v1836 = vand.u32 %v642, 4294901760
    %v1837 = vsub.f32 %v642, %v1836
    %1838 = vmatpush1.msra.mxu0 %v1837
    %1839 = vmatprep.subr.mxu0 0.0
    %v1840 = vand.u32 %v641, 4294901760
    %v1841 = vsub.f32 %v641, %v1840
    %1842 = vmatpush1.msra.mxu0 %v1841
    %1843 = vmatprep.subr.mxu0 0.0
    %v1844 = vand.u32 %v640, 4294901760
    %v1845 = vsub.f32 %v640, %v1844
    %1846 = vmatpush1.msra.mxu0 %v1845
    %1847 = vmatprep.subr.mxu0 0.0
    %1848 = vmatpush2.msra.mxu0 0.0
    %1849 = vmatprep.subr.mxu0 0.0
    %1850 = vmatpush2.msra.mxu0 0.0
    %1851 = vmatprep.subr.mxu0 0.0
    %1852 = vmatpush2.msra.mxu0 0.0
    %1853 = vmatprep.subr.mxu0 0.0
    %1854 = vmatpush2.msra.mxu0 0.0
    %1855 = vmatprep.subr.mxu0 0.0
    %1856 = vmatpush2.msra.mxu0 0.0
    %1857 = vmatprep.subr.mxu0 0.0
    %1858 = vmatpush2.msra.mxu0 0.0
    %1859 = vmatprep.subr.mxu0 0.0
    %1860 = vmatpush2.msra.mxu0 0.0
    %1861 = vmatprep.subr.mxu0 0.0
    %1862 = vmatpush2.msra.mxu0 0.0
    %1863 = vmatprep.subr.mxu0 0.0
    %1864 = vmatpush2.msra.mxu0 0.0
    %1865 = vmatprep.subr.mxu0 0.0
    %1866 = vmatpush2.msra.mxu0 0.0
    %1867 = vmatprep.subr.mxu0 0.0
    %1868 = vmatpush2.msra.mxu0 0.0
    %1869 = vmatprep.subr.mxu0 0.0
    %1870 = vmatpush2.msra.mxu0 0.0
    %1871 = vmatprep.subr.mxu0 0.0
    %1872 = vmatpush2.msra.mxu0 0.0
    %1873 = vmatprep.subr.mxu0 0.0
    %1874 = vmatpush2.msra.mxu0 0.0
    %1875 = vmatprep.subr.mxu0 0.0
    %1876 = vmatpush2.msra.mxu0 0.0
    %1877 = vmatprep.subr.mxu0 0.0
    %1878 = vmatpush2.msra.mxu0 0.0
    %1879 = vmatprep.mubr.f32.mxu0 0.0
    %v1880 = vand.u32 %v1635, 4294901760
    %v1881 = vsub.f32 %v1635, %v1880
    %1882 = vmatmul.mubr.f32.gmra.mxu0 %v1881
    %v1883 = vpop.f32.mrf.mxu0
    %v1884 = vadd.f32 %v1804, %v1883
    %v1885 = vpop.f32.mrf.mxu0
    %1886 = vdwg.mxu0
    %1887 = vmatprep.subr.mxu0 0.0
    %1888 = vmatpush1.msra.mxu0 0.0
    %1889 = vmatprep.subr.mxu0 0.0
    %1890 = vmatpush1.msra.mxu0 0.0
    %1891 = vmatprep.subr.mxu0 0.0
    %1892 = vmatpush1.msra.mxu0 0.0
    %1893 = vmatprep.subr.mxu0 0.0
    %1894 = vmatpush1.msra.mxu0 0.0
    %1895 = vmatprep.subr.mxu0 0.0
    %1896 = vmatpush1.msra.mxu0 0.0
    %1897 = vmatprep.subr.mxu0 0.0
    %1898 = vmatpush1.msra.mxu0 0.0
    %1899 = vmatprep.subr.mxu0 0.0
    %1900 = vmatpush1.msra.mxu0 0.0
    %1901 = vmatprep.subr.mxu0 0.0
    %1902 = vmatpush1.msra.mxu0 0.0
    %1903 = vmatprep.subr.mxu0 0.0
    %1904 = vmatpush1.msra.mxu0 0.0
    %1905 = vmatprep.subr.mxu0 0.0
    %1906 = vmatpush1.msra.mxu0 0.0
    %1907 = vmatprep.subr.mxu0 0.0
    %1908 = vmatpush1.msra.mxu0 0.0
    %1909 = vmatprep.subr.mxu0 0.0
    %1910 = vmatpush1.msra.mxu0 0.0
    %1911 = vmatprep.subr.mxu0 0.0
    %v1912 = vand.u32 %v643, 4294901760
    %1913 = vmatpush1.msra.mxu0 %v1912
    %1914 = vmatprep.subr.mxu0 0.0
    %v1915 = vand.u32 %v642, 4294901760
    %1916 = vmatpush1.msra.mxu0 %v1915
    %1917 = vmatprep.subr.mxu0 0.0
    %v1918 = vand.u32 %v641, 4294901760
    %1919 = vmatpush1.msra.mxu0 %v1918
    %1920 = vmatprep.subr.mxu0 0.0
    %v1921 = vand.u32 %v640, 4294901760
    %1922 = vmatpush1.msra.mxu0 %v1921
    %1923 = vmatprep.subr.mxu0 0.0
    %1924 = vmatpush2.msra.mxu0 0.0
    %1925 = vmatprep.subr.mxu0 0.0
    %1926 = vmatpush2.msra.mxu0 0.0
    %1927 = vmatprep.subr.mxu0 0.0
    %1928 = vmatpush2.msra.mxu0 0.0
    %1929 = vmatprep.subr.mxu0 0.0
    %1930 = vmatpush2.msra.mxu0 0.0
    %1931 = vmatprep.subr.mxu0 0.0
    %1932 = vmatpush2.msra.mxu0 0.0
    %1933 = vmatprep.subr.mxu0 0.0
    %1934 = vmatpush2.msra.mxu0 0.0
    %1935 = vmatprep.subr.mxu0 0.0
    %1936 = vmatpush2.msra.mxu0 0.0
    %1937 = vmatprep.subr.mxu0 0.0
    %1938 = vmatpush2.msra.mxu0 0.0
    %1939 = vmatprep.subr.mxu0 0.0
    %1940 = vmatpush2.msra.mxu0 0.0
    %1941 = vmatprep.subr.mxu0 0.0
    %1942 = vmatpush2.msra.mxu0 0.0
    %1943 = vmatprep.subr.mxu0 0.0
    %1944 = vmatpush2.msra.mxu0 0.0
    %1945 = vmatprep.subr.mxu0 0.0
    %1946 = vmatpush2.msra.mxu0 0.0
    %1947 = vmatprep.subr.mxu0 0.0
    %1948 = vmatpush2.msra.mxu0 0.0
    %1949 = vmatprep.subr.mxu0 0.0
    %1950 = vmatpush2.msra.mxu0 0.0
    %1951 = vmatprep.subr.mxu0 0.0
    %1952 = vmatpush2.msra.mxu0 0.0
    %1953 = vmatprep.subr.mxu0 0.0
    %1954 = vmatpush2.msra.mxu0 0.0
    %1955 = vmatprep.mubr.f32.mxu0 0.0
    %v1956 = vand.u32 %v1635, 4294901760
    %v1957 = vsub.f32 %v1635, %v1956
    %v1958 = vand.u32 %v1957, 4294901760
    %1959 = vmatmul.mubr.f32.gmra.mxu0 %v1958
    %v1960 = vpop.f32.mrf.mxu0
    %v1961 = vadd.f32 %v1884, %v1960
    %v1962 = vpop.f32.mrf.mxu0
    %1963 = vdwg.mxu0
    %1964 = vmatprep.subr.mxu0 0.0
    %1965 = vmatpush1.msra.mxu0 0.0
    %1966 = vmatprep.subr.mxu0 0.0
    %1967 = vmatpush1.msra.mxu0 0.0
    %1968 = vmatprep.subr.mxu0 0.0
    %1969 = vmatpush1.msra.mxu0 0.0
    %1970 = vmatprep.subr.mxu0 0.0
    %1971 = vmatpush1.msra.mxu0 0.0
    %1972 = vmatprep.subr.mxu0 0.0
    %1973 = vmatpush1.msra.mxu0 0.0
    %1974 = vmatprep.subr.mxu0 0.0
    %1975 = vmatpush1.msra.mxu0 0.0
    %1976 = vmatprep.subr.mxu0 0.0
    %1977 = vmatpush1.msra.mxu0 0.0
    %1978 = vmatprep.subr.mxu0 0.0
    %1979 = vmatpush1.msra.mxu0 0.0
    %1980 = vmatprep.subr.mxu0 0.0
    %1981 = vmatpush1.msra.mxu0 0.0
    %1982 = vmatprep.subr.mxu0 0.0
    %1983 = vmatpush1.msra.mxu0 0.0
    %1984 = vmatprep.subr.mxu0 0.0
    %1985 = vmatpush1.msra.mxu0 0.0
    %1986 = vmatprep.subr.mxu0 0.0
    %1987 = vmatpush1.msra.mxu0 0.0
    %1988 = vmatprep.subr.mxu0 0.0
    %v1989 = vand.u32 %v643, 4294901760
    %v1990 = vsub.f32 %v643, %v1989
    %v1991 = vand.u32 %v1990, 4294901760
    %1992 = vmatpush1.msra.mxu0 %v1991
    %1993 = vmatprep.subr.mxu0 0.0
    %v1994 = vand.u32 %v642, 4294901760
    %v1995 = vsub.f32 %v642, %v1994
    %v1996 = vand.u32 %v1995, 4294901760
    %1997 = vmatpush1.msra.mxu0 %v1996
    %1998 = vmatprep.subr.mxu0 0.0
    %v1999 = vand.u32 %v641, 4294901760
    %v2000 = vsub.f32 %v641, %v1999
    %v2001 = vand.u32 %v2000, 4294901760
    %2002 = vmatpush1.msra.mxu0 %v2001
    %2003 = vmatprep.subr.mxu0 0.0
    %v2004 = vand.u32 %v640, 4294901760
    %v2005 = vsub.f32 %v640, %v2004
    %v2006 = vand.u32 %v2005, 4294901760
    %2007 = vmatpush1.msra.mxu0 %v2006
    %2008 = vmatprep.subr.mxu0 0.0
    %2009 = vmatpush2.msra.mxu0 0.0
    %2010 = vmatprep.subr.mxu0 0.0
    %2011 = vmatpush2.msra.mxu0 0.0
    %2012 = vmatprep.subr.mxu0 0.0
    %2013 = vmatpush2.msra.mxu0 0.0
    %2014 = vmatprep.subr.mxu0 0.0
    %2015 = vmatpush2.msra.mxu0 0.0
    %2016 = vmatprep.subr.mxu0 0.0
    %2017 = vmatpush2.msra.mxu0 0.0
    %2018 = vmatprep.subr.mxu0 0.0
    %2019 = vmatpush2.msra.mxu0 0.0
    %2020 = vmatprep.subr.mxu0 0.0
    %2021 = vmatpush2.msra.mxu0 0.0
    %2022 = vmatprep.subr.mxu0 0.0
    %2023 = vmatpush2.msra.mxu0 0.0
    %2024 = vmatprep.subr.mxu0 0.0
    %2025 = vmatpush2.msra.mxu0 0.0
    %2026 = vmatprep.subr.mxu0 0.0
    %2027 = vmatpush2.msra.mxu0 0.0
    %2028 = vmatprep.subr.mxu0 0.0
    %2029 = vmatpush2.msra.mxu0 0.0
    %2030 = vmatprep.subr.mxu0 0.0
    %2031 = vmatpush2.msra.mxu0 0.0
    %2032 = vmatprep.subr.mxu0 0.0
    %2033 = vmatpush2.msra.mxu0 0.0
    %2034 = vmatprep.subr.mxu0 0.0
    %2035 = vmatpush2.msra.mxu0 0.0
    %2036 = vmatprep.subr.mxu0 0.0
    %2037 = vmatpush2.msra.mxu0 0.0
    %2038 = vmatprep.subr.mxu0 0.0
    %2039 = vmatpush2.msra.mxu0 0.0
    %2040 = vmatprep.mubr.f32.mxu0 0.0
    %v2041 = vand.u32 %v1635, 4294901760
    %2042 = vmatmul.mubr.f32.gmra.mxu0 %v2041
    %v2043 = vpop.f32.mrf.mxu0
    %v2044 = vadd.f32 %v1961, %v2043
    %v2045 = vpop.f32.mrf.mxu0
    %2046 = vdwg.mxu0
    %2047 = vmatprep.subr.mxu0 0.0
    %2048 = vmatpush1.msra.mxu0 0.0
    %2049 = vmatprep.subr.mxu0 0.0
    %2050 = vmatpush1.msra.mxu0 0.0
    %2051 = vmatprep.subr.mxu0 0.0
    %2052 = vmatpush1.msra.mxu0 0.0
    %2053 = vmatprep.subr.mxu0 0.0
    %2054 = vmatpush1.msra.mxu0 0.0
    %2055 = vmatprep.subr.mxu0 0.0
    %2056 = vmatpush1.msra.mxu0 0.0
    %2057 = vmatprep.subr.mxu0 0.0
    %2058 = vmatpush1.msra.mxu0 0.0
    %2059 = vmatprep.subr.mxu0 0.0
    %2060 = vmatpush1.msra.mxu0 0.0
    %2061 = vmatprep.subr.mxu0 0.0
    %2062 = vmatpush1.msra.mxu0 0.0
    %2063 = vmatprep.subr.mxu0 0.0
    %2064 = vmatpush1.msra.mxu0 0.0
    %2065 = vmatprep.subr.mxu0 0.0
    %2066 = vmatpush1.msra.mxu0 0.0
    %2067 = vmatprep.subr.mxu0 0.0
    %2068 = vmatpush1.msra.mxu0 0.0
    %2069 = vmatprep.subr.mxu0 0.0
    %2070 = vmatpush1.msra.mxu0 0.0
    %2071 = vmatprep.subr.mxu0 0.0
    %v2072 = vand.u32 %v643, 4294901760
    %2073 = vmatpush1.msra.mxu0 %v2072
    %2074 = vmatprep.subr.mxu0 0.0
    %v2075 = vand.u32 %v642, 4294901760
    %2076 = vmatpush1.msra.mxu0 %v2075
    %2077 = vmatprep.subr.mxu0 0.0
    %v2078 = vand.u32 %v641, 4294901760
    %2079 = vmatpush1.msra.mxu0 %v2078
    %2080 = vmatprep.subr.mxu0 0.0
    %v2081 = vand.u32 %v640, 4294901760
    %2082 = vmatpush1.msra.mxu0 %v2081
    %2083 = vmatprep.subr.mxu0 0.0
    %2084 = vmatpush2.msra.mxu0 0.0
    %2085 = vmatprep.subr.mxu0 0.0
    %2086 = vmatpush2.msra.mxu0 0.0
    %2087 = vmatprep.subr.mxu0 0.0
    %2088 = vmatpush2.msra.mxu0 0.0
    %2089 = vmatprep.subr.mxu0 0.0
    %2090 = vmatpush2.msra.mxu0 0.0
    %2091 = vmatprep.subr.mxu0 0.0
    %2092 = vmatpush2.msra.mxu0 0.0
    %2093 = vmatprep.subr.mxu0 0.0
    %2094 = vmatpush2.msra.mxu0 0.0
    %2095 = vmatprep.subr.mxu0 0.0
    %2096 = vmatpush2.msra.mxu0 0.0
    %2097 = vmatprep.subr.mxu0 0.0
    %2098 = vmatpush2.msra.mxu0 0.0
    %2099 = vmatprep.subr.mxu0 0.0
    %2100 = vmatpush2.msra.mxu0 0.0
    %2101 = vmatprep.subr.mxu0 0.0
    %2102 = vmatpush2.msra.mxu0 0.0
    %2103 = vmatprep.subr.mxu0 0.0
    %2104 = vmatpush2.msra.mxu0 0.0
    %2105 = vmatprep.subr.mxu0 0.0
    %2106 = vmatpush2.msra.mxu0 0.0
    %2107 = vmatprep.subr.mxu0 0.0
    %2108 = vmatpush2.msra.mxu0 0.0
    %2109 = vmatprep.subr.mxu0 0.0
    %2110 = vmatpush2.msra.mxu0 0.0
    %2111 = vmatprep.subr.mxu0 0.0
    %2112 = vmatpush2.msra.mxu0 0.0
    %2113 = vmatprep.subr.mxu0 0.0
    %2114 = vmatpush2.msra.mxu0 0.0
    %2115 = vmatprep.mubr.f32.mxu0 0.0
    %v2116 = vand.u32 %v1635, 4294901760
    %2117 = vmatmul.mubr.f32.gmra.mxu0 %v2116
    %v2118 = vpop.f32.mrf.mxu0
    %v2119 = vadd.f32 %v2044, %v2118
    %v2120 = vpop.f32.mrf.mxu0
    %2121 = vdwg.mxu0
    %2123 = vrot.lane.b32.xlu0 %v1633, 112
    %v2124 = vpop.permute.xlu0 %2123
    %v2125 = vsel %vm1145, %v2124, 0
    %2127 = vmatprep.subr.mxu0 0.0
    %2128 = vmatpush1.msra.mxu0 0.0
    %2129 = vmatprep.subr.mxu0 0.0
    %2130 = vmatpush1.msra.mxu0 0.0
    %2131 = vmatprep.subr.mxu0 0.0
    %2132 = vmatpush1.msra.mxu0 0.0
    %2133 = vmatprep.subr.mxu0 0.0
    %2134 = vmatpush1.msra.mxu0 0.0
    %2135 = vmatprep.subr.mxu0 0.0
    %2136 = vmatpush1.msra.mxu0 0.0
    %2137 = vmatprep.subr.mxu0 0.0
    %2138 = vmatpush1.msra.mxu0 0.0
    %2139 = vmatprep.subr.mxu0 0.0
    %2140 = vmatpush1.msra.mxu0 0.0
    %2141 = vmatprep.subr.mxu0 0.0
    %2142 = vmatpush1.msra.mxu0 0.0
    %2143 = vmatprep.subr.mxu0 0.0
    %2144 = vmatpush1.msra.mxu0 0.0
    %2145 = vmatprep.subr.mxu0 0.0
    %2146 = vmatpush1.msra.mxu0 0.0
    %2147 = vmatprep.subr.mxu0 0.0
    %2148 = vmatpush1.msra.mxu0 0.0
    %2149 = vmatprep.subr.mxu0 0.0
    %2150 = vmatpush1.msra.mxu0 0.0
    %2151 = vmatprep.subr.mxu0 0.0
    %2152 = vmatpush1.msra.mxu0 0.0
    %2153 = vmatprep.subr.mxu0 0.0
    %2154 = vmatpush1.msra.mxu0 0.0
    %2155 = vmatprep.subr.mxu0 0.0
    %v2156 = vand.u32 %v1139, 4294901760
    %2157 = vmatpush1.msra.mxu0 %v2156
    %2158 = vmatprep.subr.mxu0 0.0
    %v2159 = vand.u32 %v1138, 4294901760
    %2160 = vmatpush1.msra.mxu0 %v2159
    %2161 = vmatprep.subr.mxu0 0.0
    %2162 = vmatpush2.msra.mxu0 0.0
    %2163 = vmatprep.subr.mxu0 0.0
    %2164 = vmatpush2.msra.mxu0 0.0
    %2165 = vmatprep.subr.mxu0 0.0
    %2166 = vmatpush2.msra.mxu0 0.0
    %2167 = vmatprep.subr.mxu0 0.0
    %2168 = vmatpush2.msra.mxu0 0.0
    %2169 = vmatprep.subr.mxu0 0.0
    %2170 = vmatpush2.msra.mxu0 0.0
    %2171 = vmatprep.subr.mxu0 0.0
    %2172 = vmatpush2.msra.mxu0 0.0
    %2173 = vmatprep.subr.mxu0 0.0
    %2174 = vmatpush2.msra.mxu0 0.0
    %2175 = vmatprep.subr.mxu0 0.0
    %2176 = vmatpush2.msra.mxu0 0.0
    %2177 = vmatprep.subr.mxu0 0.0
    %2178 = vmatpush2.msra.mxu0 0.0
    %2179 = vmatprep.subr.mxu0 0.0
    %2180 = vmatpush2.msra.mxu0 0.0
    %2181 = vmatprep.subr.mxu0 0.0
    %2182 = vmatpush2.msra.mxu0 0.0
    %2183 = vmatprep.subr.mxu0 0.0
    %2184 = vmatpush2.msra.mxu0 0.0
    %2185 = vmatprep.subr.mxu0 0.0
    %2186 = vmatpush2.msra.mxu0 0.0
    %2187 = vmatprep.subr.mxu0 0.0
    %2188 = vmatpush2.msra.mxu0 0.0
    %2189 = vmatprep.subr.mxu0 0.0
    %2190 = vmatpush2.msra.mxu0 0.0
    %2191 = vmatprep.subr.mxu0 0.0
    %2192 = vmatpush2.msra.mxu0 0.0
    %2193 = vmatprep.mubr.f32.mxu0 0.0
    %v2194 = vand.u32 %v2125, 4294901760
    %v2195 = vsub.f32 %v2125, %v2194
    %v2196 = vand.u32 %v2195, 4294901760
    %v2197 = vsub.f32 %v2195, %v2196
    %v2198 = vand.u32 %v2197, 4294901760
    %2199 = vmatmul.mubr.f32.gmra.mxu0 %v2198
    %v2200 = vpop.f32.mrf.mxu0
    %v2201 = vadd.f32 %v1144, %v2200
    %v2202 = vpop.f32.mrf.mxu0
    %2203 = vdwg.mxu0
    %2204 = vmatprep.subr.mxu0 0.0
    %2205 = vmatpush1.msra.mxu0 0.0
    %2206 = vmatprep.subr.mxu0 0.0
    %2207 = vmatpush1.msra.mxu0 0.0
    %2208 = vmatprep.subr.mxu0 0.0
    %2209 = vmatpush1.msra.mxu0 0.0
    %2210 = vmatprep.subr.mxu0 0.0
    %2211 = vmatpush1.msra.mxu0 0.0
    %2212 = vmatprep.subr.mxu0 0.0
    %2213 = vmatpush1.msra.mxu0 0.0
    %2214 = vmatprep.subr.mxu0 0.0
    %2215 = vmatpush1.msra.mxu0 0.0
    %2216 = vmatprep.subr.mxu0 0.0
    %2217 = vmatpush1.msra.mxu0 0.0
    %2218 = vmatprep.subr.mxu0 0.0
    %2219 = vmatpush1.msra.mxu0 0.0
    %2220 = vmatprep.subr.mxu0 0.0
    %2221 = vmatpush1.msra.mxu0 0.0
    %2222 = vmatprep.subr.mxu0 0.0
    %2223 = vmatpush1.msra.mxu0 0.0
    %2224 = vmatprep.subr.mxu0 0.0
    %2225 = vmatpush1.msra.mxu0 0.0
    %2226 = vmatprep.subr.mxu0 0.0
    %2227 = vmatpush1.msra.mxu0 0.0
    %2228 = vmatprep.subr.mxu0 0.0
    %2229 = vmatpush1.msra.mxu0 0.0
    %2230 = vmatprep.subr.mxu0 0.0
    %2231 = vmatpush1.msra.mxu0 0.0
    %2232 = vmatprep.subr.mxu0 0.0
    %v2233 = vand.u32 %v1139, 4294901760
    %v2234 = vsub.f32 %v1139, %v2233
    %v2235 = vand.u32 %v2234, 4294901760
    %v2236 = vsub.f32 %v2234, %v2235
    %v2237 = vand.u32 %v2236, 4294901760
    %2238 = vmatpush1.msra.mxu0 %v2237
    %2239 = vmatprep.subr.mxu0 0.0
    %v2240 = vand.u32 %v1138, 4294901760
    %v2241 = vsub.f32 %v1138, %v2240
    %v2242 = vand.u32 %v2241, 4294901760
    %v2243 = vsub.f32 %v2241, %v2242
    %v2244 = vand.u32 %v2243, 4294901760
    %2245 = vmatpush1.msra.mxu0 %v2244
    %2246 = vmatprep.subr.mxu0 0.0
    %2247 = vmatpush2.msra.mxu0 0.0
    %2248 = vmatprep.subr.mxu0 0.0
    %2249 = vmatpush2.msra.mxu0 0.0
    %2250 = vmatprep.subr.mxu0 0.0
    %2251 = vmatpush2.msra.mxu0 0.0
    %2252 = vmatprep.subr.mxu0 0.0
    %2253 = vmatpush2.msra.mxu0 0.0
    %2254 = vmatprep.subr.mxu0 0.0
    %2255 = vmatpush2.msra.mxu0 0.0
    %2256 = vmatprep.subr.mxu0 0.0
    %2257 = vmatpush2.msra.mxu0 0.0
    %2258 = vmatprep.subr.mxu0 0.0
    %2259 = vmatpush2.msra.mxu0 0.0
    %2260 = vmatprep.subr.mxu0 0.0
    %2261 = vmatpush2.msra.mxu0 0.0
    %2262 = vmatprep.subr.mxu0 0.0
    %2263 = vmatpush2.msra.mxu0 0.0
    %2264 = vmatprep.subr.mxu0 0.0
    %2265 = vmatpush2.msra.mxu0 0.0
    %2266 = vmatprep.subr.mxu0 0.0
    %2267 = vmatpush2.msra.mxu0 0.0
    %2268 = vmatprep.subr.mxu0 0.0
    %2269 = vmatpush2.msra.mxu0 0.0
    %2270 = vmatprep.subr.mxu0 0.0
    %2271 = vmatpush2.msra.mxu0 0.0
    %2272 = vmatprep.subr.mxu0 0.0
    %2273 = vmatpush2.msra.mxu0 0.0
    %2274 = vmatprep.subr.mxu0 0.0
    %2275 = vmatpush2.msra.mxu0 0.0
    %2276 = vmatprep.subr.mxu0 0.0
    %2277 = vmatpush2.msra.mxu0 0.0
    %2278 = vmatprep.mubr.f32.mxu0 0.0
    %v2279 = vand.u32 %v2125, 4294901760
    %2280 = vmatmul.mubr.f32.gmra.mxu0 %v2279
    %v2281 = vpop.f32.mrf.mxu0
    %v2282 = vadd.f32 %v2201, %v2281
    %v2283 = vpop.f32.mrf.mxu0
    %2284 = vdwg.mxu0
    %2285 = vmatprep.subr.mxu0 0.0
    %2286 = vmatpush1.msra.mxu0 0.0
    %2287 = vmatprep.subr.mxu0 0.0
    %2288 = vmatpush1.msra.mxu0 0.0
    %2289 = vmatprep.subr.mxu0 0.0
    %2290 = vmatpush1.msra.mxu0 0.0
    %2291 = vmatprep.subr.mxu0 0.0
    %2292 = vmatpush1.msra.mxu0 0.0
    %2293 = vmatprep.subr.mxu0 0.0
    %2294 = vmatpush1.msra.mxu0 0.0
    %2295 = vmatprep.subr.mxu0 0.0
    %2296 = vmatpush1.msra.mxu0 0.0
    %2297 = vmatprep.subr.mxu0 0.0
    %2298 = vmatpush1.msra.mxu0 0.0
    %2299 = vmatprep.subr.mxu0 0.0
    %2300 = vmatpush1.msra.mxu0 0.0
    %2301 = vmatprep.subr.mxu0 0.0
    %2302 = vmatpush1.msra.mxu0 0.0
    %2303 = vmatprep.subr.mxu0 0.0
    %2304 = vmatpush1.msra.mxu0 0.0
    %2305 = vmatprep.subr.mxu0 0.0
    %2306 = vmatpush1.msra.mxu0 0.0
    %2307 = vmatprep.subr.mxu0 0.0
    %2308 = vmatpush1.msra.mxu0 0.0
    %2309 = vmatprep.subr.mxu0 0.0
    %2310 = vmatpush1.msra.mxu0 0.0
    %2311 = vmatprep.subr.mxu0 0.0
    %2312 = vmatpush1.msra.mxu0 0.0
    %2313 = vmatprep.subr.mxu0 0.0
    %v2314 = vand.u32 %v1139, 4294901760
    %v2315 = vsub.f32 %v1139, %v2314
    %2316 = vmatpush1.msra.mxu0 %v2315
    %2317 = vmatprep.subr.mxu0 0.0
    %v2318 = vand.u32 %v1138, 4294901760
    %v2319 = vsub.f32 %v1138, %v2318
    %2320 = vmatpush1.msra.mxu0 %v2319
    %2321 = vmatprep.subr.mxu0 0.0
    %2322 = vmatpush2.msra.mxu0 0.0
    %2323 = vmatprep.subr.mxu0 0.0
    %2324 = vmatpush2.msra.mxu0 0.0
    %2325 = vmatprep.subr.mxu0 0.0
    %2326 = vmatpush2.msra.mxu0 0.0
    %2327 = vmatprep.subr.mxu0 0.0
    %2328 = vmatpush2.msra.mxu0 0.0
    %2329 = vmatprep.subr.mxu0 0.0
    %2330 = vmatpush2.msra.mxu0 0.0
    %2331 = vmatprep.subr.mxu0 0.0
    %2332 = vmatpush2.msra.mxu0 0.0
    %2333 = vmatprep.subr.mxu0 0.0
    %2334 = vmatpush2.msra.mxu0 0.0
    %2335 = vmatprep.subr.mxu0 0.0
    %2336 = vmatpush2.msra.mxu0 0.0
    %2337 = vmatprep.subr.mxu0 0.0
    %2338 = vmatpush2.msra.mxu0 0.0
    %2339 = vmatprep.subr.mxu0 0.0
    %2340 = vmatpush2.msra.mxu0 0.0
    %2341 = vmatprep.subr.mxu0 0.0
    %2342 = vmatpush2.msra.mxu0 0.0
    %2343 = vmatprep.subr.mxu0 0.0
    %2344 = vmatpush2.msra.mxu0 0.0
    %2345 = vmatprep.subr.mxu0 0.0
    %2346 = vmatpush2.msra.mxu0 0.0
    %2347 = vmatprep.subr.mxu0 0.0
    %2348 = vmatpush2.msra.mxu0 0.0
    %2349 = vmatprep.subr.mxu0 0.0
    %2350 = vmatpush2.msra.mxu0 0.0
    %2351 = vmatprep.subr.mxu0 0.0
    %2352 = vmatpush2.msra.mxu0 0.0
    %2353 = vmatprep.mubr.f32.mxu0 0.0
    %v2354 = vand.u32 %v2125, 4294901760
    %v2355 = vsub.f32 %v2125, %v2354
    %2356 = vmatmul.mubr.f32.gmra.mxu0 %v2355
    %v2357 = vpop.f32.mrf.mxu0
    %v2358 = vadd.f32 %v2282, %v2357
    %v2359 = vpop.f32.mrf.mxu0
    %2360 = vdwg.mxu0
    %2361 = vmatprep.subr.mxu0 0.0
    %2362 = vmatpush1.msra.mxu0 0.0
    %2363 = vmatprep.subr.mxu0 0.0
    %2364 = vmatpush1.msra.mxu0 0.0
    %2365 = vmatprep.subr.mxu0 0.0
    %2366 = vmatpush1.msra.mxu0 0.0
    %2367 = vmatprep.subr.mxu0 0.0
    %2368 = vmatpush1.msra.mxu0 0.0
    %2369 = vmatprep.subr.mxu0 0.0
    %2370 = vmatpush1.msra.mxu0 0.0
    %2371 = vmatprep.subr.mxu0 0.0
    %2372 = vmatpush1.msra.mxu0 0.0
    %2373 = vmatprep.subr.mxu0 0.0
    %2374 = vmatpush1.msra.mxu0 0.0
    %2375 = vmatprep.subr.mxu0 0.0
    %2376 = vmatpush1.msra.mxu0 0.0
    %2377 = vmatprep.subr.mxu0 0.0
    %2378 = vmatpush1.msra.mxu0 0.0
    %2379 = vmatprep.subr.mxu0 0.0
    %2380 = vmatpush1.msra.mxu0 0.0
    %2381 = vmatprep.subr.mxu0 0.0
    %2382 = vmatpush1.msra.mxu0 0.0
    %2383 = vmatprep.subr.mxu0 0.0
    %2384 = vmatpush1.msra.mxu0 0.0
    %2385 = vmatprep.subr.mxu0 0.0
    %2386 = vmatpush1.msra.mxu0 0.0
    %2387 = vmatprep.subr.mxu0 0.0
    %2388 = vmatpush1.msra.mxu0 0.0
    %2389 = vmatprep.subr.mxu0 0.0
    %v2390 = vand.u32 %v1139, 4294901760
    %2391 = vmatpush1.msra.mxu0 %v2390
    %2392 = vmatprep.subr.mxu0 0.0
    %v2393 = vand.u32 %v1138, 4294901760
    %2394 = vmatpush1.msra.mxu0 %v2393
    %2395 = vmatprep.subr.mxu0 0.0
    %2396 = vmatpush2.msra.mxu0 0.0
    %2397 = vmatprep.subr.mxu0 0.0
    %2398 = vmatpush2.msra.mxu0 0.0
    %2399 = vmatprep.subr.mxu0 0.0
    %2400 = vmatpush2.msra.mxu0 0.0
    %2401 = vmatprep.subr.mxu0 0.0
    %2402 = vmatpush2.msra.mxu0 0.0
    %2403 = vmatprep.subr.mxu0 0.0
    %2404 = vmatpush2.msra.mxu0 0.0
    %2405 = vmatprep.subr.mxu0 0.0
    %2406 = vmatpush2.msra.mxu0 0.0
    %2407 = vmatprep.subr.mxu0 0.0
    %2408 = vmatpush2.msra.mxu0 0.0
    %2409 = vmatprep.subr.mxu0 0.0
    %2410 = vmatpush2.msra.mxu0 0.0
    %2411 = vmatprep.subr.mxu0 0.0
    %2412 = vmatpush2.msra.mxu0 0.0
    %2413 = vmatprep.subr.mxu0 0.0
    %2414 = vmatpush2.msra.mxu0 0.0
    %2415 = vmatprep.subr.mxu0 0.0
    %2416 = vmatpush2.msra.mxu0 0.0
    %2417 = vmatprep.subr.mxu0 0.0
    %2418 = vmatpush2.msra.mxu0 0.0
    %2419 = vmatprep.subr.mxu0 0.0
    %2420 = vmatpush2.msra.mxu0 0.0
    %2421 = vmatprep.subr.mxu0 0.0
    %2422 = vmatpush2.msra.mxu0 0.0
    %2423 = vmatprep.subr.mxu0 0.0
    %2424 = vmatpush2.msra.mxu0 0.0
    %2425 = vmatprep.subr.mxu0 0.0
    %2426 = vmatpush2.msra.mxu0 0.0
    %2427 = vmatprep.mubr.f32.mxu0 0.0
    %v2428 = vand.u32 %v2125, 4294901760
    %v2429 = vsub.f32 %v2125, %v2428
    %v2430 = vand.u32 %v2429, 4294901760
    %2431 = vmatmul.mubr.f32.gmra.mxu0 %v2430
    %v2432 = vpop.f32.mrf.mxu0
    %v2433 = vadd.f32 %v2358, %v2432
    %v2434 = vpop.f32.mrf.mxu0
    %2435 = vdwg.mxu0
    %2436 = vmatprep.subr.mxu0 0.0
    %2437 = vmatpush1.msra.mxu0 0.0
    %2438 = vmatprep.subr.mxu0 0.0
    %2439 = vmatpush1.msra.mxu0 0.0
    %2440 = vmatprep.subr.mxu0 0.0
    %2441 = vmatpush1.msra.mxu0 0.0
    %2442 = vmatprep.subr.mxu0 0.0
    %2443 = vmatpush1.msra.mxu0 0.0
    %2444 = vmatprep.subr.mxu0 0.0
    %2445 = vmatpush1.msra.mxu0 0.0
    %2446 = vmatprep.subr.mxu0 0.0
    %2447 = vmatpush1.msra.mxu0 0.0
    %2448 = vmatprep.subr.mxu0 0.0
    %2449 = vmatpush1.msra.mxu0 0.0
    %2450 = vmatprep.subr.mxu0 0.0
    %2451 = vmatpush1.msra.mxu0 0.0
    %2452 = vmatprep.subr.mxu0 0.0
    %2453 = vmatpush1.msra.mxu0 0.0
    %2454 = vmatprep.subr.mxu0 0.0
    %2455 = vmatpush1.msra.mxu0 0.0
    %2456 = vmatprep.subr.mxu0 0.0
    %2457 = vmatpush1.msra.mxu0 0.0
    %2458 = vmatprep.subr.mxu0 0.0
    %2459 = vmatpush1.msra.mxu0 0.0
    %2460 = vmatprep.subr.mxu0 0.0
    %2461 = vmatpush1.msra.mxu0 0.0
    %2462 = vmatprep.subr.mxu0 0.0
    %2463 = vmatpush1.msra.mxu0 0.0
    %2464 = vmatprep.subr.mxu0 0.0
    %v2465 = vand.u32 %v1139, 4294901760
    %v2466 = vsub.f32 %v1139, %v2465
    %v2467 = vand.u32 %v2466, 4294901760
    %2468 = vmatpush1.msra.mxu0 %v2467
    %2469 = vmatprep.subr.mxu0 0.0
    %v2470 = vand.u32 %v1138, 4294901760
    %v2471 = vsub.f32 %v1138, %v2470
    %v2472 = vand.u32 %v2471, 4294901760
    %2473 = vmatpush1.msra.mxu0 %v2472
    %2474 = vmatprep.subr.mxu0 0.0
    %2475 = vmatpush2.msra.mxu0 0.0
    %2476 = vmatprep.subr.mxu0 0.0
    %2477 = vmatpush2.msra.mxu0 0.0
    %2478 = vmatprep.subr.mxu0 0.0
    %2479 = vmatpush2.msra.mxu0 0.0
    %2480 = vmatprep.subr.mxu0 0.0
    %2481 = vmatpush2.msra.mxu0 0.0
    %2482 = vmatprep.subr.mxu0 0.0
    %2483 = vmatpush2.msra.mxu0 0.0
    %2484 = vmatprep.subr.mxu0 0.0
    %2485 = vmatpush2.msra.mxu0 0.0
    %2486 = vmatprep.subr.mxu0 0.0
    %2487 = vmatpush2.msra.mxu0 0.0
    %2488 = vmatprep.subr.mxu0 0.0
    %2489 = vmatpush2.msra.mxu0 0.0
    %2490 = vmatprep.subr.mxu0 0.0
    %2491 = vmatpush2.msra.mxu0 0.0
    %2492 = vmatprep.subr.mxu0 0.0
    %2493 = vmatpush2.msra.mxu0 0.0
    %2494 = vmatprep.subr.mxu0 0.0
    %2495 = vmatpush2.msra.mxu0 0.0
    %2496 = vmatprep.subr.mxu0 0.0
    %2497 = vmatpush2.msra.mxu0 0.0
    %2498 = vmatprep.subr.mxu0 0.0
    %2499 = vmatpush2.msra.mxu0 0.0
    %2500 = vmatprep.subr.mxu0 0.0
    %2501 = vmatpush2.msra.mxu0 0.0
    %2502 = vmatprep.subr.mxu0 0.0
    %2503 = vmatpush2.msra.mxu0 0.0
    %2504 = vmatprep.subr.mxu0 0.0
    %2505 = vmatpush2.msra.mxu0 0.0
    %2506 = vmatprep.mubr.f32.mxu0 0.0
    %v2507 = vand.u32 %v2125, 4294901760
    %2508 = vmatmul.mubr.f32.gmra.mxu0 %v2507
    %v2509 = vpop.f32.mrf.mxu0
    %v2510 = vadd.f32 %v2433, %v2509
    %v2511 = vpop.f32.mrf.mxu0
    %2512 = vdwg.mxu0
    %2513 = vmatprep.subr.mxu0 0.0
    %2514 = vmatpush1.msra.mxu0 0.0
    %2515 = vmatprep.subr.mxu0 0.0
    %2516 = vmatpush1.msra.mxu0 0.0
    %2517 = vmatprep.subr.mxu0 0.0
    %2518 = vmatpush1.msra.mxu0 0.0
    %2519 = vmatprep.subr.mxu0 0.0
    %2520 = vmatpush1.msra.mxu0 0.0
    %2521 = vmatprep.subr.mxu0 0.0
    %2522 = vmatpush1.msra.mxu0 0.0
    %2523 = vmatprep.subr.mxu0 0.0
    %2524 = vmatpush1.msra.mxu0 0.0
    %2525 = vmatprep.subr.mxu0 0.0
    %2526 = vmatpush1.msra.mxu0 0.0
    %2527 = vmatprep.subr.mxu0 0.0
    %2528 = vmatpush1.msra.mxu0 0.0
    %2529 = vmatprep.subr.mxu0 0.0
    %2530 = vmatpush1.msra.mxu0 0.0
    %2531 = vmatprep.subr.mxu0 0.0
    %2532 = vmatpush1.msra.mxu0 0.0
    %2533 = vmatprep.subr.mxu0 0.0
    %2534 = vmatpush1.msra.mxu0 0.0
    %2535 = vmatprep.subr.mxu0 0.0
    %2536 = vmatpush1.msra.mxu0 0.0
    %2537 = vmatprep.subr.mxu0 0.0
    %2538 = vmatpush1.msra.mxu0 0.0
    %2539 = vmatprep.subr.mxu0 0.0
    %2540 = vmatpush1.msra.mxu0 0.0
    %2541 = vmatprep.subr.mxu0 0.0
    %v2542 = vand.u32 %v1139, 4294901760
    %2543 = vmatpush1.msra.mxu0 %v2542
    %2544 = vmatprep.subr.mxu0 0.0
    %v2545 = vand.u32 %v1138, 4294901760
    %2546 = vmatpush1.msra.mxu0 %v2545
    %2547 = vmatprep.subr.mxu0 0.0
    %2548 = vmatpush2.msra.mxu0 0.0
    %2549 = vmatprep.subr.mxu0 0.0
    %2550 = vmatpush2.msra.mxu0 0.0
    %2551 = vmatprep.subr.mxu0 0.0
    %2552 = vmatpush2.msra.mxu0 0.0
    %2553 = vmatprep.subr.mxu0 0.0
    %2554 = vmatpush2.msra.mxu0 0.0
    %2555 = vmatprep.subr.mxu0 0.0
    %2556 = vmatpush2.msra.mxu0 0.0
    %2557 = vmatprep.subr.mxu0 0.0
    %2558 = vmatpush2.msra.mxu0 0.0
    %2559 = vmatprep.subr.mxu0 0.0
    %2560 = vmatpush2.msra.mxu0 0.0
    %2561 = vmatprep.subr.mxu0 0.0
    %2562 = vmatpush2.msra.mxu0 0.0
    %2563 = vmatprep.subr.mxu0 0.0
    %2564 = vmatpush2.msra.mxu0 0.0
    %2565 = vmatprep.subr.mxu0 0.0
    %2566 = vmatpush2.msra.mxu0 0.0
    %2567 = vmatprep.subr.mxu0 0.0
    %2568 = vmatpush2.msra.mxu0 0.0
    %2569 = vmatprep.subr.mxu0 0.0
    %2570 = vmatpush2.msra.mxu0 0.0
    %2571 = vmatprep.subr.mxu0 0.0
    %2572 = vmatpush2.msra.mxu0 0.0
    %2573 = vmatprep.subr.mxu0 0.0
    %2574 = vmatpush2.msra.mxu0 0.0
    %2575 = vmatprep.subr.mxu0 0.0
    %2576 = vmatpush2.msra.mxu0 0.0
    %2577 = vmatprep.subr.mxu0 0.0
    %2578 = vmatpush2.msra.mxu0 0.0
    %2579 = vmatprep.mubr.f32.mxu0 0.0
    %v2580 = vand.u32 %v2125, 4294901760
    %2581 = vmatmul.mubr.f32.gmra.mxu0 %v2580
    %v2582 = vpop.f32.mrf.mxu0
    %v2583 = vadd.f32 %v2510, %v2582
    %v2584 = vpop.f32.mrf.mxu0
    %2585 = vdwg.mxu0
    %v2586 = vadd.f32 %v2119, %v2583
    %v2587 = vxor.u32 %v2586, 2147483648
    %v2588 = vmul.f32 %v2587, 1.442695
    %v2589 = vpow.pop %v2588
    %v2590 = vadd.f32 %v2589, 1.0
    %v2591 = vrcp.pop %v2590
    %v2592 = vmul.f32 1.0, %v2591
    %2594 = vrot.lane.b32.xlu0 %v2583, 96
    %v2595 = vpop.permute.xlu0 %2594
    %v2597 = vmul.f32 %v2592, %v2595
    %2599 = vrot.lane.b32.xlu0 %v2597, 32
    %v2600 = vpop.permute.xlu0 %2599
    %v2602 = vadd.f32 %v2119, %v2600
    %v2603 = vtanh.pop %v2602
    %v2604 = vsub.f32 1.0, %v2592
    %2606 = vrot.lane.b32.xlu0 %v2603, 112
    %v2607 = vpop.permute.xlu0 %2606
    %v2609 = vmul.f32 %v2604, %v2607
    %v2610 = vmul.f32 %v2592, %v1633
    %v2611 = vadd.f32 %v2609, %v2610
    %v2612 = vld [vmem:[%s5] sm:$0xff]
    %v2613 = vld [vmem:[%s5 + $0x8] sm:$0xff]
    %v2614 = vld [vmem:[%s5 + $0x10] sm:$0xff]
    %v2615 = vld [vmem:[%s5 + $0x18] sm:$0xff]
    %v2616 = vld [vmem:[%s7] sm:$0x1]
    %v2617 = vlaneseq
    %v2618 = vshrl.u32 %v2617, 7
    %v2619 = vsub.s32 0, %v2618
    %v2620 = vrot.slane %v2616, %v2619
    %2621 = vmatprep.subr.mxu0 0.0
    %2622 = vmatpush1.msra.mxu0 0.0
    %2623 = vmatprep.subr.mxu0 0.0
    %2624 = vmatpush1.msra.mxu0 0.0
    %2625 = vmatprep.subr.mxu0 0.0
    %2626 = vmatpush1.msra.mxu0 0.0
    %2627 = vmatprep.subr.mxu0 0.0
    %2628 = vmatpush1.msra.mxu0 0.0
    %2629 = vmatprep.subr.mxu0 0.0
    %2630 = vmatpush1.msra.mxu0 0.0
    %2631 = vmatprep.subr.mxu0 0.0
    %2632 = vmatpush1.msra.mxu0 0.0
    %2633 = vmatprep.subr.mxu0 0.0
    %2634 = vmatpush1.msra.mxu0 0.0
    %2635 = vmatprep.subr.mxu0 0.0
    %2636 = vmatpush1.msra.mxu0 0.0
    %2637 = vmatprep.subr.mxu0 0.0
    %2638 = vmatpush1.msra.mxu0 0.0
    %2639 = vmatprep.subr.mxu0 0.0
    %2640 = vmatpush1.msra.mxu0 0.0
    %2641 = vmatprep.subr.mxu0 0.0
    %2642 = vmatpush1.msra.mxu0 0.0
    %2643 = vmatprep.subr.mxu0 0.0
    %2644 = vmatpush1.msra.mxu0 0.0
    %2645 = vmatprep.subr.mxu0 0.0
    %v2646 = vand.u32 %v2615, 4294901760
    %2647 = vmatpush1.msra.mxu0 %v2646
    %2648 = vmatprep.subr.mxu0 0.0
    %v2649 = vand.u32 %v2614, 4294901760
    %2650 = vmatpush1.msra.mxu0 %v2649
    %2651 = vmatprep.subr.mxu0 0.0
    %v2652 = vand.u32 %v2613, 4294901760
    %2653 = vmatpush1.msra.mxu0 %v2652
    %2654 = vmatprep.subr.mxu0 0.0
    %v2655 = vand.u32 %v2612, 4294901760
    %2656 = vmatpush1.msra.mxu0 %v2655
    %2657 = vmatprep.subr.mxu0 0.0
    %2658 = vmatpush2.msra.mxu0 0.0
    %2659 = vmatprep.subr.mxu0 0.0
    %2660 = vmatpush2.msra.mxu0 0.0
    %2661 = vmatprep.subr.mxu0 0.0
    %2662 = vmatpush2.msra.mxu0 0.0
    %2663 = vmatprep.subr.mxu0 0.0
    %2664 = vmatpush2.msra.mxu0 0.0
    %2665 = vmatprep.subr.mxu0 0.0
    %2666 = vmatpush2.msra.mxu0 0.0
    %2667 = vmatprep.subr.mxu0 0.0
    %2668 = vmatpush2.msra.mxu0 0.0
    %2669 = vmatprep.subr.mxu0 0.0
    %2670 = vmatpush2.msra.mxu0 0.0
    %2671 = vmatprep.subr.mxu0 0.0
    %2672 = vmatpush2.msra.mxu0 0.0
    %2673 = vmatprep.subr.mxu0 0.0
    %2674 = vmatpush2.msra.mxu0 0.0
    %2675 = vmatprep.subr.mxu0 0.0
    %2676 = vmatpush2.msra.mxu0 0.0
    %2677 = vmatprep.subr.mxu0 0.0
    %2678 = vmatpush2.msra.mxu0 0.0
    %2679 = vmatprep.subr.mxu0 0.0
    %2680 = vmatpush2.msra.mxu0 0.0
    %2681 = vmatprep.subr.mxu0 0.0
    %2682 = vmatpush2.msra.mxu0 0.0
    %2683 = vmatprep.subr.mxu0 0.0
    %2684 = vmatpush2.msra.mxu0 0.0
    %2685 = vmatprep.subr.mxu0 0.0
    %2686 = vmatpush2.msra.mxu0 0.0
    %2687 = vmatprep.subr.mxu0 0.0
    %2688 = vmatpush2.msra.mxu0 0.0
    %2689 = vmatprep.mubr.f32.mxu0 0.0
    %v2690 = vand.u32 %v1635, 4294901760
    %v2691 = vsub.f32 %v1635, %v2690
    %v2692 = vand.u32 %v2691, 4294901760
    %v2693 = vsub.f32 %v2691, %v2692
    %v2694 = vand.u32 %v2693, 4294901760
    %2695 = vmatmul.mubr.f32.gmra.mxu0 %v2694
    %v2696 = vpop.f32.mrf.mxu0
    %v2697 = vadd.f32 %v2620, %v2696
    %v2698 = vpop.f32.mrf.mxu0
    %2699 = vdwg.mxu0
    %2700 = vmatprep.subr.mxu0 0.0
    %2701 = vmatpush1.msra.mxu0 0.0
    %2702 = vmatprep.subr.mxu0 0.0
    %2703 = vmatpush1.msra.mxu0 0.0
    %2704 = vmatprep.subr.mxu0 0.0
    %2705 = vmatpush1.msra.mxu0 0.0
    %2706 = vmatprep.subr.mxu0 0.0
    %2707 = vmatpush1.msra.mxu0 0.0
    %2708 = vmatprep.subr.mxu0 0.0
    %2709 = vmatpush1.msra.mxu0 0.0
    %2710 = vmatprep.subr.mxu0 0.0
    %2711 = vmatpush1.msra.mxu0 0.0
    %2712 = vmatprep.subr.mxu0 0.0
    %2713 = vmatpush1.msra.mxu0 0.0
    %2714 = vmatprep.subr.mxu0 0.0
    %2715 = vmatpush1.msra.mxu0 0.0
    %2716 = vmatprep.subr.mxu0 0.0
    %2717 = vmatpush1.msra.mxu0 0.0
    %2718 = vmatprep.subr.mxu0 0.0
    %2719 = vmatpush1.msra.mxu0 0.0
    %2720 = vmatprep.subr.mxu0 0.0
    %2721 = vmatpush1.msra.mxu0 0.0
    %2722 = vmatprep.subr.mxu0 0.0
    %2723 = vmatpush1.msra.mxu0 0.0
    %2724 = vmatprep.subr.mxu0 0.0
    %v2725 = vand.u32 %v2615, 4294901760
    %v2726 = vsub.f32 %v2615, %v2725
    %v2727 = vand.u32 %v2726, 4294901760
    %v2728 = vsub.f32 %v2726, %v2727
    %v2729 = vand.u32 %v2728, 4294901760
    %2730 = vmatpush1.msra.mxu0 %v2729
    %2731 = vmatprep.subr.mxu0 0.0
    %v2732 = vand.u32 %v2614, 4294901760
    %v2733 = vsub.f32 %v2614, %v2732
    %v2734 = vand.u32 %v2733, 4294901760
    %v2735 = vsub.f32 %v2733, %v2734
    %v2736 = vand.u32 %v2735, 4294901760
    %2737 = vmatpush1.msra.mxu0 %v2736
    %2738 = vmatprep.subr.mxu0 0.0
    %v2739 = vand.u32 %v2613, 4294901760
    %v2740 = vsub.f32 %v2613, %v2739
    %v2741 = vand.u32 %v2740, 4294901760
    %v2742 = vsub.f32 %v2740, %v2741
    %v2743 = vand.u32 %v2742, 4294901760
    %2744 = vmatpush1.msra.mxu0 %v2743
    %2745 = vmatprep.subr.mxu0 0.0
    %v2746 = vand.u32 %v2612, 4294901760
    %v2747 = vsub.f32 %v2612, %v2746
    %v2748 = vand.u32 %v2747, 4294901760
    %v2749 = vsub.f32 %v2747, %v2748
    %v2750 = vand.u32 %v2749, 4294901760
    %2751 = vmatpush1.msra.mxu0 %v2750
    %2752 = vmatprep.subr.mxu0 0.0
    %2753 = vmatpush2.msra.mxu0 0.0
    %2754 = vmatprep.subr.mxu0 0.0
    %2755 = vmatpush2.msra.mxu0 0.0
    %2756 = vmatprep.subr.mxu0 0.0
    %2757 = vmatpush2.msra.mxu0 0.0
    %2758 = vmatprep.subr.mxu0 0.0
    %2759 = vmatpush2.msra.mxu0 0.0
    %2760 = vmatprep.subr.mxu0 0.0
    %2761 = vmatpush2.msra.mxu0 0.0
    %2762 = vmatprep.subr.mxu0 0.0
    %2763 = vmatpush2.msra.mxu0 0.0
    %2764 = vmatprep.subr.mxu0 0.0
    %2765 = vmatpush2.msra.mxu0 0.0
    %2766 = vmatprep.subr.mxu0 0.0
    %2767 = vmatpush2.msra.mxu0 0.0
    %2768 = vmatprep.subr.mxu0 0.0
    %2769 = vmatpush2.msra.mxu0 0.0
    %2770 = vmatprep.subr.mxu0 0.0
    %2771 = vmatpush2.msra.mxu0 0.0
    %2772 = vmatprep.subr.mxu0 0.0
    %2773 = vmatpush2.msra.mxu0 0.0
    %2774 = vmatprep.subr.mxu0 0.0
    %2775 = vmatpush2.msra.mxu0 0.0
    %2776 = vmatprep.subr.mxu0 0.0
    %2777 = vmatpush2.msra.mxu0 0.0
    %2778 = vmatprep.subr.mxu0 0.0
    %2779 = vmatpush2.msra.mxu0 0.0
    %2780 = vmatprep.subr.mxu0 0.0
    %2781 = vmatpush2.msra.mxu0 0.0
    %2782 = vmatprep.subr.mxu0 0.0
    %2783 = vmatpush2.msra.mxu0 0.0
    %2784 = vmatprep.mubr.f32.mxu0 0.0
    %v2785 = vand.u32 %v1635, 4294901760
    %2786 = vmatmul.mubr.f32.gmra.mxu0 %v2785
    %v2787 = vpop.f32.mrf.mxu0
    %v2788 = vadd.f32 %v2697, %v2787
    %v2789 = vpop.f32.mrf.mxu0
    %2790 = vdwg.mxu0
    %2791 = vmatprep.subr.mxu0 0.0
    %2792 = vmatpush1.msra.mxu0 0.0
    %2793 = vmatprep.subr.mxu0 0.0
    %2794 = vmatpush1.msra.mxu0 0.0
    %2795 = vmatprep.subr.mxu0 0.0
    %2796 = vmatpush1.msra.mxu0 0.0
    %2797 = vmatprep.subr.mxu0 0.0
    %2798 = vmatpush1.msra.mxu0 0.0
    %2799 = vmatprep.subr.mxu0 0.0
    %2800 = vmatpush1.msra.mxu0 0.0
    %2801 = vmatprep.subr.mxu0 0.0
    %2802 = vmatpush1.msra.mxu0 0.0
    %2803 = vmatprep.subr.mxu0 0.0
    %2804 = vmatpush1.msra.mxu0 0.0
    %2805 = vmatprep.subr.mxu0 0.0
    %2806 = vmatpush1.msra.mxu0 0.0
    %2807 = vmatprep.subr.mxu0 0.0
    %2808 = vmatpush1.msra.mxu0 0.0
    %2809 = vmatprep.subr.mxu0 0.0
    %2810 = vmatpush1.msra.mxu0 0.0
    %2811 = vmatprep.subr.mxu0 0.0
    %2812 = vmatpush1.msra.mxu0 0.0
    %2813 = vmatprep.subr.mxu0 0.0
    %2814 = vmatpush1.msra.mxu0 0.0
    %2815 = vmatprep.subr.mxu0 0.0
    %v2816 = vand.u32 %v2615, 4294901760
    %v2817 = vsub.f32 %v2615, %v2816
    %2818 = vmatpush1.msra.mxu0 %v2817
    %2819 = vmatprep.subr.mxu0 0.0
    %v2820 = vand.u32 %v2614, 4294901760
    %v2821 = vsub.f32 %v2614, %v2820
    %2822 = vmatpush1.msra.mxu0 %v2821
    %2823 = vmatprep.subr.mxu0 0.0
    %v2824 = vand.u32 %v2613, 4294901760
    %v2825 = vsub.f32 %v2613, %v2824
    %2826 = vmatpush1.msra.mxu0 %v2825
    %2827 = vmatprep.subr.mxu0 0.0
    %v2828 = vand.u32 %v2612, 4294901760
    %v2829 = vsub.f32 %v2612, %v2828
    %2830 = vmatpush1.msra.mxu0 %v2829
    %2831 = vmatprep.subr.mxu0 0.0
    %2832 = vmatpush2.msra.mxu0 0.0
    %2833 = vmatprep.subr.mxu0 0.0
    %2834 = vmatpush2.msra.mxu0 0.0
    %2835 = vmatprep.subr.mxu0 0.0
    %2836 = vmatpush2.msra.mxu0 0.0
    %2837 = vmatprep.subr.mxu0 0.0
    %2838 = vmatpush2.msra.mxu0 0.0
    %2839 = vmatprep.subr.mxu0 0.0
    %2840 = vmatpush2.msra.mxu0 0.0
    %2841 = vmatprep.subr.mxu0 0.0
    %2842 = vmatpush2.msra.mxu0 0.0
    %2843 = vmatprep.subr.mxu0 0.0
    %2844 = vmatpush2.msra.mxu0 0.0
    %2845 = vmatprep.subr.mxu0 0.0
    %2846 = vmatpush2.msra.mxu0 0.0
    %2847 = vmatprep.subr.mxu0 0.0
    %2848 = vmatpush2.msra.mxu0 0.0
    %2849 = vmatprep.subr.mxu0 0.0
    %2850 = vmatpush2.msra.mxu0 0.0
    %2851 = vmatprep.subr.mxu0 0.0
    %2852 = vmatpush2.msra.mxu0 0.0
    %2853 = vmatprep.subr.mxu0 0.0
    %2854 = vmatpush2.msra.mxu0 0.0
    %2855 = vmatprep.subr.mxu0 0.0
    %2856 = vmatpush2.msra.mxu0 0.0
    %2857 = vmatprep.subr.mxu0 0.0
    %2858 = vmatpush2.msra.mxu0 0.0
    %2859 = vmatprep.subr.mxu0 0.0
    %2860 = vmatpush2.msra.mxu0 0.0
    %2861 = vmatprep.subr.mxu0 0.0
    %2862 = vmatpush2.msra.mxu0 0.0
    %2863 = vmatprep.mubr.f32.mxu0 0.0
    %v2864 = vand.u32 %v1635, 4294901760
    %v2865 = vsub.f32 %v1635, %v2864
    %2866 = vmatmul.mubr.f32.gmra.mxu0 %v2865
    %v2867 = vpop.f32.mrf.mxu0
    %v2868 = vadd.f32 %v2788, %v2867
    %v2869 = vpop.f32.mrf.mxu0
    %2870 = vdwg.mxu0
    %2871 = vmatprep.subr.mxu0 0.0
    %2872 = vmatpush1.msra.mxu0 0.0
    %2873 = vmatprep.subr.mxu0 0.0
    %2874 = vmatpush1.msra.mxu0 0.0
    %2875 = vmatprep.subr.mxu0 0.0
    %2876 = vmatpush1.msra.mxu0 0.0
    %2877 = vmatprep.subr.mxu0 0.0
    %2878 = vmatpush1.msra.mxu0 0.0
    %2879 = vmatprep.subr.mxu0 0.0
    %2880 = vmatpush1.msra.mxu0 0.0
    %2881 = vmatprep.subr.mxu0 0.0
    %2882 = vmatpush1.msra.mxu0 0.0
    %2883 = vmatprep.subr.mxu0 0.0
    %2884 = vmatpush1.msra.mxu0 0.0
    %2885 = vmatprep.subr.mxu0 0.0
    %2886 = vmatpush1.msra.mxu0 0.0
    %2887 = vmatprep.subr.mxu0 0.0
    %2888 = vmatpush1.msra.mxu0 0.0
    %2889 = vmatprep.subr.mxu0 0.0
    %2890 = vmatpush1.msra.mxu0 0.0
    %2891 = vmatprep.subr.mxu0 0.0
    %2892 = vmatpush1.msra.mxu0 0.0
    %2893 = vmatprep.subr.mxu0 0.0
    %2894 = vmatpush1.msra.mxu0 0.0
    %2895 = vmatprep.subr.mxu0 0.0
    %v2896 = vand.u32 %v2615, 4294901760
    %2897 = vmatpush1.msra.mxu0 %v2896
    %2898 = vmatprep.subr.mxu0 0.0
    %v2899 = vand.u32 %v2614, 4294901760
    %2900 = vmatpush1.msra.mxu0 %v2899
    %2901 = vmatprep.subr.mxu0 0.0
    %v2902 = vand.u32 %v2613, 4294901760
    %2903 = vmatpush1.msra.mxu0 %v2902
    %2904 = vmatprep.subr.mxu0 0.0
    %v2905 = vand.u32 %v2612, 4294901760
    %2906 = vmatpush1.msra.mxu0 %v2905
    %2907 = vmatprep.subr.mxu0 0.0
    %2908 = vmatpush2.msra.mxu0 0.0
    %2909 = vmatprep.subr.mxu0 0.0
    %2910 = vmatpush2.msra.mxu0 0.0
    %2911 = vmatprep.subr.mxu0 0.0
    %2912 = vmatpush2.msra.mxu0 0.0
    %2913 = vmatprep.subr.mxu0 0.0
    %2914 = vmatpush2.msra.mxu0 0.0
    %2915 = vmatprep.subr.mxu0 0.0
    %2916 = vmatpush2.msra.mxu0 0.0
    %2917 = vmatprep.subr.mxu0 0.0
    %2918 = vmatpush2.msra.mxu0 0.0
    %2919 = vmatprep.subr.mxu0 0.0
    %2920 = vmatpush2.msra.mxu0 0.0
    %2921 = vmatprep.subr.mxu0 0.0
    %2922 = vmatpush2.msra.mxu0 0.0
    %2923 = vmatprep.subr.mxu0 0.0
    %2924 = vmatpush2.msra.mxu0 0.0
    %2925 = vmatprep.subr.mxu0 0.0
    %2926 = vmatpush2.msra.mxu0 0.0
    %2927 = vmatprep.subr.mxu0 0.0
    %2928 = vmatpush2.msra.mxu0 0.0
    %2929 = vmatprep.subr.mxu0 0.0
    %2930 = vmatpush2.msra.mxu0 0.0
    %2931 = vmatprep.subr.mxu0 0.0
    %2932 = vmatpush2.msra.mxu0 0.0
    %2933 = vmatprep.subr.mxu0 0.0
    %2934 = vmatpush2.msra.mxu0 0.0
    %2935 = vmatprep.subr.mxu0 0.0
    %2936 = vmatpush2.msra.mxu0 0.0
    %2937 = vmatprep.subr.mxu0 0.0
    %2938 = vmatpush2.msra.mxu0 0.0
    %2939 = vmatprep.mubr.f32.mxu0 0.0
    %v2940 = vand.u32 %v1635, 4294901760
    %v2941 = vsub.f32 %v1635, %v2940
    %v2942 = vand.u32 %v2941, 4294901760
    %2943 = vmatmul.mubr.f32.gmra.mxu0 %v2942
    %v2944 = vpop.f32.mrf.mxu0
    %v2945 = vadd.f32 %v2868, %v2944
    %v2946 = vpop.f32.mrf.mxu0
    %2947 = vdwg.mxu0
    %2948 = vmatprep.subr.mxu0 0.0
    %2949 = vmatpush1.msra.mxu0 0.0
    %2950 = vmatprep.subr.mxu0 0.0
    %2951 = vmatpush1.msra.mxu0 0.0
    %2952 = vmatprep.subr.mxu0 0.0
    %2953 = vmatpush1.msra.mxu0 0.0
    %2954 = vmatprep.subr.mxu0 0.0
    %2955 = vmatpush1.msra.mxu0 0.0
    %2956 = vmatprep.subr.mxu0 0.0
    %2957 = vmatpush1.msra.mxu0 0.0
    %2958 = vmatprep.subr.mxu0 0.0
    %2959 = vmatpush1.msra.mxu0 0.0
    %2960 = vmatprep.subr.mxu0 0.0
    %2961 = vmatpush1.msra.mxu0 0.0
    %2962 = vmatprep.subr.mxu0 0.0
    %2963 = vmatpush1.msra.mxu0 0.0
    %2964 = vmatprep.subr.mxu0 0.0
    %2965 = vmatpush1.msra.mxu0 0.0
    %2966 = vmatprep.subr.mxu0 0.0
    %2967 = vmatpush1.msra.mxu0 0.0
    %2968 = vmatprep.subr.mxu0 0.0
    %2969 = vmatpush1.msra.mxu0 0.0
    %2970 = vmatprep.subr.mxu0 0.0
    %2971 = vmatpush1.msra.mxu0 0.0
    %2972 = vmatprep.subr.mxu0 0.0
    %v2973 = vand.u32 %v2615, 4294901760
    %v2974 = vsub.f32 %v2615, %v2973
    %v2975 = vand.u32 %v2974, 4294901760
    %2976 = vmatpush1.msra.mxu0 %v2975
    %2977 = vmatprep.subr.mxu0 0.0
    %v2978 = vand.u32 %v2614, 4294901760
    %v2979 = vsub.f32 %v2614, %v2978
    %v2980 = vand.u32 %v2979, 4294901760
    %2981 = vmatpush1.msra.mxu0 %v2980
    %2982 = vmatprep.subr.mxu0 0.0
    %v2983 = vand.u32 %v2613, 4294901760
    %v2984 = vsub.f32 %v2613, %v2983
    %v2985 = vand.u32 %v2984, 4294901760
    %2986 = vmatpush1.msra.mxu0 %v2985
    %2987 = vmatprep.subr.mxu0 0.0
    %v2988 = vand.u32 %v2612, 4294901760
    %v2989 = vsub.f32 %v2612, %v2988
    %v2990 = vand.u32 %v2989, 4294901760
    %2991 = vmatpush1.msra.mxu0 %v2990
    %2992 = vmatprep.subr.mxu0 0.0
    %2993 = vmatpush2.msra.mxu0 0.0
    %2994 = vmatprep.subr.mxu0 0.0
    %2995 = vmatpush2.msra.mxu0 0.0
    %2996 = vmatprep.subr.mxu0 0.0
    %2997 = vmatpush2.msra.mxu0 0.0
    %2998 = vmatprep.subr.mxu0 0.0
    %2999 = vmatpush2.msra.mxu0 0.0
    %3000 = vmatprep.subr.mxu0 0.0
    %3001 = vmatpush2.msra.mxu0 0.0
    %3002 = vmatprep.subr.mxu0 0.0
    %3003 = vmatpush2.msra.mxu0 0.0
    %3004 = vmatprep.subr.mxu0 0.0
    %3005 = vmatpush2.msra.mxu0 0.0
    %3006 = vmatprep.subr.mxu0 0.0
    %3007 = vmatpush2.msra.mxu0 0.0
    %3008 = vmatprep.subr.mxu0 0.0
    %3009 = vmatpush2.msra.mxu0 0.0
    %3010 = vmatprep.subr.mxu0 0.0
    %3011 = vmatpush2.msra.mxu0 0.0
    %3012 = vmatprep.subr.mxu0 0.0
    %3013 = vmatpush2.msra.mxu0 0.0
    %3014 = vmatprep.subr.mxu0 0.0
    %3015 = vmatpush2.msra.mxu0 0.0
    %3016 = vmatprep.subr.mxu0 0.0
    %3017 = vmatpush2.msra.mxu0 0.0
    %3018 = vmatprep.subr.mxu0 0.0
    %3019 = vmatpush2.msra.mxu0 0.0
    %3020 = vmatprep.subr.mxu0 0.0
    %3021 = vmatpush2.msra.mxu0 0.0
    %3022 = vmatprep.subr.mxu0 0.0
    %3023 = vmatpush2.msra.mxu0 0.0
    %3024 = vmatprep.mubr.f32.mxu0 0.0
    %v3025 = vand.u32 %v1635, 4294901760
    %3026 = vmatmul.mubr.f32.gmra.mxu0 %v3025
    %v3027 = vpop.f32.mrf.mxu0
    %v3028 = vadd.f32 %v2945, %v3027
    %v3029 = vpop.f32.mrf.mxu0
    %3030 = vdwg.mxu0
    %3031 = vmatprep.subr.mxu0 0.0
    %3032 = vmatpush1.msra.mxu0 0.0
    %3033 = vmatprep.subr.mxu0 0.0
    %3034 = vmatpush1.msra.mxu0 0.0
    %3035 = vmatprep.subr.mxu0 0.0
    %3036 = vmatpush1.msra.mxu0 0.0
    %3037 = vmatprep.subr.mxu0 0.0
    %3038 = vmatpush1.msra.mxu0 0.0
    %3039 = vmatprep.subr.mxu0 0.0
    %3040 = vmatpush1.msra.mxu0 0.0
    %3041 = vmatprep.subr.mxu0 0.0
    %3042 = vmatpush1.msra.mxu0 0.0
    %3043 = vmatprep.subr.mxu0 0.0
    %3044 = vmatpush1.msra.mxu0 0.0
    %3045 = vmatprep.subr.mxu0 0.0
    %3046 = vmatpush1.msra.mxu0 0.0
    %3047 = vmatprep.subr.mxu0 0.0
    %3048 = vmatpush1.msra.mxu0 0.0
    %3049 = vmatprep.subr.mxu0 0.0
    %3050 = vmatpush1.msra.mxu0 0.0
    %3051 = vmatprep.subr.mxu0 0.0
    %3052 = vmatpush1.msra.mxu0 0.0
    %3053 = vmatprep.subr.mxu0 0.0
    %3054 = vmatpush1.msra.mxu0 0.0
    %3055 = vmatprep.subr.mxu0 0.0
    %v3056 = vand.u32 %v2615, 4294901760
    %3057 = vmatpush1.msra.mxu0 %v3056
    %3058 = vmatprep.subr.mxu0 0.0
    %v3059 = vand.u32 %v2614, 4294901760
    %3060 = vmatpush1.msra.mxu0 %v3059
    %3061 = vmatprep.subr.mxu0 0.0
    %v3062 = vand.u32 %v2613, 4294901760
    %3063 = vmatpush1.msra.mxu0 %v3062
    %3064 = vmatprep.subr.mxu0 0.0
    %v3065 = vand.u32 %v2612, 4294901760
    %3066 = vmatpush1.msra.mxu0 %v3065
    %3067 = vmatprep.subr.mxu0 0.0
    %3068 = vmatpush2.msra.mxu0 0.0
    %3069 = vmatprep.subr.mxu0 0.0
    %3070 = vmatpush2.msra.mxu0 0.0
    %3071 = vmatprep.subr.mxu0 0.0
    %3072 = vmatpush2.msra.mxu0 0.0
    %3073 = vmatprep.subr.mxu0 0.0
    %3074 = vmatpush2.msra.mxu0 0.0
    %3075 = vmatprep.subr.mxu0 0.0
    %3076 = vmatpush2.msra.mxu0 0.0
    %3077 = vmatprep.subr.mxu0 0.0
    %3078 = vmatpush2.msra.mxu0 0.0
    %3079 = vmatprep.subr.mxu0 0.0
    %3080 = vmatpush2.msra.mxu0 0.0
    %3081 = vmatprep.subr.mxu0 0.0
    %3082 = vmatpush2.msra.mxu0 0.0
    %3083 = vmatprep.subr.mxu0 0.0
    %3084 = vmatpush2.msra.mxu0 0.0
    %3085 = vmatprep.subr.mxu0 0.0
    %3086 = vmatpush2.msra.mxu0 0.0
    %3087 = vmatprep.subr.mxu0 0.0
    %3088 = vmatpush2.msra.mxu0 0.0
    %3089 = vmatprep.subr.mxu0 0.0
    %3090 = vmatpush2.msra.mxu0 0.0
    %3091 = vmatprep.subr.mxu0 0.0
    %3092 = vmatpush2.msra.mxu0 0.0
    %3093 = vmatprep.subr.mxu0 0.0
    %3094 = vmatpush2.msra.mxu0 0.0
    %3095 = vmatprep.subr.mxu0 0.0
    %3096 = vmatpush2.msra.mxu0 0.0
    %3097 = vmatprep.subr.mxu0 0.0
    %3098 = vmatpush2.msra.mxu0 0.0
    %3099 = vmatprep.mubr.f32.mxu0 0.0
    %v3100 = vand.u32 %v1635, 4294901760
    %3101 = vmatmul.mubr.f32.gmra.mxu0 %v3100
    %v3102 = vpop.f32.mrf.mxu0
    %v3103 = vadd.f32 %v3028, %v3102
    %v3104 = vpop.f32.mrf.mxu0
    %3105 = vdwg.mxu0
    %v3106 = vld [vmem:[%s6] sm:$0xff]
    %v3107 = vld [vmem:[%s6 + $0x8] sm:$0xff]
    %v3108 = vld [vmem:[%s7 + $0x1] sm:$0x1]
    %v3109 = vlaneseq
    %v3110 = vshrl.u32 %v3109, 7
    %v3111 = vsub.s32 0, %v3110
    %v3112 = vrot.slane %v3108, %v3111
    %3113 = vmatprep.subr.mxu0 0.0
    %3114 = vmatpush1.msra.mxu0 0.0
    %3115 = vmatprep.subr.mxu0 0.0
    %3116 = vmatpush1.msra.mxu0 0.0
    %3117 = vmatprep.subr.mxu0 0.0
    %3118 = vmatpush1.msra.mxu0 0.0
    %3119 = vmatprep.subr.mxu0 0.0
    %3120 = vmatpush1.msra.mxu0 0.0
    %3121 = vmatprep.subr.mxu0 0.0
    %3122 = vmatpush1.msra.mxu0 0.0
    %3123 = vmatprep.subr.mxu0 0.0
    %3124 = vmatpush1.msra.mxu0 0.0
    %3125 = vmatprep.subr.mxu0 0.0
    %3126 = vmatpush1.msra.mxu0 0.0
    %3127 = vmatprep.subr.mxu0 0.0
    %3128 = vmatpush1.msra.mxu0 0.0
    %3129 = vmatprep.subr.mxu0 0.0
    %3130 = vmatpush1.msra.mxu0 0.0
    %3131 = vmatprep.subr.mxu0 0.0
    %3132 = vmatpush1.msra.mxu0 0.0
    %3133 = vmatprep.subr.mxu0 0.0
    %3134 = vmatpush1.msra.mxu0 0.0
    %3135 = vmatprep.subr.mxu0 0.0
    %3136 = vmatpush1.msra.mxu0 0.0
    %3137 = vmatprep.subr.mxu0 0.0
    %3138 = vmatpush1.msra.mxu0 0.0
    %3139 = vmatprep.subr.mxu0 0.0
    %3140 = vmatpush1.msra.mxu0 0.0
    %3141 = vmatprep.subr.mxu0 0.0
    %v3142 = vand.u32 %v3107, 4294901760
    %3143 = vmatpush1.msra.mxu0 %v3142
    %3144 = vmatprep.subr.mxu0 0.0
    %v3145 = vand.u32 %v3106, 4294901760
    %3146 = vmatpush1.msra.mxu0 %v3145
    %3147 = vmatprep.subr.mxu0 0.0
    %3148 = vmatpush2.msra.mxu0 0.0
    %3149 = vmatprep.subr.mxu0 0.0
    %3150 = vmatpush2.msra.mxu0 0.0
    %3151 = vmatprep.subr.mxu0 0.0
    %3152 = vmatpush2.msra.mxu0 0.0
    %3153 = vmatprep.subr.mxu0 0.0
    %3154 = vmatpush2.msra.mxu0 0.0
    %3155 = vmatprep.subr.mxu0 0.0
    %3156 = vmatpush2.msra.mxu0 0.0
    %3157 = vmatprep.subr.mxu0 0.0
    %3158 = vmatpush2.msra.mxu0 0.0
    %3159 = vmatprep.subr.mxu0 0.0
    %3160 = vmatpush2.msra.mxu0 0.0
    %3161 = vmatprep.subr.mxu0 0.0
    %3162 = vmatpush2.msra.mxu0 0.0
    %3163 = vmatprep.subr.mxu0 0.0
    %3164 = vmatpush2.msra.mxu0 0.0
    %3165 = vmatprep.subr.mxu0 0.0
    %3166 = vmatpush2.msra.mxu0 0.0
    %3167 = vmatprep.subr.mxu0 0.0
    %3168 = vmatpush2.msra.mxu0 0.0
    %3169 = vmatprep.subr.mxu0 0.0
    %3170 = vmatpush2.msra.mxu0 0.0
    %3171 = vmatprep.subr.mxu0 0.0
    %3172 = vmatpush2.msra.mxu0 0.0
    %3173 = vmatprep.subr.mxu0 0.0
    %3174 = vmatpush2.msra.mxu0 0.0
    %3175 = vmatprep.subr.mxu0 0.0
    %3176 = vmatpush2.msra.mxu0 0.0
    %3177 = vmatprep.subr.mxu0 0.0
    %3178 = vmatpush2.msra.mxu0 0.0
    %3179 = vmatprep.mubr.f32.mxu0 0.0
    %v3180 = vand.u32 %v1147, 4294901760
    %v3181 = vsub.f32 %v1147, %v3180
    %v3182 = vand.u32 %v3181, 4294901760
    %v3183 = vsub.f32 %v3181, %v3182
    %v3184 = vand.u32 %v3183, 4294901760
    %3185 = vmatmul.mubr.f32.gmra.mxu0 %v3184
    %v3186 = vpop.f32.mrf.mxu0
    %v3187 = vadd.f32 %v3112, %v3186
    %v3188 = vpop.f32.mrf.mxu0
    %3189 = vdwg.mxu0
    %3190 = vmatprep.subr.mxu0 0.0
    %3191 = vmatpush1.msra.mxu0 0.0
    %3192 = vmatprep.subr.mxu0 0.0
    %3193 = vmatpush1.msra.mxu0 0.0
    %3194 = vmatprep.subr.mxu0 0.0
    %3195 = vmatpush1.msra.mxu0 0.0
    %3196 = vmatprep.subr.mxu0 0.0
    %3197 = vmatpush1.msra.mxu0 0.0
    %3198 = vmatprep.subr.mxu0 0.0
    %3199 = vmatpush1.msra.mxu0 0.0
    %3200 = vmatprep.subr.mxu0 0.0
    %3201 = vmatpush1.msra.mxu0 0.0
    %3202 = vmatprep.subr.mxu0 0.0
    %3203 = vmatpush1.msra.mxu0 0.0
    %3204 = vmatprep.subr.mxu0 0.0
    %3205 = vmatpush1.msra.mxu0 0.0
    %3206 = vmatprep.subr.mxu0 0.0
    %3207 = vmatpush1.msra.mxu0 0.0
    %3208 = vmatprep.subr.mxu0 0.0
    %3209 = vmatpush1.msra.mxu0 0.0
    %3210 = vmatprep.subr.mxu0 0.0
    %3211 = vmatpush1.msra.mxu0 0.0
    %3212 = vmatprep.subr.mxu0 0.0
    %3213 = vmatpush1.msra.mxu0 0.0
    %3214 = vmatprep.subr.mxu0 0.0
    %3215 = vmatpush1.msra.mxu0 0.0
    %3216 = vmatprep.subr.mxu0 0.0
    %3217 = vmatpush1.msra.mxu0 0.0
    %3218 = vmatprep.subr.mxu0 0.0
    %v3219 = vand.u32 %v3107, 4294901760
    %v3220 = vsub.f32 %v3107, %v3219
    %v3221 = vand.u32 %v3220, 4294901760
    %v3222 = vsub.f32 %v3220, %v3221
    %v3223 = vand.u32 %v3222, 4294901760
    %3224 = vmatpush1.msra.mxu0 %v3223
    %3225 = vmatprep.subr.mxu0 0.0
    %v3226 = vand.u32 %v3106, 4294901760
    %v3227 = vsub.f32 %v3106, %v3226
    %v3228 = vand.u32 %v3227, 4294901760
    %v3229 = vsub.f32 %v3227, %v3228
    %v3230 = vand.u32 %v3229, 4294901760
    %3231 = vmatpush1.msra.mxu0 %v3230
    %3232 = vmatprep.subr.mxu0 0.0
    %3233 = vmatpush2.msra.mxu0 0.0
    %3234 = vmatprep.subr.mxu0 0.0
    %3235 = vmatpush2.msra.mxu0 0.0
    %3236 = vmatprep.subr.mxu0 0.0
    %3237 = vmatpush2.msra.mxu0 0.0
    %3238 = vmatprep.subr.mxu0 0.0
    %3239 = vmatpush2.msra.mxu0 0.0
    %3240 = vmatprep.subr.mxu0 0.0
    %3241 = vmatpush2.msra.mxu0 0.0
    %3242 = vmatprep.subr.mxu0 0.0
    %3243 = vmatpush2.msra.mxu0 0.0
    %3244 = vmatprep.subr.mxu0 0.0
    %3245 = vmatpush2.msra.mxu0 0.0
    %3246 = vmatprep.subr.mxu0 0.0
    %3247 = vmatpush2.msra.mxu0 0.0
    %3248 = vmatprep.subr.mxu0 0.0
    %3249 = vmatpush2.msra.mxu0 0.0
    %3250 = vmatprep.subr.mxu0 0.0
    %3251 = vmatpush2.msra.mxu0 0.0
    %3252 = vmatprep.subr.mxu0 0.0
    %3253 = vmatpush2.msra.mxu0 0.0
    %3254 = vmatprep.subr.mxu0 0.0
    %3255 = vmatpush2.msra.mxu0 0.0
    %3256 = vmatprep.subr.mxu0 0.0
    %3257 = vmatpush2.msra.mxu0 0.0
    %3258 = vmatprep.subr.mxu0 0.0
    %3259 = vmatpush2.msra.mxu0 0.0
    %3260 = vmatprep.subr.mxu0 0.0
    %3261 = vmatpush2.msra.mxu0 0.0
    %3262 = vmatprep.subr.mxu0 0.0
    %3263 = vmatpush2.msra.mxu0 0.0
    %3264 = vmatprep.mubr.f32.mxu0 0.0
    %v3265 = vand.u32 %v1147, 4294901760
    %3266 = vmatmul.mubr.f32.gmra.mxu0 %v3265
    %v3267 = vpop.f32.mrf.mxu0
    %v3268 = vadd.f32 %v3187, %v3267
    %v3269 = vpop.f32.mrf.mxu0
    %3270 = vdwg.mxu0
    %3271 = vmatprep.subr.mxu0 0.0
    %3272 = vmatpush1.msra.mxu0 0.0
    %3273 = vmatprep.subr.mxu0 0.0
    %3274 = vmatpush1.msra.mxu0 0.0
    %3275 = vmatprep.subr.mxu0 0.0
    %3276 = vmatpush1.msra.mxu0 0.0
    %3277 = vmatprep.subr.mxu0 0.0
    %3278 = vmatpush1.msra.mxu0 0.0
    %3279 = vmatprep.subr.mxu0 0.0
    %3280 = vmatpush1.msra.mxu0 0.0
    %3281 = vmatprep.subr.mxu0 0.0
    %3282 = vmatpush1.msra.mxu0 0.0
    %3283 = vmatprep.subr.mxu0 0.0
    %3284 = vmatpush1.msra.mxu0 0.0
    %3285 = vmatprep.subr.mxu0 0.0
    %3286 = vmatpush1.msra.mxu0 0.0
    %3287 = vmatprep.subr.mxu0 0.0
    %3288 = vmatpush1.msra.mxu0 0.0
    %3289 = vmatprep.subr.mxu0 0.0
    %3290 = vmatpush1.msra.mxu0 0.0
    %3291 = vmatprep.subr.mxu0 0.0
    %3292 = vmatpush1.msra.mxu0 0.0
    %3293 = vmatprep.subr.mxu0 0.0
    %3294 = vmatpush1.msra.mxu0 0.0
    %3295 = vmatprep.subr.mxu0 0.0
    %3296 = vmatpush1.msra.mxu0 0.0
    %3297 = vmatprep.subr.mxu0 0.0
    %3298 = vmatpush1.msra.mxu0 0.0
    %3299 = vmatprep.subr.mxu0 0.0
    %v3300 = vand.u32 %v3107, 4294901760
    %v3301 = vsub.f32 %v3107, %v3300
    %3302 = vmatpush1.msra.mxu0 %v3301
    %3303 = vmatprep.subr.mxu0 0.0
    %v3304 = vand.u32 %v3106, 4294901760
    %v3305 = vsub.f32 %v3106, %v3304
    %3306 = vmatpush1.msra.mxu0 %v3305
    %3307 = vmatprep.subr.mxu0 0.0
    %3308 = vmatpush2.msra.mxu0 0.0
    %3309 = vmatprep.subr.mxu0 0.0
    %3310 = vmatpush2.msra.mxu0 0.0
    %3311 = vmatprep.subr.mxu0 0.0
    %3312 = vmatpush2.msra.mxu0 0.0
    %3313 = vmatprep.subr.mxu0 0.0
    %3314 = vmatpush2.msra.mxu0 0.0
    %3315 = vmatprep.subr.mxu0 0.0
    %3316 = vmatpush2.msra.mxu0 0.0
    %3317 = vmatprep.subr.mxu0 0.0
    %3318 = vmatpush2.msra.mxu0 0.0
    %3319 = vmatprep.subr.mxu0 0.0
    %3320 = vmatpush2.msra.mxu0 0.0
    %3321 = vmatprep.subr.mxu0 0.0
    %3322 = vmatpush2.msra.mxu0 0.0
    %3323 = vmatprep.subr.mxu0 0.0
    %3324 = vmatpush2.msra.mxu0 0.0
    %3325 = vmatprep.subr.mxu0 0.0
    %3326 = vmatpush2.msra.mxu0 0.0
    %3327 = vmatprep.subr.mxu0 0.0
    %3328 = vmatpush2.msra.mxu0 0.0
    %3329 = vmatprep.subr.mxu0 0.0
    %3330 = vmatpush2.msra.mxu0 0.0
    %3331 = vmatprep.subr.mxu0 0.0
    %3332 = vmatpush2.msra.mxu0 0.0
    %3333 = vmatprep.subr.mxu0 0.0
    %3334 = vmatpush2.msra.mxu0 0.0
    %3335 = vmatprep.subr.mxu0 0.0
    %3336 = vmatpush2.msra.mxu0 0.0
    %3337 = vmatprep.subr.mxu0 0.0
    %3338 = vmatpush2.msra.mxu0 0.0
    %3339 = vmatprep.mubr.f32.mxu0 0.0
    %v3340 = vand.u32 %v1147, 4294901760
    %v3341 = vsub.f32 %v1147, %v3340
    %3342 = vmatmul.mubr.f32.gmra.mxu0 %v3341
    %v3343 = vpop.f32.mrf.mxu0
    %v3344 = vadd.f32 %v3268, %v3343
    %v3345 = vpop.f32.mrf.mxu0
    %3346 = vdwg.mxu0
    %3347 = vmatprep.subr.mxu0 0.0
    %3348 = vmatpush1.msra.mxu0 0.0
    %3349 = vmatprep.subr.mxu0 0.0
    %3350 = vmatpush1.msra.mxu0 0.0
    %3351 = vmatprep.subr.mxu0 0.0
    %3352 = vmatpush1.msra.mxu0 0.0
    %3353 = vmatprep.subr.mxu0 0.0
    %3354 = vmatpush1.msra.mxu0 0.0
    %3355 = vmatprep.subr.mxu0 0.0
    %3356 = vmatpush1.msra.mxu0 0.0
    %3357 = vmatprep.subr.mxu0 0.0
    %3358 = vmatpush1.msra.mxu0 0.0
    %3359 = vmatprep.subr.mxu0 0.0
    %3360 = vmatpush1.msra.mxu0 0.0
    %3361 = vmatprep.subr.mxu0 0.0
    %3362 = vmatpush1.msra.mxu0 0.0
    %3363 = vmatprep.subr.mxu0 0.0
    %3364 = vmatpush1.msra.mxu0 0.0
    %3365 = vmatprep.subr.mxu0 0.0
    %3366 = vmatpush1.msra.mxu0 0.0
    %3367 = vmatprep.subr.mxu0 0.0
    %3368 = vmatpush1.msra.mxu0 0.0
    %3369 = vmatprep.subr.mxu0 0.0
    %3370 = vmatpush1.msra.mxu0 0.0
    %3371 = vmatprep.subr.mxu0 0.0
    %3372 = vmatpush1.msra.mxu0 0.0
    %3373 = vmatprep.subr.mxu0 0.0
    %3374 = vmatpush1.msra.mxu0 0.0
    %3375 = vmatprep.subr.mxu0 0.0
    %v3376 = vand.u32 %v3107, 4294901760
    %3377 = vmatpush1.msra.mxu0 %v3376
    %3378 = vmatprep.subr.mxu0 0.0
    %v3379 = vand.u32 %v3106, 4294901760
    %3380 = vmatpush1.msra.mxu0 %v3379
    %3381 = vmatprep.subr.mxu0 0.0
    %3382 = vmatpush2.msra.mxu0 0.0
    %3383 = vmatprep.subr.mxu0 0.0
    %3384 = vmatpush2.msra.mxu0 0.0
    %3385 = vmatprep.subr.mxu0 0.0
    %3386 = vmatpush2.msra.mxu0 0.0
    %3387 = vmatprep.subr.mxu0 0.0
    %3388 = vmatpush2.msra.mxu0 0.0
    %3389 = vmatprep.subr.mxu0 0.0
    %3390 = vmatpush2.msra.mxu0 0.0
    %3391 = vmatprep.subr.mxu0 0.0
    %3392 = vmatpush2.msra.mxu0 0.0
    %3393 = vmatprep.subr.mxu0 0.0
    %3394 = vmatpush2.msra.mxu0 0.0
    %3395 = vmatprep.subr.mxu0 0.0
    %3396 = vmatpush2.msra.mxu0 0.0
    %3397 = vmatprep.subr.mxu0 0.0
    %3398 = vmatpush2.msra.mxu0 0.0
    %3399 = vmatprep.subr.mxu0 0.0
    %3400 = vmatpush2.msra.mxu0 0.0
    %3401 = vmatprep.subr.mxu0 0.0
    %3402 = vmatpush2.msra.mxu0 0.0
    %3403 = vmatprep.subr.mxu0 0.0
    %3404 = vmatpush2.msra.mxu0 0.0
    %3405 = vmatprep.subr.mxu0 0.0
    %3406 = vmatpush2.msra.mxu0 0.0
    %3407 = vmatprep.subr.mxu0 0.0
    %3408 = vmatpush2.msra.mxu0 0.0
    %3409 = vmatprep.subr.mxu0 0.0
    %3410 = vmatpush2.msra.mxu0 0.0
    %3411 = vmatprep.subr.mxu0 0.0
    %3412 = vmatpush2.msra.mxu0 0.0
    %3413 = vmatprep.mubr.f32.mxu0 0.0
    %v3414 = vand.u32 %v1147, 4294901760
    %v3415 = vsub.f32 %v1147, %v3414
    %v3416 = vand.u32 %v3415, 4294901760
    %3417 = vmatmul.mubr.f32.gmra.mxu0 %v3416
    %v3418 = vpop.f32.mrf.mxu0
    %v3419 = vadd.f32 %v3344, %v3418
    %v3420 = vpop.f32.mrf.mxu0
    %3421 = vdwg.mxu0
    %3422 = vmatprep.subr.mxu0 0.0
    %3423 = vmatpush1.msra.mxu0 0.0
    %3424 = vmatprep.subr.mxu0 0.0
    %3425 = vmatpush1.msra.mxu0 0.0
    %3426 = vmatprep.subr.mxu0 0.0
    %3427 = vmatpush1.msra.mxu0 0.0
    %3428 = vmatprep.subr.mxu0 0.0
    %3429 = vmatpush1.msra.mxu0 0.0
    %3430 = vmatprep.subr.mxu0 0.0
    %3431 = vmatpush1.msra.mxu0 0.0
    %3432 = vmatprep.subr.mxu0 0.0
    %3433 = vmatpush1.msra.mxu0 0.0
    %3434 = vmatprep.subr.mxu0 0.0
    %3435 = vmatpush1.msra.mxu0 0.0
    %3436 = vmatprep.subr.mxu0 0.0
    %3437 = vmatpush1.msra.mxu0 0.0
    %3438 = vmatprep.subr.mxu0 0.0
    %3439 = vmatpush1.msra.mxu0 0.0
    %3440 = vmatprep.subr.mxu0 0.0
    %3441 = vmatpush1.msra.mxu0 0.0
    %3442 = vmatprep.subr.mxu0 0.0
    %3443 = vmatpush1.msra.mxu0 0.0
    %3444 = vmatprep.subr.mxu0 0.0
    %3445 = vmatpush1.msra.mxu0 0.0
    %3446 = vmatprep.subr.mxu0 0.0
    %3447 = vmatpush1.msra.mxu0 0.0
    %3448 = vmatprep.subr.mxu0 0.0
    %3449 = vmatpush1.msra.mxu0 0.0
    %3450 = vmatprep.subr.mxu0 0.0
    %v3451 = vand.u32 %v3107, 4294901760
    %v3452 = vsub.f32 %v3107, %v3451
    %v3453 = vand.u32 %v3452, 4294901760
    %3454 = vmatpush1.msra.mxu0 %v3453
    %3455 = vmatprep.subr.mxu0 0.0
    %v3456 = vand.u32 %v3106, 4294901760
    %v3457 = vsub.f32 %v3106, %v3456
    %v3458 = vand.u32 %v3457, 4294901760
    %3459 = vmatpush1.msra.mxu0 %v3458
    %3460 = vmatprep.subr.mxu0 0.0
    %3461 = vmatpush2.msra.mxu0 0.0
    %3462 = vmatprep.subr.mxu0 0.0
    %3463 = vmatpush2.msra.mxu0 0.0
    %3464 = vmatprep.subr.mxu0 0.0
    %3465 = vmatpush2.msra.mxu0 0.0
    %3466 = vmatprep.subr.mxu0 0.0
    %3467 = vmatpush2.msra.mxu0 0.0
    %3468 = vmatprep.subr.mxu0 0.0
    %3469 = vmatpush2.msra.mxu0 0.0
    %3470 = vmatprep.subr.mxu0 0.0
    %3471 = vmatpush2.msra.mxu0 0.0
    %3472 = vmatprep.subr.mxu0 0.0
    %3473 = vmatpush2.msra.mxu0 0.0
    %3474 = vmatprep.subr.mxu0 0.0
    %3475 = vmatpush2.msra.mxu0 0.0
    %3476 = vmatprep.subr.mxu0 0.0
    %3477 = vmatpush2.msra.mxu0 0.0
    %3478 = vmatprep.subr.mxu0 0.0
    %3479 = vmatpush2.msra.mxu0 0.0
    %3480 = vmatprep.subr.mxu0 0.0
    %3481 = vmatpush2.msra.mxu0 0.0
    %3482 = vmatprep.subr.mxu0 0.0
    %3483 = vmatpush2.msra.mxu0 0.0
    %3484 = vmatprep.subr.mxu0 0.0
    %3485 = vmatpush2.msra.mxu0 0.0
    %3486 = vmatprep.subr.mxu0 0.0
    %3487 = vmatpush2.msra.mxu0 0.0
    %3488 = vmatprep.subr.mxu0 0.0
    %3489 = vmatpush2.msra.mxu0 0.0
    %3490 = vmatprep.subr.mxu0 0.0
    %3491 = vmatpush2.msra.mxu0 0.0
    %3492 = vmatprep.mubr.f32.mxu0 0.0
    %v3493 = vand.u32 %v1147, 4294901760
    %3494 = vmatmul.mubr.f32.gmra.mxu0 %v3493
    %v3495 = vpop.f32.mrf.mxu0
    %v3496 = vadd.f32 %v3419, %v3495
    %v3497 = vpop.f32.mrf.mxu0
    %3498 = vdwg.mxu0
    %3499 = vmatprep.subr.mxu0 0.0
    %3500 = vmatpush1.msra.mxu0 0.0
    %3501 = vmatprep.subr.mxu0 0.0
    %3502 = vmatpush1.msra.mxu0 0.0
    %3503 = vmatprep.subr.mxu0 0.0
    %3504 = vmatpush1.msra.mxu0 0.0
    %3505 = vmatprep.subr.mxu0 0.0
    %3506 = vmatpush1.msra.mxu0 0.0
    %3507 = vmatprep.subr.mxu0 0.0
    %3508 = vmatpush1.msra.mxu0 0.0
    %3509 = vmatprep.subr.mxu0 0.0
    %3510 = vmatpush1.msra.mxu0 0.0
    %3511 = vmatprep.subr.mxu0 0.0
    %3512 = vmatpush1.msra.mxu0 0.0
    %3513 = vmatprep.subr.mxu0 0.0
    %3514 = vmatpush1.msra.mxu0 0.0
    %3515 = vmatprep.subr.mxu0 0.0
    %3516 = vmatpush1.msra.mxu0 0.0
    %3517 = vmatprep.subr.mxu0 0.0
    %3518 = vmatpush1.msra.mxu0 0.0
    %3519 = vmatprep.subr.mxu0 0.0
    %3520 = vmatpush1.msra.mxu0 0.0
    %3521 = vmatprep.subr.mxu0 0.0
    %3522 = vmatpush1.msra.mxu0 0.0
    %3523 = vmatprep.subr.mxu0 0.0
    %3524 = vmatpush1.msra.mxu0 0.0
    %3525 = vmatprep.subr.mxu0 0.0
    %3526 = vmatpush1.msra.mxu0 0.0
    %3527 = vmatprep.subr.mxu0 0.0
    %v3528 = vand.u32 %v3107, 4294901760
    %3529 = vmatpush1.msra.mxu0 %v3528
    %3530 = vmatprep.subr.mxu0 0.0
    %v3531 = vand.u32 %v3106, 4294901760
    %3532 = vmatpush1.msra.mxu0 %v3531
    %3533 = vmatprep.subr.mxu0 0.0
    %3534 = vmatpush2.msra.mxu0 0.0
    %3535 = vmatprep.subr.mxu0 0.0
    %3536 = vmatpush2.msra.mxu0 0.0
    %3537 = vmatprep.subr.mxu0 0.0
    %3538 = vmatpush2.msra.mxu0 0.0
    %3539 = vmatprep.subr.mxu0 0.0
    %3540 = vmatpush2.msra.mxu0 0.0
    %3541 = vmatprep.subr.mxu0 0.0
    %3542 = vmatpush2.msra.mxu0 0.0
    %3543 = vmatprep.subr.mxu0 0.0
    %3544 = vmatpush2.msra.mxu0 0.0
    %3545 = vmatprep.subr.mxu0 0.0
    %3546 = vmatpush2.msra.mxu0 0.0
    %3547 = vmatprep.subr.mxu0 0.0
    %3548 = vmatpush2.msra.mxu0 0.0
    %3549 = vmatprep.subr.mxu0 0.0
    %3550 = vmatpush2.msra.mxu0 0.0
    %3551 = vmatprep.subr.mxu0 0.0
    %3552 = vmatpush2.msra.mxu0 0.0
    %3553 = vmatprep.subr.mxu0 0.0
    %3554 = vmatpush2.msra.mxu0 0.0
    %3555 = vmatprep.subr.mxu0 0.0
    %3556 = vmatpush2.msra.mxu0 0.0
    %3557 = vmatprep.subr.mxu0 0.0
    %3558 = vmatpush2.msra.mxu0 0.0
    %3559 = vmatprep.subr.mxu0 0.0
    %3560 = vmatpush2.msra.mxu0 0.0
    %3561 = vmatprep.subr.mxu0 0.0
    %3562 = vmatpush2.msra.mxu0 0.0
    %3563 = vmatprep.subr.mxu0 0.0
    %3564 = vmatpush2.msra.mxu0 0.0
    %3565 = vmatprep.mubr.f32.mxu0 0.0
    %v3566 = vand.u32 %v1147, 4294901760
    %3567 = vmatmul.mubr.f32.gmra.mxu0 %v3566
    %v3568 = vpop.f32.mrf.mxu0
    %v3569 = vadd.f32 %v3496, %v3568
    %v3570 = vpop.f32.mrf.mxu0
    %3571 = vdwg.mxu0
    %v3572 = vadd.f32 %v3103, %v3569
    %v3573 = vxor.u32 %v3572, 2147483648
    %v3574 = vmul.f32 %v3573, 1.442695
    %v3575 = vpow.pop %v3574
    %v3576 = vadd.f32 %v3575, 1.0
    %v3577 = vrcp.pop %v3576
    %v3578 = vmul.f32 1.0, %v3577
    %3580 = vrot.lane.b32.xlu0 %v3569, 96
    %v3581 = vpop.permute.xlu0 %3580
    %v3583 = vmul.f32 %v3578, %v3581
    %3585 = vrot.lane.b32.xlu0 %v3583, 32
    %v3586 = vpop.permute.xlu0 %3585
    %v3588 = vadd.f32 %v3103, %v3586
    %v3589 = vtanh.pop %v3588
    %v3590 = vsub.f32 1.0, %v3578
    %3592 = vrot.lane.b32.xlu0 %v3589, 112
    %v3593 = vpop.permute.xlu0 %3592
    %v3595 = vmul.f32 %v3590, %v3593
    %v3596 = vmul.f32 %v3578, 0.0
    %v3597 = vadd.f32 %v3595, %v3596
    %3598 = vmatprep.subr.mxu0 0.0
    %3599 = vmatpush1.msra.mxu0 0.0
    %3600 = vmatprep.subr.mxu0 0.0
    %3601 = vmatpush1.msra.mxu0 0.0
    %3602 = vmatprep.subr.mxu0 0.0
    %3603 = vmatpush1.msra.mxu0 0.0
    %3604 = vmatprep.subr.mxu0 0.0
    %3605 = vmatpush1.msra.mxu0 0.0
    %3606 = vmatprep.subr.mxu0 0.0
    %3607 = vmatpush1.msra.mxu0 0.0
    %3608 = vmatprep.subr.mxu0 0.0
    %3609 = vmatpush1.msra.mxu0 0.0
    %3610 = vmatprep.subr.mxu0 0.0
    %3611 = vmatpush1.msra.mxu0 0.0
    %3612 = vmatprep.subr.mxu0 0.0
    %3613 = vmatpush1.msra.mxu0 0.0
    %3614 = vmatprep.subr.mxu0 0.0
    %3615 = vmatpush1.msra.mxu0 0.0
    %3616 = vmatprep.subr.mxu0 0.0
    %3617 = vmatpush1.msra.mxu0 0.0
    %3618 = vmatprep.subr.mxu0 0.0
    %3619 = vmatpush1.msra.mxu0 0.0
    %3620 = vmatprep.subr.mxu0 0.0
    %3621 = vmatpush1.msra.mxu0 0.0
    %3622 = vmatprep.subr.mxu0 0.0
    %v3623 = vand.u32 %v2615, 4294901760
    %3624 = vmatpush1.msra.mxu0 %v3623
    %3625 = vmatprep.subr.mxu0 0.0
    %v3626 = vand.u32 %v2614, 4294901760
    %3627 = vmatpush1.msra.mxu0 %v3626
    %3628 = vmatprep.subr.mxu0 0.0
    %v3629 = vand.u32 %v2613, 4294901760
    %3630 = vmatpush1.msra.mxu0 %v3629
    %3631 = vmatprep.subr.mxu0 0.0
    %v3632 = vand.u32 %v2612, 4294901760
    %3633 = vmatpush1.msra.mxu0 %v3632
    %3634 = vmatprep.subr.mxu0 0.0
    %3635 = vmatpush2.msra.mxu0 0.0
    %3636 = vmatprep.subr.mxu0 0.0
    %3637 = vmatpush2.msra.mxu0 0.0
    %3638 = vmatprep.subr.mxu0 0.0
    %3639 = vmatpush2.msra.mxu0 0.0
    %3640 = vmatprep.subr.mxu0 0.0
    %3641 = vmatpush2.msra.mxu0 0.0
    %3642 = vmatprep.subr.mxu0 0.0
    %3643 = vmatpush2.msra.mxu0 0.0
    %3644 = vmatprep.subr.mxu0 0.0
    %3645 = vmatpush2.msra.mxu0 0.0
    %3646 = vmatprep.subr.mxu0 0.0
    %3647 = vmatpush2.msra.mxu0 0.0
    %3648 = vmatprep.subr.mxu0 0.0
    %3649 = vmatpush2.msra.mxu0 0.0
    %3650 = vmatprep.subr.mxu0 0.0
    %3651 = vmatpush2.msra.mxu0 0.0
    %3652 = vmatprep.subr.mxu0 0.0
    %3653 = vmatpush2.msra.mxu0 0.0
    %3654 = vmatprep.subr.mxu0 0.0
    %3655 = vmatpush2.msra.mxu0 0.0
    %3656 = vmatprep.subr.mxu0 0.0
    %3657 = vmatpush2.msra.mxu0 0.0
    %3658 = vmatprep.subr.mxu0 0.0
    %3659 = vmatpush2.msra.mxu0 0.0
    %3660 = vmatprep.subr.mxu0 0.0
    %3661 = vmatpush2.msra.mxu0 0.0
    %3662 = vmatprep.subr.mxu0 0.0
    %3663 = vmatpush2.msra.mxu0 0.0
    %3664 = vmatprep.subr.mxu0 0.0
    %3665 = vmatpush2.msra.mxu0 0.0
    %3666 = vmatprep.mubr.f32.mxu0 0.0
    %v3667 = vand.u32 %v651, 4294901760
    %v3668 = vsub.f32 %v651, %v3667
    %v3669 = vand.u32 %v3668, 4294901760
    %v3670 = vsub.f32 %v3668, %v3669
    %v3671 = vand.u32 %v3670, 4294901760
    %3672 = vmatmul.mubr.f32.gmra.mxu0 %v3671
    %v3673 = vpop.f32.mrf.mxu0
    %v3674 = vadd.f32 %v2620, %v3673
    %v3675 = vpop.f32.mrf.mxu0
    %3676 = vdwg.mxu0
    %3677 = vmatprep.subr.mxu0 0.0
    %3678 = vmatpush1.msra.mxu0 0.0
    %3679 = vmatprep.subr.mxu0 0.0
    %3680 = vmatpush1.msra.mxu0 0.0
    %3681 = vmatprep.subr.mxu0 0.0
    %3682 = vmatpush1.msra.mxu0 0.0
    %3683 = vmatprep.subr.mxu0 0.0
    %3684 = vmatpush1.msra.mxu0 0.0
    %3685 = vmatprep.subr.mxu0 0.0
    %3686 = vmatpush1.msra.mxu0 0.0
    %3687 = vmatprep.subr.mxu0 0.0
    %3688 = vmatpush1.msra.mxu0 0.0
    %3689 = vmatprep.subr.mxu0 0.0
    %3690 = vmatpush1.msra.mxu0 0.0
    %3691 = vmatprep.subr.mxu0 0.0
    %3692 = vmatpush1.msra.mxu0 0.0
    %3693 = vmatprep.subr.mxu0 0.0
    %3694 = vmatpush1.msra.mxu0 0.0
    %3695 = vmatprep.subr.mxu0 0.0
    %3696 = vmatpush1.msra.mxu0 0.0
    %3697 = vmatprep.subr.mxu0 0.0
    %3698 = vmatpush1.msra.mxu0 0.0
    %3699 = vmatprep.subr.mxu0 0.0
    %3700 = vmatpush1.msra.mxu0 0.0
    %3701 = vmatprep.subr.mxu0 0.0
    %v3702 = vand.u32 %v2615, 4294901760
    %v3703 = vsub.f32 %v2615, %v3702
    %v3704 = vand.u32 %v3703, 4294901760
    %v3705 = vsub.f32 %v3703, %v3704
    %v3706 = vand.u32 %v3705, 4294901760
    %3707 = vmatpush1.msra.mxu0 %v3706
    %3708 = vmatprep.subr.mxu0 0.0
    %v3709 = vand.u32 %v2614, 4294901760
    %v3710 = vsub.f32 %v2614, %v3709
    %v3711 = vand.u32 %v3710, 4294901760
    %v3712 = vsub.f32 %v3710, %v3711
    %v3713 = vand.u32 %v3712, 4294901760
    %3714 = vmatpush1.msra.mxu0 %v3713
    %3715 = vmatprep.subr.mxu0 0.0
    %v3716 = vand.u32 %v2613, 4294901760
    %v3717 = vsub.f32 %v2613, %v3716
    %v3718 = vand.u32 %v3717, 4294901760
    %v3719 = vsub.f32 %v3717, %v3718
    %v3720 = vand.u32 %v3719, 4294901760
    %3721 = vmatpush1.msra.mxu0 %v3720
    %3722 = vmatprep.subr.mxu0 0.0
    %v3723 = vand.u32 %v2612, 4294901760
    %v3724 = vsub.f32 %v2612, %v3723
    %v3725 = vand.u32 %v3724, 4294901760
    %v3726 = vsub.f32 %v3724, %v3725
    %v3727 = vand.u32 %v3726, 4294901760
    %3728 = vmatpush1.msra.mxu0 %v3727
    %3729 = vmatprep.subr.mxu0 0.0
    %3730 = vmatpush2.msra.mxu0 0.0
    %3731 = vmatprep.subr.mxu0 0.0
    %3732 = vmatpush2.msra.mxu0 0.0
    %3733 = vmatprep.subr.mxu0 0.0
    %3734 = vmatpush2.msra.mxu0 0.0
    %3735 = vmatprep.subr.mxu0 0.0
    %3736 = vmatpush2.msra.mxu0 0.0
    %3737 = vmatprep.subr.mxu0 0.0
    %3738 = vmatpush2.msra.mxu0 0.0
    %3739 = vmatprep.subr.mxu0 0.0
    %3740 = vmatpush2.msra.mxu0 0.0
    %3741 = vmatprep.subr.mxu0 0.0
    %3742 = vmatpush2.msra.mxu0 0.0
    %3743 = vmatprep.subr.mxu0 0.0
    %3744 = vmatpush2.msra.mxu0 0.0
    %3745 = vmatprep.subr.mxu0 0.0
    %3746 = vmatpush2.msra.mxu0 0.0
    %3747 = vmatprep.subr.mxu0 0.0
    %3748 = vmatpush2.msra.mxu0 0.0
    %3749 = vmatprep.subr.mxu0 0.0
    %3750 = vmatpush2.msra.mxu0 0.0
    %3751 = vmatprep.subr.mxu0 0.0
    %3752 = vmatpush2.msra.mxu0 0.0
    %3753 = vmatprep.subr.mxu0 0.0
    %3754 = vmatpush2.msra.mxu0 0.0
    %3755 = vmatprep.subr.mxu0 0.0
    %3756 = vmatpush2.msra.mxu0 0.0
    %3757 = vmatprep.subr.mxu0 0.0
    %3758 = vmatpush2.msra.mxu0 0.0
    %3759 = vmatprep.subr.mxu0 0.0
    %3760 = vmatpush2.msra.mxu0 0.0
    %3761 = vmatprep.mubr.f32.mxu0 0.0
    %v3762 = vand.u32 %v651, 4294901760
    %3763 = vmatmul.mubr.f32.gmra.mxu0 %v3762
    %v3764 = vpop.f32.mrf.mxu0
    %v3765 = vadd.f32 %v3674, %v3764
    %v3766 = vpop.f32.mrf.mxu0
    %3767 = vdwg.mxu0
    %3768 = vmatprep.subr.mxu0 0.0
    %3769 = vmatpush1.msra.mxu0 0.0
    %3770 = vmatprep.subr.mxu0 0.0
    %3771 = vmatpush1.msra.mxu0 0.0
    %3772 = vmatprep.subr.mxu0 0.0
    %3773 = vmatpush1.msra.mxu0 0.0
    %3774 = vmatprep.subr.mxu0 0.0
    %3775 = vmatpush1.msra.mxu0 0.0
    %3776 = vmatprep.subr.mxu0 0.0
    %3777 = vmatpush1.msra.mxu0 0.0
    %3778 = vmatprep.subr.mxu0 0.0
    %3779 = vmatpush1.msra.mxu0 0.0
    %3780 = vmatprep.subr.mxu0 0.0
    %3781 = vmatpush1.msra.mxu0 0.0
    %3782 = vmatprep.subr.mxu0 0.0
    %3783 = vmatpush1.msra.mxu0 0.0
    %3784 = vmatprep.subr.mxu0 0.0
    %3785 = vmatpush1.msra.mxu0 0.0
    %3786 = vmatprep.subr.mxu0 0.0
    %3787 = vmatpush1.msra.mxu0 0.0
    %3788 = vmatprep.subr.mxu0 0.0
    %3789 = vmatpush1.msra.mxu0 0.0
    %3790 = vmatprep.subr.mxu0 0.0
    %3791 = vmatpush1.msra.mxu0 0.0
    %3792 = vmatprep.subr.mxu0 0.0
    %v3793 = vand.u32 %v2615, 4294901760
    %v3794 = vsub.f32 %v2615, %v3793
    %3795 = vmatpush1.msra.mxu0 %v3794
    %3796 = vmatprep.subr.mxu0 0.0
    %v3797 = vand.u32 %v2614, 4294901760
    %v3798 = vsub.f32 %v2614, %v3797
    %3799 = vmatpush1.msra.mxu0 %v3798
    %3800 = vmatprep.subr.mxu0 0.0
    %v3801 = vand.u32 %v2613, 4294901760
    %v3802 = vsub.f32 %v2613, %v3801
    %3803 = vmatpush1.msra.mxu0 %v3802
    %3804 = vmatprep.subr.mxu0 0.0
    %v3805 = vand.u32 %v2612, 4294901760
    %v3806 = vsub.f32 %v2612, %v3805
    %3807 = vmatpush1.msra.mxu0 %v3806
    %3808 = vmatprep.subr.mxu0 0.0
    %3809 = vmatpush2.msra.mxu0 0.0
    %3810 = vmatprep.subr.mxu0 0.0
    %3811 = vmatpush2.msra.mxu0 0.0
    %3812 = vmatprep.subr.mxu0 0.0
    %3813 = vmatpush2.msra.mxu0 0.0
    %3814 = vmatprep.subr.mxu0 0.0
    %3815 = vmatpush2.msra.mxu0 0.0
    %3816 = vmatprep.subr.mxu0 0.0
    %3817 = vmatpush2.msra.mxu0 0.0
    %3818 = vmatprep.subr.mxu0 0.0
    %3819 = vmatpush2.msra.mxu0 0.0
    %3820 = vmatprep.subr.mxu0 0.0
    %3821 = vmatpush2.msra.mxu0 0.0
    %3822 = vmatprep.subr.mxu0 0.0
    %3823 = vmatpush2.msra.mxu0 0.0
    %3824 = vmatprep.subr.mxu0 0.0
    %3825 = vmatpush2.msra.mxu0 0.0
    %3826 = vmatprep.subr.mxu0 0.0
    %3827 = vmatpush2.msra.mxu0 0.0
    %3828 = vmatprep.subr.mxu0 0.0
    %3829 = vmatpush2.msra.mxu0 0.0
    %3830 = vmatprep.subr.mxu0 0.0
    %3831 = vmatpush2.msra.mxu0 0.0
    %3832 = vmatprep.subr.mxu0 0.0
    %3833 = vmatpush2.msra.mxu0 0.0
    %3834 = vmatprep.subr.mxu0 0.0
    %3835 = vmatpush2.msra.mxu0 0.0
    %3836 = vmatprep.subr.mxu0 0.0
    %3837 = vmatpush2.msra.mxu0 0.0
    %3838 = vmatprep.subr.mxu0 0.0
    %3839 = vmatpush2.msra.mxu0 0.0
    %3840 = vmatprep.mubr.f32.mxu0 0.0
    %v3841 = vand.u32 %v651, 4294901760
    %v3842 = vsub.f32 %v651, %v3841
    %3843 = vmatmul.mubr.f32.gmra.mxu0 %v3842
    %v3844 = vpop.f32.mrf.mxu0
    %v3845 = vadd.f32 %v3765, %v3844
    %v3846 = vpop.f32.mrf.mxu0
    %3847 = vdwg.mxu0
    %3848 = vmatprep.subr.mxu0 0.0
    %3849 = vmatpush1.msra.mxu0 0.0
    %3850 = vmatprep.subr.mxu0 0.0
    %3851 = vmatpush1.msra.mxu0 0.0
    %3852 = vmatprep.subr.mxu0 0.0
    %3853 = vmatpush1.msra.mxu0 0.0
    %3854 = vmatprep.subr.mxu0 0.0
    %3855 = vmatpush1.msra.mxu0 0.0
    %3856 = vmatprep.subr.mxu0 0.0
    %3857 = vmatpush1.msra.mxu0 0.0
    %3858 = vmatprep.subr.mxu0 0.0
    %3859 = vmatpush1.msra.mxu0 0.0
    %3860 = vmatprep.subr.mxu0 0.0
    %3861 = vmatpush1.msra.mxu0 0.0
    %3862 = vmatprep.subr.mxu0 0.0
    %3863 = vmatpush1.msra.mxu0 0.0
    %3864 = vmatprep.subr.mxu0 0.0
    %3865 = vmatpush1.msra.mxu0 0.0
    %3866 = vmatprep.subr.mxu0 0.0
    %3867 = vmatpush1.msra.mxu0 0.0
    %3868 = vmatprep.subr.mxu0 0.0
    %3869 = vmatpush1.msra.mxu0 0.0
    %3870 = vmatprep.subr.mxu0 0.0
    %3871 = vmatpush1.msra.mxu0 0.0
    %3872 = vmatprep.subr.mxu0 0.0
    %v3873 = vand.u32 %v2615, 4294901760
    %3874 = vmatpush1.msra.mxu0 %v3873
    %3875 = vmatprep.subr.mxu0 0.0
    %v3876 = vand.u32 %v2614, 4294901760
    %3877 = vmatpush1.msra.mxu0 %v3876
    %3878 = vmatprep.subr.mxu0 0.0
    %v3879 = vand.u32 %v2613, 4294901760
    %3880 = vmatpush1.msra.mxu0 %v3879
    %3881 = vmatprep.subr.mxu0 0.0
    %v3882 = vand.u32 %v2612, 4294901760
    %3883 = vmatpush1.msra.mxu0 %v3882
    %3884 = vmatprep.subr.mxu0 0.0
    %3885 = vmatpush2.msra.mxu0 0.0
    %3886 = vmatprep.subr.mxu0 0.0
    %3887 = vmatpush2.msra.mxu0 0.0
    %3888 = vmatprep.subr.mxu0 0.0
    %3889 = vmatpush2.msra.mxu0 0.0
    %3890 = vmatprep.subr.mxu0 0.0
    %3891 = vmatpush2.msra.mxu0 0.0
    %3892 = vmatprep.subr.mxu0 0.0
    %3893 = vmatpush2.msra.mxu0 0.0
    %3894 = vmatprep.subr.mxu0 0.0
    %3895 = vmatpush2.msra.mxu0 0.0
    %3896 = vmatprep.subr.mxu0 0.0
    %3897 = vmatpush2.msra.mxu0 0.0
    %3898 = vmatprep.subr.mxu0 0.0
    %3899 = vmatpush2.msra.mxu0 0.0
    %3900 = vmatprep.subr.mxu0 0.0
    %3901 = vmatpush2.msra.mxu0 0.0
    %3902 = vmatprep.subr.mxu0 0.0
    %3903 = vmatpush2.msra.mxu0 0.0
    %3904 = vmatprep.subr.mxu0 0.0
    %3905 = vmatpush2.msra.mxu0 0.0
    %3906 = vmatprep.subr.mxu0 0.0
    %3907 = vmatpush2.msra.mxu0 0.0
    %3908 = vmatprep.subr.mxu0 0.0
    %3909 = vmatpush2.msra.mxu0 0.0
    %3910 = vmatprep.subr.mxu0 0.0
    %3911 = vmatpush2.msra.mxu0 0.0
    %3912 = vmatprep.subr.mxu0 0.0
    %3913 = vmatpush2.msra.mxu0 0.0
    %3914 = vmatprep.subr.mxu0 0.0
    %3915 = vmatpush2.msra.mxu0 0.0
    %3916 = vmatprep.mubr.f32.mxu0 0.0
    %v3917 = vand.u32 %v651, 4294901760
    %v3918 = vsub.f32 %v651, %v3917
    %v3919 = vand.u32 %v3918, 4294901760
    %3920 = vmatmul.mubr.f32.gmra.mxu0 %v3919
    %v3921 = vpop.f32.mrf.mxu0
    %v3922 = vadd.f32 %v3845, %v3921
    %v3923 = vpop.f32.mrf.mxu0
    %3924 = vdwg.mxu0
    %3925 = vmatprep.subr.mxu0 0.0
    %3926 = vmatpush1.msra.mxu0 0.0
    %3927 = vmatprep.subr.mxu0 0.0
    %3928 = vmatpush1.msra.mxu0 0.0
    %3929 = vmatprep.subr.mxu0 0.0
    %3930 = vmatpush1.msra.mxu0 0.0
    %3931 = vmatprep.subr.mxu0 0.0
    %3932 = vmatpush1.msra.mxu0 0.0
    %3933 = vmatprep.subr.mxu0 0.0
    %3934 = vmatpush1.msra.mxu0 0.0
    %3935 = vmatprep.subr.mxu0 0.0
    %3936 = vmatpush1.msra.mxu0 0.0
    %3937 = vmatprep.subr.mxu0 0.0
    %3938 = vmatpush1.msra.mxu0 0.0
    %3939 = vmatprep.subr.mxu0 0.0
    %3940 = vmatpush1.msra.mxu0 0.0
    %3941 = vmatprep.subr.mxu0 0.0
    %3942 = vmatpush1.msra.mxu0 0.0
    %3943 = vmatprep.subr.mxu0 0.0
    %3944 = vmatpush1.msra.mxu0 0.0
    %3945 = vmatprep.subr.mxu0 0.0
    %3946 = vmatpush1.msra.mxu0 0.0
    %3947 = vmatprep.subr.mxu0 0.0
    %3948 = vmatpush1.msra.mxu0 0.0
    %3949 = vmatprep.subr.mxu0 0.0
    %v3950 = vand.u32 %v2615, 4294901760
    %v3951 = vsub.f32 %v2615, %v3950
    %v3952 = vand.u32 %v3951, 4294901760
    %3953 = vmatpush1.msra.mxu0 %v3952
    %3954 = vmatprep.subr.mxu0 0.0
    %v3955 = vand.u32 %v2614, 4294901760
    %v3956 = vsub.f32 %v2614, %v3955
    %v3957 = vand.u32 %v3956, 4294901760
    %3958 = vmatpush1.msra.mxu0 %v3957
    %3959 = vmatprep.subr.mxu0 0.0
    %v3960 = vand.u32 %v2613, 4294901760
    %v3961 = vsub.f32 %v2613, %v3960
    %v3962 = vand.u32 %v3961, 4294901760
    %3963 = vmatpush1.msra.mxu0 %v3962
    %3964 = vmatprep.subr.mxu0 0.0
    %v3965 = vand.u32 %v2612, 4294901760
    %v3966 = vsub.f32 %v2612, %v3965
    %v3967 = vand.u32 %v3966, 4294901760
    %3968 = vmatpush1.msra.mxu0 %v3967
    %3969 = vmatprep.subr.mxu0 0.0
    %3970 = vmatpush2.msra.mxu0 0.0
    %3971 = vmatprep.subr.mxu0 0.0
    %3972 = vmatpush2.msra.mxu0 0.0
    %3973 = vmatprep.subr.mxu0 0.0
    %3974 = vmatpush2.msra.mxu0 0.0
    %3975 = vmatprep.subr.mxu0 0.0
    %3976 = vmatpush2.msra.mxu0 0.0
    %3977 = vmatprep.subr.mxu0 0.0
    %3978 = vmatpush2.msra.mxu0 0.0
    %3979 = vmatprep.subr.mxu0 0.0
    %3980 = vmatpush2.msra.mxu0 0.0
    %3981 = vmatprep.subr.mxu0 0.0
    %3982 = vmatpush2.msra.mxu0 0.0
    %3983 = vmatprep.subr.mxu0 0.0
    %3984 = vmatpush2.msra.mxu0 0.0
    %3985 = vmatprep.subr.mxu0 0.0
    %3986 = vmatpush2.msra.mxu0 0.0
    %3987 = vmatprep.subr.mxu0 0.0
    %3988 = vmatpush2.msra.mxu0 0.0
    %3989 = vmatprep.subr.mxu0 0.0
    %3990 = vmatpush2.msra.mxu0 0.0
    %3991 = vmatprep.subr.mxu0 0.0
    %3992 = vmatpush2.msra.mxu0 0.0
    %3993 = vmatprep.subr.mxu0 0.0
    %3994 = vmatpush2.msra.mxu0 0.0
    %3995 = vmatprep.subr.mxu0 0.0
    %3996 = vmatpush2.msra.mxu0 0.0
    %3997 = vmatprep.subr.mxu0 0.0
    %3998 = vmatpush2.msra.mxu0 0.0
    %3999 = vmatprep.subr.mxu0 0.0
    %4000 = vmatpush2.msra.mxu0 0.0
    %4001 = vmatprep.mubr.f32.mxu0 0.0
    %v4002 = vand.u32 %v651, 4294901760
    %4003 = vmatmul.mubr.f32.gmra.mxu0 %v4002
    %v4004 = vpop.f32.mrf.mxu0
    %v4005 = vadd.f32 %v3922, %v4004
    %v4006 = vpop.f32.mrf.mxu0
    %4007 = vdwg.mxu0
    %4008 = vmatprep.subr.mxu0 0.0
    %4009 = vmatpush1.msra.mxu0 0.0
    %4010 = vmatprep.subr.mxu0 0.0
    %4011 = vmatpush1.msra.mxu0 0.0
    %4012 = vmatprep.subr.mxu0 0.0
    %4013 = vmatpush1.msra.mxu0 0.0
    %4014 = vmatprep.subr.mxu0 0.0
    %4015 = vmatpush1.msra.mxu0 0.0
    %4016 = vmatprep.subr.mxu0 0.0
    %4017 = vmatpush1.msra.mxu0 0.0
    %4018 = vmatprep.subr.mxu0 0.0
    %4019 = vmatpush1.msra.mxu0 0.0
    %4020 = vmatprep.subr.mxu0 0.0
    %4021 = vmatpush1.msra.mxu0 0.0
    %4022 = vmatprep.subr.mxu0 0.0
    %4023 = vmatpush1.msra.mxu0 0.0
    %4024 = vmatprep.subr.mxu0 0.0
    %4025 = vmatpush1.msra.mxu0 0.0
    %4026 = vmatprep.subr.mxu0 0.0
    %4027 = vmatpush1.msra.mxu0 0.0
    %4028 = vmatprep.subr.mxu0 0.0
    %4029 = vmatpush1.msra.mxu0 0.0
    %4030 = vmatprep.subr.mxu0 0.0
    %4031 = vmatpush1.msra.mxu0 0.0
    %4032 = vmatprep.subr.mxu0 0.0
    %v4033 = vand.u32 %v2615, 4294901760
    %4034 = vmatpush1.msra.mxu0 %v4033
    %4035 = vmatprep.subr.mxu0 0.0
    %v4036 = vand.u32 %v2614, 4294901760
    %4037 = vmatpush1.msra.mxu0 %v4036
    %4038 = vmatprep.subr.mxu0 0.0
    %v4039 = vand.u32 %v2613, 4294901760
    %4040 = vmatpush1.msra.mxu0 %v4039
    %4041 = vmatprep.subr.mxu0 0.0
    %v4042 = vand.u32 %v2612, 4294901760
    %4043 = vmatpush1.msra.mxu0 %v4042
    %4044 = vmatprep.subr.mxu0 0.0
    %4045 = vmatpush2.msra.mxu0 0.0
    %4046 = vmatprep.subr.mxu0 0.0
    %4047 = vmatpush2.msra.mxu0 0.0
    %4048 = vmatprep.subr.mxu0 0.0
    %4049 = vmatpush2.msra.mxu0 0.0
    %4050 = vmatprep.subr.mxu0 0.0
    %4051 = vmatpush2.msra.mxu0 0.0
    %4052 = vmatprep.subr.mxu0 0.0
    %4053 = vmatpush2.msra.mxu0 0.0
    %4054 = vmatprep.subr.mxu0 0.0
    %4055 = vmatpush2.msra.mxu0 0.0
    %4056 = vmatprep.subr.mxu0 0.0
    %4057 = vmatpush2.msra.mxu0 0.0
    %4058 = vmatprep.subr.mxu0 0.0
    %4059 = vmatpush2.msra.mxu0 0.0
    %4060 = vmatprep.subr.mxu0 0.0
    %4061 = vmatpush2.msra.mxu0 0.0
    %4062 = vmatprep.subr.mxu0 0.0
    %4063 = vmatpush2.msra.mxu0 0.0
    %4064 = vmatprep.subr.mxu0 0.0
    %4065 = vmatpush2.msra.mxu0 0.0
    %4066 = vmatprep.subr.mxu0 0.0
    %4067 = vmatpush2.msra.mxu0 0.0
    %4068 = vmatprep.subr.mxu0 0.0
    %4069 = vmatpush2.msra.mxu0 0.0
    %4070 = vmatprep.subr.mxu0 0.0
    %4071 = vmatpush2.msra.mxu0 0.0
    %4072 = vmatprep.subr.mxu0 0.0
    %4073 = vmatpush2.msra.mxu0 0.0
    %4074 = vmatprep.subr.mxu0 0.0
    %4075 = vmatpush2.msra.mxu0 0.0
    %4076 = vmatprep.mubr.f32.mxu0 0.0
    %v4077 = vand.u32 %v651, 4294901760
    %4078 = vmatmul.mubr.f32.gmra.mxu0 %v4077
    %v4079 = vpop.f32.mrf.mxu0
    %v4080 = vadd.f32 %v4005, %v4079
    %v4081 = vpop.f32.mrf.mxu0
    %4082 = vdwg.mxu0
    %4084 = vrot.lane.b32.xlu0 %v3597, 112
    %v4085 = vpop.permute.xlu0 %4084
    %v4086 = vsel %vm1145, %v4085, 0
    %4088 = vmatprep.subr.mxu0 0.0
    %4089 = vmatpush1.msra.mxu0 0.0
    %4090 = vmatprep.subr.mxu0 0.0
    %4091 = vmatpush1.msra.mxu0 0.0
    %4092 = vmatprep.subr.mxu0 0.0
    %4093 = vmatpush1.msra.mxu0 0.0
    %4094 = vmatprep.subr.mxu0 0.0
    %4095 = vmatpush1.msra.mxu0 0.0
    %4096 = vmatprep.subr.mxu0 0.0
    %4097 = vmatpush1.msra.mxu0 0.0
    %4098 = vmatprep.subr.mxu0 0.0
    %4099 = vmatpush1.msra.mxu0 0.0
    %4100 = vmatprep.subr.mxu0 0.0
    %4101 = vmatpush1.msra.mxu0 0.0
    %4102 = vmatprep.subr.mxu0 0.0
    %4103 = vmatpush1.msra.mxu0 0.0
    %4104 = vmatprep.subr.mxu0 0.0
    %4105 = vmatpush1.msra.mxu0 0.0
    %4106 = vmatprep.subr.mxu0 0.0
    %4107 = vmatpush1.msra.mxu0 0.0
    %4108 = vmatprep.subr.mxu0 0.0
    %4109 = vmatpush1.msra.mxu0 0.0
    %4110 = vmatprep.subr.mxu0 0.0
    %4111 = vmatpush1.msra.mxu0 0.0
    %4112 = vmatprep.subr.mxu0 0.0
    %4113 = vmatpush1.msra.mxu0 0.0
    %4114 = vmatprep.subr.mxu0 0.0
    %4115 = vmatpush1.msra.mxu0 0.0
    %4116 = vmatprep.subr.mxu0 0.0
    %v4117 = vand.u32 %v3107, 4294901760
    %4118 = vmatpush1.msra.mxu0 %v4117
    %4119 = vmatprep.subr.mxu0 0.0
    %v4120 = vand.u32 %v3106, 4294901760
    %4121 = vmatpush1.msra.mxu0 %v4120
    %4122 = vmatprep.subr.mxu0 0.0
    %4123 = vmatpush2.msra.mxu0 0.0
    %4124 = vmatprep.subr.mxu0 0.0
    %4125 = vmatpush2.msra.mxu0 0.0
    %4126 = vmatprep.subr.mxu0 0.0
    %4127 = vmatpush2.msra.mxu0 0.0
    %4128 = vmatprep.subr.mxu0 0.0
    %4129 = vmatpush2.msra.mxu0 0.0
    %4130 = vmatprep.subr.mxu0 0.0
    %4131 = vmatpush2.msra.mxu0 0.0
    %4132 = vmatprep.subr.mxu0 0.0
    %4133 = vmatpush2.msra.mxu0 0.0
    %4134 = vmatprep.subr.mxu0 0.0
    %4135 = vmatpush2.msra.mxu0 0.0
    %4136 = vmatprep.subr.mxu0 0.0
    %4137 = vmatpush2.msra.mxu0 0.0
    %4138 = vmatprep.subr.mxu0 0.0
    %4139 = vmatpush2.msra.mxu0 0.0
    %4140 = vmatprep.subr.mxu0 0.0
    %4141 = vmatpush2.msra.mxu0 0.0
    %4142 = vmatprep.subr.mxu0 0.0
    %4143 = vmatpush2.msra.mxu0 0.0
    %4144 = vmatprep.subr.mxu0 0.0
    %4145 = vmatpush2.msra.mxu0 0.0
    %4146 = vmatprep.subr.mxu0 0.0
    %4147 = vmatpush2.msra.mxu0 0.0
    %4148 = vmatprep.subr.mxu0 0.0
    %4149 = vmatpush2.msra.mxu0 0.0
    %4150 = vmatprep.subr.mxu0 0.0
    %4151 = vmatpush2.msra.mxu0 0.0
    %4152 = vmatprep.subr.mxu0 0.0
    %4153 = vmatpush2.msra.mxu0 0.0
    %4154 = vmatprep.mubr.f32.mxu0 0.0
    %v4155 = vand.u32 %v4086, 4294901760
    %v4156 = vsub.f32 %v4086, %v4155
    %v4157 = vand.u32 %v4156, 4294901760
    %v4158 = vsub.f32 %v4156, %v4157
    %v4159 = vand.u32 %v4158, 4294901760
    %4160 = vmatmul.mubr.f32.gmra.mxu0 %v4159
    %v4161 = vpop.f32.mrf.mxu0
    %v4162 = vadd.f32 %v3112, %v4161
    %v4163 = vpop.f32.mrf.mxu0
    %4164 = vdwg.mxu0
    %4165 = vmatprep.subr.mxu0 0.0
    %4166 = vmatpush1.msra.mxu0 0.0
    %4167 = vmatprep.subr.mxu0 0.0
    %4168 = vmatpush1.msra.mxu0 0.0
    %4169 = vmatprep.subr.mxu0 0.0
    %4170 = vmatpush1.msra.mxu0 0.0
    %4171 = vmatprep.subr.mxu0 0.0
    %4172 = vmatpush1.msra.mxu0 0.0
    %4173 = vmatprep.subr.mxu0 0.0
    %4174 = vmatpush1.msra.mxu0 0.0
    %4175 = vmatprep.subr.mxu0 0.0
    %4176 = vmatpush1.msra.mxu0 0.0
    %4177 = vmatprep.subr.mxu0 0.0
    %4178 = vmatpush1.msra.mxu0 0.0
    %4179 = vmatprep.subr.mxu0 0.0
    %4180 = vmatpush1.msra.mxu0 0.0
    %4181 = vmatprep.subr.mxu0 0.0
    %4182 = vmatpush1.msra.mxu0 0.0
    %4183 = vmatprep.subr.mxu0 0.0
    %4184 = vmatpush1.msra.mxu0 0.0
    %4185 = vmatprep.subr.mxu0 0.0
    %4186 = vmatpush1.msra.mxu0 0.0
    %4187 = vmatprep.subr.mxu0 0.0
    %4188 = vmatpush1.msra.mxu0 0.0
    %4189 = vmatprep.subr.mxu0 0.0
    %4190 = vmatpush1.msra.mxu0 0.0
    %4191 = vmatprep.subr.mxu0 0.0
    %4192 = vmatpush1.msra.mxu0 0.0
    %4193 = vmatprep.subr.mxu0 0.0
    %v4194 = vand.u32 %v3107, 4294901760
    %v4195 = vsub.f32 %v3107, %v4194
    %v4196 = vand.u32 %v4195, 4294901760
    %v4197 = vsub.f32 %v4195, %v4196
    %v4198 = vand.u32 %v4197, 4294901760
    %4199 = vmatpush1.msra.mxu0 %v4198
    %4200 = vmatprep.subr.mxu0 0.0
    %v4201 = vand.u32 %v3106, 4294901760
    %v4202 = vsub.f32 %v3106, %v4201
    %v4203 = vand.u32 %v4202, 4294901760
    %v4204 = vsub.f32 %v4202, %v4203
    %v4205 = vand.u32 %v4204, 4294901760
    %4206 = vmatpush1.msra.mxu0 %v4205
    %4207 = vmatprep.subr.mxu0 0.0
    %4208 = vmatpush2.msra.mxu0 0.0
    %4209 = vmatprep.subr.mxu0 0.0
    %4210 = vmatpush2.msra.mxu0 0.0
    %4211 = vmatprep.subr.mxu0 0.0
    %4212 = vmatpush2.msra.mxu0 0.0
    %4213 = vmatprep.subr.mxu0 0.0
    %4214 = vmatpush2.msra.mxu0 0.0
    %4215 = vmatprep.subr.mxu0 0.0
    %4216 = vmatpush2.msra.mxu0 0.0
    %4217 = vmatprep.subr.mxu0 0.0
    %4218 = vmatpush2.msra.mxu0 0.0
    %4219 = vmatprep.subr.mxu0 0.0
    %4220 = vmatpush2.msra.mxu0 0.0
    %4221 = vmatprep.subr.mxu0 0.0
    %4222 = vmatpush2.msra.mxu0 0.0
    %4223 = vmatprep.subr.mxu0 0.0
    %4224 = vmatpush2.msra.mxu0 0.0
    %4225 = vmatprep.subr.mxu0 0.0
    %4226 = vmatpush2.msra.mxu0 0.0
    %4227 = vmatprep.subr.mxu0 0.0
    %4228 = vmatpush2.msra.mxu0 0.0
    %4229 = vmatprep.subr.mxu0 0.0
    %4230 = vmatpush2.msra.mxu0 0.0
    %4231 = vmatprep.subr.mxu0 0.0
    %4232 = vmatpush2.msra.mxu0 0.0
    %4233 = vmatprep.subr.mxu0 0.0
    %4234 = vmatpush2.msra.mxu0 0.0
    %4235 = vmatprep.subr.mxu0 0.0
    %4236 = vmatpush2.msra.mxu0 0.0
    %4237 = vmatprep.subr.mxu0 0.0
    %4238 = vmatpush2.msra.mxu0 0.0
    %4239 = vmatprep.mubr.f32.mxu0 0.0
    %v4240 = vand.u32 %v4086, 4294901760
    %4241 = vmatmul.mubr.f32.gmra.mxu0 %v4240
    %v4242 = vpop.f32.mrf.mxu0
    %v4243 = vadd.f32 %v4162, %v4242
    %v4244 = vpop.f32.mrf.mxu0
    %4245 = vdwg.mxu0
    %4246 = vmatprep.subr.mxu0 0.0
    %4247 = vmatpush1.msra.mxu0 0.0
    %4248 = vmatprep.subr.mxu0 0.0
    %4249 = vmatpush1.msra.mxu0 0.0
    %4250 = vmatprep.subr.mxu0 0.0
    %4251 = vmatpush1.msra.mxu0 0.0
    %4252 = vmatprep.subr.mxu0 0.0
    %4253 = vmatpush1.msra.mxu0 0.0
    %4254 = vmatprep.subr.mxu0 0.0
    %4255 = vmatpush1.msra.mxu0 0.0
    %4256 = vmatprep.subr.mxu0 0.0
    %4257 = vmatpush1.msra.mxu0 0.0
    %4258 = vmatprep.subr.mxu0 0.0
    %4259 = vmatpush1.msra.mxu0 0.0
    %4260 = vmatprep.subr.mxu0 0.0
    %4261 = vmatpush1.msra.mxu0 0.0
    %4262 = vmatprep.subr.mxu0 0.0
    %4263 = vmatpush1.msra.mxu0 0.0
    %4264 = vmatprep.subr.mxu0 0.0
    %4265 = vmatpush1.msra.mxu0 0.0
    %4266 = vmatprep.subr.mxu0 0.0
    %4267 = vmatpush1.msra.mxu0 0.0
    %4268 = vmatprep.subr.mxu0 0.0
    %4269 = vmatpush1.msra.mxu0 0.0
    %4270 = vmatprep.subr.mxu0 0.0
    %4271 = vmatpush1.msra.mxu0 0.0
    %4272 = vmatprep.subr.mxu0 0.0
    %4273 = vmatpush1.msra.mxu0 0.0
    %4274 = vmatprep.subr.mxu0 0.0
    %v4275 = vand.u32 %v3107, 4294901760
    %v4276 = vsub.f32 %v3107, %v4275
    %4277 = vmatpush1.msra.mxu0 %v4276
    %4278 = vmatprep.subr.mxu0 0.0
    %v4279 = vand.u32 %v3106, 4294901760
    %v4280 = vsub.f32 %v3106, %v4279
    %4281 = vmatpush1.msra.mxu0 %v4280
    %4282 = vmatprep.subr.mxu0 0.0
    %4283 = vmatpush2.msra.mxu0 0.0
    %4284 = vmatprep.subr.mxu0 0.0
    %4285 = vmatpush2.msra.mxu0 0.0
    %4286 = vmatprep.subr.mxu0 0.0
    %4287 = vmatpush2.msra.mxu0 0.0
    %4288 = vmatprep.subr.mxu0 0.0
    %4289 = vmatpush2.msra.mxu0 0.0
    %4290 = vmatprep.subr.mxu0 0.0
    %4291 = vmatpush2.msra.mxu0 0.0
    %4292 = vmatprep.subr.mxu0 0.0
    %4293 = vmatpush2.msra.mxu0 0.0
    %4294 = vmatprep.subr.mxu0 0.0
    %4295 = vmatpush2.msra.mxu0 0.0
    %4296 = vmatprep.subr.mxu0 0.0
    %4297 = vmatpush2.msra.mxu0 0.0
    %4298 = vmatprep.subr.mxu0 0.0
    %4299 = vmatpush2.msra.mxu0 0.0
    %4300 = vmatprep.subr.mxu0 0.0
    %4301 = vmatpush2.msra.mxu0 0.0
    %4302 = vmatprep.subr.mxu0 0.0
    %4303 = vmatpush2.msra.mxu0 0.0
    %4304 = vmatprep.subr.mxu0 0.0
    %4305 = vmatpush2.msra.mxu0 0.0
    %4306 = vmatprep.subr.mxu0 0.0
    %4307 = vmatpush2.msra.mxu0 0.0
    %4308 = vmatprep.subr.mxu0 0.0
    %4309 = vmatpush2.msra.mxu0 0.0
    %4310 = vmatprep.subr.mxu0 0.0
    %4311 = vmatpush2.msra.mxu0 0.0
    %4312 = vmatprep.subr.mxu0 0.0
    %4313 = vmatpush2.msra.mxu0 0.0
    %4314 = vmatprep.mubr.f32.mxu0 0.0
    %v4315 = vand.u32 %v4086, 4294901760
    %v4316 = vsub.f32 %v4086, %v4315
    %4317 = vmatmul.mubr.f32.gmra.mxu0 %v4316
    %v4318 = vpop.f32.mrf.mxu0
    %v4319 = vadd.f32 %v4243, %v4318
    %v4320 = vpop.f32.mrf.mxu0
    %4321 = vdwg.mxu0
    %4322 = vmatprep.subr.mxu0 0.0
    %4323 = vmatpush1.msra.mxu0 0.0
    %4324 = vmatprep.subr.mxu0 0.0
    %4325 = vmatpush1.msra.mxu0 0.0
    %4326 = vmatprep.subr.mxu0 0.0
    %4327 = vmatpush1.msra.mxu0 0.0
    %4328 = vmatprep.subr.mxu0 0.0
    %4329 = vmatpush1.msra.mxu0 0.0
    %4330 = vmatprep.subr.mxu0 0.0
    %4331 = vmatpush1.msra.mxu0 0.0
    %4332 = vmatprep.subr.mxu0 0.0
    %4333 = vmatpush1.msra.mxu0 0.0
    %4334 = vmatprep.subr.mxu0 0.0
    %4335 = vmatpush1.msra.mxu0 0.0
    %4336 = vmatprep.subr.mxu0 0.0
    %4337 = vmatpush1.msra.mxu0 0.0
    %4338 = vmatprep.subr.mxu0 0.0
    %4339 = vmatpush1.msra.mxu0 0.0
    %4340 = vmatprep.subr.mxu0 0.0
    %4341 = vmatpush1.msra.mxu0 0.0
    %4342 = vmatprep.subr.mxu0 0.0
    %4343 = vmatpush1.msra.mxu0 0.0
    %4344 = vmatprep.subr.mxu0 0.0
    %4345 = vmatpush1.msra.mxu0 0.0
    %4346 = vmatprep.subr.mxu0 0.0
    %4347 = vmatpush1.msra.mxu0 0.0
    %4348 = vmatprep.subr.mxu0 0.0
    %4349 = vmatpush1.msra.mxu0 0.0
    %4350 = vmatprep.subr.mxu0 0.0
    %v4351 = vand.u32 %v3107, 4294901760
    %4352 = vmatpush1.msra.mxu0 %v4351
    %4353 = vmatprep.subr.mxu0 0.0
    %v4354 = vand.u32 %v3106, 4294901760
    %4355 = vmatpush1.msra.mxu0 %v4354
    %4356 = vmatprep.subr.mxu0 0.0
    %4357 = vmatpush2.msra.mxu0 0.0
    %4358 = vmatprep.subr.mxu0 0.0
    %4359 = vmatpush2.msra.mxu0 0.0
    %4360 = vmatprep.subr.mxu0 0.0
    %4361 = vmatpush2.msra.mxu0 0.0
    %4362 = vmatprep.subr.mxu0 0.0
    %4363 = vmatpush2.msra.mxu0 0.0
    %4364 = vmatprep.subr.mxu0 0.0
    %4365 = vmatpush2.msra.mxu0 0.0
    %4366 = vmatprep.subr.mxu0 0.0
    %4367 = vmatpush2.msra.mxu0 0.0
    %4368 = vmatprep.subr.mxu0 0.0
    %4369 = vmatpush2.msra.mxu0 0.0
    %4370 = vmatprep.subr.mxu0 0.0
    %4371 = vmatpush2.msra.mxu0 0.0
    %4372 = vmatprep.subr.mxu0 0.0
    %4373 = vmatpush2.msra.mxu0 0.0
    %4374 = vmatprep.subr.mxu0 0.0
    %4375 = vmatpush2.msra.mxu0 0.0
    %4376 = vmatprep.subr.mxu0 0.0
    %4377 = vmatpush2.msra.mxu0 0.0
    %4378 = vmatprep.subr.mxu0 0.0
    %4379 = vmatpush2.msra.mxu0 0.0
    %4380 = vmatprep.subr.mxu0 0.0
    %4381 = vmatpush2.msra.mxu0 0.0
    %4382 = vmatprep.subr.mxu0 0.0
    %4383 = vmatpush2.msra.mxu0 0.0
    %4384 = vmatprep.subr.mxu0 0.0
    %4385 = vmatpush2.msra.mxu0 0.0
    %4386 = vmatprep.subr.mxu0 0.0
    %4387 = vmatpush2.msra.mxu0 0.0
    %4388 = vmatprep.mubr.f32.mxu0 0.0
    %v4389 = vand.u32 %v4086, 4294901760
    %v4390 = vsub.f32 %v4086, %v4389
    %v4391 = vand.u32 %v4390, 4294901760
    %4392 = vmatmul.mubr.f32.gmra.mxu0 %v4391
    %v4393 = vpop.f32.mrf.mxu0
    %v4394 = vadd.f32 %v4319, %v4393
    %v4395 = vpop.f32.mrf.mxu0
    %4396 = vdwg.mxu0
    %4397 = vmatprep.subr.mxu0 0.0
    %4398 = vmatpush1.msra.mxu0 0.0
    %4399 = vmatprep.subr.mxu0 0.0
    %4400 = vmatpush1.msra.mxu0 0.0
    %4401 = vmatprep.subr.mxu0 0.0
    %4402 = vmatpush1.msra.mxu0 0.0
    %4403 = vmatprep.subr.mxu0 0.0
    %4404 = vmatpush1.msra.mxu0 0.0
    %4405 = vmatprep.subr.mxu0 0.0
    %4406 = vmatpush1.msra.mxu0 0.0
    %4407 = vmatprep.subr.mxu0 0.0
    %4408 = vmatpush1.msra.mxu0 0.0
    %4409 = vmatprep.subr.mxu0 0.0
    %4410 = vmatpush1.msra.mxu0 0.0
    %4411 = vmatprep.subr.mxu0 0.0
    %4412 = vmatpush1.msra.mxu0 0.0
    %4413 = vmatprep.subr.mxu0 0.0
    %4414 = vmatpush1.msra.mxu0 0.0
    %4415 = vmatprep.subr.mxu0 0.0
    %4416 = vmatpush1.msra.mxu0 0.0
    %4417 = vmatprep.subr.mxu0 0.0
    %4418 = vmatpush1.msra.mxu0 0.0
    %4419 = vmatprep.subr.mxu0 0.0
    %4420 = vmatpush1.msra.mxu0 0.0
    %4421 = vmatprep.subr.mxu0 0.0
    %4422 = vmatpush1.msra.mxu0 0.0
    %4423 = vmatprep.subr.mxu0 0.0
    %4424 = vmatpush1.msra.mxu0 0.0
    %4425 = vmatprep.subr.mxu0 0.0
    %v4426 = vand.u32 %v3107, 4294901760
    %v4427 = vsub.f32 %v3107, %v4426
    %v4428 = vand.u32 %v4427, 4294901760
    %4429 = vmatpush1.msra.mxu0 %v4428
    %4430 = vmatprep.subr.mxu0 0.0
    %v4431 = vand.u32 %v3106, 4294901760
    %v4432 = vsub.f32 %v3106, %v4431
    %v4433 = vand.u32 %v4432, 4294901760
    %4434 = vmatpush1.msra.mxu0 %v4433
    %4435 = vmatprep.subr.mxu0 0.0
    %4436 = vmatpush2.msra.mxu0 0.0
    %4437 = vmatprep.subr.mxu0 0.0
    %4438 = vmatpush2.msra.mxu0 0.0
    %4439 = vmatprep.subr.mxu0 0.0
    %4440 = vmatpush2.msra.mxu0 0.0
    %4441 = vmatprep.subr.mxu0 0.0
    %4442 = vmatpush2.msra.mxu0 0.0
    %4443 = vmatprep.subr.mxu0 0.0
    %4444 = vmatpush2.msra.mxu0 0.0
    %4445 = vmatprep.subr.mxu0 0.0
    %4446 = vmatpush2.msra.mxu0 0.0
    %4447 = vmatprep.subr.mxu0 0.0
    %4448 = vmatpush2.msra.mxu0 0.0
    %4449 = vmatprep.subr.mxu0 0.0
    %4450 = vmatpush2.msra.mxu0 0.0
    %4451 = vmatprep.subr.mxu0 0.0
    %4452 = vmatpush2.msra.mxu0 0.0
    %4453 = vmatprep.subr.mxu0 0.0
    %4454 = vmatpush2.msra.mxu0 0.0
    %4455 = vmatprep.subr.mxu0 0.0
    %4456 = vmatpush2.msra.mxu0 0.0
    %4457 = vmatprep.subr.mxu0 0.0
    %4458 = vmatpush2.msra.mxu0 0.0
    %4459 = vmatprep.subr.mxu0 0.0
    %4460 = vmatpush2.msra.mxu0 0.0
    %4461 = vmatprep.subr.mxu0 0.0
    %4462 = vmatpush2.msra.mxu0 0.0
    %4463 = vmatprep.subr.mxu0 0.0
    %4464 = vmatpush2.msra.mxu0 0.0
    %4465 = vmatprep.subr.mxu0 0.0
    %4466 = vmatpush2.msra.mxu0 0.0
    %4467 = vmatprep.mubr.f32.mxu0 0.0
    %v4468 = vand.u32 %v4086, 4294901760
    %4469 = vmatmul.mubr.f32.gmra.mxu0 %v4468
    %v4470 = vpop.f32.mrf.mxu0
    %v4471 = vadd.f32 %v4394, %v4470
    %v4472 = vpop.f32.mrf.mxu0
    %4473 = vdwg.mxu0
    %4474 = vmatprep.subr.mxu0 0.0
    %4475 = vmatpush1.msra.mxu0 0.0
    %4476 = vmatprep.subr.mxu0 0.0
    %4477 = vmatpush1.msra.mxu0 0.0
    %4478 = vmatprep.subr.mxu0 0.0
    %4479 = vmatpush1.msra.mxu0 0.0
    %4480 = vmatprep.subr.mxu0 0.0
    %4481 = vmatpush1.msra.mxu0 0.0
    %4482 = vmatprep.subr.mxu0 0.0
    %4483 = vmatpush1.msra.mxu0 0.0
    %4484 = vmatprep.subr.mxu0 0.0
    %4485 = vmatpush1.msra.mxu0 0.0
    %4486 = vmatprep.subr.mxu0 0.0
    %4487 = vmatpush1.msra.mxu0 0.0
    %4488 = vmatprep.subr.mxu0 0.0
    %4489 = vmatpush1.msra.mxu0 0.0
    %4490 = vmatprep.subr.mxu0 0.0
    %4491 = vmatpush1.msra.mxu0 0.0
    %4492 = vmatprep.subr.mxu0 0.0
    %4493 = vmatpush1.msra.mxu0 0.0
    %4494 = vmatprep.subr.mxu0 0.0
    %4495 = vmatpush1.msra.mxu0 0.0
    %4496 = vmatprep.subr.mxu0 0.0
    %4497 = vmatpush1.msra.mxu0 0.0
    %4498 = vmatprep.subr.mxu0 0.0
    %4499 = vmatpush1.msra.mxu0 0.0
    %4500 = vmatprep.subr.mxu0 0.0
    %4501 = vmatpush1.msra.mxu0 0.0
    %4502 = vmatprep.subr.mxu0 0.0
    %v4503 = vand.u32 %v3107, 4294901760
    %4504 = vmatpush1.msra.mxu0 %v4503
    %4505 = vmatprep.subr.mxu0 0.0
    %v4506 = vand.u32 %v3106, 4294901760
    %4507 = vmatpush1.msra.mxu0 %v4506
    %4508 = vmatprep.subr.mxu0 0.0
    %4509 = vmatpush2.msra.mxu0 0.0
    %4510 = vmatprep.subr.mxu0 0.0
    %4511 = vmatpush2.msra.mxu0 0.0
    %4512 = vmatprep.subr.mxu0 0.0
    %4513 = vmatpush2.msra.mxu0 0.0
    %4514 = vmatprep.subr.mxu0 0.0
    %4515 = vmatpush2.msra.mxu0 0.0
    %4516 = vmatprep.subr.mxu0 0.0
    %4517 = vmatpush2.msra.mxu0 0.0
    %4518 = vmatprep.subr.mxu0 0.0
    %4519 = vmatpush2.msra.mxu0 0.0
    %4520 = vmatprep.subr.mxu0 0.0
    %4521 = vmatpush2.msra.mxu0 0.0
    %4522 = vmatprep.subr.mxu0 0.0
    %4523 = vmatpush2.msra.mxu0 0.0
    %4524 = vmatprep.subr.mxu0 0.0
    %4525 = vmatpush2.msra.mxu0 0.0
    %4526 = vmatprep.subr.mxu0 0.0
    %4527 = vmatpush2.msra.mxu0 0.0
    %4528 = vmatprep.subr.mxu0 0.0
    %4529 = vmatpush2.msra.mxu0 0.0
    %4530 = vmatprep.subr.mxu0 0.0
    %4531 = vmatpush2.msra.mxu0 0.0
    %4532 = vmatprep.subr.mxu0 0.0
    %4533 = vmatpush2.msra.mxu0 0.0
    %4534 = vmatprep.subr.mxu0 0.0
    %4535 = vmatpush2.msra.mxu0 0.0
    %4536 = vmatprep.subr.mxu0 0.0
    %4537 = vmatpush2.msra.mxu0 0.0
    %4538 = vmatprep.subr.mxu0 0.0
    %4539 = vmatpush2.msra.mxu0 0.0
    %4540 = vmatprep.mubr.f32.mxu0 0.0
    %v4541 = vand.u32 %v4086, 4294901760
    %4542 = vmatmul.mubr.f32.gmra.mxu0 %v4541
    %v4543 = vpop.f32.mrf.mxu0
    %v4544 = vadd.f32 %v4471, %v4543
    %v4545 = vpop.f32.mrf.mxu0
    %4546 = vdwg.mxu0
    %v4547 = vadd.f32 %v4080, %v4544
    %v4548 = vxor.u32 %v4547, 2147483648
    %v4549 = vmul.f32 %v4548, 1.442695
    %v4550 = vpow.pop %v4549
    %v4551 = vadd.f32 %v4550, 1.0
    %v4552 = vrcp.pop %v4551
    %v4553 = vmul.f32 1.0, %v4552
    %4555 = vrot.lane.b32.xlu0 %v4544, 96
    %v4556 = vpop.permute.xlu0 %4555
    %v4558 = vmul.f32 %v4553, %v4556
    %4560 = vrot.lane.b32.xlu0 %v4558, 32
    %v4561 = vpop.permute.xlu0 %4560
    %v4563 = vadd.f32 %v4080, %v4561
    %v4564 = vtanh.pop %v4563
    %v4565 = vsub.f32 1.0, %v4553
    %4567 = vrot.lane.b32.xlu0 %v4564, 112
    %v4568 = vpop.permute.xlu0 %4567
    %v4570 = vmul.f32 %v4565, %v4568
    %v4571 = vmul.f32 %v4553, %v3597
    %v4572 = vadd.f32 %v4570, %v4571
    %4574 = vrot.lane.b32.xlu0 %v2611, 112
    %v4575 = vpop.permute.xlu0 %4574
    %v4578 = vsel %vm1145, %v2124, %v4572
    %v4579 = vsel %vm1145, %v4575, %v3597
    %v4580 = vld [vmem:[%s8] sm:$0xff]
    %v4581 = vld [vmem:[%s8 + $0x8] sm:$0xff]
    %v4582 = vld [vmem:[%s8 + $0x10] sm:$0xff]
    %v4583 = vld [vmem:[%s8 + $0x18] sm:$0xff]
    %v4585 = vsel %vm649, %v4578, 0
    %v4588 = vsel %vm649, %v4579, 0
    %4590 = vmatprep.subr.mxu0 0.0
    %4591 = vmatpush1.msra.mxu0 0.0
    %4592 = vmatprep.subr.mxu0 0.0
    %4593 = vmatpush1.msra.mxu0 0.0
    %4594 = vmatprep.subr.mxu0 0.0
    %4595 = vmatpush1.msra.mxu0 0.0
    %4596 = vmatprep.subr.mxu0 0.0
    %4597 = vmatpush1.msra.mxu0 0.0
    %4598 = vmatprep.subr.mxu0 0.0
    %4599 = vmatpush1.msra.mxu0 0.0
    %4600 = vmatprep.subr.mxu0 0.0
    %4601 = vmatpush1.msra.mxu0 0.0
    %4602 = vmatprep.subr.mxu0 0.0
    %4603 = vmatpush1.msra.mxu0 0.0
    %4604 = vmatprep.subr.mxu0 0.0
    %4605 = vmatpush1.msra.mxu0 0.0
    %4606 = vmatprep.subr.mxu0 0.0
    %4607 = vmatpush1.msra.mxu0 0.0
    %4608 = vmatprep.subr.mxu0 0.0
    %4609 = vmatpush1.msra.mxu0 0.0
    %4610 = vmatprep.subr.mxu0 0.0
    %4611 = vmatpush1.msra.mxu0 0.0
    %4612 = vmatprep.subr.mxu0 0.0
    %4613 = vmatpush1.msra.mxu0 0.0
    %4614 = vmatprep.subr.mxu0 0.0
    %v4615 = vand.u32 %v4583, 4294901760
    %4616 = vmatpush1.msra.mxu0 %v4615
    %4617 = vmatprep.subr.mxu0 0.0
    %v4618 = vand.u32 %v4582, 4294901760
    %4619 = vmatpush1.msra.mxu0 %v4618
    %4620 = vmatprep.subr.mxu0 0.0
    %v4621 = vand.u32 %v4581, 4294901760
    %4622 = vmatpush1.msra.mxu0 %v4621
    %4623 = vmatprep.subr.mxu0 0.0
    %v4624 = vand.u32 %v4580, 4294901760
    %4625 = vmatpush1.msra.mxu0 %v4624
    %4626 = vmatprep.subr.mxu0 0.0
    %4627 = vmatpush2.msra.mxu0 0.0
    %4628 = vmatprep.subr.mxu0 0.0
    %4629 = vmatpush2.msra.mxu0 0.0
    %4630 = vmatprep.subr.mxu0 0.0
    %4631 = vmatpush2.msra.mxu0 0.0
    %4632 = vmatprep.subr.mxu0 0.0
    %4633 = vmatpush2.msra.mxu0 0.0
    %4634 = vmatprep.subr.mxu0 0.0
    %4635 = vmatpush2.msra.mxu0 0.0
    %4636 = vmatprep.subr.mxu0 0.0
    %4637 = vmatpush2.msra.mxu0 0.0
    %4638 = vmatprep.subr.mxu0 0.0
    %4639 = vmatpush2.msra.mxu0 0.0
    %4640 = vmatprep.subr.mxu0 0.0
    %4641 = vmatpush2.msra.mxu0 0.0
    %4642 = vmatprep.subr.mxu0 0.0
    %4643 = vmatpush2.msra.mxu0 0.0
    %4644 = vmatprep.subr.mxu0 0.0
    %4645 = vmatpush2.msra.mxu0 0.0
    %4646 = vmatprep.subr.mxu0 0.0
    %4647 = vmatpush2.msra.mxu0 0.0
    %4648 = vmatprep.subr.mxu0 0.0
    %4649 = vmatpush2.msra.mxu0 0.0
    %4650 = vmatprep.subr.mxu0 0.0
    %4651 = vmatpush2.msra.mxu0 0.0
    %4652 = vmatprep.subr.mxu0 0.0
    %4653 = vmatpush2.msra.mxu0 0.0
    %4654 = vmatprep.subr.mxu0 0.0
    %4655 = vmatpush2.msra.mxu0 0.0
    %4656 = vmatprep.subr.mxu0 0.0
    %4657 = vmatpush2.msra.mxu0 0.0
    %4658 = vmatprep.mubr.f32.mxu0 0.0
    %v4659 = vand.u32 %v4585, 4294901760
    %v4660 = vsub.f32 %v4585, %v4659
    %v4661 = vand.u32 %v4660, 4294901760
    %v4662 = vsub.f32 %v4660, %v4661
    %v4663 = vand.u32 %v4662, 4294901760
    %4664 = vmatmul.mubr.f32.gmra.mxu0 %v4663
    %v4665 = vpop.f32.mrf.mxu0
    %v4666 = vadd.f32 0.0, %v4665
    %v4667 = vpop.f32.mrf.mxu0
    %4668 = vmatprep.mubr.f32.mxu0 0.0
    %v4669 = vand.u32 %v4588, 4294901760
    %v4670 = vsub.f32 %v4588, %v4669
    %v4671 = vand.u32 %v4670, 4294901760
    %v4672 = vsub.f32 %v4670, %v4671
    %v4673 = vand.u32 %v4672, 4294901760
    %4674 = vmatmul.mubr.f32.gmra.mxu0 %v4673
    %v4675 = vpop.f32.mrf.mxu0
    %v4676 = vadd.f32 0.0, %v4675
    %v4677 = vpop.f32.mrf.mxu0
    %4678 = vdwg.mxu0
    %4679 = vmatprep.subr.mxu0 0.0
    %4680 = vmatpush1.msra.mxu0 0.0
    %4681 = vmatprep.subr.mxu0 0.0
    %4682 = vmatpush1.msra.mxu0 0.0
    %4683 = vmatprep.subr.mxu0 0.0
    %4684 = vmatpush1.msra.mxu0 0.0
    %4685 = vmatprep.subr.mxu0 0.0
    %4686 = vmatpush1.msra.mxu0 0.0
    %4687 = vmatprep.subr.mxu0 0.0
    %4688 = vmatpush1.msra.mxu0 0.0
    %4689 = vmatprep.subr.mxu0 0.0
    %4690 = vmatpush1.msra.mxu0 0.0
    %4691 = vmatprep.subr.mxu0 0.0
    %4692 = vmatpush1.msra.mxu0 0.0
    %4693 = vmatprep.subr.mxu0 0.0
    %4694 = vmatpush1.msra.mxu0 0.0
    %4695 = vmatprep.subr.mxu0 0.0
    %4696 = vmatpush1.msra.mxu0 0.0
    %4697 = vmatprep.subr.mxu0 0.0
    %4698 = vmatpush1.msra.mxu0 0.0
    %4699 = vmatprep.subr.mxu0 0.0
    %4700 = vmatpush1.msra.mxu0 0.0
    %4701 = vmatprep.subr.mxu0 0.0
    %4702 = vmatpush1.msra.mxu0 0.0
    %4703 = vmatprep.subr.mxu0 0.0
    %v4704 = vand.u32 %v4583, 4294901760
    %v4705 = vsub.f32 %v4583, %v4704
    %v4706 = vand.u32 %v4705, 4294901760
    %v4707 = vsub.f32 %v4705, %v4706
    %v4708 = vand.u32 %v4707, 4294901760
    %4709 = vmatpush1.msra.mxu0 %v4708
    %4710 = vmatprep.subr.mxu0 0.0
    %v4711 = vand.u32 %v4582, 4294901760
    %v4712 = vsub.f32 %v4582, %v4711
    %v4713 = vand.u32 %v4712, 4294901760
    %v4714 = vsub.f32 %v4712, %v4713
    %v4715 = vand.u32 %v4714, 4294901760
    %4716 = vmatpush1.msra.mxu0 %v4715
    %4717 = vmatprep.subr.mxu0 0.0
    %v4718 = vand.u32 %v4581, 4294901760
    %v4719 = vsub.f32 %v4581, %v4718
    %v4720 = vand.u32 %v4719, 4294901760
    %v4721 = vsub.f32 %v4719, %v4720
    %v4722 = vand.u32 %v4721, 4294901760
    %4723 = vmatpush1.msra.mxu0 %v4722
    %4724 = vmatprep.subr.mxu0 0.0
    %v4725 = vand.u32 %v4580, 4294901760
    %v4726 = vsub.f32 %v4580, %v4725
    %v4727 = vand.u32 %v4726, 4294901760
    %v4728 = vsub.f32 %v4726, %v4727
    %v4729 = vand.u32 %v4728, 4294901760
    %4730 = vmatpush1.msra.mxu0 %v4729
    %4731 = vmatprep.subr.mxu0 0.0
    %4732 = vmatpush2.msra.mxu0 0.0
    %4733 = vmatprep.subr.mxu0 0.0
    %4734 = vmatpush2.msra.mxu0 0.0
    %4735 = vmatprep.subr.mxu0 0.0
    %4736 = vmatpush2.msra.mxu0 0.0
    %4737 = vmatprep.subr.mxu0 0.0
    %4738 = vmatpush2.msra.mxu0 0.0
    %4739 = vmatprep.subr.mxu0 0.0
    %4740 = vmatpush2.msra.mxu0 0.0
    %4741 = vmatprep.subr.mxu0 0.0
    %4742 = vmatpush2.msra.mxu0 0.0
    %4743 = vmatprep.subr.mxu0 0.0
    %4744 = vmatpush2.msra.mxu0 0.0
    %4745 = vmatprep.subr.mxu0 0.0
    %4746 = vmatpush2.msra.mxu0 0.0
    %4747 = vmatprep.subr.mxu0 0.0
    %4748 = vmatpush2.msra.mxu0 0.0
    %4749 = vmatprep.subr.mxu0 0.0
    %4750 = vmatpush2.msra.mxu0 0.0
    %4751 = vmatprep.subr.mxu0 0.0
    %4752 = vmatpush2.msra.mxu0 0.0
    %4753 = vmatprep.subr.mxu0 0.0
    %4754 = vmatpush2.msra.mxu0 0.0
    %4755 = vmatprep.subr.mxu0 0.0
    %4756 = vmatpush2.msra.mxu0 0.0
    %4757 = vmatprep.subr.mxu0 0.0
    %4758 = vmatpush2.msra.mxu0 0.0
    %4759 = vmatprep.subr.mxu0 0.0
    %4760 = vmatpush2.msra.mxu0 0.0
    %4761 = vmatprep.subr.mxu0 0.0
    %4762 = vmatpush2.msra.mxu0 0.0
    %4763 = vmatprep.mubr.f32.mxu0 0.0
    %v4764 = vand.u32 %v4585, 4294901760
    %4765 = vmatmul.mubr.f32.gmra.mxu0 %v4764
    %v4766 = vpop.f32.mrf.mxu0
    %v4767 = vadd.f32 %v4666, %v4766
    %v4768 = vpop.f32.mrf.mxu0
    %4769 = vmatprep.mubr.f32.mxu0 0.0
    %v4770 = vand.u32 %v4588, 4294901760
    %4771 = vmatmul.mubr.f32.gmra.mxu0 %v4770
    %v4772 = vpop.f32.mrf.mxu0
    %v4773 = vadd.f32 %v4676, %v4772
    %v4774 = vpop.f32.mrf.mxu0
    %4775 = vdwg.mxu0
    %4776 = vmatprep.subr.mxu0 0.0
    %4777 = vmatpush1.msra.mxu0 0.0
    %4778 = vmatprep.subr.mxu0 0.0
    %4779 = vmatpush1.msra.mxu0 0.0
    %4780 = vmatprep.subr.mxu0 0.0
    %4781 = vmatpush1.msra.mxu0 0.0
    %4782 = vmatprep.subr.mxu0 0.0
    %4783 = vmatpush1.msra.mxu0 0.0
    %4784 = vmatprep.subr.mxu0 0.0
    %4785 = vmatpush1.msra.mxu0 0.0
    %4786 = vmatprep.subr.mxu0 0.0
    %4787 = vmatpush1.msra.mxu0 0.0
    %4788 = vmatprep.subr.mxu0 0.0
    %4789 = vmatpush1.msra.mxu0 0.0
    %4790 = vmatprep.subr.mxu0 0.0
    %4791 = vmatpush1.msra.mxu0 0.0
    %4792 = vmatprep.subr.mxu0 0.0
    %4793 = vmatpush1.msra.mxu0 0.0
    %4794 = vmatprep.subr.mxu0 0.0
    %4795 = vmatpush1.msra.mxu0 0.0
    %4796 = vmatprep.subr.mxu0 0.0
    %4797 = vmatpush1.msra.mxu0 0.0
    %4798 = vmatprep.subr.mxu0 0.0
    %4799 = vmatpush1.msra.mxu0 0.0
    %4800 = vmatprep.subr.mxu0 0.0
    %v4801 = vand.u32 %v4583, 4294901760
    %v4802 = vsub.f32 %v4583, %v4801
    %4803 = vmatpush1.msra.mxu0 %v4802
    %4804 = vmatprep.subr.mxu0 0.0
    %v4805 = vand.u32 %v4582, 4294901760
    %v4806 = vsub.f32 %v4582, %v4805
    %4807 = vmatpush1.msra.mxu0 %v4806
    %4808 = vmatprep.subr.mxu0 0.0
    %v4809 = vand.u32 %v4581, 4294901760
    %v4810 = vsub.f32 %v4581, %v4809
    %4811 = vmatpush1.msra.mxu0 %v4810
    %4812 = vmatprep.subr.mxu0 0.0
    %v4813 = vand.u32 %v4580, 4294901760
    %v4814 = vsub.f32 %v4580, %v4813
    %4815 = vmatpush1.msra.mxu0 %v4814
    %4816 = vmatprep.subr.mxu0 0.0
    %4817 = vmatpush2.msra.mxu0 0.0
    %4818 = vmatprep.subr.mxu0 0.0
    %4819 = vmatpush2.msra.mxu0 0.0
    %4820 = vmatprep.subr.mxu0 0.0
    %4821 = vmatpush2.msra.mxu0 0.0
    %4822 = vmatprep.subr.mxu0 0.0
    %4823 = vmatpush2.msra.mxu0 0.0
    %4824 = vmatprep.subr.mxu0 0.0
    %4825 = vmatpush2.msra.mxu0 0.0
    %4826 = vmatprep.subr.mxu0 0.0
    %4827 = vmatpush2.msra.mxu0 0.0
    %4828 = vmatprep.subr.mxu0 0.0
    %4829 = vmatpush2.msra.mxu0 0.0
    %4830 = vmatprep.subr.mxu0 0.0
    %4831 = vmatpush2.msra.mxu0 0.0
    %4832 = vmatprep.subr.mxu0 0.0
    %4833 = vmatpush2.msra.mxu0 0.0
    %4834 = vmatprep.subr.mxu0 0.0
    %4835 = vmatpush2.msra.mxu0 0.0
    %4836 = vmatprep.subr.mxu0 0.0
    %4837 = vmatpush2.msra.mxu0 0.0
    %4838 = vmatprep.subr.mxu0 0.0
    %4839 = vmatpush2.msra.mxu0 0.0
    %4840 = vmatprep.subr.mxu0 0.0
    %4841 = vmatpush2.msra.mxu0 0.0
    %4842 = vmatprep.subr.mxu0 0.0
    %4843 = vmatpush2.msra.mxu0 0.0
    %4844 = vmatprep.subr.mxu0 0.0
    %4845 = vmatpush2.msra.mxu0 0.0
    %4846 = vmatprep.subr.mxu0 0.0
    %4847 = vmatpush2.msra.mxu0 0.0
    %4848 = vmatprep.mubr.f32.mxu0 0.0
    %v4849 = vand.u32 %v4585, 4294901760
    %v4850 = vsub.f32 %v4585, %v4849
    %4851 = vmatmul.mubr.f32.gmra.mxu0 %v4850
    %v4852 = vpop.f32.mrf.mxu0
    %v4853 = vadd.f32 %v4767, %v4852
    %v4854 = vpop.f32.mrf.mxu0
    %4855 = vmatprep.mubr.f32.mxu0 0.0
    %v4856 = vand.u32 %v4588, 4294901760
    %v4857 = vsub.f32 %v4588, %v4856
    %4858 = vmatmul.mubr.f32.gmra.mxu0 %v4857
    %v4859 = vpop.f32.mrf.mxu0
    %v4860 = vadd.f32 %v4773, %v4859
    %v4861 = vpop.f32.mrf.mxu0
    %4862 = vdwg.mxu0
    %4863 = vmatprep.subr.mxu0 0.0
    %4864 = vmatpush1.msra.mxu0 0.0
    %4865 = vmatprep.subr.mxu0 0.0
    %4866 = vmatpush1.msra.mxu0 0.0
    %4867 = vmatprep.subr.mxu0 0.0
    %4868 = vmatpush1.msra.mxu0 0.0
    %4869 = vmatprep.subr.mxu0 0.0
    %4870 = vmatpush1.msra.mxu0 0.0
    %4871 = vmatprep.subr.mxu0 0.0
    %4872 = vmatpush1.msra.mxu0 0.0
    %4873 = vmatprep.subr.mxu0 0.0
    %4874 = vmatpush1.msra.mxu0 0.0
    %4875 = vmatprep.subr.mxu0 0.0
    %4876 = vmatpush1.msra.mxu0 0.0
    %4877 = vmatprep.subr.mxu0 0.0
    %4878 = vmatpush1.msra.mxu0 0.0
    %4879 = vmatprep.subr.mxu0 0.0
    %4880 = vmatpush1.msra.mxu0 0.0
    %4881 = vmatprep.subr.mxu0 0.0
    %4882 = vmatpush1.msra.mxu0 0.0
    %4883 = vmatprep.subr.mxu0 0.0
    %4884 = vmatpush1.msra.mxu0 0.0
    %4885 = vmatprep.subr.mxu0 0.0
    %4886 = vmatpush1.msra.mxu0 0.0
    %4887 = vmatprep.subr.mxu0 0.0
    %v4888 = vand.u32 %v4583, 4294901760
    %4889 = vmatpush1.msra.mxu0 %v4888
    %4890 = vmatprep.subr.mxu0 0.0
    %v4891 = vand.u32 %v4582, 4294901760
    %4892 = vmatpush1.msra.mxu0 %v4891
    %4893 = vmatprep.subr.mxu0 0.0
    %v4894 = vand.u32 %v4581, 4294901760
    %4895 = vmatpush1.msra.mxu0 %v4894
    %4896 = vmatprep.subr.mxu0 0.0
    %v4897 = vand.u32 %v4580, 4294901760
    %4898 = vmatpush1.msra.mxu0 %v4897
    %4899 = vmatprep.subr.mxu0 0.0
    %4900 = vmatpush2.msra.mxu0 0.0
    %4901 = vmatprep.subr.mxu0 0.0
    %4902 = vmatpush2.msra.mxu0 0.0
    %4903 = vmatprep.subr.mxu0 0.0
    %4904 = vmatpush2.msra.mxu0 0.0
    %4905 = vmatprep.subr.mxu0 0.0
    %4906 = vmatpush2.msra.mxu0 0.0
    %4907 = vmatprep.subr.mxu0 0.0
    %4908 = vmatpush2.msra.mxu0 0.0
    %4909 = vmatprep.subr.mxu0 0.0
    %4910 = vmatpush2.msra.mxu0 0.0
    %4911 = vmatprep.subr.mxu0 0.0
    %4912 = vmatpush2.msra.mxu0 0.0
    %4913 = vmatprep.subr.mxu0 0.0
    %4914 = vmatpush2.msra.mxu0 0.0
    %4915 = vmatprep.subr.mxu0 0.0
    %4916 = vmatpush2.msra.mxu0 0.0
    %4917 = vmatprep.subr.mxu0 0.0
    %4918 = vmatpush2.msra.mxu0 0.0
    %4919 = vmatprep.subr.mxu0 0.0
    %4920 = vmatpush2.msra.mxu0 0.0
    %4921 = vmatprep.subr.mxu0 0.0
    %4922 = vmatpush2.msra.mxu0 0.0
    %4923 = vmatprep.subr.mxu0 0.0
    %4924 = vmatpush2.msra.mxu0 0.0
    %4925 = vmatprep.subr.mxu0 0.0
    %4926 = vmatpush2.msra.mxu0 0.0
    %4927 = vmatprep.subr.mxu0 0.0
    %4928 = vmatpush2.msra.mxu0 0.0
    %4929 = vmatprep.subr.mxu0 0.0
    %4930 = vmatpush2.msra.mxu0 0.0
    %4931 = vmatprep.mubr.f32.mxu0 0.0
    %v4932 = vand.u32 %v4585, 4294901760
    %v4933 = vsub.f32 %v4585, %v4932
    %v4934 = vand.u32 %v4933, 4294901760
    %4935 = vmatmul.mubr.f32.gmra.mxu0 %v4934
    %v4936 = vpop.f32.mrf.mxu0
    %v4937 = vadd.f32 %v4853, %v4936
    %v4938 = vpop.f32.mrf.mxu0
    %4939 = vmatprep.mubr.f32.mxu0 0.0
    %v4940 = vand.u32 %v4588, 4294901760
    %v4941 = vsub.f32 %v4588, %v4940
    %v4942 = vand.u32 %v4941, 4294901760
    %4943 = vmatmul.mubr.f32.gmra.mxu0 %v4942
    %v4944 = vpop.f32.mrf.mxu0
    %v4945 = vadd.f32 %v4860, %v4944
    %v4946 = vpop.f32.mrf.mxu0
    %4947 = vdwg.mxu0
    %4948 = vmatprep.subr.mxu0 0.0
    %4949 = vmatpush1.msra.mxu0 0.0
    %4950 = vmatprep.subr.mxu0 0.0
    %4951 = vmatpush1.msra.mxu0 0.0
    %4952 = vmatprep.subr.mxu0 0.0
    %4953 = vmatpush1.msra.mxu0 0.0
    %4954 = vmatprep.subr.mxu0 0.0
    %4955 = vmatpush1.msra.mxu0 0.0
    %4956 = vmatprep.subr.mxu0 0.0
    %4957 = vmatpush1.msra.mxu0 0.0
    %4958 = vmatprep.subr.mxu0 0.0
    %4959 = vmatpush1.msra.mxu0 0.0
    %4960 = vmatprep.subr.mxu0 0.0
    %4961 = vmatpush1.msra.mxu0 0.0
    %4962 = vmatprep.subr.mxu0 0.0
    %4963 = vmatpush1.msra.mxu0 0.0
    %4964 = vmatprep.subr.mxu0 0.0
    %4965 = vmatpush1.msra.mxu0 0.0
    %4966 = vmatprep.subr.mxu0 0.0
    %4967 = vmatpush1.msra.mxu0 0.0
    %4968 = vmatprep.subr.mxu0 0.0
    %4969 = vmatpush1.msra.mxu0 0.0
    %4970 = vmatprep.subr.mxu0 0.0
    %4971 = vmatpush1.msra.mxu0 0.0
    %4972 = vmatprep.subr.mxu0 0.0
    %v4973 = vand.u32 %v4583, 4294901760
    %v4974 = vsub.f32 %v4583, %v4973
    %v4975 = vand.u32 %v4974, 4294901760
    %4976 = vmatpush1.msra.mxu0 %v4975
    %4977 = vmatprep.subr.mxu0 0.0
    %v4978 = vand.u32 %v4582, 4294901760
    %v4979 = vsub.f32 %v4582, %v4978
    %v4980 = vand.u32 %v4979, 4294901760
    %4981 = vmatpush1.msra.mxu0 %v4980
    %4982 = vmatprep.subr.mxu0 0.0
    %v4983 = vand.u32 %v4581, 4294901760
    %v4984 = vsub.f32 %v4581, %v4983
    %v4985 = vand.u32 %v4984, 4294901760
    %4986 = vmatpush1.msra.mxu0 %v4985
    %4987 = vmatprep.subr.mxu0 0.0
    %v4988 = vand.u32 %v4580, 4294901760
    %v4989 = vsub.f32 %v4580, %v4988
    %v4990 = vand.u32 %v4989, 4294901760
    %4991 = vmatpush1.msra.mxu0 %v4990
    %4992 = vmatprep.subr.mxu0 0.0
    %4993 = vmatpush2.msra.mxu0 0.0
    %4994 = vmatprep.subr.mxu0 0.0
    %4995 = vmatpush2.msra.mxu0 0.0
    %4996 = vmatprep.subr.mxu0 0.0
    %4997 = vmatpush2.msra.mxu0 0.0
    %4998 = vmatprep.subr.mxu0 0.0
    %4999 = vmatpush2.msra.mxu0 0.0
    %5000 = vmatprep.subr.mxu0 0.0
    %5001 = vmatpush2.msra.mxu0 0.0
    %5002 = vmatprep.subr.mxu0 0.0
    %5003 = vmatpush2.msra.mxu0 0.0
    %5004 = vmatprep.subr.mxu0 0.0
    %5005 = vmatpush2.msra.mxu0 0.0
    %5006 = vmatprep.subr.mxu0 0.0
    %5007 = vmatpush2.msra.mxu0 0.0
    %5008 = vmatprep.subr.mxu0 0.0
    %5009 = vmatpush2.msra.mxu0 0.0
    %5010 = vmatprep.subr.mxu0 0.0
    %5011 = vmatpush2.msra.mxu0 0.0
    %5012 = vmatprep.subr.mxu0 0.0
    %5013 = vmatpush2.msra.mxu0 0.0
    %5014 = vmatprep.subr.mxu0 0.0
    %5015 = vmatpush2.msra.mxu0 0.0
    %5016 = vmatprep.subr.mxu0 0.0
    %5017 = vmatpush2.msra.mxu0 0.0
    %5018 = vmatprep.subr.mxu0 0.0
    %5019 = vmatpush2.msra.mxu0 0.0
    %5020 = vmatprep.subr.mxu0 0.0
    %5021 = vmatpush2.msra.mxu0 0.0
    %5022 = vmatprep.subr.mxu0 0.0
    %5023 = vmatpush2.msra.mxu0 0.0
    %5024 = vmatprep.mubr.f32.mxu0 0.0
    %v5025 = vand.u32 %v4585, 4294901760
    %5026 = vmatmul.mubr.f32.gmra.mxu0 %v5025
    %v5027 = vpop.f32.mrf.mxu0
    %v5028 = vadd.f32 %v4937, %v5027
    %v5029 = vpop.f32.mrf.mxu0
    %5030 = vmatprep.mubr.f32.mxu0 0.0
    %v5031 = vand.u32 %v4588, 4294901760
    %5032 = vmatmul.mubr.f32.gmra.mxu0 %v5031
    %v5033 = vpop.f32.mrf.mxu0
    %v5034 = vadd.f32 %v4945, %v5033
    %v5035 = vpop.f32.mrf.mxu0
    %5036 = vdwg.mxu0
    %5037 = vmatprep.subr.mxu0 0.0
    %5038 = vmatpush1.msra.mxu0 0.0
    %5039 = vmatprep.subr.mxu0 0.0
    %5040 = vmatpush1.msra.mxu0 0.0
    %5041 = vmatprep.subr.mxu0 0.0
    %5042 = vmatpush1.msra.mxu0 0.0
    %5043 = vmatprep.subr.mxu0 0.0
    %5044 = vmatpush1.msra.mxu0 0.0
    %5045 = vmatprep.subr.mxu0 0.0
    %5046 = vmatpush1.msra.mxu0 0.0
    %5047 = vmatprep.subr.mxu0 0.0
    %5048 = vmatpush1.msra.mxu0 0.0
    %5049 = vmatprep.subr.mxu0 0.0
    %5050 = vmatpush1.msra.mxu0 0.0
    %5051 = vmatprep.subr.mxu0 0.0
    %5052 = vmatpush1.msra.mxu0 0.0
    %5053 = vmatprep.subr.mxu0 0.0
    %5054 = vmatpush1.msra.mxu0 0.0
    %5055 = vmatprep.subr.mxu0 0.0
    %5056 = vmatpush1.msra.mxu0 0.0
    %5057 = vmatprep.subr.mxu0 0.0
    %5058 = vmatpush1.msra.mxu0 0.0
    %5059 = vmatprep.subr.mxu0 0.0
    %5060 = vmatpush1.msra.mxu0 0.0
    %5061 = vmatprep.subr.mxu0 0.0
    %v5062 = vand.u32 %v4583, 4294901760
    %5063 = vmatpush1.msra.mxu0 %v5062
    %5064 = vmatprep.subr.mxu0 0.0
    %v5065 = vand.u32 %v4582, 4294901760
    %5066 = vmatpush1.msra.mxu0 %v5065
    %5067 = vmatprep.subr.mxu0 0.0
    %v5068 = vand.u32 %v4581, 4294901760
    %5069 = vmatpush1.msra.mxu0 %v5068
    %5070 = vmatprep.subr.mxu0 0.0
    %v5071 = vand.u32 %v4580, 4294901760
    %5072 = vmatpush1.msra.mxu0 %v5071
    %5073 = vmatprep.subr.mxu0 0.0
    %5074 = vmatpush2.msra.mxu0 0.0
    %5075 = vmatprep.subr.mxu0 0.0
    %5076 = vmatpush2.msra.mxu0 0.0
    %5077 = vmatprep.subr.mxu0 0.0
    %5078 = vmatpush2.msra.mxu0 0.0
    %5079 = vmatprep.subr.mxu0 0.0
    %5080 = vmatpush2.msra.mxu0 0.0
    %5081 = vmatprep.subr.mxu0 0.0
    %5082 = vmatpush2.msra.mxu0 0.0
    %5083 = vmatprep.subr.mxu0 0.0
    %5084 = vmatpush2.msra.mxu0 0.0
    %5085 = vmatprep.subr.mxu0 0.0
    %5086 = vmatpush2.msra.mxu0 0.0
    %5087 = vmatprep.subr.mxu0 0.0
    %5088 = vmatpush2.msra.mxu0 0.0
    %5089 = vmatprep.subr.mxu0 0.0
    %5090 = vmatpush2.msra.mxu0 0.0
    %5091 = vmatprep.subr.mxu0 0.0
    %5092 = vmatpush2.msra.mxu0 0.0
    %5093 = vmatprep.subr.mxu0 0.0
    %5094 = vmatpush2.msra.mxu0 0.0
    %5095 = vmatprep.subr.mxu0 0.0
    %5096 = vmatpush2.msra.mxu0 0.0
    %5097 = vmatprep.subr.mxu0 0.0
    %5098 = vmatpush2.msra.mxu0 0.0
    %5099 = vmatprep.subr.mxu0 0.0
    %5100 = vmatpush2.msra.mxu0 0.0
    %5101 = vmatprep.subr.mxu0 0.0
    %5102 = vmatpush2.msra.mxu0 0.0
    %5103 = vmatprep.subr.mxu0 0.0
    %5104 = vmatpush2.msra.mxu0 0.0
    %5105 = vmatprep.mubr.f32.mxu0 0.0
    %v5106 = vand.u32 %v4585, 4294901760
    %5107 = vmatmul.mubr.f32.gmra.mxu0 %v5106
    %v5108 = vpop.f32.mrf.mxu0
    %v5109 = vadd.f32 %v5028, %v5108
    %v5110 = vpop.f32.mrf.mxu0
    %5111 = vmatprep.mubr.f32.mxu0 0.0
    %v5112 = vand.u32 %v4588, 4294901760
    %5113 = vmatmul.mubr.f32.gmra.mxu0 %v5112
    %v5114 = vpop.f32.mrf.mxu0
    %v5115 = vadd.f32 %v5034, %v5114
    %v5116 = vpop.f32.mrf.mxu0
    %5117 = vdwg.mxu0
    %s5118 = scalar_lea.vmem %s8, 32
    %v5119 = vld [vmem:[%s5118] sm:$0xff]
    %v5120 = vld [vmem:[%s5118 + $0x8] sm:$0xff]
    %v5121 = vld [vmem:[%s5118 + $0x10] sm:$0xff]
    %v5122 = vld [vmem:[%s5118 + $0x18] sm:$0xff]
    %5123 = vmatprep.subr.mxu0 0.0
    %5124 = vmatpush1.msra.mxu0 0.0
    %5125 = vmatprep.subr.mxu0 0.0
    %5126 = vmatpush1.msra.mxu0 0.0
    %5127 = vmatprep.subr.mxu0 0.0
    %5128 = vmatpush1.msra.mxu0 0.0
    %5129 = vmatprep.subr.mxu0 0.0
    %5130 = vmatpush1.msra.mxu0 0.0
    %5131 = vmatprep.subr.mxu0 0.0
    %5132 = vmatpush1.msra.mxu0 0.0
    %5133 = vmatprep.subr.mxu0 0.0
    %5134 = vmatpush1.msra.mxu0 0.0
    %5135 = vmatprep.subr.mxu0 0.0
    %5136 = vmatpush1.msra.mxu0 0.0
    %5137 = vmatprep.subr.mxu0 0.0
    %5138 = vmatpush1.msra.mxu0 0.0
    %5139 = vmatprep.subr.mxu0 0.0
    %5140 = vmatpush1.msra.mxu0 0.0
    %5141 = vmatprep.subr.mxu0 0.0
    %5142 = vmatpush1.msra.mxu0 0.0
    %5143 = vmatprep.subr.mxu0 0.0
    %5144 = vmatpush1.msra.mxu0 0.0
    %5145 = vmatprep.subr.mxu0 0.0
    %5146 = vmatpush1.msra.mxu0 0.0
    %5147 = vmatprep.subr.mxu0 0.0
    %v5148 = vand.u32 %v5122, 4294901760
    %5149 = vmatpush1.msra.mxu0 %v5148
    %5150 = vmatprep.subr.mxu0 0.0
    %v5151 = vand.u32 %v5121, 4294901760
    %5152 = vmatpush1.msra.mxu0 %v5151
    %5153 = vmatprep.subr.mxu0 0.0
    %v5154 = vand.u32 %v5120, 4294901760
    %5155 = vmatpush1.msra.mxu0 %v5154
    %5156 = vmatprep.subr.mxu0 0.0
    %v5157 = vand.u32 %v5119, 4294901760
    %5158 = vmatpush1.msra.mxu0 %v5157
    %5159 = vmatprep.subr.mxu0 0.0
    %5160 = vmatpush2.msra.mxu0 0.0
    %5161 = vmatprep.subr.mxu0 0.0
    %5162 = vmatpush2.msra.mxu0 0.0
    %5163 = vmatprep.subr.mxu0 0.0
    %5164 = vmatpush2.msra.mxu0 0.0
    %5165 = vmatprep.subr.mxu0 0.0
    %5166 = vmatpush2.msra.mxu0 0.0
    %5167 = vmatprep.subr.mxu0 0.0
    %5168 = vmatpush2.msra.mxu0 0.0
    %5169 = vmatprep.subr.mxu0 0.0
    %5170 = vmatpush2.msra.mxu0 0.0
    %5171 = vmatprep.subr.mxu0 0.0
    %5172 = vmatpush2.msra.mxu0 0.0
    %5173 = vmatprep.subr.mxu0 0.0
    %5174 = vmatpush2.msra.mxu0 0.0
    %5175 = vmatprep.subr.mxu0 0.0
    %5176 = vmatpush2.msra.mxu0 0.0
    %5177 = vmatprep.subr.mxu0 0.0
    %5178 = vmatpush2.msra.mxu0 0.0
    %5179 = vmatprep.subr.mxu0 0.0
    %5180 = vmatpush2.msra.mxu0 0.0
    %5181 = vmatprep.subr.mxu0 0.0
    %5182 = vmatpush2.msra.mxu0 0.0
    %5183 = vmatprep.subr.mxu0 0.0
    %5184 = vmatpush2.msra.mxu0 0.0
    %5185 = vmatprep.subr.mxu0 0.0
    %5186 = vmatpush2.msra.mxu0 0.0
    %5187 = vmatprep.subr.mxu0 0.0
    %5188 = vmatpush2.msra.mxu0 0.0
    %5189 = vmatprep.subr.mxu0 0.0
    %5190 = vmatpush2.msra.mxu0 0.0
    %5191 = vmatprep.mubr.f32.mxu0 0.0
    %v5192 = vand.u32 %v4585, 4294901760
    %v5193 = vsub.f32 %v4585, %v5192
    %v5194 = vand.u32 %v5193, 4294901760
    %v5195 = vsub.f32 %v5193, %v5194
    %v5196 = vand.u32 %v5195, 4294901760
    %5197 = vmatmul.mubr.f32.gmra.mxu0 %v5196
    %v5198 = vpop.f32.mrf.mxu0
    %v5199 = vadd.f32 0.0, %v5198
    %v5200 = vpop.f32.mrf.mxu0
    %5201 = vmatprep.mubr.f32.mxu0 0.0
    %v5202 = vand.u32 %v4588, 4294901760
    %v5203 = vsub.f32 %v4588, %v5202
    %v5204 = vand.u32 %v5203, 4294901760
    %v5205 = vsub.f32 %v5203, %v5204
    %v5206 = vand.u32 %v5205, 4294901760
    %5207 = vmatmul.mubr.f32.gmra.mxu0 %v5206
    %v5208 = vpop.f32.mrf.mxu0
    %v5209 = vadd.f32 0.0, %v5208
    %v5210 = vpop.f32.mrf.mxu0
    %5211 = vdwg.mxu0
    %5212 = vmatprep.subr.mxu0 0.0
    %5213 = vmatpush1.msra.mxu0 0.0
    %5214 = vmatprep.subr.mxu0 0.0
    %5215 = vmatpush1.msra.mxu0 0.0
    %5216 = vmatprep.subr.mxu0 0.0
    %5217 = vmatpush1.msra.mxu0 0.0
    %5218 = vmatprep.subr.mxu0 0.0
    %5219 = vmatpush1.msra.mxu0 0.0
    %5220 = vmatprep.subr.mxu0 0.0
    %5221 = vmatpush1.msra.mxu0 0.0
    %5222 = vmatprep.subr.mxu0 0.0
    %5223 = vmatpush1.msra.mxu0 0.0
    %5224 = vmatprep.subr.mxu0 0.0
    %5225 = vmatpush1.msra.mxu0 0.0
    %5226 = vmatprep.subr.mxu0 0.0
    %5227 = vmatpush1.msra.mxu0 0.0
    %5228 = vmatprep.subr.mxu0 0.0
    %5229 = vmatpush1.msra.mxu0 0.0
    %5230 = vmatprep.subr.mxu0 0.0
    %5231 = vmatpush1.msra.mxu0 0.0
    %5232 = vmatprep.subr.mxu0 0.0
    %5233 = vmatpush1.msra.mxu0 0.0
    %5234 = vmatprep.subr.mxu0 0.0
    %5235 = vmatpush1.msra.mxu0 0.0
    %5236 = vmatprep.subr.mxu0 0.0
    %v5237 = vand.u32 %v5122, 4294901760
    %v5238 = vsub.f32 %v5122, %v5237
    %v5239 = vand.u32 %v5238, 4294901760
    %v5240 = vsub.f32 %v5238, %v5239
    %v5241 = vand.u32 %v5240, 4294901760
    %5242 = vmatpush1.msra.mxu0 %v5241
    %5243 = vmatprep.subr.mxu0 0.0
    %v5244 = vand.u32 %v5121, 4294901760
    %v5245 = vsub.f32 %v5121, %v5244
    %v5246 = vand.u32 %v5245, 4294901760
    %v5247 = vsub.f32 %v5245, %v5246
    %v5248 = vand.u32 %v5247, 4294901760
    %5249 = vmatpush1.msra.mxu0 %v5248
    %5250 = vmatprep.subr.mxu0 0.0
    %v5251 = vand.u32 %v5120, 4294901760
    %v5252 = vsub.f32 %v5120, %v5251
    %v5253 = vand.u32 %v5252, 4294901760
    %v5254 = vsub.f32 %v5252, %v5253
    %v5255 = vand.u32 %v5254, 4294901760
    %5256 = vmatpush1.msra.mxu0 %v5255
    %5257 = vmatprep.subr.mxu0 0.0
    %v5258 = vand.u32 %v5119, 4294901760
    %v5259 = vsub.f32 %v5119, %v5258
    %v5260 = vand.u32 %v5259, 4294901760
    %v5261 = vsub.f32 %v5259, %v5260
    %v5262 = vand.u32 %v5261, 4294901760
    %5263 = vmatpush1.msra.mxu0 %v5262
    %5264 = vmatprep.subr.mxu0 0.0
    %5265 = vmatpush2.msra.mxu0 0.0
    %5266 = vmatprep.subr.mxu0 0.0
    %5267 = vmatpush2.msra.mxu0 0.0
    %5268 = vmatprep.subr.mxu0 0.0
    %5269 = vmatpush2.msra.mxu0 0.0
    %5270 = vmatprep.subr.mxu0 0.0
    %5271 = vmatpush2.msra.mxu0 0.0
    %5272 = vmatprep.subr.mxu0 0.0
    %5273 = vmatpush2.msra.mxu0 0.0
    %5274 = vmatprep.subr.mxu0 0.0
    %5275 = vmatpush2.msra.mxu0 0.0
    %5276 = vmatprep.subr.mxu0 0.0
    %5277 = vmatpush2.msra.mxu0 0.0
    %5278 = vmatprep.subr.mxu0 0.0
    %5279 = vmatpush2.msra.mxu0 0.0
    %5280 = vmatprep.subr.mxu0 0.0
    %5281 = vmatpush2.msra.mxu0 0.0
    %5282 = vmatprep.subr.mxu0 0.0
    %5283 = vmatpush2.msra.mxu0 0.0
    %5284 = vmatprep.subr.mxu0 0.0
    %5285 = vmatpush2.msra.mxu0 0.0
    %5286 = vmatprep.subr.mxu0 0.0
    %5287 = vmatpush2.msra.mxu0 0.0
    %5288 = vmatprep.subr.mxu0 0.0
    %5289 = vmatpush2.msra.mxu0 0.0
    %5290 = vmatprep.subr.mxu0 0.0
    %5291 = vmatpush2.msra.mxu0 0.0
    %5292 = vmatprep.subr.mxu0 0.0
    %5293 = vmatpush2.msra.mxu0 0.0
    %5294 = vmatprep.subr.mxu0 0.0
    %5295 = vmatpush2.msra.mxu0 0.0
    %5296 = vmatprep.mubr.f32.mxu0 0.0
    %v5297 = vand.u32 %v4585, 4294901760
    %5298 = vmatmul.mubr.f32.gmra.mxu0 %v5297
    %v5299 = vpop.f32.mrf.mxu0
    %v5300 = vadd.f32 %v5199, %v5299
    %v5301 = vpop.f32.mrf.mxu0
    %5302 = vmatprep.mubr.f32.mxu0 0.0
    %v5303 = vand.u32 %v4588, 4294901760
    %5304 = vmatmul.mubr.f32.gmra.mxu0 %v5303
    %v5305 = vpop.f32.mrf.mxu0
    %v5306 = vadd.f32 %v5209, %v5305
    %v5307 = vpop.f32.mrf.mxu0
    %5308 = vdwg.mxu0
    %5309 = vmatprep.subr.mxu0 0.0
    %5310 = vmatpush1.msra.mxu0 0.0
    %5311 = vmatprep.subr.mxu0 0.0
    %5312 = vmatpush1.msra.mxu0 0.0
    %5313 = vmatprep.subr.mxu0 0.0
    %5314 = vmatpush1.msra.mxu0 0.0
    %5315 = vmatprep.subr.mxu0 0.0
    %5316 = vmatpush1.msra.mxu0 0.0
    %5317 = vmatprep.subr.mxu0 0.0
    %5318 = vmatpush1.msra.mxu0 0.0
    %5319 = vmatprep.subr.mxu0 0.0
    %5320 = vmatpush1.msra.mxu0 0.0
    %5321 = vmatprep.subr.mxu0 0.0
    %5322 = vmatpush1.msra.mxu0 0.0
    %5323 = vmatprep.subr.mxu0 0.0
    %5324 = vmatpush1.msra.mxu0 0.0
    %5325 = vmatprep.subr.mxu0 0.0
    %5326 = vmatpush1.msra.mxu0 0.0
    %5327 = vmatprep.subr.mxu0 0.0
    %5328 = vmatpush1.msra.mxu0 0.0
    %5329 = vmatprep.subr.mxu0 0.0
    %5330 = vmatpush1.msra.mxu0 0.0
    %5331 = vmatprep.subr.mxu0 0.0
    %5332 = vmatpush1.msra.mxu0 0.0
    %5333 = vmatprep.subr.mxu0 0.0
    %v5334 = vand.u32 %v5122, 4294901760
    %v5335 = vsub.f32 %v5122, %v5334
    %5336 = vmatpush1.msra.mxu0 %v5335
    %5337 = vmatprep.subr.mxu0 0.0
    %v5338 = vand.u32 %v5121, 4294901760
    %v5339 = vsub.f32 %v5121, %v5338
    %5340 = vmatpush1.msra.mxu0 %v5339
    %5341 = vmatprep.subr.mxu0 0.0
    %v5342 = vand.u32 %v5120, 4294901760
    %v5343 = vsub.f32 %v5120, %v5342
    %5344 = vmatpush1.msra.mxu0 %v5343
    %5345 = vmatprep.subr.mxu0 0.0
    %v5346 = vand.u32 %v5119, 4294901760
    %v5347 = vsub.f32 %v5119, %v5346
    %5348 = vmatpush1.msra.mxu0 %v5347
    %5349 = vmatprep.subr.mxu0 0.0
    %5350 = vmatpush2.msra.mxu0 0.0
    %5351 = vmatprep.subr.mxu0 0.0
    %5352 = vmatpush2.msra.mxu0 0.0
    %5353 = vmatprep.subr.mxu0 0.0
    %5354 = vmatpush2.msra.mxu0 0.0
    %5355 = vmatprep.subr.mxu0 0.0
    %5356 = vmatpush2.msra.mxu0 0.0
    %5357 = vmatprep.subr.mxu0 0.0
    %5358 = vmatpush2.msra.mxu0 0.0
    %5359 = vmatprep.subr.mxu0 0.0
    %5360 = vmatpush2.msra.mxu0 0.0
    %5361 = vmatprep.subr.mxu0 0.0
    %5362 = vmatpush2.msra.mxu0 0.0
    %5363 = vmatprep.subr.mxu0 0.0
    %5364 = vmatpush2.msra.mxu0 0.0
    %5365 = vmatprep.subr.mxu0 0.0
    %5366 = vmatpush2.msra.mxu0 0.0
    %5367 = vmatprep.subr.mxu0 0.0
    %5368 = vmatpush2.msra.mxu0 0.0
    %5369 = vmatprep.subr.mxu0 0.0
    %5370 = vmatpush2.msra.mxu0 0.0
    %5371 = vmatprep.subr.mxu0 0.0
    %5372 = vmatpush2.msra.mxu0 0.0
    %5373 = vmatprep.subr.mxu0 0.0
    %5374 = vmatpush2.msra.mxu0 0.0
    %5375 = vmatprep.subr.mxu0 0.0
    %5376 = vmatpush2.msra.mxu0 0.0
    %5377 = vmatprep.subr.mxu0 0.0
    %5378 = vmatpush2.msra.mxu0 0.0
    %5379 = vmatprep.subr.mxu0 0.0
    %5380 = vmatpush2.msra.mxu0 0.0
    %5381 = vmatprep.mubr.f32.mxu0 0.0
    %v5382 = vand.u32 %v4585, 4294901760
    %v5383 = vsub.f32 %v4585, %v5382
    %5384 = vmatmul.mubr.f32.gmra.mxu0 %v5383
    %v5385 = vpop.f32.mrf.mxu0
    %v5386 = vadd.f32 %v5300, %v5385
    %v5387 = vpop.f32.mrf.mxu0
    %5388 = vmatprep.mubr.f32.mxu0 0.0
    %v5389 = vand.u32 %v4588, 4294901760
    %v5390 = vsub.f32 %v4588, %v5389
    %5391 = vmatmul.mubr.f32.gmra.mxu0 %v5390
    %v5392 = vpop.f32.mrf.mxu0
    %v5393 = vadd.f32 %v5306, %v5392
    %v5394 = vpop.f32.mrf.mxu0
    %5395 = vdwg.mxu0
    %5396 = vmatprep.subr.mxu0 0.0
    %5397 = vmatpush1.msra.mxu0 0.0
    %5398 = vmatprep.subr.mxu0 0.0
    %5399 = vmatpush1.msra.mxu0 0.0
    %5400 = vmatprep.subr.mxu0 0.0
    %5401 = vmatpush1.msra.mxu0 0.0
    %5402 = vmatprep.subr.mxu0 0.0
    %5403 = vmatpush1.msra.mxu0 0.0
    %5404 = vmatprep.subr.mxu0 0.0
    %5405 = vmatpush1.msra.mxu0 0.0
    %5406 = vmatprep.subr.mxu0 0.0
    %5407 = vmatpush1.msra.mxu0 0.0
    %5408 = vmatprep.subr.mxu0 0.0
    %5409 = vmatpush1.msra.mxu0 0.0
    %5410 = vmatprep.subr.mxu0 0.0
    %5411 = vmatpush1.msra.mxu0 0.0
    %5412 = vmatprep.subr.mxu0 0.0
    %5413 = vmatpush1.msra.mxu0 0.0
    %5414 = vmatprep.subr.mxu0 0.0
    %5415 = vmatpush1.msra.mxu0 0.0
    %5416 = vmatprep.subr.mxu0 0.0
    %5417 = vmatpush1.msra.mxu0 0.0
    %5418 = vmatprep.subr.mxu0 0.0
    %5419 = vmatpush1.msra.mxu0 0.0
    %5420 = vmatprep.subr.mxu0 0.0
    %v5421 = vand.u32 %v5122, 4294901760
    %5422 = vmatpush1.msra.mxu0 %v5421
    %5423 = vmatprep.subr.mxu0 0.0
    %v5424 = vand.u32 %v5121, 4294901760
    %5425 = vmatpush1.msra.mxu0 %v5424
    %5426 = vmatprep.subr.mxu0 0.0
    %v5427 = vand.u32 %v5120, 4294901760
    %5428 = vmatpush1.msra.mxu0 %v5427
    %5429 = vmatprep.subr.mxu0 0.0
    %v5430 = vand.u32 %v5119, 4294901760
    %5431 = vmatpush1.msra.mxu0 %v5430
    %5432 = vmatprep.subr.mxu0 0.0
    %5433 = vmatpush2.msra.mxu0 0.0
    %5434 = vmatprep.subr.mxu0 0.0
    %5435 = vmatpush2.msra.mxu0 0.0
    %5436 = vmatprep.subr.mxu0 0.0
    %5437 = vmatpush2.msra.mxu0 0.0
    %5438 = vmatprep.subr.mxu0 0.0
    %5439 = vmatpush2.msra.mxu0 0.0
    %5440 = vmatprep.subr.mxu0 0.0
    %5441 = vmatpush2.msra.mxu0 0.0
    %5442 = vmatprep.subr.mxu0 0.0
    %5443 = vmatpush2.msra.mxu0 0.0
    %5444 = vmatprep.subr.mxu0 0.0
    %5445 = vmatpush2.msra.mxu0 0.0
    %5446 = vmatprep.subr.mxu0 0.0
    %5447 = vmatpush2.msra.mxu0 0.0
    %5448 = vmatprep.subr.mxu0 0.0
    %5449 = vmatpush2.msra.mxu0 0.0
    %5450 = vmatprep.subr.mxu0 0.0
    %5451 = vmatpush2.msra.mxu0 0.0
    %5452 = vmatprep.subr.mxu0 0.0
    %5453 = vmatpush2.msra.mxu0 0.0
    %5454 = vmatprep.subr.mxu0 0.0
    %5455 = vmatpush2.msra.mxu0 0.0
    %5456 = vmatprep.subr.mxu0 0.0
    %5457 = vmatpush2.msra.mxu0 0.0
    %5458 = vmatprep.subr.mxu0 0.0
    %5459 = vmatpush2.msra.mxu0 0.0
    %5460 = vmatprep.subr.mxu0 0.0
    %5461 = vmatpush2.msra.mxu0 0.0
    %5462 = vmatprep.subr.mxu0 0.0
    %5463 = vmatpush2.msra.mxu0 0.0
    %5464 = vmatprep.mubr.f32.mxu0 0.0
    %v5465 = vand.u32 %v4585, 4294901760
    %v5466 = vsub.f32 %v4585, %v5465
    %v5467 = vand.u32 %v5466, 4294901760
    %5468 = vmatmul.mubr.f32.gmra.mxu0 %v5467
    %v5469 = vpop.f32.mrf.mxu0
    %v5470 = vadd.f32 %v5386, %v5469
    %v5471 = vpop.f32.mrf.mxu0
    %5472 = vmatprep.mubr.f32.mxu0 0.0
    %v5473 = vand.u32 %v4588, 4294901760
    %v5474 = vsub.f32 %v4588, %v5473
    %v5475 = vand.u32 %v5474, 4294901760
    %5476 = vmatmul.mubr.f32.gmra.mxu0 %v5475
    %v5477 = vpop.f32.mrf.mxu0
    %v5478 = vadd.f32 %v5393, %v5477
    %v5479 = vpop.f32.mrf.mxu0
    %5480 = vdwg.mxu0
    %5481 = vmatprep.subr.mxu0 0.0
    %5482 = vmatpush1.msra.mxu0 0.0
    %5483 = vmatprep.subr.mxu0 0.0
    %5484 = vmatpush1.msra.mxu0 0.0
    %5485 = vmatprep.subr.mxu0 0.0
    %5486 = vmatpush1.msra.mxu0 0.0
    %5487 = vmatprep.subr.mxu0 0.0
    %5488 = vmatpush1.msra.mxu0 0.0
    %5489 = vmatprep.subr.mxu0 0.0
    %5490 = vmatpush1.msra.mxu0 0.0
    %5491 = vmatprep.subr.mxu0 0.0
    %5492 = vmatpush1.msra.mxu0 0.0
    %5493 = vmatprep.subr.mxu0 0.0
    %5494 = vmatpush1.msra.mxu0 0.0
    %5495 = vmatprep.subr.mxu0 0.0
    %5496 = vmatpush1.msra.mxu0 0.0
    %5497 = vmatprep.subr.mxu0 0.0
    %5498 = vmatpush1.msra.mxu0 0.0
    %5499 = vmatprep.subr.mxu0 0.0
    %5500 = vmatpush1.msra.mxu0 0.0
    %5501 = vmatprep.subr.mxu0 0.0
    %5502 = vmatpush1.msra.mxu0 0.0
    %5503 = vmatprep.subr.mxu0 0.0
    %5504 = vmatpush1.msra.mxu0 0.0
    %5505 = vmatprep.subr.mxu0 0.0
    %v5506 = vand.u32 %v5122, 4294901760
    %v5507 = vsub.f32 %v5122, %v5506
    %v5508 = vand.u32 %v5507, 4294901760
    %5509 = vmatpush1.msra.mxu0 %v5508
    %5510 = vmatprep.subr.mxu0 0.0
    %v5511 = vand.u32 %v5121, 4294901760
    %v5512 = vsub.f32 %v5121, %v5511
    %v5513 = vand.u32 %v5512, 4294901760
    %5514 = vmatpush1.msra.mxu0 %v5513
    %5515 = vmatprep.subr.mxu0 0.0
    %v5516 = vand.u32 %v5120, 4294901760
    %v5517 = vsub.f32 %v5120, %v5516
    %v5518 = vand.u32 %v5517, 4294901760
    %5519 = vmatpush1.msra.mxu0 %v5518
    %5520 = vmatprep.subr.mxu0 0.0
    %v5521 = vand.u32 %v5119, 4294901760
    %v5522 = vsub.f32 %v5119, %v5521
    %v5523 = vand.u32 %v5522, 4294901760
    %5524 = vmatpush1.msra.mxu0 %v5523
    %5525 = vmatprep.subr.mxu0 0.0
    %5526 = vmatpush2.msra.mxu0 0.0
    %5527 = vmatprep.subr.mxu0 0.0
    %5528 = vmatpush2.msra.mxu0 0.0
    %5529 = vmatprep.subr.mxu0 0.0
    %5530 = vmatpush2.msra.mxu0 0.0
    %5531 = vmatprep.subr.mxu0 0.0
    %5532 = vmatpush2.msra.mxu0 0.0
    %5533 = vmatprep.subr.mxu0 0.0
    %5534 = vmatpush2.msra.mxu0 0.0
    %5535 = vmatprep.subr.mxu0 0.0
    %5536 = vmatpush2.msra.mxu0 0.0
    %5537 = vmatprep.subr.mxu0 0.0
    %5538 = vmatpush2.msra.mxu0 0.0
    %5539 = vmatprep.subr.mxu0 0.0
    %5540 = vmatpush2.msra.mxu0 0.0
    %5541 = vmatprep.subr.mxu0 0.0
    %5542 = vmatpush2.msra.mxu0 0.0
    %5543 = vmatprep.subr.mxu0 0.0
    %5544 = vmatpush2.msra.mxu0 0.0
    %5545 = vmatprep.subr.mxu0 0.0
    %5546 = vmatpush2.msra.mxu0 0.0
    %5547 = vmatprep.subr.mxu0 0.0
    %5548 = vmatpush2.msra.mxu0 0.0
    %5549 = vmatprep.subr.mxu0 0.0
    %5550 = vmatpush2.msra.mxu0 0.0
    %5551 = vmatprep.subr.mxu0 0.0
    %5552 = vmatpush2.msra.mxu0 0.0
    %5553 = vmatprep.subr.mxu0 0.0
    %5554 = vmatpush2.msra.mxu0 0.0
    %5555 = vmatprep.subr.mxu0 0.0
    %5556 = vmatpush2.msra.mxu0 0.0
    %5557 = vmatprep.mubr.f32.mxu0 0.0
    %v5558 = vand.u32 %v4585, 4294901760
    %5559 = vmatmul.mubr.f32.gmra.mxu0 %v5558
    %v5560 = vpop.f32.mrf.mxu0
    %v5561 = vadd.f32 %v5470, %v5560
    %v5562 = vpop.f32.mrf.mxu0
    %5563 = vmatprep.mubr.f32.mxu0 0.0
    %v5564 = vand.u32 %v4588, 4294901760
    %5565 = vmatmul.mubr.f32.gmra.mxu0 %v5564
    %v5566 = vpop.f32.mrf.mxu0
    %v5567 = vadd.f32 %v5478, %v5566
    %v5568 = vpop.f32.mrf.mxu0
    %5569 = vdwg.mxu0
    %5570 = vmatprep.subr.mxu0 0.0
    %5571 = vmatpush1.msra.mxu0 0.0
    %5572 = vmatprep.subr.mxu0 0.0
    %5573 = vmatpush1.msra.mxu0 0.0
    %5574 = vmatprep.subr.mxu0 0.0
    %5575 = vmatpush1.msra.mxu0 0.0
    %5576 = vmatprep.subr.mxu0 0.0
    %5577 = vmatpush1.msra.mxu0 0.0
    %5578 = vmatprep.subr.mxu0 0.0
    %5579 = vmatpush1.msra.mxu0 0.0
    %5580 = vmatprep.subr.mxu0 0.0
    %5581 = vmatpush1.msra.mxu0 0.0
    %5582 = vmatprep.subr.mxu0 0.0
    %5583 = vmatpush1.msra.mxu0 0.0
    %5584 = vmatprep.subr.mxu0 0.0
    %5585 = vmatpush1.msra.mxu0 0.0
    %5586 = vmatprep.subr.mxu0 0.0
    %5587 = vmatpush1.msra.mxu0 0.0
    %5588 = vmatprep.subr.mxu0 0.0
    %5589 = vmatpush1.msra.mxu0 0.0
    %5590 = vmatprep.subr.mxu0 0.0
    %5591 = vmatpush1.msra.mxu0 0.0
    %5592 = vmatprep.subr.mxu0 0.0
    %5593 = vmatpush1.msra.mxu0 0.0
    %5594 = vmatprep.subr.mxu0 0.0
    %v5595 = vand.u32 %v5122, 4294901760
    %5596 = vmatpush1.msra.mxu0 %v5595
    %5597 = vmatprep.subr.mxu0 0.0
    %v5598 = vand.u32 %v5121, 4294901760
    %5599 = vmatpush1.msra.mxu0 %v5598
    %5600 = vmatprep.subr.mxu0 0.0
    %v5601 = vand.u32 %v5120, 4294901760
    %5602 = vmatpush1.msra.mxu0 %v5601
    %5603 = vmatprep.subr.mxu0 0.0
    %v5604 = vand.u32 %v5119, 4294901760
    %5605 = vmatpush1.msra.mxu0 %v5604
    %5606 = vmatprep.subr.mxu0 0.0
    %5607 = vmatpush2.msra.mxu0 0.0
    %5608 = vmatprep.subr.mxu0 0.0
    %5609 = vmatpush2.msra.mxu0 0.0
    %5610 = vmatprep.subr.mxu0 0.0
    %5611 = vmatpush2.msra.mxu0 0.0
    %5612 = vmatprep.subr.mxu0 0.0
    %5613 = vmatpush2.msra.mxu0 0.0
    %5614 = vmatprep.subr.mxu0 0.0
    %5615 = vmatpush2.msra.mxu0 0.0
    %5616 = vmatprep.subr.mxu0 0.0
    %5617 = vmatpush2.msra.mxu0 0.0
    %5618 = vmatprep.subr.mxu0 0.0
    %5619 = vmatpush2.msra.mxu0 0.0
    %5620 = vmatprep.subr.mxu0 0.0
    %5621 = vmatpush2.msra.mxu0 0.0
    %5622 = vmatprep.subr.mxu0 0.0
    %5623 = vmatpush2.msra.mxu0 0.0
    %5624 = vmatprep.subr.mxu0 0.0
    %5625 = vmatpush2.msra.mxu0 0.0
    %5626 = vmatprep.subr.mxu0 0.0
    %5627 = vmatpush2.msra.mxu0 0.0
    %5628 = vmatprep.subr.mxu0 0.0
    %5629 = vmatpush2.msra.mxu0 0.0
    %5630 = vmatprep.subr.mxu0 0.0
    %5631 = vmatpush2.msra.mxu0 0.0
    %5632 = vmatprep.subr.mxu0 0.0
    %5633 = vmatpush2.msra.mxu0 0.0
    %5634 = vmatprep.subr.mxu0 0.0
    %5635 = vmatpush2.msra.mxu0 0.0
    %5636 = vmatprep.subr.mxu0 0.0
    %5637 = vmatpush2.msra.mxu0 0.0
    %5638 = vmatprep.mubr.f32.mxu0 0.0
    %v5639 = vand.u32 %v4585, 4294901760
    %5640 = vmatmul.mubr.f32.gmra.mxu0 %v5639
    %v5641 = vpop.f32.mrf.mxu0
    %v5642 = vadd.f32 %v5561, %v5641
    %v5643 = vpop.f32.mrf.mxu0
    %5644 = vmatprep.mubr.f32.mxu0 0.0
    %v5645 = vand.u32 %v4588, 4294901760
    %5646 = vmatmul.mubr.f32.gmra.mxu0 %v5645
    %v5647 = vpop.f32.mrf.mxu0
    %v5648 = vadd.f32 %v5567, %v5647
    %v5649 = vpop.f32.mrf.mxu0
    %5650 = vdwg.mxu0
    %s5651 = scalar_lea.vmem %s8, 64
    %v5652 = vld [vmem:[%s5651] sm:$0xff]
    %v5653 = vld [vmem:[%s5651 + $0x8] sm:$0xff]
    %v5654 = vld [vmem:[%s5651 + $0x10] sm:$0xff]
    %v5655 = vld [vmem:[%s5651 + $0x18] sm:$0xff]
    %5656 = vmatprep.subr.mxu0 0.0
    %5657 = vmatpush1.msra.mxu0 0.0
    %5658 = vmatprep.subr.mxu0 0.0
    %5659 = vmatpush1.msra.mxu0 0.0
    %5660 = vmatprep.subr.mxu0 0.0
    %5661 = vmatpush1.msra.mxu0 0.0
    %5662 = vmatprep.subr.mxu0 0.0
    %5663 = vmatpush1.msra.mxu0 0.0
    %5664 = vmatprep.subr.mxu0 0.0
    %5665 = vmatpush1.msra.mxu0 0.0
    %5666 = vmatprep.subr.mxu0 0.0
    %5667 = vmatpush1.msra.mxu0 0.0
    %5668 = vmatprep.subr.mxu0 0.0
    %5669 = vmatpush1.msra.mxu0 0.0
    %5670 = vmatprep.subr.mxu0 0.0
    %5671 = vmatpush1.msra.mxu0 0.0
    %5672 = vmatprep.subr.mxu0 0.0
    %5673 = vmatpush1.msra.mxu0 0.0
    %5674 = vmatprep.subr.mxu0 0.0
    %5675 = vmatpush1.msra.mxu0 0.0
    %5676 = vmatprep.subr.mxu0 0.0
    %5677 = vmatpush1.msra.mxu0 0.0
    %5678 = vmatprep.subr.mxu0 0.0
    %5679 = vmatpush1.msra.mxu0 0.0
    %5680 = vmatprep.subr.mxu0 0.0
    %v5681 = vand.u32 %v5655, 4294901760
    %5682 = vmatpush1.msra.mxu0 %v5681
    %5683 = vmatprep.subr.mxu0 0.0
    %v5684 = vand.u32 %v5654, 4294901760
    %5685 = vmatpush1.msra.mxu0 %v5684
    %5686 = vmatprep.subr.mxu0 0.0
    %v5687 = vand.u32 %v5653, 4294901760
    %5688 = vmatpush1.msra.mxu0 %v5687
    %5689 = vmatprep.subr.mxu0 0.0
    %v5690 = vand.u32 %v5652, 4294901760
    %5691 = vmatpush1.msra.mxu0 %v5690
    %5692 = vmatprep.subr.mxu0 0.0
    %5693 = vmatpush2.msra.mxu0 0.0
    %5694 = vmatprep.subr.mxu0 0.0
    %5695 = vmatpush2.msra.mxu0 0.0
    %5696 = vmatprep.subr.mxu0 0.0
    %5697 = vmatpush2.msra.mxu0 0.0
    %5698 = vmatprep.subr.mxu0 0.0
    %5699 = vmatpush2.msra.mxu0 0.0
    %5700 = vmatprep.subr.mxu0 0.0
    %5701 = vmatpush2.msra.mxu0 0.0
    %5702 = vmatprep.subr.mxu0 0.0
    %5703 = vmatpush2.msra.mxu0 0.0
    %5704 = vmatprep.subr.mxu0 0.0
    %5705 = vmatpush2.msra.mxu0 0.0
    %5706 = vmatprep.subr.mxu0 0.0
    %5707 = vmatpush2.msra.mxu0 0.0
    %5708 = vmatprep.subr.mxu0 0.0
    %5709 = vmatpush2.msra.mxu0 0.0
    %5710 = vmatprep.subr.mxu0 0.0
    %5711 = vmatpush2.msra.mxu0 0.0
    %5712 = vmatprep.subr.mxu0 0.0
    %5713 = vmatpush2.msra.mxu0 0.0
    %5714 = vmatprep.subr.mxu0 0.0
    %5715 = vmatpush2.msra.mxu0 0.0
    %5716 = vmatprep.subr.mxu0 0.0
    %5717 = vmatpush2.msra.mxu0 0.0
    %5718 = vmatprep.subr.mxu0 0.0
    %5719 = vmatpush2.msra.mxu0 0.0
    %5720 = vmatprep.subr.mxu0 0.0
    %5721 = vmatpush2.msra.mxu0 0.0
    %5722 = vmatprep.subr.mxu0 0.0
    %5723 = vmatpush2.msra.mxu0 0.0
    %5724 = vmatprep.mubr.f32.mxu0 0.0
    %v5725 = vand.u32 %v4585, 4294901760
    %v5726 = vsub.f32 %v4585, %v5725
    %v5727 = vand.u32 %v5726, 4294901760
    %v5728 = vsub.f32 %v5726, %v5727
    %v5729 = vand.u32 %v5728, 4294901760
    %5730 = vmatmul.mubr.f32.gmra.mxu0 %v5729
    %v5731 = vpop.f32.mrf.mxu0
    %v5732 = vadd.f32 0.0, %v5731
    %v5733 = vpop.f32.mrf.mxu0
    %5734 = vmatprep.mubr.f32.mxu0 0.0
    %v5735 = vand.u32 %v4588, 4294901760
    %v5736 = vsub.f32 %v4588, %v5735
    %v5737 = vand.u32 %v5736, 4294901760
    %v5738 = vsub.f32 %v5736, %v5737
    %v5739 = vand.u32 %v5738, 4294901760
    %5740 = vmatmul.mubr.f32.gmra.mxu0 %v5739
    %v5741 = vpop.f32.mrf.mxu0
    %v5742 = vadd.f32 0.0, %v5741
    %v5743 = vpop.f32.mrf.mxu0
    %5744 = vdwg.mxu0
    %5745 = vmatprep.subr.mxu0 0.0
    %5746 = vmatpush1.msra.mxu0 0.0
    %5747 = vmatprep.subr.mxu0 0.0
    %5748 = vmatpush1.msra.mxu0 0.0
    %5749 = vmatprep.subr.mxu0 0.0
    %5750 = vmatpush1.msra.mxu0 0.0
    %5751 = vmatprep.subr.mxu0 0.0
    %5752 = vmatpush1.msra.mxu0 0.0
    %5753 = vmatprep.subr.mxu0 0.0
    %5754 = vmatpush1.msra.mxu0 0.0
    %5755 = vmatprep.subr.mxu0 0.0
    %5756 = vmatpush1.msra.mxu0 0.0
    %5757 = vmatprep.subr.mxu0 0.0
    %5758 = vmatpush1.msra.mxu0 0.0
    %5759 = vmatprep.subr.mxu0 0.0
    %5760 = vmatpush1.msra.mxu0 0.0
    %5761 = vmatprep.subr.mxu0 0.0
    %5762 = vmatpush1.msra.mxu0 0.0
    %5763 = vmatprep.subr.mxu0 0.0
    %5764 = vmatpush1.msra.mxu0 0.0
    %5765 = vmatprep.subr.mxu0 0.0
    %5766 = vmatpush1.msra.mxu0 0.0
    %5767 = vmatprep.subr.mxu0 0.0
    %5768 = vmatpush1.msra.mxu0 0.0
    %5769 = vmatprep.subr.mxu0 0.0
    %v5770 = vand.u32 %v5655, 4294901760
    %v5771 = vsub.f32 %v5655, %v5770
    %v5772 = vand.u32 %v5771, 4294901760
    %v5773 = vsub.f32 %v5771, %v5772
    %v5774 = vand.u32 %v5773, 4294901760
    %5775 = vmatpush1.msra.mxu0 %v5774
    %5776 = vmatprep.subr.mxu0 0.0
    %v5777 = vand.u32 %v5654, 4294901760
    %v5778 = vsub.f32 %v5654, %v5777
    %v5779 = vand.u32 %v5778, 4294901760
    %v5780 = vsub.f32 %v5778, %v5779
    %v5781 = vand.u32 %v5780, 4294901760
    %5782 = vmatpush1.msra.mxu0 %v5781
    %5783 = vmatprep.subr.mxu0 0.0
    %v5784 = vand.u32 %v5653, 4294901760
    %v5785 = vsub.f32 %v5653, %v5784
    %v5786 = vand.u32 %v5785, 4294901760
    %v5787 = vsub.f32 %v5785, %v5786
    %v5788 = vand.u32 %v5787, 4294901760
    %5789 = vmatpush1.msra.mxu0 %v5788
    %5790 = vmatprep.subr.mxu0 0.0
    %v5791 = vand.u32 %v5652, 4294901760
    %v5792 = vsub.f32 %v5652, %v5791
    %v5793 = vand.u32 %v5792, 4294901760
    %v5794 = vsub.f32 %v5792, %v5793
    %v5795 = vand.u32 %v5794, 4294901760
    %5796 = vmatpush1.msra.mxu0 %v5795
    %5797 = vmatprep.subr.mxu0 0.0
    %5798 = vmatpush2.msra.mxu0 0.0
    %5799 = vmatprep.subr.mxu0 0.0
    %5800 = vmatpush2.msra.mxu0 0.0
    %5801 = vmatprep.subr.mxu0 0.0
    %5802 = vmatpush2.msra.mxu0 0.0
    %5803 = vmatprep.subr.mxu0 0.0
    %5804 = vmatpush2.msra.mxu0 0.0
    %5805 = vmatprep.subr.mxu0 0.0
    %5806 = vmatpush2.msra.mxu0 0.0
    %5807 = vmatprep.subr.mxu0 0.0
    %5808 = vmatpush2.msra.mxu0 0.0
    %5809 = vmatprep.subr.mxu0 0.0
    %5810 = vmatpush2.msra.mxu0 0.0
    %5811 = vmatprep.subr.mxu0 0.0
    %5812 = vmatpush2.msra.mxu0 0.0
    %5813 = vmatprep.subr.mxu0 0.0
    %5814 = vmatpush2.msra.mxu0 0.0
    %5815 = vmatprep.subr.mxu0 0.0
    %5816 = vmatpush2.msra.mxu0 0.0
    %5817 = vmatprep.subr.mxu0 0.0
    %5818 = vmatpush2.msra.mxu0 0.0
    %5819 = vmatprep.subr.mxu0 0.0
    %5820 = vmatpush2.msra.mxu0 0.0
    %5821 = vmatprep.subr.mxu0 0.0
    %5822 = vmatpush2.msra.mxu0 0.0
    %5823 = vmatprep.subr.mxu0 0.0
    %5824 = vmatpush2.msra.mxu0 0.0
    %5825 = vmatprep.subr.mxu0 0.0
    %5826 = vmatpush2.msra.mxu0 0.0
    %5827 = vmatprep.subr.mxu0 0.0
    %5828 = vmatpush2.msra.mxu0 0.0
    %5829 = vmatprep.mubr.f32.mxu0 0.0
    %v5830 = vand.u32 %v4585, 4294901760
    %5831 = vmatmul.mubr.f32.gmra.mxu0 %v5830
    %v5832 = vpop.f32.mrf.mxu0
    %v5833 = vadd.f32 %v5732, %v5832
    %v5834 = vpop.f32.mrf.mxu0
    %5835 = vmatprep.mubr.f32.mxu0 0.0
    %v5836 = vand.u32 %v4588, 4294901760
    %5837 = vmatmul.mubr.f32.gmra.mxu0 %v5836
    %v5838 = vpop.f32.mrf.mxu0
    %v5839 = vadd.f32 %v5742, %v5838
    %v5840 = vpop.f32.mrf.mxu0
    %5841 = vdwg.mxu0
    %5842 = vmatprep.subr.mxu0 0.0
    %5843 = vmatpush1.msra.mxu0 0.0
    %5844 = vmatprep.subr.mxu0 0.0
    %5845 = vmatpush1.msra.mxu0 0.0
    %5846 = vmatprep.subr.mxu0 0.0
    %5847 = vmatpush1.msra.mxu0 0.0
    %5848 = vmatprep.subr.mxu0 0.0
    %5849 = vmatpush1.msra.mxu0 0.0
    %5850 = vmatprep.subr.mxu0 0.0
    %5851 = vmatpush1.msra.mxu0 0.0
    %5852 = vmatprep.subr.mxu0 0.0
    %5853 = vmatpush1.msra.mxu0 0.0
    %5854 = vmatprep.subr.mxu0 0.0
    %5855 = vmatpush1.msra.mxu0 0.0
    %5856 = vmatprep.subr.mxu0 0.0
    %5857 = vmatpush1.msra.mxu0 0.0
    %5858 = vmatprep.subr.mxu0 0.0
    %5859 = vmatpush1.msra.mxu0 0.0
    %5860 = vmatprep.subr.mxu0 0.0
    %5861 = vmatpush1.msra.mxu0 0.0
    %5862 = vmatprep.subr.mxu0 0.0
    %5863 = vmatpush1.msra.mxu0 0.0
    %5864 = vmatprep.subr.mxu0 0.0
    %5865 = vmatpush1.msra.mxu0 0.0
    %5866 = vmatprep.subr.mxu0 0.0
    %v5867 = vand.u32 %v5655, 4294901760
    %v5868 = vsub.f32 %v5655, %v5867
    %5869 = vmatpush1.msra.mxu0 %v5868
    %5870 = vmatprep.subr.mxu0 0.0
    %v5871 = vand.u32 %v5654, 4294901760
    %v5872 = vsub.f32 %v5654, %v5871
    %5873 = vmatpush1.msra.mxu0 %v5872
    %5874 = vmatprep.subr.mxu0 0.0
    %v5875 = vand.u32 %v5653, 4294901760
    %v5876 = vsub.f32 %v5653, %v5875
    %5877 = vmatpush1.msra.mxu0 %v5876
    %5878 = vmatprep.subr.mxu0 0.0
    %v5879 = vand.u32 %v5652, 4294901760
    %v5880 = vsub.f32 %v5652, %v5879
    %5881 = vmatpush1.msra.mxu0 %v5880
    %5882 = vmatprep.subr.mxu0 0.0
    %5883 = vmatpush2.msra.mxu0 0.0
    %5884 = vmatprep.subr.mxu0 0.0
    %5885 = vmatpush2.msra.mxu0 0.0
    %5886 = vmatprep.subr.mxu0 0.0
    %5887 = vmatpush2.msra.mxu0 0.0
    %5888 = vmatprep.subr.mxu0 0.0
    %5889 = vmatpush2.msra.mxu0 0.0
    %5890 = vmatprep.subr.mxu0 0.0
    %5891 = vmatpush2.msra.mxu0 0.0
    %5892 = vmatprep.subr.mxu0 0.0
    %5893 = vmatpush2.msra.mxu0 0.0
    %5894 = vmatprep.subr.mxu0 0.0
    %5895 = vmatpush2.msra.mxu0 0.0
    %5896 = vmatprep.subr.mxu0 0.0
    %5897 = vmatpush2.msra.mxu0 0.0
    %5898 = vmatprep.subr.mxu0 0.0
    %5899 = vmatpush2.msra.mxu0 0.0
    %5900 = vmatprep.subr.mxu0 0.0
    %5901 = vmatpush2.msra.mxu0 0.0
    %5902 = vmatprep.subr.mxu0 0.0
    %5903 = vmatpush2.msra.mxu0 0.0
    %5904 = vmatprep.subr.mxu0 0.0
    %5905 = vmatpush2.msra.mxu0 0.0
    %5906 = vmatprep.subr.mxu0 0.0
    %5907 = vmatpush2.msra.mxu0 0.0
    %5908 = vmatprep.subr.mxu0 0.0
    %5909 = vmatpush2.msra.mxu0 0.0
    %5910 = vmatprep.subr.mxu0 0.0
    %5911 = vmatpush2.msra.mxu0 0.0
    %5912 = vmatprep.subr.mxu0 0.0
    %5913 = vmatpush2.msra.mxu0 0.0
    %5914 = vmatprep.mubr.f32.mxu0 0.0
    %v5915 = vand.u32 %v4585, 4294901760
    %v5916 = vsub.f32 %v4585, %v5915
    %5917 = vmatmul.mubr.f32.gmra.mxu0 %v5916
    %v5918 = vpop.f32.mrf.mxu0
    %v5919 = vadd.f32 %v5833, %v5918
    %v5920 = vpop.f32.mrf.mxu0
    %5921 = vmatprep.mubr.f32.mxu0 0.0
    %v5922 = vand.u32 %v4588, 4294901760
    %v5923 = vsub.f32 %v4588, %v5922
    %5924 = vmatmul.mubr.f32.gmra.mxu0 %v5923
    %v5925 = vpop.f32.mrf.mxu0
    %v5926 = vadd.f32 %v5839, %v5925
    %v5927 = vpop.f32.mrf.mxu0
    %5928 = vdwg.mxu0
    %5929 = vmatprep.subr.mxu0 0.0
    %5930 = vmatpush1.msra.mxu0 0.0
    %5931 = vmatprep.subr.mxu0 0.0
    %5932 = vmatpush1.msra.mxu0 0.0
    %5933 = vmatprep.subr.mxu0 0.0
    %5934 = vmatpush1.msra.mxu0 0.0
    %5935 = vmatprep.subr.mxu0 0.0
    %5936 = vmatpush1.msra.mxu0 0.0
    %5937 = vmatprep.subr.mxu0 0.0
    %5938 = vmatpush1.msra.mxu0 0.0
    %5939 = vmatprep.subr.mxu0 0.0
    %5940 = vmatpush1.msra.mxu0 0.0
    %5941 = vmatprep.subr.mxu0 0.0
    %5942 = vmatpush1.msra.mxu0 0.0
    %5943 = vmatprep.subr.mxu0 0.0
    %5944 = vmatpush1.msra.mxu0 0.0
    %5945 = vmatprep.subr.mxu0 0.0
    %5946 = vmatpush1.msra.mxu0 0.0
    %5947 = vmatprep.subr.mxu0 0.0
    %5948 = vmatpush1.msra.mxu0 0.0
    %5949 = vmatprep.subr.mxu0 0.0
    %5950 = vmatpush1.msra.mxu0 0.0
    %5951 = vmatprep.subr.mxu0 0.0
    %5952 = vmatpush1.msra.mxu0 0.0
    %5953 = vmatprep.subr.mxu0 0.0
    %v5954 = vand.u32 %v5655, 4294901760
    %5955 = vmatpush1.msra.mxu0 %v5954
    %5956 = vmatprep.subr.mxu0 0.0
    %v5957 = vand.u32 %v5654, 4294901760
    %5958 = vmatpush1.msra.mxu0 %v5957
    %5959 = vmatprep.subr.mxu0 0.0
    %v5960 = vand.u32 %v5653, 4294901760
    %5961 = vmatpush1.msra.mxu0 %v5960
    %5962 = vmatprep.subr.mxu0 0.0
    %v5963 = vand.u32 %v5652, 4294901760
    %5964 = vmatpush1.msra.mxu0 %v5963
    %5965 = vmatprep.subr.mxu0 0.0
    %5966 = vmatpush2.msra.mxu0 0.0
    %5967 = vmatprep.subr.mxu0 0.0
    %5968 = vmatpush2.msra.mxu0 0.0
    %5969 = vmatprep.subr.mxu0 0.0
    %5970 = vmatpush2.msra.mxu0 0.0
    %5971 = vmatprep.subr.mxu0 0.0
    %5972 = vmatpush2.msra.mxu0 0.0
    %5973 = vmatprep.subr.mxu0 0.0
    %5974 = vmatpush2.msra.mxu0 0.0
    %5975 = vmatprep.subr.mxu0 0.0
    %5976 = vmatpush2.msra.mxu0 0.0
    %5977 = vmatprep.subr.mxu0 0.0
    %5978 = vmatpush2.msra.mxu0 0.0
    %5979 = vmatprep.subr.mxu0 0.0
    %5980 = vmatpush2.msra.mxu0 0.0
    %5981 = vmatprep.subr.mxu0 0.0
    %5982 = vmatpush2.msra.mxu0 0.0
    %5983 = vmatprep.subr.mxu0 0.0
    %5984 = vmatpush2.msra.mxu0 0.0
    %5985 = vmatprep.subr.mxu0 0.0
    %5986 = vmatpush2.msra.mxu0 0.0
    %5987 = vmatprep.subr.mxu0 0.0
    %5988 = vmatpush2.msra.mxu0 0.0
    %5989 = vmatprep.subr.mxu0 0.0
    %5990 = vmatpush2.msra.mxu0 0.0
    %5991 = vmatprep.subr.mxu0 0.0
    %5992 = vmatpush2.msra.mxu0 0.0
    %5993 = vmatprep.subr.mxu0 0.0
    %5994 = vmatpush2.msra.mxu0 0.0
    %5995 = vmatprep.subr.mxu0 0.0
    %5996 = vmatpush2.msra.mxu0 0.0
    %5997 = vmatprep.mubr.f32.mxu0 0.0
    %v5998 = vand.u32 %v4585, 4294901760
    %v5999 = vsub.f32 %v4585, %v5998
    %v6000 = vand.u32 %v5999, 4294901760
    %6001 = vmatmul.mubr.f32.gmra.mxu0 %v6000
    %v6002 = vpop.f32.mrf.mxu0
    %v6003 = vadd.f32 %v5919, %v6002
    %v6004 = vpop.f32.mrf.mxu0
    %6005 = vmatprep.mubr.f32.mxu0 0.0
    %v6006 = vand.u32 %v4588, 4294901760
    %v6007 = vsub.f32 %v4588, %v6006
    %v6008 = vand.u32 %v6007, 4294901760
    %6009 = vmatmul.mubr.f32.gmra.mxu0 %v6008
    %v6010 = vpop.f32.mrf.mxu0
    %v6011 = vadd.f32 %v5926, %v6010
    %v6012 = vpop.f32.mrf.mxu0
    %6013 = vdwg.mxu0
    %6014 = vmatprep.subr.mxu0 0.0
    %6015 = vmatpush1.msra.mxu0 0.0
    %6016 = vmatprep.subr.mxu0 0.0
    %6017 = vmatpush1.msra.mxu0 0.0
    %6018 = vmatprep.subr.mxu0 0.0
    %6019 = vmatpush1.msra.mxu0 0.0
    %6020 = vmatprep.subr.mxu0 0.0
    %6021 = vmatpush1.msra.mxu0 0.0
    %6022 = vmatprep.subr.mxu0 0.0
    %6023 = vmatpush1.msra.mxu0 0.0
    %6024 = vmatprep.subr.mxu0 0.0
    %6025 = vmatpush1.msra.mxu0 0.0
    %6026 = vmatprep.subr.mxu0 0.0
    %6027 = vmatpush1.msra.mxu0 0.0
    %6028 = vmatprep.subr.mxu0 0.0
    %6029 = vmatpush1.msra.mxu0 0.0
    %6030 = vmatprep.subr.mxu0 0.0
    %6031 = vmatpush1.msra.mxu0 0.0
    %6032 = vmatprep.subr.mxu0 0.0
    %6033 = vmatpush1.msra.mxu0 0.0
    %6034 = vmatprep.subr.mxu0 0.0
    %6035 = vmatpush1.msra.mxu0 0.0
    %6036 = vmatprep.subr.mxu0 0.0
    %6037 = vmatpush1.msra.mxu0 0.0
    %6038 = vmatprep.subr.mxu0 0.0
    %v6039 = vand.u32 %v5655, 4294901760
    %v6040 = vsub.f32 %v5655, %v6039
    %v6041 = vand.u32 %v6040, 4294901760
    %6042 = vmatpush1.msra.mxu0 %v6041
    %6043 = vmatprep.subr.mxu0 0.0
    %v6044 = vand.u32 %v5654, 4294901760
    %v6045 = vsub.f32 %v5654, %v6044
    %v6046 = vand.u32 %v6045, 4294901760
    %6047 = vmatpush1.msra.mxu0 %v6046
    %6048 = vmatprep.subr.mxu0 0.0
    %v6049 = vand.u32 %v5653, 4294901760
    %v6050 = vsub.f32 %v5653, %v6049
    %v6051 = vand.u32 %v6050, 4294901760
    %6052 = vmatpush1.msra.mxu0 %v6051
    %6053 = vmatprep.subr.mxu0 0.0
    %v6054 = vand.u32 %v5652, 4294901760
    %v6055 = vsub.f32 %v5652, %v6054
    %v6056 = vand.u32 %v6055, 4294901760
    %6057 = vmatpush1.msra.mxu0 %v6056
    %6058 = vmatprep.subr.mxu0 0.0
    %6059 = vmatpush2.msra.mxu0 0.0
    %6060 = vmatprep.subr.mxu0 0.0
    %6061 = vmatpush2.msra.mxu0 0.0
    %6062 = vmatprep.subr.mxu0 0.0
    %6063 = vmatpush2.msra.mxu0 0.0
    %6064 = vmatprep.subr.mxu0 0.0
    %6065 = vmatpush2.msra.mxu0 0.0
    %6066 = vmatprep.subr.mxu0 0.0
    %6067 = vmatpush2.msra.mxu0 0.0
    %6068 = vmatprep.subr.mxu0 0.0
    %6069 = vmatpush2.msra.mxu0 0.0
    %6070 = vmatprep.subr.mxu0 0.0
    %6071 = vmatpush2.msra.mxu0 0.0
    %6072 = vmatprep.subr.mxu0 0.0
    %6073 = vmatpush2.msra.mxu0 0.0
    %6074 = vmatprep.subr.mxu0 0.0
    %6075 = vmatpush2.msra.mxu0 0.0
    %6076 = vmatprep.subr.mxu0 0.0
    %6077 = vmatpush2.msra.mxu0 0.0
    %6078 = vmatprep.subr.mxu0 0.0
    %6079 = vmatpush2.msra.mxu0 0.0
    %6080 = vmatprep.subr.mxu0 0.0
    %6081 = vmatpush2.msra.mxu0 0.0
    %6082 = vmatprep.subr.mxu0 0.0
    %6083 = vmatpush2.msra.mxu0 0.0
    %6084 = vmatprep.subr.mxu0 0.0
    %6085 = vmatpush2.msra.mxu0 0.0
    %6086 = vmatprep.subr.mxu0 0.0
    %6087 = vmatpush2.msra.mxu0 0.0
    %6088 = vmatprep.subr.mxu0 0.0
    %6089 = vmatpush2.msra.mxu0 0.0
    %6090 = vmatprep.mubr.f32.mxu0 0.0
    %v6091 = vand.u32 %v4585, 4294901760
    %6092 = vmatmul.mubr.f32.gmra.mxu0 %v6091
    %v6093 = vpop.f32.mrf.mxu0
    %v6094 = vadd.f32 %v6003, %v6093
    %v6095 = vpop.f32.mrf.mxu0
    %6096 = vmatprep.mubr.f32.mxu0 0.0
    %v6097 = vand.u32 %v4588, 4294901760
    %6098 = vmatmul.mubr.f32.gmra.mxu0 %v6097
    %v6099 = vpop.f32.mrf.mxu0
    %v6100 = vadd.f32 %v6011, %v6099
    %v6101 = vpop.f32.mrf.mxu0
    %6102 = vdwg.mxu0
    %6103 = vmatprep.subr.mxu0 0.0
    %6104 = vmatpush1.msra.mxu0 0.0
    %6105 = vmatprep.subr.mxu0 0.0
    %6106 = vmatpush1.msra.mxu0 0.0
    %6107 = vmatprep.subr.mxu0 0.0
    %6108 = vmatpush1.msra.mxu0 0.0
    %6109 = vmatprep.subr.mxu0 0.0
    %6110 = vmatpush1.msra.mxu0 0.0
    %6111 = vmatprep.subr.mxu0 0.0
    %6112 = vmatpush1.msra.mxu0 0.0
    %6113 = vmatprep.subr.mxu0 0.0
    %6114 = vmatpush1.msra.mxu0 0.0
    %6115 = vmatprep.subr.mxu0 0.0
    %6116 = vmatpush1.msra.mxu0 0.0
    %6117 = vmatprep.subr.mxu0 0.0
    %6118 = vmatpush1.msra.mxu0 0.0
    %6119 = vmatprep.subr.mxu0 0.0
    %6120 = vmatpush1.msra.mxu0 0.0
    %6121 = vmatprep.subr.mxu0 0.0
    %6122 = vmatpush1.msra.mxu0 0.0
    %6123 = vmatprep.subr.mxu0 0.0
    %6124 = vmatpush1.msra.mxu0 0.0
    %6125 = vmatprep.subr.mxu0 0.0
    %6126 = vmatpush1.msra.mxu0 0.0
    %6127 = vmatprep.subr.mxu0 0.0
    %v6128 = vand.u32 %v5655, 4294901760
    %6129 = vmatpush1.msra.mxu0 %v6128
    %6130 = vmatprep.subr.mxu0 0.0
    %v6131 = vand.u32 %v5654, 4294901760
    %6132 = vmatpush1.msra.mxu0 %v6131
    %6133 = vmatprep.subr.mxu0 0.0
    %v6134 = vand.u32 %v5653, 4294901760
    %6135 = vmatpush1.msra.mxu0 %v6134
    %6136 = vmatprep.subr.mxu0 0.0
    %v6137 = vand.u32 %v5652, 4294901760
    %6138 = vmatpush1.msra.mxu0 %v6137
    %6139 = vmatprep.subr.mxu0 0.0
    %6140 = vmatpush2.msra.mxu0 0.0
    %6141 = vmatprep.subr.mxu0 0.0
    %6142 = vmatpush2.msra.mxu0 0.0
    %6143 = vmatprep.subr.mxu0 0.0
    %6144 = vmatpush2.msra.mxu0 0.0
    %6145 = vmatprep.subr.mxu0 0.0
    %6146 = vmatpush2.msra.mxu0 0.0
    %6147 = vmatprep.subr.mxu0 0.0
    %6148 = vmatpush2.msra.mxu0 0.0
    %6149 = vmatprep.subr.mxu0 0.0
    %6150 = vmatpush2.msra.mxu0 0.0
    %6151 = vmatprep.subr.mxu0 0.0
    %6152 = vmatpush2.msra.mxu0 0.0
    %6153 = vmatprep.subr.mxu0 0.0
    %6154 = vmatpush2.msra.mxu0 0.0
    %6155 = vmatprep.subr.mxu0 0.0
    %6156 = vmatpush2.msra.mxu0 0.0
    %6157 = vmatprep.subr.mxu0 0.0
    %6158 = vmatpush2.msra.mxu0 0.0
    %6159 = vmatprep.subr.mxu0 0.0
    %6160 = vmatpush2.msra.mxu0 0.0
    %6161 = vmatprep.subr.mxu0 0.0
    %6162 = vmatpush2.msra.mxu0 0.0
    %6163 = vmatprep.subr.mxu0 0.0
    %6164 = vmatpush2.msra.mxu0 0.0
    %6165 = vmatprep.subr.mxu0 0.0
    %6166 = vmatpush2.msra.mxu0 0.0
    %6167 = vmatprep.subr.mxu0 0.0
    %6168 = vmatpush2.msra.mxu0 0.0
    %6169 = vmatprep.subr.mxu0 0.0
    %6170 = vmatpush2.msra.mxu0 0.0
    %6171 = vmatprep.mubr.f32.mxu0 0.0
    %v6172 = vand.u32 %v4585, 4294901760
    %6173 = vmatmul.mubr.f32.gmra.mxu0 %v6172
    %v6174 = vpop.f32.mrf.mxu0
    %v6175 = vadd.f32 %v6094, %v6174
    %v6176 = vpop.f32.mrf.mxu0
    %6177 = vmatprep.mubr.f32.mxu0 0.0
    %v6178 = vand.u32 %v4588, 4294901760
    %6179 = vmatmul.mubr.f32.gmra.mxu0 %v6178
    %v6180 = vpop.f32.mrf.mxu0
    %v6181 = vadd.f32 %v6100, %v6180
    %v6182 = vpop.f32.mrf.mxu0
    %6183 = vdwg.mxu0
    %s6184 = scalar_lea.vmem %s8, 96
    %v6185 = vld [vmem:[%s6184] sm:$0xff]
    %v6186 = vld [vmem:[%s6184 + $0x8] sm:$0xff]
    %v6187 = vld [vmem:[%s6184 + $0x10] sm:$0xff]
    %v6188 = vld [vmem:[%s6184 + $0x18] sm:$0xff]
    %6189 = vmatprep.subr.mxu0 0.0
    %6190 = vmatpush1.msra.mxu0 0.0
    %6191 = vmatprep.subr.mxu0 0.0
    %6192 = vmatpush1.msra.mxu0 0.0
    %6193 = vmatprep.subr.mxu0 0.0
    %6194 = vmatpush1.msra.mxu0 0.0
    %6195 = vmatprep.subr.mxu0 0.0
    %6196 = vmatpush1.msra.mxu0 0.0
    %6197 = vmatprep.subr.mxu0 0.0
    %6198 = vmatpush1.msra.mxu0 0.0
    %6199 = vmatprep.subr.mxu0 0.0
    %6200 = vmatpush1.msra.mxu0 0.0
    %6201 = vmatprep.subr.mxu0 0.0
    %6202 = vmatpush1.msra.mxu0 0.0
    %6203 = vmatprep.subr.mxu0 0.0
    %6204 = vmatpush1.msra.mxu0 0.0
    %6205 = vmatprep.subr.mxu0 0.0
    %6206 = vmatpush1.msra.mxu0 0.0
    %6207 = vmatprep.subr.mxu0 0.0
    %6208 = vmatpush1.msra.mxu0 0.0
    %6209 = vmatprep.subr.mxu0 0.0
    %6210 = vmatpush1.msra.mxu0 0.0
    %6211 = vmatprep.subr.mxu0 0.0
    %6212 = vmatpush1.msra.mxu0 0.0
    %6213 = vmatprep.subr.mxu0 0.0
    %v6214 = vand.u32 %v6188, 4294901760
    %6215 = vmatpush1.msra.mxu0 %v6214
    %6216 = vmatprep.subr.mxu0 0.0
    %v6217 = vand.u32 %v6187, 4294901760
    %6218 = vmatpush1.msra.mxu0 %v6217
    %6219 = vmatprep.subr.mxu0 0.0
    %v6220 = vand.u32 %v6186, 4294901760
    %6221 = vmatpush1.msra.mxu0 %v6220
    %6222 = vmatprep.subr.mxu0 0.0
    %v6223 = vand.u32 %v6185, 4294901760
    %6224 = vmatpush1.msra.mxu0 %v6223
    %6225 = vmatprep.subr.mxu0 0.0
    %6226 = vmatpush2.msra.mxu0 0.0
    %6227 = vmatprep.subr.mxu0 0.0
    %6228 = vmatpush2.msra.mxu0 0.0
    %6229 = vmatprep.subr.mxu0 0.0
    %6230 = vmatpush2.msra.mxu0 0.0
    %6231 = vmatprep.subr.mxu0 0.0
    %6232 = vmatpush2.msra.mxu0 0.0
    %6233 = vmatprep.subr.mxu0 0.0
    %6234 = vmatpush2.msra.mxu0 0.0
    %6235 = vmatprep.subr.mxu0 0.0
    %6236 = vmatpush2.msra.mxu0 0.0
    %6237 = vmatprep.subr.mxu0 0.0
    %6238 = vmatpush2.msra.mxu0 0.0
    %6239 = vmatprep.subr.mxu0 0.0
    %6240 = vmatpush2.msra.mxu0 0.0
    %6241 = vmatprep.subr.mxu0 0.0
    %6242 = vmatpush2.msra.mxu0 0.0
    %6243 = vmatprep.subr.mxu0 0.0
    %6244 = vmatpush2.msra.mxu0 0.0
    %6245 = vmatprep.subr.mxu0 0.0
    %6246 = vmatpush2.msra.mxu0 0.0
    %6247 = vmatprep.subr.mxu0 0.0
    %6248 = vmatpush2.msra.mxu0 0.0
    %6249 = vmatprep.subr.mxu0 0.0
    %6250 = vmatpush2.msra.mxu0 0.0
    %6251 = vmatprep.subr.mxu0 0.0
    %6252 = vmatpush2.msra.mxu0 0.0
    %6253 = vmatprep.subr.mxu0 0.0
    %6254 = vmatpush2.msra.mxu0 0.0
    %6255 = vmatprep.subr.mxu0 0.0
    %6256 = vmatpush2.msra.mxu0 0.0
    %6257 = vmatprep.mubr.f32.mxu0 0.0
    %v6258 = vand.u32 %v4585, 4294901760
    %v6259 = vsub.f32 %v4585, %v6258
    %v6260 = vand.u32 %v6259, 4294901760
    %v6261 = vsub.f32 %v6259, %v6260
    %v6262 = vand.u32 %v6261, 4294901760
    %6263 = vmatmul.mubr.f32.gmra.mxu0 %v6262
    %v6264 = vpop.f32.mrf.mxu0
    %v6265 = vadd.f32 0.0, %v6264
    %v6266 = vpop.f32.mrf.mxu0
    %6267 = vmatprep.mubr.f32.mxu0 0.0
    %v6268 = vand.u32 %v4588, 4294901760
    %v6269 = vsub.f32 %v4588, %v6268
    %v6270 = vand.u32 %v6269, 4294901760
    %v6271 = vsub.f32 %v6269, %v6270
    %v6272 = vand.u32 %v6271, 4294901760
    %6273 = vmatmul.mubr.f32.gmra.mxu0 %v6272
    %v6274 = vpop.f32.mrf.mxu0
    %v6275 = vadd.f32 0.0, %v6274
    %v6276 = vpop.f32.mrf.mxu0
    %6277 = vdwg.mxu0
    %6278 = vmatprep.subr.mxu0 0.0
    %6279 = vmatpush1.msra.mxu0 0.0
    %6280 = vmatprep.subr.mxu0 0.0
    %6281 = vmatpush1.msra.mxu0 0.0
    %6282 = vmatprep.subr.mxu0 0.0
    %6283 = vmatpush1.msra.mxu0 0.0
    %6284 = vmatprep.subr.mxu0 0.0
    %6285 = vmatpush1.msra.mxu0 0.0
    %6286 = vmatprep.subr.mxu0 0.0
    %6287 = vmatpush1.msra.mxu0 0.0
    %6288 = vmatprep.subr.mxu0 0.0
    %6289 = vmatpush1.msra.mxu0 0.0
    %6290 = vmatprep.subr.mxu0 0.0
    %6291 = vmatpush1.msra.mxu0 0.0
    %6292 = vmatprep.subr.mxu0 0.0
    %6293 = vmatpush1.msra.mxu0 0.0
    %6294 = vmatprep.subr.mxu0 0.0
    %6295 = vmatpush1.msra.mxu0 0.0
    %6296 = vmatprep.subr.mxu0 0.0
    %6297 = vmatpush1.msra.mxu0 0.0
    %6298 = vmatprep.subr.mxu0 0.0
    %6299 = vmatpush1.msra.mxu0 0.0
    %6300 = vmatprep.subr.mxu0 0.0
    %6301 = vmatpush1.msra.mxu0 0.0
    %6302 = vmatprep.subr.mxu0 0.0
    %v6303 = vand.u32 %v6188, 4294901760
    %v6304 = vsub.f32 %v6188, %v6303
    %v6305 = vand.u32 %v6304, 4294901760
    %v6306 = vsub.f32 %v6304, %v6305
    %v6307 = vand.u32 %v6306, 4294901760
    %6308 = vmatpush1.msra.mxu0 %v6307
    %6309 = vmatprep.subr.mxu0 0.0
    %v6310 = vand.u32 %v6187, 4294901760
    %v6311 = vsub.f32 %v6187, %v6310
    %v6312 = vand.u32 %v6311, 4294901760
    %v6313 = vsub.f32 %v6311, %v6312
    %v6314 = vand.u32 %v6313, 4294901760
    %6315 = vmatpush1.msra.mxu0 %v6314
    %6316 = vmatprep.subr.mxu0 0.0
    %v6317 = vand.u32 %v6186, 4294901760
    %v6318 = vsub.f32 %v6186, %v6317
    %v6319 = vand.u32 %v6318, 4294901760
    %v6320 = vsub.f32 %v6318, %v6319
    %v6321 = vand.u32 %v6320, 4294901760
    %6322 = vmatpush1.msra.mxu0 %v6321
    %6323 = vmatprep.subr.mxu0 0.0
    %v6324 = vand.u32 %v6185, 4294901760
    %v6325 = vsub.f32 %v6185, %v6324
    %v6326 = vand.u32 %v6325, 4294901760
    %v6327 = vsub.f32 %v6325, %v6326
    %v6328 = vand.u32 %v6327, 4294901760
    %6329 = vmatpush1.msra.mxu0 %v6328
    %6330 = vmatprep.subr.mxu0 0.0
    %6331 = vmatpush2.msra.mxu0 0.0
    %6332 = vmatprep.subr.mxu0 0.0
    %6333 = vmatpush2.msra.mxu0 0.0
    %6334 = vmatprep.subr.mxu0 0.0
    %6335 = vmatpush2.msra.mxu0 0.0
    %6336 = vmatprep.subr.mxu0 0.0
    %6337 = vmatpush2.msra.mxu0 0.0
    %6338 = vmatprep.subr.mxu0 0.0
    %6339 = vmatpush2.msra.mxu0 0.0
    %6340 = vmatprep.subr.mxu0 0.0
    %6341 = vmatpush2.msra.mxu0 0.0
    %6342 = vmatprep.subr.mxu0 0.0
    %6343 = vmatpush2.msra.mxu0 0.0
    %6344 = vmatprep.subr.mxu0 0.0
    %6345 = vmatpush2.msra.mxu0 0.0
    %6346 = vmatprep.subr.mxu0 0.0
    %6347 = vmatpush2.msra.mxu0 0.0
    %6348 = vmatprep.subr.mxu0 0.0
    %6349 = vmatpush2.msra.mxu0 0.0
    %6350 = vmatprep.subr.mxu0 0.0
    %6351 = vmatpush2.msra.mxu0 0.0
    %6352 = vmatprep.subr.mxu0 0.0
    %6353 = vmatpush2.msra.mxu0 0.0
    %6354 = vmatprep.subr.mxu0 0.0
    %6355 = vmatpush2.msra.mxu0 0.0
    %6356 = vmatprep.subr.mxu0 0.0
    %6357 = vmatpush2.msra.mxu0 0.0
    %6358 = vmatprep.subr.mxu0 0.0
    %6359 = vmatpush2.msra.mxu0 0.0
    %6360 = vmatprep.subr.mxu0 0.0
    %6361 = vmatpush2.msra.mxu0 0.0
    %6362 = vmatprep.mubr.f32.mxu0 0.0
    %v6363 = vand.u32 %v4585, 4294901760
    %6364 = vmatmul.mubr.f32.gmra.mxu0 %v6363
    %v6365 = vpop.f32.mrf.mxu0
    %v6366 = vadd.f32 %v6265, %v6365
    %v6367 = vpop.f32.mrf.mxu0
    %6368 = vmatprep.mubr.f32.mxu0 0.0
    %v6369 = vand.u32 %v4588, 4294901760
    %6370 = vmatmul.mubr.f32.gmra.mxu0 %v6369
    %v6371 = vpop.f32.mrf.mxu0
    %v6372 = vadd.f32 %v6275, %v6371
    %v6373 = vpop.f32.mrf.mxu0
    %6374 = vdwg.mxu0
    %6375 = vmatprep.subr.mxu0 0.0
    %6376 = vmatpush1.msra.mxu0 0.0
    %6377 = vmatprep.subr.mxu0 0.0
    %6378 = vmatpush1.msra.mxu0 0.0
    %6379 = vmatprep.subr.mxu0 0.0
    %6380 = vmatpush1.msra.mxu0 0.0
    %6381 = vmatprep.subr.mxu0 0.0
    %6382 = vmatpush1.msra.mxu0 0.0
    %6383 = vmatprep.subr.mxu0 0.0
    %6384 = vmatpush1.msra.mxu0 0.0
    %6385 = vmatprep.subr.mxu0 0.0
    %6386 = vmatpush1.msra.mxu0 0.0
    %6387 = vmatprep.subr.mxu0 0.0
    %6388 = vmatpush1.msra.mxu0 0.0
    %6389 = vmatprep.subr.mxu0 0.0
    %6390 = vmatpush1.msra.mxu0 0.0
    %6391 = vmatprep.subr.mxu0 0.0
    %6392 = vmatpush1.msra.mxu0 0.0
    %6393 = vmatprep.subr.mxu0 0.0
    %6394 = vmatpush1.msra.mxu0 0.0
    %6395 = vmatprep.subr.mxu0 0.0
    %6396 = vmatpush1.msra.mxu0 0.0
    %6397 = vmatprep.subr.mxu0 0.0
    %6398 = vmatpush1.msra.mxu0 0.0
    %6399 = vmatprep.subr.mxu0 0.0
    %v6400 = vand.u32 %v6188, 4294901760
    %v6401 = vsub.f32 %v6188, %v6400
    %6402 = vmatpush1.msra.mxu0 %v6401
    %6403 = vmatprep.subr.mxu0 0.0
    %v6404 = vand.u32 %v6187, 4294901760
    %v6405 = vsub.f32 %v6187, %v6404
    %6406 = vmatpush1.msra.mxu0 %v6405
    %6407 = vmatprep.subr.mxu0 0.0
    %v6408 = vand.u32 %v6186, 4294901760
    %v6409 = vsub.f32 %v6186, %v6408
    %6410 = vmatpush1.msra.mxu0 %v6409
    %6411 = vmatprep.subr.mxu0 0.0
    %v6412 = vand.u32 %v6185, 4294901760
    %v6413 = vsub.f32 %v6185, %v6412
    %6414 = vmatpush1.msra.mxu0 %v6413
    %6415 = vmatprep.subr.mxu0 0.0
    %6416 = vmatpush2.msra.mxu0 0.0
    %6417 = vmatprep.subr.mxu0 0.0
    %6418 = vmatpush2.msra.mxu0 0.0
    %6419 = vmatprep.subr.mxu0 0.0
    %6420 = vmatpush2.msra.mxu0 0.0
    %6421 = vmatprep.subr.mxu0 0.0
    %6422 = vmatpush2.msra.mxu0 0.0
    %6423 = vmatprep.subr.mxu0 0.0
    %6424 = vmatpush2.msra.mxu0 0.0
    %6425 = vmatprep.subr.mxu0 0.0
    %6426 = vmatpush2.msra.mxu0 0.0
    %6427 = vmatprep.subr.mxu0 0.0
    %6428 = vmatpush2.msra.mxu0 0.0
    %6429 = vmatprep.subr.mxu0 0.0
    %6430 = vmatpush2.msra.mxu0 0.0
    %6431 = vmatprep.subr.mxu0 0.0
    %6432 = vmatpush2.msra.mxu0 0.0
    %6433 = vmatprep.subr.mxu0 0.0
    %6434 = vmatpush2.msra.mxu0 0.0
    %6435 = vmatprep.subr.mxu0 0.0
    %6436 = vmatpush2.msra.mxu0 0.0
    %6437 = vmatprep.subr.mxu0 0.0
    %6438 = vmatpush2.msra.mxu0 0.0
    %6439 = vmatprep.subr.mxu0 0.0
    %6440 = vmatpush2.msra.mxu0 0.0
    %6441 = vmatprep.subr.mxu0 0.0
    %6442 = vmatpush2.msra.mxu0 0.0
    %6443 = vmatprep.subr.mxu0 0.0
    %6444 = vmatpush2.msra.mxu0 0.0
    %6445 = vmatprep.subr.mxu0 0.0
    %6446 = vmatpush2.msra.mxu0 0.0
    %6447 = vmatprep.mubr.f32.mxu0 0.0
    %v6448 = vand.u32 %v4585, 4294901760
    %v6449 = vsub.f32 %v4585, %v6448
    %6450 = vmatmul.mubr.f32.gmra.mxu0 %v6449
    %v6451 = vpop.f32.mrf.mxu0
    %v6452 = vadd.f32 %v6366, %v6451
    %v6453 = vpop.f32.mrf.mxu0
    %6454 = vmatprep.mubr.f32.mxu0 0.0
    %v6455 = vand.u32 %v4588, 4294901760
    %v6456 = vsub.f32 %v4588, %v6455
    %6457 = vmatmul.mubr.f32.gmra.mxu0 %v6456
    %v6458 = vpop.f32.mrf.mxu0
    %v6459 = vadd.f32 %v6372, %v6458
    %v6460 = vpop.f32.mrf.mxu0
    %6461 = vdwg.mxu0
    %6462 = vmatprep.subr.mxu0 0.0
    %6463 = vmatpush1.msra.mxu0 0.0
    %6464 = vmatprep.subr.mxu0 0.0
    %6465 = vmatpush1.msra.mxu0 0.0
    %6466 = vmatprep.subr.mxu0 0.0
    %6467 = vmatpush1.msra.mxu0 0.0
    %6468 = vmatprep.subr.mxu0 0.0
    %6469 = vmatpush1.msra.mxu0 0.0
    %6470 = vmatprep.subr.mxu0 0.0
    %6471 = vmatpush1.msra.mxu0 0.0
    %6472 = vmatprep.subr.mxu0 0.0
    %6473 = vmatpush1.msra.mxu0 0.0
    %6474 = vmatprep.subr.mxu0 0.0
    %6475 = vmatpush1.msra.mxu0 0.0
    %6476 = vmatprep.subr.mxu0 0.0
    %6477 = vmatpush1.msra.mxu0 0.0
    %6478 = vmatprep.subr.mxu0 0.0
    %6479 = vmatpush1.msra.mxu0 0.0
    %6480 = vmatprep.subr.mxu0 0.0
    %6481 = vmatpush1.msra.mxu0 0.0
    %6482 = vmatprep.subr.mxu0 0.0
    %6483 = vmatpush1.msra.mxu0 0.0
    %6484 = vmatprep.subr.mxu0 0.0
    %6485 = vmatpush1.msra.mxu0 0.0
    %6486 = vmatprep.subr.mxu0 0.0
    %v6487 = vand.u32 %v6188, 4294901760
    %6488 = vmatpush1.msra.mxu0 %v6487
    %6489 = vmatprep.subr.mxu0 0.0
    %v6490 = vand.u32 %v6187, 4294901760
    %6491 = vmatpush1.msra.mxu0 %v6490
    %6492 = vmatprep.subr.mxu0 0.0
    %v6493 = vand.u32 %v6186, 4294901760
    %6494 = vmatpush1.msra.mxu0 %v6493
    %6495 = vmatprep.subr.mxu0 0.0
    %v6496 = vand.u32 %v6185, 4294901760
    %6497 = vmatpush1.msra.mxu0 %v6496
    %6498 = vmatprep.subr.mxu0 0.0
    %6499 = vmatpush2.msra.mxu0 0.0
    %6500 = vmatprep.subr.mxu0 0.0
    %6501 = vmatpush2.msra.mxu0 0.0
    %6502 = vmatprep.subr.mxu0 0.0
    %6503 = vmatpush2.msra.mxu0 0.0
    %6504 = vmatprep.subr.mxu0 0.0
    %6505 = vmatpush2.msra.mxu0 0.0
    %6506 = vmatprep.subr.mxu0 0.0
    %6507 = vmatpush2.msra.mxu0 0.0
    %6508 = vmatprep.subr.mxu0 0.0
    %6509 = vmatpush2.msra.mxu0 0.0
    %6510 = vmatprep.subr.mxu0 0.0
    %6511 = vmatpush2.msra.mxu0 0.0
    %6512 = vmatprep.subr.mxu0 0.0
    %6513 = vmatpush2.msra.mxu0 0.0
    %6514 = vmatprep.subr.mxu0 0.0
    %6515 = vmatpush2.msra.mxu0 0.0
    %6516 = vmatprep.subr.mxu0 0.0
    %6517 = vmatpush2.msra.mxu0 0.0
    %6518 = vmatprep.subr.mxu0 0.0
    %6519 = vmatpush2.msra.mxu0 0.0
    %6520 = vmatprep.subr.mxu0 0.0
    %6521 = vmatpush2.msra.mxu0 0.0
    %6522 = vmatprep.subr.mxu0 0.0
    %6523 = vmatpush2.msra.mxu0 0.0
    %6524 = vmatprep.subr.mxu0 0.0
    %6525 = vmatpush2.msra.mxu0 0.0
    %6526 = vmatprep.subr.mxu0 0.0
    %6527 = vmatpush2.msra.mxu0 0.0
    %6528 = vmatprep.subr.mxu0 0.0
    %6529 = vmatpush2.msra.mxu0 0.0
    %6530 = vmatprep.mubr.f32.mxu0 0.0
    %v6531 = vand.u32 %v4585, 4294901760
    %v6532 = vsub.f32 %v4585, %v6531
    %v6533 = vand.u32 %v6532, 4294901760
    %6534 = vmatmul.mubr.f32.gmra.mxu0 %v6533
    %v6535 = vpop.f32.mrf.mxu0
    %v6536 = vadd.f32 %v6452, %v6535
    %v6537 = vpop.f32.mrf.mxu0
    %6538 = vmatprep.mubr.f32.mxu0 0.0
    %v6539 = vand.u32 %v4588, 4294901760
    %v6540 = vsub.f32 %v4588, %v6539
    %v6541 = vand.u32 %v6540, 4294901760
    %6542 = vmatmul.mubr.f32.gmra.mxu0 %v6541
    %v6543 = vpop.f32.mrf.mxu0
    %v6544 = vadd.f32 %v6459, %v6543
    %v6545 = vpop.f32.mrf.mxu0
    %6546 = vdwg.mxu0
    %6547 = vmatprep.subr.mxu0 0.0
    %6548 = vmatpush1.msra.mxu0 0.0
    %6549 = vmatprep.subr.mxu0 0.0
    %6550 = vmatpush1.msra.mxu0 0.0
    %6551 = vmatprep.subr.mxu0 0.0
    %6552 = vmatpush1.msra.mxu0 0.0
    %6553 = vmatprep.subr.mxu0 0.0
    %6554 = vmatpush1.msra.mxu0 0.0
    %6555 = vmatprep.subr.mxu0 0.0
    %6556 = vmatpush1.msra.mxu0 0.0
    %6557 = vmatprep.subr.mxu0 0.0
    %6558 = vmatpush1.msra.mxu0 0.0
    %6559 = vmatprep.subr.mxu0 0.0
    %6560 = vmatpush1.msra.mxu0 0.0
    %6561 = vmatprep.subr.mxu0 0.0
    %6562 = vmatpush1.msra.mxu0 0.0
    %6563 = vmatprep.subr.mxu0 0.0
    %6564 = vmatpush1.msra.mxu0 0.0
    %6565 = vmatprep.subr.mxu0 0.0
    %6566 = vmatpush1.msra.mxu0 0.0
    %6567 = vmatprep.subr.mxu0 0.0
    %6568 = vmatpush1.msra.mxu0 0.0
    %6569 = vmatprep.subr.mxu0 0.0
    %6570 = vmatpush1.msra.mxu0 0.0
    %6571 = vmatprep.subr.mxu0 0.0
    %v6572 = vand.u32 %v6188, 4294901760
    %v6573 = vsub.f32 %v6188, %v6572
    %v6574 = vand.u32 %v6573, 4294901760
    %6575 = vmatpush1.msra.mxu0 %v6574
    %6576 = vmatprep.subr.mxu0 0.0
    %v6577 = vand.u32 %v6187, 4294901760
    %v6578 = vsub.f32 %v6187, %v6577
    %v6579 = vand.u32 %v6578, 4294901760
    %6580 = vmatpush1.msra.mxu0 %v6579
    %6581 = vmatprep.subr.mxu0 0.0
    %v6582 = vand.u32 %v6186, 4294901760
    %v6583 = vsub.f32 %v6186, %v6582
    %v6584 = vand.u32 %v6583, 4294901760
    %6585 = vmatpush1.msra.mxu0 %v6584
    %6586 = vmatprep.subr.mxu0 0.0
    %v6587 = vand.u32 %v6185, 4294901760
    %v6588 = vsub.f32 %v6185, %v6587
    %v6589 = vand.u32 %v6588, 4294901760
    %6590 = vmatpush1.msra.mxu0 %v6589
    %6591 = vmatprep.subr.mxu0 0.0
    %6592 = vmatpush2.msra.mxu0 0.0
    %6593 = vmatprep.subr.mxu0 0.0
    %6594 = vmatpush2.msra.mxu0 0.0
    %6595 = vmatprep.subr.mxu0 0.0
    %6596 = vmatpush2.msra.mxu0 0.0
    %6597 = vmatprep.subr.mxu0 0.0
    %6598 = vmatpush2.msra.mxu0 0.0
    %6599 = vmatprep.subr.mxu0 0.0
    %6600 = vmatpush2.msra.mxu0 0.0
    %6601 = vmatprep.subr.mxu0 0.0
    %6602 = vmatpush2.msra.mxu0 0.0
    %6603 = vmatprep.subr.mxu0 0.0
    %6604 = vmatpush2.msra.mxu0 0.0
    %6605 = vmatprep.subr.mxu0 0.0
    %6606 = vmatpush2.msra.mxu0 0.0
    %6607 = vmatprep.subr.mxu0 0.0
    %6608 = vmatpush2.msra.mxu0 0.0
    %6609 = vmatprep.subr.mxu0 0.0
    %6610 = vmatpush2.msra.mxu0 0.0
    %6611 = vmatprep.subr.mxu0 0.0
    %6612 = vmatpush2.msra.mxu0 0.0
    %6613 = vmatprep.subr.mxu0 0.0
    %6614 = vmatpush2.msra.mxu0 0.0
    %6615 = vmatprep.subr.mxu0 0.0
    %6616 = vmatpush2.msra.mxu0 0.0
    %6617 = vmatprep.subr.mxu0 0.0
    %6618 = vmatpush2.msra.mxu0 0.0
    %6619 = vmatprep.subr.mxu0 0.0
    %6620 = vmatpush2.msra.mxu0 0.0
    %6621 = vmatprep.subr.mxu0 0.0
    %6622 = vmatpush2.msra.mxu0 0.0
    %6623 = vmatprep.mubr.f32.mxu0 0.0
    %v6624 = vand.u32 %v4585, 4294901760
    %6625 = vmatmul.mubr.f32.gmra.mxu0 %v6624
    %v6626 = vpop.f32.mrf.mxu0
    %v6627 = vadd.f32 %v6536, %v6626
    %v6628 = vpop.f32.mrf.mxu0
    %6629 = vmatprep.mubr.f32.mxu0 0.0
    %v6630 = vand.u32 %v4588, 4294901760
    %6631 = vmatmul.mubr.f32.gmra.mxu0 %v6630
    %v6632 = vpop.f32.mrf.mxu0
    %v6633 = vadd.f32 %v6544, %v6632
    %v6634 = vpop.f32.mrf.mxu0
    %6635 = vdwg.mxu0
    %6636 = vmatprep.subr.mxu0 0.0
    %6637 = vmatpush1.msra.mxu0 0.0
    %6638 = vmatprep.subr.mxu0 0.0
    %6639 = vmatpush1.msra.mxu0 0.0
    %6640 = vmatprep.subr.mxu0 0.0
    %6641 = vmatpush1.msra.mxu0 0.0
    %6642 = vmatprep.subr.mxu0 0.0
    %6643 = vmatpush1.msra.mxu0 0.0
    %6644 = vmatprep.subr.mxu0 0.0
    %6645 = vmatpush1.msra.mxu0 0.0
    %6646 = vmatprep.subr.mxu0 0.0
    %6647 = vmatpush1.msra.mxu0 0.0
    %6648 = vmatprep.subr.mxu0 0.0
    %6649 = vmatpush1.msra.mxu0 0.0
    %6650 = vmatprep.subr.mxu0 0.0
    %6651 = vmatpush1.msra.mxu0 0.0
    %6652 = vmatprep.subr.mxu0 0.0
    %6653 = vmatpush1.msra.mxu0 0.0
    %6654 = vmatprep.subr.mxu0 0.0
    %6655 = vmatpush1.msra.mxu0 0.0
    %6656 = vmatprep.subr.mxu0 0.0
    %6657 = vmatpush1.msra.mxu0 0.0
    %6658 = vmatprep.subr.mxu0 0.0
    %6659 = vmatpush1.msra.mxu0 0.0
    %6660 = vmatprep.subr.mxu0 0.0
    %v6661 = vand.u32 %v6188, 4294901760
    %6662 = vmatpush1.msra.mxu0 %v6661
    %6663 = vmatprep.subr.mxu0 0.0
    %v6664 = vand.u32 %v6187, 4294901760
    %6665 = vmatpush1.msra.mxu0 %v6664
    %6666 = vmatprep.subr.mxu0 0.0
    %v6667 = vand.u32 %v6186, 4294901760
    %6668 = vmatpush1.msra.mxu0 %v6667
    %6669 = vmatprep.subr.mxu0 0.0
    %v6670 = vand.u32 %v6185, 4294901760
    %6671 = vmatpush1.msra.mxu0 %v6670
    %6672 = vmatprep.subr.mxu0 0.0
    %6673 = vmatpush2.msra.mxu0 0.0
    %6674 = vmatprep.subr.mxu0 0.0
    %6675 = vmatpush2.msra.mxu0 0.0
    %6676 = vmatprep.subr.mxu0 0.0
    %6677 = vmatpush2.msra.mxu0 0.0
    %6678 = vmatprep.subr.mxu0 0.0
    %6679 = vmatpush2.msra.mxu0 0.0
    %6680 = vmatprep.subr.mxu0 0.0
    %6681 = vmatpush2.msra.mxu0 0.0
    %6682 = vmatprep.subr.mxu0 0.0
    %6683 = vmatpush2.msra.mxu0 0.0
    %6684 = vmatprep.subr.mxu0 0.0
    %6685 = vmatpush2.msra.mxu0 0.0
    %6686 = vmatprep.subr.mxu0 0.0
    %6687 = vmatpush2.msra.mxu0 0.0
    %6688 = vmatprep.subr.mxu0 0.0
    %6689 = vmatpush2.msra.mxu0 0.0
    %6690 = vmatprep.subr.mxu0 0.0
    %6691 = vmatpush2.msra.mxu0 0.0
    %6692 = vmatprep.subr.mxu0 0.0
    %6693 = vmatpush2.msra.mxu0 0.0
    %6694 = vmatprep.subr.mxu0 0.0
    %6695 = vmatpush2.msra.mxu0 0.0
    %6696 = vmatprep.subr.mxu0 0.0
    %6697 = vmatpush2.msra.mxu0 0.0
    %6698 = vmatprep.subr.mxu0 0.0
    %6699 = vmatpush2.msra.mxu0 0.0
    %6700 = vmatprep.subr.mxu0 0.0
    %6701 = vmatpush2.msra.mxu0 0.0
    %6702 = vmatprep.subr.mxu0 0.0
    %6703 = vmatpush2.msra.mxu0 0.0
    %6704 = vmatprep.mubr.f32.mxu0 0.0
    %v6705 = vand.u32 %v4585, 4294901760
    %6706 = vmatmul.mubr.f32.gmra.mxu0 %v6705
    %v6707 = vpop.f32.mrf.mxu0
    %v6708 = vadd.f32 %v6627, %v6707
    %v6709 = vpop.f32.mrf.mxu0
    %6710 = vmatprep.mubr.f32.mxu0 0.0
    %v6711 = vand.u32 %v4588, 4294901760
    %6712 = vmatmul.mubr.f32.gmra.mxu0 %v6711
    %v6713 = vpop.f32.mrf.mxu0
    %v6714 = vadd.f32 %v6633, %v6713
    %v6715 = vpop.f32.mrf.mxu0
    %6716 = vdwg.mxu0
    %v6717 = vmul.f32 %v5109, 0.25
    %vm6718 = vcmask 64512
    %v6719 = vsel %vm6718, %v6717, 0.0
    %v6720 = vrot.slane %v6719, 4
    %v6721 = vadd.f32 %v6719, %v6720
    %v6722 = vrot.slane %v6721, 2
    %v6723 = vadd.f32 %v6721, %v6722
    %v6724 = vrot.slane %v6723, 1
    %v6725 = vadd.f32 %v6723, %v6724
    %v6726 = vmul.f32 %v6725, %v6725
    %v6727 = vsel %vm6718, %v6726, 0.0
    %6728 = vadd.xlane.f32.xlu0 %v6727
    %v6729 = vpop.xlane.xlu0 %6728
    %v6730 = vadd.f32 %v6729, 1e-07
    %v6731 = vrsqrt.pop %v6730
    %v6732 = vmul.f32 %v6725, %v6731
    %v6733 = vmul.f32 %v5642, 0.25
    %v6734 = vsel %vm6718, %v6733, 0.0
    %v6735 = vrot.slane %v6734, 4
    %v6736 = vadd.f32 %v6734, %v6735
    %v6737 = vrot.slane %v6736, 2
    %v6738 = vadd.f32 %v6736, %v6737
    %v6739 = vrot.slane %v6738, 1
    %v6740 = vadd.f32 %v6738, %v6739
    %v6741 = vmul.f32 %v6740, %v6740
    %v6742 = vsel %vm6718, %v6741, 0.0
    %6743 = vadd.xlane.f32.xlu0 %v6742
    %v6744 = vpop.xlane.xlu0 %6743
    %v6745 = vadd.f32 %v6744, 1e-07
    %v6746 = vrsqrt.pop %v6745
    %v6747 = vmul.f32 %v6740, %v6746
    %v6748 = vmul.f32 %v6175, 0.25
    %v6749 = vsel %vm6718, %v6748, 0.0
    %v6750 = vrot.slane %v6749, 4
    %v6751 = vadd.f32 %v6749, %v6750
    %v6752 = vrot.slane %v6751, 2
    %v6753 = vadd.f32 %v6751, %v6752
    %v6754 = vrot.slane %v6753, 1
    %v6755 = vadd.f32 %v6753, %v6754
    %v6756 = vmul.f32 %v6755, %v6755
    %v6757 = vsel %vm6718, %v6756, 0.0
    %6758 = vadd.xlane.f32.xlu0 %v6757
    %v6759 = vpop.xlane.xlu0 %6758
    %v6760 = vadd.f32 %v6759, 1e-07
    %v6761 = vrsqrt.pop %v6760
    %v6762 = vmul.f32 %v6755, %v6761
    %v6763 = vmul.f32 %v6708, 0.25
    %v6764 = vsel %vm6718, %v6763, 0.0
    %v6765 = vrot.slane %v6764, 4
    %v6766 = vadd.f32 %v6764, %v6765
    %v6767 = vrot.slane %v6766, 2
    %v6768 = vadd.f32 %v6766, %v6767
    %v6769 = vrot.slane %v6768, 1
    %v6770 = vadd.f32 %v6768, %v6769
    %v6771 = vmul.f32 %v6770, %v6770
    %v6772 = vsel %vm6718, %v6771, 0.0
    %6773 = vadd.xlane.f32.xlu0 %v6772
    %v6774 = vpop.xlane.xlu0 %6773
    %v6775 = vadd.f32 %v6774, 1e-07
    %v6776 = vrsqrt.pop %v6775
    %v6777 = vmul.f32 %v6770, %v6776
    %v6778 = vmul.f32 %v6732, %v5109
    %v6779 = vsel %vm6718, %v6778, 0.0
    %6780 = vadd.xlane.f32.xlu0 %v6779
    %v6781 = vpop.xlane.xlu0 %6780
    %v6782 = vmul.f32 %v6747, %v5642
    %v6783 = vsel %vm6718, %v6782, 0.0
    %6784 = vadd.xlane.f32.xlu0 %v6783
    %v6785 = vpop.xlane.xlu0 %6784
    %v6786 = vmul.f32 %v6762, %v6175
    %v6787 = vsel %vm6718, %v6786, 0.0
    %6788 = vadd.xlane.f32.xlu0 %v6787
    %v6789 = vpop.xlane.xlu0 %6788
    %v6790 = vmul.f32 %v6777, %v6708
    %v6791 = vsel %vm6718, %v6790, 0.0
    %6792 = vadd.xlane.f32.xlu0 %v6791
    %v6793 = vpop.xlane.xlu0 %6792
    %v6794 = vmax.f32 %v6781, %v6785
    %v6795 = vmax.f32 %v6794, %v6789
    %v6796 = vmax.f32 %v6795, %v6793
    %v6797 = vsub.f32 %v6781, %v6796
    %v6798 = vmul.f32 %v6797, 1.442695
    %v6799 = vpow.pop %v6798
    %v6800 = vsub.f32 %v6785, %v6796
    %v6801 = vmul.f32 %v6800, 1.442695
    %v6802 = vpow.pop %v6801
    %v6803 = vsub.f32 %v6789, %v6796
    %v6804 = vmul.f32 %v6803, 1.442695
    %v6805 = vpow.pop %v6804
    %v6806 = vsub.f32 %v6793, %v6796
    %v6807 = vmul.f32 %v6806, 1.442695
    %v6808 = vpow.pop %v6807
    %v6809 = vadd.f32 %v6799, %v6802
    %v6810 = vadd.f32 %v6809, %v6805
    %v6811 = vadd.f32 %v6810, %v6808
    %v6812 = vrcp.pop %v6811
    %v6813 = vmul.f32 %v6799, %v6812
    %v6814 = vmul.f32 %v6813, %v5109
    %v6815 = vsel %vm6718, %v6814, 0.0
    %v6816 = vrot.slane %v6815, 4
    %v6817 = vadd.f32 %v6815, %v6816
    %v6818 = vrot.slane %v6817, 2
    %v6819 = vadd.f32 %v6817, %v6818
    %v6820 = vrot.slane %v6819, 1
    %v6821 = vadd.f32 %v6819, %v6820
    %v6822 = vmul.f32 %v6821, %v6821
    %v6823 = vsel %vm6718, %v6822, 0.0
    %6824 = vadd.xlane.f32.xlu0 %v6823
    %v6825 = vpop.xlane.xlu0 %6824
    %v6826 = vadd.f32 %v6825, 1e-07
    %v6827 = vrsqrt.pop %v6826
    %v6828 = vmul.f32 %v6821, %v6827
    %v6829 = vmul.f32 %v6802, %v6812
    %v6830 = vmul.f32 %v6829, %v5642
    %v6831 = vsel %vm6718, %v6830, 0.0
    %v6832 = vrot.slane %v6831, 4
    %v6833 = vadd.f32 %v6831, %v6832
    %v6834 = vrot.slane %v6833, 2
    %v6835 = vadd.f32 %v6833, %v6834
    %v6836 = vrot.slane %v6835, 1
    %v6837 = vadd.f32 %v6835, %v6836
    %v6838 = vmul.f32 %v6837, %v6837
    %v6839 = vsel %vm6718, %v6838, 0.0
    %6840 = vadd.xlane.f32.xlu0 %v6839
    %v6841 = vpop.xlane.xlu0 %6840
    %v6842 = vadd.f32 %v6841, 1e-07
    %v6843 = vrsqrt.pop %v6842
    %v6844 = vmul.f32 %v6837, %v6843
    %v6845 = vmul.f32 %v6805, %v6812
    %v6846 = vmul.f32 %v6845, %v6175
    %v6847 = vsel %vm6718, %v6846, 0.0
    %v6848 = vrot.slane %v6847, 4
    %v6849 = vadd.f32 %v6847, %v6848
    %v6850 = vrot.slane %v6849, 2
    %v6851 = vadd.f32 %v6849, %v6850
    %v6852 = vrot.slane %v6851, 1
    %v6853 = vadd.f32 %v6851, %v6852
    %v6854 = vmul.f32 %v6853, %v6853
    %v6855 = vsel %vm6718, %v6854, 0.0
    %6856 = vadd.xlane.f32.xlu0 %v6855
    %v6857 = vpop.xlane.xlu0 %6856
    %v6858 = vadd.f32 %v6857, 1e-07
    %v6859 = vrsqrt.pop %v6858
    %v6860 = vmul.f32 %v6853, %v6859
    %v6861 = vmul.f32 %v6808, %v6812
    %v6862 = vmul.f32 %v6861, %v6708
    %v6863 = vsel %vm6718, %v6862, 0.0
    %v6864 = vrot.slane %v6863, 4
    %v6865 = vadd.f32 %v6863, %v6864
    %v6866 = vrot.slane %v6865, 2
    %v6867 = vadd.f32 %v6865, %v6866
    %v6868 = vrot.slane %v6867, 1
    %v6869 = vadd.f32 %v6867, %v6868
    %v6870 = vmul.f32 %v6869, %v6869
    %v6871 = vsel %vm6718, %v6870, 0.0
    %6872 = vadd.xlane.f32.xlu0 %v6871
    %v6873 = vpop.xlane.xlu0 %6872
    %v6874 = vadd.f32 %v6873, 1e-07
    %v6875 = vrsqrt.pop %v6874
    %v6876 = vmul.f32 %v6869, %v6875
    %v6877 = vmul.f32 %v6828, %v5109
    %v6878 = vsel %vm6718, %v6877, 0.0
    %6879 = vadd.xlane.f32.xlu0 %v6878
    %v6880 = vpop.xlane.xlu0 %6879
    %v6881 = vmul.f32 %v6844, %v5642
    %v6882 = vsel %vm6718, %v6881, 0.0
    %6883 = vadd.xlane.f32.xlu0 %v6882
    %v6884 = vpop.xlane.xlu0 %6883
    %v6885 = vmul.f32 %v6860, %v6175
    %v6886 = vsel %vm6718, %v6885, 0.0
    %6887 = vadd.xlane.f32.xlu0 %v6886
    %v6888 = vpop.xlane.xlu0 %6887
    %v6889 = vmul.f32 %v6876, %v6708
    %v6890 = vsel %vm6718, %v6889, 0.0
    %6891 = vadd.xlane.f32.xlu0 %v6890
    %v6892 = vpop.xlane.xlu0 %6891
    %v6893 = vmax.f32 %v6880, %v6884
    %v6894 = vmax.f32 %v6893, %v6888
    %v6895 = vmax.f32 %v6894, %v6892
    %v6896 = vsub.f32 %v6880, %v6895
    %v6897 = vmul.f32 %v6896, 1.442695
    %v6898 = vpow.pop %v6897
    %v6899 = vsub.f32 %v6884, %v6895
    %v6900 = vmul.f32 %v6899, 1.442695
    %v6901 = vpow.pop %v6900
    %v6902 = vsub.f32 %v6888, %v6895
    %v6903 = vmul.f32 %v6902, 1.442695
    %v6904 = vpow.pop %v6903
    %v6905 = vsub.f32 %v6892, %v6895
    %v6906 = vmul.f32 %v6905, 1.442695
    %v6907 = vpow.pop %v6906
    %v6908 = vadd.f32 %v6898, %v6901
    %v6909 = vadd.f32 %v6908, %v6904
    %v6910 = vadd.f32 %v6909, %v6907
    %v6911 = vrcp.pop %v6910
    %v6912 = vmul.f32 %v6898, %v6911
    %v6913 = vmul.f32 %v6912, %v5109
    %v6914 = vsel %vm6718, %v6913, 0.0
    %v6915 = vrot.slane %v6914, 4
    %v6916 = vadd.f32 %v6914, %v6915
    %v6917 = vrot.slane %v6916, 2
    %v6918 = vadd.f32 %v6916, %v6917
    %v6919 = vrot.slane %v6918, 1
    %v6920 = vadd.f32 %v6918, %v6919
    %v6921 = vmul.f32 %v6920, %v6920
    %v6922 = vsel %vm6718, %v6921, 0.0
    %6923 = vadd.xlane.f32.xlu0 %v6922
    %v6924 = vpop.xlane.xlu0 %6923
    %v6925 = vadd.f32 %v6924, 1e-07
    %v6926 = vrsqrt.pop %v6925
    %v6927 = vmul.f32 %v6920, %v6926
    %v6928 = vmul.f32 %v6901, %v6911
    %v6929 = vmul.f32 %v6928, %v5642
    %v6930 = vsel %vm6718, %v6929, 0.0
    %v6931 = vrot.slane %v6930, 4
    %v6932 = vadd.f32 %v6930, %v6931
    %v6933 = vrot.slane %v6932, 2
    %v6934 = vadd.f32 %v6932, %v6933
    %v6935 = vrot.slane %v6934, 1
    %v6936 = vadd.f32 %v6934, %v6935
    %v6937 = vmul.f32 %v6936, %v6936
    %v6938 = vsel %vm6718, %v6937, 0.0
    %6939 = vadd.xlane.f32.xlu0 %v6938
    %v6940 = vpop.xlane.xlu0 %6939
    %v6941 = vadd.f32 %v6940, 1e-07
    %v6942 = vrsqrt.pop %v6941
    %v6943 = vmul.f32 %v6936, %v6942
    %v6944 = vmul.f32 %v6904, %v6911
    %v6945 = vmul.f32 %v6944, %v6175
    %v6946 = vsel %vm6718, %v6945, 0.0
    %v6947 = vrot.slane %v6946, 4
    %v6948 = vadd.f32 %v6946, %v6947
    %v6949 = vrot.slane %v6948, 2
    %v6950 = vadd.f32 %v6948, %v6949
    %v6951 = vrot.slane %v6950, 1
    %v6952 = vadd.f32 %v6950, %v6951
    %v6953 = vmul.f32 %v6952, %v6952
    %v6954 = vsel %vm6718, %v6953, 0.0
    %6955 = vadd.xlane.f32.xlu0 %v6954
    %v6956 = vpop.xlane.xlu0 %6955
    %v6957 = vadd.f32 %v6956, 1e-07
    %v6958 = vrsqrt.pop %v6957
    %v6959 = vmul.f32 %v6952, %v6958
    %v6960 = vmul.f32 %v6907, %v6911
    %v6961 = vmul.f32 %v6960, %v6708
    %v6962 = vsel %vm6718, %v6961, 0.0
    %v6963 = vrot.slane %v6962, 4
    %v6964 = vadd.f32 %v6962, %v6963
    %v6965 = vrot.slane %v6964, 2
    %v6966 = vadd.f32 %v6964, %v6965
    %v6967 = vrot.slane %v6966, 1
    %v6968 = vadd.f32 %v6966, %v6967
    %v6969 = vmul.f32 %v6968, %v6968
    %v6970 = vsel %vm6718, %v6969, 0.0
    %6971 = vadd.xlane.f32.xlu0 %v6970
    %v6972 = vpop.xlane.xlu0 %6971
    %v6973 = vadd.f32 %v6972, 1e-07
    %v6974 = vrsqrt.pop %v6973
    %v6975 = vmul.f32 %v6968, %v6974
    %v6976 = vmul.f32 %v5115, 0.25
    %v6977 = vsel %vm6718, %v6976, 0.0
    %v6978 = vrot.slane %v6977, 4
    %v6979 = vadd.f32 %v6977, %v6978
    %v6980 = vrot.slane %v6979, 2
    %v6981 = vadd.f32 %v6979, %v6980
    %v6982 = vrot.slane %v6981, 1
    %v6983 = vadd.f32 %v6981, %v6982
    %v6984 = vmul.f32 %v6983, %v6983
    %v6985 = vsel %vm6718, %v6984, 0.0
    %6986 = vadd.xlane.f32.xlu0 %v6985
    %v6987 = vpop.xlane.xlu0 %6986
    %v6988 = vadd.f32 %v6987, 1e-07
    %v6989 = vrsqrt.pop %v6988
    %v6990 = vmul.f32 %v6983, %v6989
    %v6991 = vmul.f32 %v5648, 0.25
    %v6992 = vsel %vm6718, %v6991, 0.0
    %v6993 = vrot.slane %v6992, 4
    %v6994 = vadd.f32 %v6992, %v6993
    %v6995 = vrot.slane %v6994, 2
    %v6996 = vadd.f32 %v6994, %v6995
    %v6997 = vrot.slane %v6996, 1
    %v6998 = vadd.f32 %v6996, %v6997
    %v6999 = vmul.f32 %v6998, %v6998
    %v7000 = vsel %vm6718, %v6999, 0.0
    %7001 = vadd.xlane.f32.xlu0 %v7000
    %v7002 = vpop.xlane.xlu0 %7001
    %v7003 = vadd.f32 %v7002, 1e-07
    %v7004 = vrsqrt.pop %v7003
    %v7005 = vmul.f32 %v6998, %v7004
    %v7006 = vmul.f32 %v6181, 0.25
    %v7007 = vsel %vm6718, %v7006, 0.0
    %v7008 = vrot.slane %v7007, 4
    %v7009 = vadd.f32 %v7007, %v7008
    %v7010 = vrot.slane %v7009, 2
    %v7011 = vadd.f32 %v7009, %v7010
    %v7012 = vrot.slane %v7011, 1
    %v7013 = vadd.f32 %v7011, %v7012
    %v7014 = vmul.f32 %v7013, %v7013
    %v7015 = vsel %vm6718, %v7014, 0.0
    %7016 = vadd.xlane.f32.xlu0 %v7015
    %v7017 = vpop.xlane.xlu0 %7016
    %v7018 = vadd.f32 %v7017, 1e-07
    %v7019 = vrsqrt.pop %v7018
    %v7020 = vmul.f32 %v7013, %v7019
    %v7021 = vmul.f32 %v6714, 0.25
    %v7022 = vsel %vm6718, %v7021, 0.0
    %v7023 = vrot.slane %v7022, 4
    %v7024 = vadd.f32 %v7022, %v7023
    %v7025 = vrot.slane %v7024, 2
    %v7026 = vadd.f32 %v7024, %v7025
    %v7027 = vrot.slane %v7026, 1
    %v7028 = vadd.f32 %v7026, %v7027
    %v7029 = vmul.f32 %v7028, %v7028
    %v7030 = vsel %vm6718, %v7029, 0.0
    %7031 = vadd.xlane.f32.xlu0 %v7030
    %v7032 = vpop.xlane.xlu0 %7031
    %v7033 = vadd.f32 %v7032, 1e-07
    %v7034 = vrsqrt.pop %v7033
    %v7035 = vmul.f32 %v7028, %v7034
    %v7036 = vmul.f32 %v6990, %v5115
    %v7037 = vsel %vm6718, %v7036, 0.0
    %7038 = vadd.xlane.f32.xlu0 %v7037
    %v7039 = vpop.xlane.xlu0 %7038
    %v7040 = vmul.f32 %v7005, %v5648
    %v7041 = vsel %vm6718, %v7040, 0.0
    %7042 = vadd.xlane.f32.xlu0 %v7041
    %v7043 = vpop.xlane.xlu0 %7042
    %v7044 = vmul.f32 %v7020, %v6181
    %v7045 = vsel %vm6718, %v7044, 0.0
    %7046 = vadd.xlane.f32.xlu0 %v7045
    %v7047 = vpop.xlane.xlu0 %7046
    %v7048 = vmul.f32 %v7035, %v6714
    %v7049 = vsel %vm6718, %v7048, 0.0
    %7050 = vadd.xlane.f32.xlu0 %v7049
    %v7051 = vpop.xlane.xlu0 %7050
    %v7052 = vmax.f32 %v7039, %v7043
    %v7053 = vmax.f32 %v7052, %v7047
    %v7054 = vmax.f32 %v7053, %v7051
    %v7055 = vsub.f32 %v7039, %v7054
    %v7056 = vmul.f32 %v7055, 1.442695
    %v7057 = vpow.pop %v7056
    %v7058 = vsub.f32 %v7043, %v7054
    %v7059 = vmul.f32 %v7058, 1.442695
    %v7060 = vpow.pop %v7059
    %v7061 = vsub.f32 %v7047, %v7054
    %v7062 = vmul.f32 %v7061, 1.442695
    %v7063 = vpow.pop %v7062
    %v7064 = vsub.f32 %v7051, %v7054
    %v7065 = vmul.f32 %v7064, 1.442695
    %v7066 = vpow.pop %v7065
    %v7067 = vadd.f32 %v7057, %v7060
    %v7068 = vadd.f32 %v7067, %v7063
    %v7069 = vadd.f32 %v7068, %v7066
    %v7070 = vrcp.pop %v7069
    %v7071 = vmul.f32 %v7057, %v7070
    %v7072 = vmul.f32 %v7071, %v5115
    %v7073 = vsel %vm6718, %v7072, 0.0
    %v7074 = vrot.slane %v7073, 4
    %v7075 = vadd.f32 %v7073, %v7074
    %v7076 = vrot.slane %v7075, 2
    %v7077 = vadd.f32 %v7075, %v7076
    %v7078 = vrot.slane %v7077, 1
    %v7079 = vadd.f32 %v7077, %v7078
    %v7080 = vmul.f32 %v7079, %v7079
    %v7081 = vsel %vm6718, %v7080, 0.0
    %7082 = vadd.xlane.f32.xlu0 %v7081
    %v7083 = vpop.xlane.xlu0 %7082
    %v7084 = vadd.f32 %v7083, 1e-07
    %v7085 = vrsqrt.pop %v7084
    %v7086 = vmul.f32 %v7079, %v7085
    %v7087 = vmul.f32 %v7060, %v7070
    %v7088 = vmul.f32 %v7087, %v5648
    %v7089 = vsel %vm6718, %v7088, 0.0
    %v7090 = vrot.slane %v7089, 4
    %v7091 = vadd.f32 %v7089, %v7090
    %v7092 = vrot.slane %v7091, 2
    %v7093 = vadd.f32 %v7091, %v7092
    %v7094 = vrot.slane %v7093, 1
    %v7095 = vadd.f32 %v7093, %v7094
    %v7096 = vmul.f32 %v7095, %v7095
    %v7097 = vsel %vm6718, %v7096, 0.0
    %7098 = vadd.xlane.f32.xlu0 %v7097
    %v7099 = vpop.xlane.xlu0 %7098
    %v7100 = vadd.f32 %v7099, 1e-07
    %v7101 = vrsqrt.pop %v7100
    %v7102 = vmul.f32 %v7095, %v7101
    %v7103 = vmul.f32 %v7063, %v7070
    %v7104 = vmul.f32 %v7103, %v6181
    %v7105 = vsel %vm6718, %v7104, 0.0
    %v7106 = vrot.slane %v7105, 4
    %v7107 = vadd.f32 %v7105, %v7106
    %v7108 = vrot.slane %v7107, 2
    %v7109 = vadd.f32 %v7107, %v7108
    %v7110 = vrot.slane %v7109, 1
    %v7111 = vadd.f32 %v7109, %v7110
    %v7112 = vmul.f32 %v7111, %v7111
    %v7113 = vsel %vm6718, %v7112, 0.0
    %7114 = vadd.xlane.f32.xlu0 %v7113
    %v7115 = vpop.xlane.xlu0 %7114
    %v7116 = vadd.f32 %v7115, 1e-07
    %v7117 = vrsqrt.pop %v7116
    %v7118 = vmul.f32 %v7111, %v7117
    %v7119 = vmul.f32 %v7066, %v7070
    %v7120 = vmul.f32 %v7119, %v6714
    %v7121 = vsel %vm6718, %v7120, 0.0
    %v7122 = vrot.slane %v7121, 4
    %v7123 = vadd.f32 %v7121, %v7122
    %v7124 = vrot.slane %v7123, 2
    %v7125 = vadd.f32 %v7123, %v7124
    %v7126 = vrot.slane %v7125, 1
    %v7127 = vadd.f32 %v7125, %v7126
    %v7128 = vmul.f32 %v7127, %v7127
    %v7129 = vsel %vm6718, %v7128, 0.0
    %7130 = vadd.xlane.f32.xlu0 %v7129
    %v7131 = vpop.xlane.xlu0 %7130
    %v7132 = vadd.f32 %v7131, 1e-07
    %v7133 = vrsqrt.pop %v7132
    %v7134 = vmul.f32 %v7127, %v7133
    %v7135 = vmul.f32 %v7086, %v5115
    %v7136 = vsel %vm6718, %v7135, 0.0
    %7137 = vadd.xlane.f32.xlu0 %v7136
    %v7138 = vpop.xlane.xlu0 %7137
    %v7139 = vmul.f32 %v7102, %v5648
    %v7140 = vsel %vm6718, %v7139, 0.0
    %7141 = vadd.xlane.f32.xlu0 %v7140
    %v7142 = vpop.xlane.xlu0 %7141
    %v7143 = vmul.f32 %v7118, %v6181
    %v7144 = vsel %vm6718, %v7143, 0.0
    %7145 = vadd.xlane.f32.xlu0 %v7144
    %v7146 = vpop.xlane.xlu0 %7145
    %v7147 = vmul.f32 %v7134, %v6714
    %v7148 = vsel %vm6718, %v7147, 0.0
    %7149 = vadd.xlane.f32.xlu0 %v7148
    %v7150 = vpop.xlane.xlu0 %7149
    %v7151 = vmax.f32 %v7138, %v7142
    %v7152 = vmax.f32 %v7151, %v7146
    %v7153 = vmax.f32 %v7152, %v7150
    %v7154 = vsub.f32 %v7138, %v7153
    %v7155 = vmul.f32 %v7154, 1.442695
    %v7156 = vpow.pop %v7155
    %v7157 = vsub.f32 %v7142, %v7153
    %v7158 = vmul.f32 %v7157, 1.442695
    %v7159 = vpow.pop %v7158
    %v7160 = vsub.f32 %v7146, %v7153
    %v7161 = vmul.f32 %v7160, 1.442695
    %v7162 = vpow.pop %v7161
    %v7163 = vsub.f32 %v7150, %v7153
    %v7164 = vmul.f32 %v7163, 1.442695
    %v7165 = vpow.pop %v7164
    %v7166 = vadd.f32 %v7156, %v7159
    %v7167 = vadd.f32 %v7166, %v7162
    %v7168 = vadd.f32 %v7167, %v7165
    %v7169 = vrcp.pop %v7168
    %v7170 = vmul.f32 %v7156, %v7169
    %v7171 = vmul.f32 %v7170, %v5115
    %v7172 = vsel %vm6718, %v7171, 0.0
    %v7173 = vrot.slane %v7172, 4
    %v7174 = vadd.f32 %v7172, %v7173
    %v7175 = vrot.slane %v7174, 2
    %v7176 = vadd.f32 %v7174, %v7175
    %v7177 = vrot.slane %v7176, 1
    %v7178 = vadd.f32 %v7176, %v7177
    %v7179 = vmul.f32 %v7178, %v7178
    %v7180 = vsel %vm6718, %v7179, 0.0
    %7181 = vadd.xlane.f32.xlu0 %v7180
    %v7182 = vpop.xlane.xlu0 %7181
    %v7183 = vadd.f32 %v7182, 1e-07
    %v7184 = vrsqrt.pop %v7183
    %v7185 = vmul.f32 %v7178, %v7184
    %v7186 = vmul.f32 %v7159, %v7169
    %v7187 = vmul.f32 %v7186, %v5648
    %v7188 = vsel %vm6718, %v7187, 0.0
    %v7189 = vrot.slane %v7188, 4
    %v7190 = vadd.f32 %v7188, %v7189
    %v7191 = vrot.slane %v7190, 2
    %v7192 = vadd.f32 %v7190, %v7191
    %v7193 = vrot.slane %v7192, 1
    %v7194 = vadd.f32 %v7192, %v7193
    %v7195 = vmul.f32 %v7194, %v7194
    %v7196 = vsel %vm6718, %v7195, 0.0
    %7197 = vadd.xlane.f32.xlu0 %v7196
    %v7198 = vpop.xlane.xlu0 %7197
    %v7199 = vadd.f32 %v7198, 1e-07
    %v7200 = vrsqrt.pop %v7199
    %v7201 = vmul.f32 %v7194, %v7200
    %v7202 = vmul.f32 %v7162, %v7169
    %v7203 = vmul.f32 %v7202, %v6181
    %v7204 = vsel %vm6718, %v7203, 0.0
    %v7205 = vrot.slane %v7204, 4
    %v7206 = vadd.f32 %v7204, %v7205
    %v7207 = vrot.slane %v7206, 2
    %v7208 = vadd.f32 %v7206, %v7207
    %v7209 = vrot.slane %v7208, 1
    %v7210 = vadd.f32 %v7208, %v7209
    %v7211 = vmul.f32 %v7210, %v7210
    %v7212 = vsel %vm6718, %v7211, 0.0
    %7213 = vadd.xlane.f32.xlu0 %v7212
    %v7214 = vpop.xlane.xlu0 %7213
    %v7215 = vadd.f32 %v7214, 1e-07
    %v7216 = vrsqrt.pop %v7215
    %v7217 = vmul.f32 %v7210, %v7216
    %v7218 = vmul.f32 %v7165, %v7169
    %v7219 = vmul.f32 %v7218, %v6714
    %v7220 = vsel %vm6718, %v7219, 0.0
    %v7221 = vrot.slane %v7220, 4
    %v7222 = vadd.f32 %v7220, %v7221
    %v7223 = vrot.slane %v7222, 2
    %v7224 = vadd.f32 %v7222, %v7223
    %v7225 = vrot.slane %v7224, 1
    %v7226 = vadd.f32 %v7224, %v7225
    %v7227 = vmul.f32 %v7226, %v7226
    %v7228 = vsel %vm6718, %v7227, 0.0
    %7229 = vadd.xlane.f32.xlu0 %v7228
    %v7230 = vpop.xlane.xlu0 %7229
    %v7231 = vadd.f32 %v7230, 1e-07
    %v7232 = vrsqrt.pop %v7231
    %v7233 = vmul.f32 %v7226, %v7232
    %7235 = vrot.lane.b32.xlu0 %v6943, 8
    %v7236 = vpop.permute.xlu0 %7235
    %7239 = vrot.lane.b32.xlu0 %v6959, 16
    %v7240 = vpop.permute.xlu0 %7239
    %7243 = vrot.lane.b32.xlu0 %v6975, 24
    %v7244 = vpop.permute.xlu0 %7243
    %v7246 = vsel %vm6718, %v6927, %v7236
    %v7247 = vsel %vm1145, %v7246, %v7240
    %vm7248 = vcmask 195584
    %v7249 = vsel %vm7248, %v7247, %v7244
    %7251 = vrot.lane.b32.xlu0 %v7201, 8
    %v7252 = vpop.permute.xlu0 %7251
    %7255 = vrot.lane.b32.xlu0 %v7217, 16
    %v7256 = vpop.permute.xlu0 %7255
    %7259 = vrot.lane.b32.xlu0 %v7233, 24
    %v7260 = vpop.permute.xlu0 %7259
    %v7262 = vsel %vm6718, %v7185, %v7252
    %v7263 = vsel %vm1145, %v7262, %v7256
    %v7264 = vsel %vm7248, %v7263, %v7260
    %v7266 = vrot.slane %v7264, 7
    %vm7268 = vcmask 1040384
    %v7269 = vsel %vm7268, %v7249, %v7266
    %v7270 = vld [vmem:[%s9] sm:$0xff]
    %v7271 = vld [vmem:[%s9 + $0x8] sm:$0xff]
    %v7272 = vld [vmem:[%s9 + $0x10] sm:$0xff]
    %v7273 = vld [vmem:[%s9 + $0x18] sm:$0xff]
    %v7274 = vld [vmem:[%s10] sm:$0x1]
    %v7276 = vlaneseq
    %v7277 = vshrl.u32 %v7276, 7
    %v7278 = vsub.s32 0, %v7277
    %v7279 = vrot.slane %v7274, %v7278
    %v7282 = vsel %vm649, %v7269, 0
    %7284 = vmatprep.subr.mxu0 0.0
    %7285 = vmatpush1.msra.mxu0 0.0
    %7286 = vmatprep.subr.mxu0 0.0
    %7287 = vmatpush1.msra.mxu0 0.0
    %7288 = vmatprep.subr.mxu0 0.0
    %7289 = vmatpush1.msra.mxu0 0.0
    %7290 = vmatprep.subr.mxu0 0.0
    %7291 = vmatpush1.msra.mxu0 0.0
    %7292 = vmatprep.subr.mxu0 0.0
    %7293 = vmatpush1.msra.mxu0 0.0
    %7294 = vmatprep.subr.mxu0 0.0
    %7295 = vmatpush1.msra.mxu0 0.0
    %7296 = vmatprep.subr.mxu0 0.0
    %7297 = vmatpush1.msra.mxu0 0.0
    %7298 = vmatprep.subr.mxu0 0.0
    %7299 = vmatpush1.msra.mxu0 0.0
    %7300 = vmatprep.subr.mxu0 0.0
    %7301 = vmatpush1.msra.mxu0 0.0
    %7302 = vmatprep.subr.mxu0 0.0
    %7303 = vmatpush1.msra.mxu0 0.0
    %7304 = vmatprep.subr.mxu0 0.0
    %7305 = vmatpush1.msra.mxu0 0.0
    %7306 = vmatprep.subr.mxu0 0.0
    %7307 = vmatpush1.msra.mxu0 0.0
    %7308 = vmatprep.subr.mxu0 0.0
    %v7309 = vand.u32 %v7273, 4294901760
    %7310 = vmatpush1.msra.mxu0 %v7309
    %7311 = vmatprep.subr.mxu0 0.0
    %v7312 = vand.u32 %v7272, 4294901760
    %7313 = vmatpush1.msra.mxu0 %v7312
    %7314 = vmatprep.subr.mxu0 0.0
    %v7315 = vand.u32 %v7271, 4294901760
    %7316 = vmatpush1.msra.mxu0 %v7315
    %7317 = vmatprep.subr.mxu0 0.0
    %v7318 = vand.u32 %v7270, 4294901760
    %7319 = vmatpush1.msra.mxu0 %v7318
    %7320 = vmatprep.subr.mxu0 0.0
    %7321 = vmatpush2.msra.mxu0 0.0
    %7322 = vmatprep.subr.mxu0 0.0
    %7323 = vmatpush2.msra.mxu0 0.0
    %7324 = vmatprep.subr.mxu0 0.0
    %7325 = vmatpush2.msra.mxu0 0.0
    %7326 = vmatprep.subr.mxu0 0.0
    %7327 = vmatpush2.msra.mxu0 0.0
    %7328 = vmatprep.subr.mxu0 0.0
    %7329 = vmatpush2.msra.mxu0 0.0
    %7330 = vmatprep.subr.mxu0 0.0
    %7331 = vmatpush2.msra.mxu0 0.0
    %7332 = vmatprep.subr.mxu0 0.0
    %7333 = vmatpush2.msra.mxu0 0.0
    %7334 = vmatprep.subr.mxu0 0.0
    %7335 = vmatpush2.msra.mxu0 0.0
    %7336 = vmatprep.subr.mxu0 0.0
    %7337 = vmatpush2.msra.mxu0 0.0
    %7338 = vmatprep.subr.mxu0 0.0
    %7339 = vmatpush2.msra.mxu0 0.0
    %7340 = vmatprep.subr.mxu0 0.0
    %7341 = vmatpush2.msra.mxu0 0.0
    %7342 = vmatprep.subr.mxu0 0.0
    %7343 = vmatpush2.msra.mxu0 0.0
    %7344 = vmatprep.subr.mxu0 0.0
    %7345 = vmatpush2.msra.mxu0 0.0
    %7346 = vmatprep.subr.mxu0 0.0
    %7347 = vmatpush2.msra.mxu0 0.0
    %7348 = vmatprep.subr.mxu0 0.0
    %7349 = vmatpush2.msra.mxu0 0.0
    %7350 = vmatprep.subr.mxu0 0.0
    %7351 = vmatpush2.msra.mxu0 0.0
    %7352 = vmatprep.mubr.f32.mxu0 0.0
    %v7353 = vand.u32 %v7282, 4294901760
    %v7354 = vsub.f32 %v7282, %v7353
    %v7355 = vand.u32 %v7354, 4294901760
    %v7356 = vsub.f32 %v7354, %v7355
    %v7357 = vand.u32 %v7356, 4294901760
    %7358 = vmatmul.mubr.f32.gmra.mxu0 %v7357
    %v7359 = vpop.f32.mrf.mxu0
    %v7360 = vadd.f32 %v7279, %v7359
    %v7361 = vpop.f32.mrf.mxu0
    %7362 = vdwg.mxu0
    %7363 = vmatprep.subr.mxu0 0.0
    %7364 = vmatpush1.msra.mxu0 0.0
    %7365 = vmatprep.subr.mxu0 0.0
    %7366 = vmatpush1.msra.mxu0 0.0
    %7367 = vmatprep.subr.mxu0 0.0
    %7368 = vmatpush1.msra.mxu0 0.0
    %7369 = vmatprep.subr.mxu0 0.0
    %7370 = vmatpush1.msra.mxu0 0.0
    %7371 = vmatprep.subr.mxu0 0.0
    %7372 = vmatpush1.msra.mxu0 0.0
    %7373 = vmatprep.subr.mxu0 0.0
    %7374 = vmatpush1.msra.mxu0 0.0
    %7375 = vmatprep.subr.mxu0 0.0
    %7376 = vmatpush1.msra.mxu0 0.0
    %7377 = vmatprep.subr.mxu0 0.0
    %7378 = vmatpush1.msra.mxu0 0.0
    %7379 = vmatprep.subr.mxu0 0.0
    %7380 = vmatpush1.msra.mxu0 0.0
    %7381 = vmatprep.subr.mxu0 0.0
    %7382 = vmatpush1.msra.mxu0 0.0
    %7383 = vmatprep.subr.mxu0 0.0
    %7384 = vmatpush1.msra.mxu0 0.0
    %7385 = vmatprep.subr.mxu0 0.0
    %7386 = vmatpush1.msra.mxu0 0.0
    %7387 = vmatprep.subr.mxu0 0.0
    %v7388 = vand.u32 %v7273, 4294901760
    %v7389 = vsub.f32 %v7273, %v7388
    %v7390 = vand.u32 %v7389, 4294901760
    %v7391 = vsub.f32 %v7389, %v7390
    %v7392 = vand.u32 %v7391, 4294901760
    %7393 = vmatpush1.msra.mxu0 %v7392
    %7394 = vmatprep.subr.mxu0 0.0
    %v7395 = vand.u32 %v7272, 4294901760
    %v7396 = vsub.f32 %v7272, %v7395
    %v7397 = vand.u32 %v7396, 4294901760
    %v7398 = vsub.f32 %v7396, %v7397
    %v7399 = vand.u32 %v7398, 4294901760
    %7400 = vmatpush1.msra.mxu0 %v7399
    %7401 = vmatprep.subr.mxu0 0.0
    %v7402 = vand.u32 %v7271, 4294901760
    %v7403 = vsub.f32 %v7271, %v7402
    %v7404 = vand.u32 %v7403, 4294901760
    %v7405 = vsub.f32 %v7403, %v7404
    %v7406 = vand.u32 %v7405, 4294901760
    %7407 = vmatpush1.msra.mxu0 %v7406
    %7408 = vmatprep.subr.mxu0 0.0
    %v7409 = vand.u32 %v7270, 4294901760
    %v7410 = vsub.f32 %v7270, %v7409
    %v7411 = vand.u32 %v7410, 4294901760
    %v7412 = vsub.f32 %v7410, %v7411
    %v7413 = vand.u32 %v7412, 4294901760
    %7414 = vmatpush1.msra.mxu0 %v7413
    %7415 = vmatprep.subr.mxu0 0.0
    %7416 = vmatpush2.msra.mxu0 0.0
    %7417 = vmatprep.subr.mxu0 0.0
    %7418 = vmatpush2.msra.mxu0 0.0
    %7419 = vmatprep.subr.mxu0 0.0
    %7420 = vmatpush2.msra.mxu0 0.0
    %7421 = vmatprep.subr.mxu0 0.0
    %7422 = vmatpush2.msra.mxu0 0.0
    %7423 = vmatprep.subr.mxu0 0.0
    %7424 = vmatpush2.msra.mxu0 0.0
    %7425 = vmatprep.subr.mxu0 0.0
    %7426 = vmatpush2.msra.mxu0 0.0
    %7427 = vmatprep.subr.mxu0 0.0
    %7428 = vmatpush2.msra.mxu0 0.0
    %7429 = vmatprep.subr.mxu0 0.0
    %7430 = vmatpush2.msra.mxu0 0.0
    %7431 = vmatprep.subr.mxu0 0.0
    %7432 = vmatpush2.msra.mxu0 0.0
    %7433 = vmatprep.subr.mxu0 0.0
    %7434 = vmatpush2.msra.mxu0 0.0
    %7435 = vmatprep.subr.mxu0 0.0
    %7436 = vmatpush2.msra.mxu0 0.0
    %7437 = vmatprep.subr.mxu0 0.0
    %7438 = vmatpush2.msra.mxu0 0.0
    %7439 = vmatprep.subr.mxu0 0.0
    %7440 = vmatpush2.msra.mxu0 0.0
    %7441 = vmatprep.subr.mxu0 0.0
    %7442 = vmatpush2.msra.mxu0 0.0
    %7443 = vmatprep.subr.mxu0 0.0
    %7444 = vmatpush2.msra.mxu0 0.0
    %7445 = vmatprep.subr.mxu0 0.0
    %7446 = vmatpush2.msra.mxu0 0.0
    %7447 = vmatprep.mubr.f32.mxu0 0.0
    %v7448 = vand.u32 %v7282, 4294901760
    %7449 = vmatmul.mubr.f32.gmra.mxu0 %v7448
    %v7450 = vpop.f32.mrf.mxu0
    %v7451 = vadd.f32 %v7360, %v7450
    %v7452 = vpop.f32.mrf.mxu0
    %7453 = vdwg.mxu0
    %7454 = vmatprep.subr.mxu0 0.0
    %7455 = vmatpush1.msra.mxu0 0.0
    %7456 = vmatprep.subr.mxu0 0.0
    %7457 = vmatpush1.msra.mxu0 0.0
    %7458 = vmatprep.subr.mxu0 0.0
    %7459 = vmatpush1.msra.mxu0 0.0
    %7460 = vmatprep.subr.mxu0 0.0
    %7461 = vmatpush1.msra.mxu0 0.0
    %7462 = vmatprep.subr.mxu0 0.0
    %7463 = vmatpush1.msra.mxu0 0.0
    %7464 = vmatprep.subr.mxu0 0.0
    %7465 = vmatpush1.msra.mxu0 0.0
    %7466 = vmatprep.subr.mxu0 0.0
    %7467 = vmatpush1.msra.mxu0 0.0
    %7468 = vmatprep.subr.mxu0 0.0
    %7469 = vmatpush1.msra.mxu0 0.0
    %7470 = vmatprep.subr.mxu0 0.0
    %7471 = vmatpush1.msra.mxu0 0.0
    %7472 = vmatprep.subr.mxu0 0.0
    %7473 = vmatpush1.msra.mxu0 0.0
    %7474 = vmatprep.subr.mxu0 0.0
    %7475 = vmatpush1.msra.mxu0 0.0
    %7476 = vmatprep.subr.mxu0 0.0
    %7477 = vmatpush1.msra.mxu0 0.0
    %7478 = vmatprep.subr.mxu0 0.0
    %v7479 = vand.u32 %v7273, 4294901760
    %v7480 = vsub.f32 %v7273, %v7479
    %7481 = vmatpush1.msra.mxu0 %v7480
    %7482 = vmatprep.subr.mxu0 0.0
    %v7483 = vand.u32 %v7272, 4294901760
    %v7484 = vsub.f32 %v7272, %v7483
    %7485 = vmatpush1.msra.mxu0 %v7484
    %7486 = vmatprep.subr.mxu0 0.0
    %v7487 = vand.u32 %v7271, 4294901760
    %v7488 = vsub.f32 %v7271, %v7487
    %7489 = vmatpush1.msra.mxu0 %v7488
    %7490 = vmatprep.subr.mxu0 0.0
    %v7491 = vand.u32 %v7270, 4294901760
    %v7492 = vsub.f32 %v7270, %v7491
    %7493 = vmatpush1.msra.mxu0 %v7492
    %7494 = vmatprep.subr.mxu0 0.0
    %7495 = vmatpush2.msra.mxu0 0.0
    %7496 = vmatprep.subr.mxu0 0.0
    %7497 = vmatpush2.msra.mxu0 0.0
    %7498 = vmatprep.subr.mxu0 0.0
    %7499 = vmatpush2.msra.mxu0 0.0
    %7500 = vmatprep.subr.mxu0 0.0
    %7501 = vmatpush2.msra.mxu0 0.0
    %7502 = vmatprep.subr.mxu0 0.0
    %7503 = vmatpush2.msra.mxu0 0.0
    %7504 = vmatprep.subr.mxu0 0.0
    %7505 = vmatpush2.msra.mxu0 0.0
    %7506 = vmatprep.subr.mxu0 0.0
    %7507 = vmatpush2.msra.mxu0 0.0
    %7508 = vmatprep.subr.mxu0 0.0
    %7509 = vmatpush2.msra.mxu0 0.0
    %7510 = vmatprep.subr.mxu0 0.0
    %7511 = vmatpush2.msra.mxu0 0.0
    %7512 = vmatprep.subr.mxu0 0.0
    %7513 = vmatpush2.msra.mxu0 0.0
    %7514 = vmatprep.subr.mxu0 0.0
    %7515 = vmatpush2.msra.mxu0 0.0
    %7516 = vmatprep.subr.mxu0 0.0
    %7517 = vmatpush2.msra.mxu0 0.0
    %7518 = vmatprep.subr.mxu0 0.0
    %7519 = vmatpush2.msra.mxu0 0.0
    %7520 = vmatprep.subr.mxu0 0.0
    %7521 = vmatpush2.msra.mxu0 0.0
    %7522 = vmatprep.subr.mxu0 0.0
    %7523 = vmatpush2.msra.mxu0 0.0
    %7524 = vmatprep.subr.mxu0 0.0
    %7525 = vmatpush2.msra.mxu0 0.0
    %7526 = vmatprep.mubr.f32.mxu0 0.0
    %v7527 = vand.u32 %v7282, 4294901760
    %v7528 = vsub.f32 %v7282, %v7527
    %7529 = vmatmul.mubr.f32.gmra.mxu0 %v7528
    %v7530 = vpop.f32.mrf.mxu0
    %v7531 = vadd.f32 %v7451, %v7530
    %v7532 = vpop.f32.mrf.mxu0
    %7533 = vdwg.mxu0
    %7534 = vmatprep.subr.mxu0 0.0
    %7535 = vmatpush1.msra.mxu0 0.0
    %7536 = vmatprep.subr.mxu0 0.0
    %7537 = vmatpush1.msra.mxu0 0.0
    %7538 = vmatprep.subr.mxu0 0.0
    %7539 = vmatpush1.msra.mxu0 0.0
    %7540 = vmatprep.subr.mxu0 0.0
    %7541 = vmatpush1.msra.mxu0 0.0
    %7542 = vmatprep.subr.mxu0 0.0
    %7543 = vmatpush1.msra.mxu0 0.0
    %7544 = vmatprep.subr.mxu0 0.0
    %7545 = vmatpush1.msra.mxu0 0.0
    %7546 = vmatprep.subr.mxu0 0.0
    %7547 = vmatpush1.msra.mxu0 0.0
    %7548 = vmatprep.subr.mxu0 0.0
    %7549 = vmatpush1.msra.mxu0 0.0
    %7550 = vmatprep.subr.mxu0 0.0
    %7551 = vmatpush1.msra.mxu0 0.0
    %7552 = vmatprep.subr.mxu0 0.0
    %7553 = vmatpush1.msra.mxu0 0.0
    %7554 = vmatprep.subr.mxu0 0.0
    %7555 = vmatpush1.msra.mxu0 0.0
    %7556 = vmatprep.subr.mxu0 0.0
    %7557 = vmatpush1.msra.mxu0 0.0
    %7558 = vmatprep.subr.mxu0 0.0
    %v7559 = vand.u32 %v7273, 4294901760
    %7560 = vmatpush1.msra.mxu0 %v7559
    %7561 = vmatprep.subr.mxu0 0.0
    %v7562 = vand.u32 %v7272, 4294901760
    %7563 = vmatpush1.msra.mxu0 %v7562
    %7564 = vmatprep.subr.mxu0 0.0
    %v7565 = vand.u32 %v7271, 4294901760
    %7566 = vmatpush1.msra.mxu0 %v7565
    %7567 = vmatprep.subr.mxu0 0.0
    %v7568 = vand.u32 %v7270, 4294901760
    %7569 = vmatpush1.msra.mxu0 %v7568
    %7570 = vmatprep.subr.mxu0 0.0
    %7571 = vmatpush2.msra.mxu0 0.0
    %7572 = vmatprep.subr.mxu0 0.0
    %7573 = vmatpush2.msra.mxu0 0.0
    %7574 = vmatprep.subr.mxu0 0.0
    %7575 = vmatpush2.msra.mxu0 0.0
    %7576 = vmatprep.subr.mxu0 0.0
    %7577 = vmatpush2.msra.mxu0 0.0
    %7578 = vmatprep.subr.mxu0 0.0
    %7579 = vmatpush2.msra.mxu0 0.0
    %7580 = vmatprep.subr.mxu0 0.0
    %7581 = vmatpush2.msra.mxu0 0.0
    %7582 = vmatprep.subr.mxu0 0.0
    %7583 = vmatpush2.msra.mxu0 0.0
    %7584 = vmatprep.subr.mxu0 0.0
    %7585 = vmatpush2.msra.mxu0 0.0
    %7586 = vmatprep.subr.mxu0 0.0
    %7587 = vmatpush2.msra.mxu0 0.0
    %7588 = vmatprep.subr.mxu0 0.0
    %7589 = vmatpush2.msra.mxu0 0.0
    %7590 = vmatprep.subr.mxu0 0.0
    %7591 = vmatpush2.msra.mxu0 0.0
    %7592 = vmatprep.subr.mxu0 0.0
    %7593 = vmatpush2.msra.mxu0 0.0
    %7594 = vmatprep.subr.mxu0 0.0
    %7595 = vmatpush2.msra.mxu0 0.0
    %7596 = vmatprep.subr.mxu0 0.0
    %7597 = vmatpush2.msra.mxu0 0.0
    %7598 = vmatprep.subr.mxu0 0.0
    %7599 = vmatpush2.msra.mxu0 0.0
    %7600 = vmatprep.subr.mxu0 0.0
    %7601 = vmatpush2.msra.mxu0 0.0
    %7602 = vmatprep.mubr.f32.mxu0 0.0
    %v7603 = vand.u32 %v7282, 4294901760
    %v7604 = vsub.f32 %v7282, %v7603
    %v7605 = vand.u32 %v7604, 4294901760
    %7606 = vmatmul.mubr.f32.gmra.mxu0 %v7605
    %v7607 = vpop.f32.mrf.mxu0
    %v7608 = vadd.f32 %v7531, %v7607
    %v7609 = vpop.f32.mrf.mxu0
    %7610 = vdwg.mxu0
    %7611 = vmatprep.subr.mxu0 0.0
    %7612 = vmatpush1.msra.mxu0 0.0
    %7613 = vmatprep.subr.mxu0 0.0
    %7614 = vmatpush1.msra.mxu0 0.0
    %7615 = vmatprep.subr.mxu0 0.0
    %7616 = vmatpush1.msra.mxu0 0.0
    %7617 = vmatprep.subr.mxu0 0.0
    %7618 = vmatpush1.msra.mxu0 0.0
    %7619 = vmatprep.subr.mxu0 0.0
    %7620 = vmatpush1.msra.mxu0 0.0
    %7621 = vmatprep.subr.mxu0 0.0
    %7622 = vmatpush1.msra.mxu0 0.0
    %7623 = vmatprep.subr.mxu0 0.0
    %7624 = vmatpush1.msra.mxu0 0.0
    %7625 = vmatprep.subr.mxu0 0.0
    %7626 = vmatpush1.msra.mxu0 0.0
    %7627 = vmatprep.subr.mxu0 0.0
    %7628 = vmatpush1.msra.mxu0 0.0
    %7629 = vmatprep.subr.mxu0 0.0
    %7630 = vmatpush1.msra.mxu0 0.0
    %7631 = vmatprep.subr.mxu0 0.0
    %7632 = vmatpush1.msra.mxu0 0.0
    %7633 = vmatprep.subr.mxu0 0.0
    %7634 = vmatpush1.msra.mxu0 0.0
    %7635 = vmatprep.subr.mxu0 0.0
    %v7636 = vand.u32 %v7273, 4294901760
    %v7637 = vsub.f32 %v7273, %v7636
    %v7638 = vand.u32 %v7637, 4294901760
    %7639 = vmatpush1.msra.mxu0 %v7638
    %7640 = vmatprep.subr.mxu0 0.0
    %v7641 = vand.u32 %v7272, 4294901760
    %v7642 = vsub.f32 %v7272, %v7641
    %v7643 = vand.u32 %v7642, 4294901760
    %7644 = vmatpush1.msra.mxu0 %v7643
    %7645 = vmatprep.subr.mxu0 0.0
    %v7646 = vand.u32 %v7271, 4294901760
    %v7647 = vsub.f32 %v7271, %v7646
    %v7648 = vand.u32 %v7647, 4294901760
    %7649 = vmatpush1.msra.mxu0 %v7648
    %7650 = vmatprep.subr.mxu0 0.0
    %v7651 = vand.u32 %v7270, 4294901760
    %v7652 = vsub.f32 %v7270, %v7651
    %v7653 = vand.u32 %v7652, 4294901760
    %7654 = vmatpush1.msra.mxu0 %v7653
    %7655 = vmatprep.subr.mxu0 0.0
    %7656 = vmatpush2.msra.mxu0 0.0
    %7657 = vmatprep.subr.mxu0 0.0
    %7658 = vmatpush2.msra.mxu0 0.0
    %7659 = vmatprep.subr.mxu0 0.0
    %7660 = vmatpush2.msra.mxu0 0.0
    %7661 = vmatprep.subr.mxu0 0.0
    %7662 = vmatpush2.msra.mxu0 0.0
    %7663 = vmatprep.subr.mxu0 0.0
    %7664 = vmatpush2.msra.mxu0 0.0
    %7665 = vmatprep.subr.mxu0 0.0
    %7666 = vmatpush2.msra.mxu0 0.0
    %7667 = vmatprep.subr.mxu0 0.0
    %7668 = vmatpush2.msra.mxu0 0.0
    %7669 = vmatprep.subr.mxu0 0.0
    %7670 = vmatpush2.msra.mxu0 0.0
    %7671 = vmatprep.subr.mxu0 0.0
    %7672 = vmatpush2.msra.mxu0 0.0
    %7673 = vmatprep.subr.mxu0 0.0
    %7674 = vmatpush2.msra.mxu0 0.0
    %7675 = vmatprep.subr.mxu0 0.0
    %7676 = vmatpush2.msra.mxu0 0.0
    %7677 = vmatprep.subr.mxu0 0.0
    %7678 = vmatpush2.msra.mxu0 0.0
    %7679 = vmatprep.subr.mxu0 0.0
    %7680 = vmatpush2.msra.mxu0 0.0
    %7681 = vmatprep.subr.mxu0 0.0
    %7682 = vmatpush2.msra.mxu0 0.0
    %7683 = vmatprep.subr.mxu0 0.0
    %7684 = vmatpush2.msra.mxu0 0.0
    %7685 = vmatprep.subr.mxu0 0.0
    %7686 = vmatpush2.msra.mxu0 0.0
    %7687 = vmatprep.mubr.f32.mxu0 0.0
    %v7688 = vand.u32 %v7282, 4294901760
    %7689 = vmatmul.mubr.f32.gmra.mxu0 %v7688
    %v7690 = vpop.f32.mrf.mxu0
    %v7691 = vadd.f32 %v7608, %v7690
    %v7692 = vpop.f32.mrf.mxu0
    %7693 = vdwg.mxu0
    %7694 = vmatprep.subr.mxu0 0.0
    %7695 = vmatpush1.msra.mxu0 0.0
    %7696 = vmatprep.subr.mxu0 0.0
    %7697 = vmatpush1.msra.mxu0 0.0
    %7698 = vmatprep.subr.mxu0 0.0
    %7699 = vmatpush1.msra.mxu0 0.0
    %7700 = vmatprep.subr.mxu0 0.0
    %7701 = vmatpush1.msra.mxu0 0.0
    %7702 = vmatprep.subr.mxu0 0.0
    %7703 = vmatpush1.msra.mxu0 0.0
    %7704 = vmatprep.subr.mxu0 0.0
    %7705 = vmatpush1.msra.mxu0 0.0
    %7706 = vmatprep.subr.mxu0 0.0
    %7707 = vmatpush1.msra.mxu0 0.0
    %7708 = vmatprep.subr.mxu0 0.0
    %7709 = vmatpush1.msra.mxu0 0.0
    %7710 = vmatprep.subr.mxu0 0.0
    %7711 = vmatpush1.msra.mxu0 0.0
    %7712 = vmatprep.subr.mxu0 0.0
    %7713 = vmatpush1.msra.mxu0 0.0
    %7714 = vmatprep.subr.mxu0 0.0
    %7715 = vmatpush1.msra.mxu0 0.0
    %7716 = vmatprep.subr.mxu0 0.0
    %7717 = vmatpush1.msra.mxu0 0.0
    %7718 = vmatprep.subr.mxu0 0.0
    %v7719 = vand.u32 %v7273, 4294901760
    %7720 = vmatpush1.msra.mxu0 %v7719
    %7721 = vmatprep.subr.mxu0 0.0
    %v7722 = vand.u32 %v7272, 4294901760
    %7723 = vmatpush1.msra.mxu0 %v7722
    %7724 = vmatprep.subr.mxu0 0.0
    %v7725 = vand.u32 %v7271, 4294901760
    %7726 = vmatpush1.msra.mxu0 %v7725
    %7727 = vmatprep.subr.mxu0 0.0
    %v7728 = vand.u32 %v7270, 4294901760
    %7729 = vmatpush1.msra.mxu0 %v7728
    %7730 = vmatprep.subr.mxu0 0.0
    %7731 = vmatpush2.msra.mxu0 0.0
    %7732 = vmatprep.subr.mxu0 0.0
    %7733 = vmatpush2.msra.mxu0 0.0
    %7734 = vmatprep.subr.mxu0 0.0
    %7735 = vmatpush2.msra.mxu0 0.0
    %7736 = vmatprep.subr.mxu0 0.0
    %7737 = vmatpush2.msra.mxu0 0.0
    %7738 = vmatprep.subr.mxu0 0.0
    %7739 = vmatpush2.msra.mxu0 0.0
    %7740 = vmatprep.subr.mxu0 0.0
    %7741 = vmatpush2.msra.mxu0 0.0
    %7742 = vmatprep.subr.mxu0 0.0
    %7743 = vmatpush2.msra.mxu0 0.0
    %7744 = vmatprep.subr.mxu0 0.0
    %7745 = vmatpush2.msra.mxu0 0.0
    %7746 = vmatprep.subr.mxu0 0.0
    %7747 = vmatpush2.msra.mxu0 0.0
    %7748 = vmatprep.subr.mxu0 0.0
    %7749 = vmatpush2.msra.mxu0 0.0
    %7750 = vmatprep.subr.mxu0 0.0
    %7751 = vmatpush2.msra.mxu0 0.0
    %7752 = vmatprep.subr.mxu0 0.0
    %7753 = vmatpush2.msra.mxu0 0.0
    %7754 = vmatprep.subr.mxu0 0.0
    %7755 = vmatpush2.msra.mxu0 0.0
    %7756 = vmatprep.subr.mxu0 0.0
    %7757 = vmatpush2.msra.mxu0 0.0
    %7758 = vmatprep.subr.mxu0 0.0
    %7759 = vmatpush2.msra.mxu0 0.0
    %7760 = vmatprep.subr.mxu0 0.0
    %7761 = vmatpush2.msra.mxu0 0.0
    %7762 = vmatprep.mubr.f32.mxu0 0.0
    %v7763 = vand.u32 %v7282, 4294901760
    %7764 = vmatmul.mubr.f32.gmra.mxu0 %v7763
    %v7765 = vpop.f32.mrf.mxu0
    %v7766 = vadd.f32 %v7691, %v7765
    %v7767 = vpop.f32.mrf.mxu0
    %7768 = vdwg.mxu0
    %vm7769 = vcmask 9216
    %7770 = vst.msk [vmem:[#allocation2] sm:$0x3] %vm7769, %v7766
    // Predicated region
    $region46: #{model_forward.1} parent=1 // pred_check
      _
    $region47: #{model_forward.1} parent=1 // pred_check_branch
      %7772 = sbr.rel (0) target = $region49
    $region48: #{model_forward.1} parent=1 // pred_region
      %s7774 = ssub.s32 32, 32
      %7775 = vsyncadd [#allocation3], %s7774
      %s7777 = sshll.u32 [#allocation2], 4
      %s7778 = int_to_ptr.vmem [resolvable:$true] %s7777
      %7780 = dma.vmem_to_hbm [thread:$0]  %s7778, 32, %s11, [#allocation3]
    $region49: #{model_forward.1} parent=1 // pred_fallthru
      _
    // Predicated region
    $region50: #{model_forward.1} parent=1 // pred_check
      _
    $region51: #{model_forward.1} parent=1 // pred_check_branch
      %7782 = sbr.rel (0) target = $region53
    $region52: #{model_forward.1} parent=1 // pred_region
      %7783 = dma.done [#allocation3], 32
    $region53: #{model_forward.1} parent=1 // pred_fallthru
      _
    %7784 = vsyncpa [#allocation3], 1

</llo_original>
